<compile_context>
chip_gen: v5e
topology: v5e:2x2
jax: 0.10.0
libtpu: 0.0.40
codegen_flags: <defaults>
</compile_context>

<pallas_src>
import jax
import jax.numpy as jnp
from jax import lax
from jax.experimental import pallas as pl
from jax.experimental.pallas import tpu as pltpu

GUARD = 32          # zero guard lanes flanking the flattened padded grid
GRID1 = 30          # padded 28x28 grid  (block 1)
GRID2 = 16          # padded 14x14 grid  (block 2)


def _vmem():
    return pl.BlockSpec(memory_space=pltpu.MemorySpace.VMEM)


# ---------------------------------------------------------------------------
# The fused kernel
# ---------------------------------------------------------------------------
def _tinyvgg_kernel(x_ref, w1_ref, b1_ref, w2_ref, b2_ref, w3_ref, b3_ref,
                    w4_ref, b4_ref, mask1_ref, sel1_ref, mask2_ref,
                    wf_ref, bc_ref, out_ref, buf):
    h = w2_ref.shape[1]               # hidden channels
    n1 = mask1_ref.shape[1]           # B * 30 * 30
    n2 = mask2_ref.shape[1]           # B * 16 * 16
    batch = out_ref.shape[0]
    p1 = n1 // batch                  # 900
    p2 = n2 // batch                  # 256
    g = GUARD

    # Zero the guard bands once so every out-of-window tap reads a finite value.
    zg = jnp.zeros((h, g), jnp.float32)
    buf[:, 0:g] = zg
    buf[:, g + n1:g + n1 + g] = zg

    def conv3x3_relu(src_ref, n, wp, w_ref, b_ref):
        """3x3 'same' conv + bias + ReLU on the flat zero-padded grid.

        src_ref[:, g:g+n] holds a (Cin, n) activation with a zero border ring;
        interior outputs are exact, border outputs are garbage-but-finite and
        are either re-zeroed by the caller or never consumed downstream.
        """
        cin = src_ref.shape[0]
        acc = None
        tap = 0
        for dy in (-1, 0, 1):
            for dx in (-1, 0, 1):
                off = g + dy * wp + dx
                patch = src_ref[:, off:off + n]                  # (Cin, n)
                if cin == 1:
                    # Cin=1: outer product -> cheaper as VPU broadcast-FMAs.
                    contrib = w_ref[tap] * patch                 # (Cout,1)*(1,n)
                else:
                    contrib = jnp.dot(w_ref[tap], patch,
                                      preferred_element_type=jnp.float32)
                acc = contrib if acc is None else acc + contrib
                tap += 1
        return jnp.maximum(acc + b_ref[...], 0.0)

    def pool_window_max(n, wp):
        """Max over the 4 corners of every 2x2 window (still on the padded grid)."""
        t00 = buf[:, g:g + n]
        t01 = buf[:, g + 1:g + 1 + n]
        t10 = buf[:, g + wp:g + wp + n]
        t11 = buf[:, g + wp + 1:g + wp + 1 + n]
        return jnp.maximum(jnp.maximum(t00, t01), jnp.maximum(t10, t11))

    # ---- block 1 : conv-relu, conv-relu, maxpool(2) on the 30x30 grid ----
    buf[:, g:g + n1] = conv3x3_relu(x_ref, n1, GRID1, w1_ref, b1_ref) * mask1_ref[...]
    buf[:, g:g + n1] = conv3x3_relu(buf, n1, GRID1, w2_ref, b2_ref)
    buf[:, g:g + n1] = pool_window_max(n1, GRID1)
    # stride-2 decimation + re-padding onto the 16x16 grid (selection matmul)
    sel1 = sel1_ref[...]
    for bi in range(batch):
        buf[:, g + bi * p2:g + (bi + 1) * p2] = jnp.dot(
            buf[:, g + bi * p1:g + bi * p1 + p1], sel1,
            preferred_element_type=jnp.float32)

    # ---- block 2 : conv-relu, conv-relu, maxpool(2) on the 16x16 grid ----
    buf[:, g:g + n2] = conv3x3_relu(buf, n2, GRID2, w3_ref, b3_ref) * mask2_ref[...]
    buf[:, g:g + n2] = conv3x3_relu(buf, n2, GRID2, w4_ref, b4_ref)
    buf[:, g:g + n2] = pool_window_max(n2, GRID2)

    # ---- classifier : pool-2 decimation + NCHW flatten + Linear, all folded
    #      into wf (h, 256, out); zero rows drop non max-pool-anchor positions.
    for bi in range(batch):
        row = bc_ref[...]                                        # (1, out)
        for c in range(h):
            row = row + jnp.dot(buf[c:c + 1, g + bi * p2:g + (bi + 1) * p2],
                                wf_ref[c], preferred_element_type=jnp.float32)
        out_ref[bi:bi + 1, :] = row


# ---------------------------------------------------------------------------
# Parameters + one-time re-layout for the kernel
# ---------------------------------------------------------------------------
def init_params(key, input_shape, hidden_units, output_shape):
    """Deterministic synthetic init (uniform, PyTorch-style fan-in bounds)."""
    ks = jax.random.split(key, 10)

    def u(k, shape, fan_in):
        bound = 1.0 / jnp.sqrt(jnp.float32(fan_in))
        return jax.random.uniform(k, shape, jnp.float32, -bound, bound)

    h = hidden_units
    return {
        "w1": u(ks[0], (3, 3, input_shape, h), 9 * input_shape),
        "b1": u(ks[1], (h,), 9 * input_shape),
        "w2": u(ks[2], (3, 3, h, h), 9 * h),
        "b2": u(ks[3], (h,), 9 * h),
        "w3": u(ks[4], (3, 3, h, h), 9 * h),
        "b3": u(ks[5], (h,), 9 * h),
        "w4": u(ks[6], (3, 3, h, h), 9 * h),
        "b4": u(ks[7], (h,), 9 * h),
        "wc": u(ks[8], (h * 7 * 7, output_shape), h * 7 * 7),
        "bc": u(ks[9], (output_shape,), h * 7 * 7),
    }


def prepare_params(params, batch):
    """One-time re-layout of weights + constant tables for the fused kernel."""
    h = params["b1"].shape[0]
    nout = params["bc"].shape[0]

    def conv_w(w):   # (3,3,Cin,Cout) -> (9, Cout, Cin), tap-major (ky,kx)
        return jnp.transpose(w, (0, 1, 3, 2)).reshape(9, w.shape[3], w.shape[2])

    def conv_b(b):
        return b.reshape(-1, 1).astype(jnp.float32)

    # interior (= valid pixel) masks on the flattened padded grids
    m30 = jnp.pad(jnp.ones((28, 28), jnp.float32), 1).reshape(-1)
    m16 = jnp.pad(jnp.ones((14, 14), jnp.float32), 1).reshape(-1)
    mask1 = jnp.tile(m30, batch).reshape(1, batch * GRID1 * GRID1)
    mask2 = jnp.tile(m16, batch).reshape(1, batch * GRID2 * GRID2)

    # pool-1 decimation: pick each 2x2 window anchor on the 30x30 grid and
    # scatter it into the interior of the (zero-bordered) 16x16 grid.
    q = jnp.arange(GRID2 * GRID2)
    yo, xo = q // GRID2, q % GRID2
    valid = (yo >= 1) & (yo <= 14) & (xo >= 1) & (xo <= 14)
    src = (2 * yo - 1) * GRID1 + (2 * xo - 1)
    sel1 = ((jnp.arange(GRID1 * GRID1)[:, None] == src[None, :])
            & valid[None, :]).astype(jnp.float32)                # (900, 256)

    # classifier: fold pool-2 anchor selection + NCHW flatten into the Linear
    ys, xs = jnp.meshgrid(jnp.arange(7), jnp.arange(7), indexing="ij")
    p_sel = ((2 * ys + 1) * GRID2 + (2 * xs + 1)).reshape(-1)    # (49,)
    wc3 = params["wc"].astype(jnp.float32).reshape(h, 49, nout)
    wf = jnp.zeros((h, GRID2 * GRID2, nout), jnp.float32).at[:, p_sel, :].set(wc3)

    return {
        "w1": conv_w(params["w1"]), "b1": conv_b(params["b1"]),
        "w2": conv_w(params["w2"]), "b2": conv_b(params["b2"]),
        "w3": conv_w(params["w3"]), "b3": conv_b(params["b3"]),
        "w4": conv_w(params["w4"]), "b4": conv_b(params["b4"]),
        "mask1": mask1, "sel1": sel1, "mask2": mask2,
        "wf": wf, "bc": params["bc"].reshape(1, nout).astype(jnp.float32),
    }


@jax.jit
def forward(prepped, x_nchw):
    """Fused TinyVGG forward: one pallas_call, only (B, out) logits hit HBM."""
    B, cin, H, W = x_nchw.shape
    assert H == 28 and W == 28, "classifier expects 28x28 inputs (7*7 after pooling)"
    h = prepped["b1"].shape[0]
    nout = prepped["bc"].shape[1]
    g = GUARD
    n1 = B * GRID1 * GRID1

    # NCHW -> (Cin, B*30*30) flat zero-padded grid, flanked by zero guard lanes.
    xp = jnp.pad(x_nchw.astype(jnp.float32), ((0, 0), (0, 0), (1, 1), (1, 1)))
    xf = jnp.transpose(xp, (1, 0, 2, 3)).reshape(cin, n1)
    xf = jnp.pad(xf, ((0, 0), (g, g)))

    # TODO(synk): for large batch, tile the flattened grid over a Pallas grid
    # ('parallel' across batch segments) instead of this single-block design.
    return pl.pallas_call(
        _tinyvgg_kernel,
        out_shape=jax.ShapeDtypeStruct((B, nout), jnp.float32),
        in_specs=[_vmem()] * 14,
        out_specs=_vmem(),
        scratch_shapes=[pltpu.VMEM((h, n1 + 2 * g), jnp.float32)],
    )(xf,
      prepped["w1"], prepped["b1"], prepped["w2"], prepped["b2"],
      prepped["w3"], prepped["b3"], prepped["w4"], prepped["b4"],
      prepped["mask1"], prepped["sel1"], prepped["mask2"],
      prepped["wf"], prepped["bc"])


# ---------------------------------------------------------------------------
# Pure-JAX reference (matches the PyTorch module) for a correctness check
# ---------------------------------------------------------------------------
def reference_forward(params, x):
    dn = ("NCHW", "HWIO", "NCHW")

    def conv(x, w, b):
        y = lax.conv_general_dilated(x, w, (1, 1), "SAME", dimension_numbers=dn,
                                     precision=lax.Precision.HIGHEST)
        return jax.nn.relu(y + b.reshape(1, -1, 1, 1))

    def pool(x):
        return lax.reduce_window(x, -jnp.inf, lax.max, (1, 1, 2, 2),
                                 (1, 1, 2, 2), "VALID")

    x = pool(conv(conv(x, params["w1"], params["b1"]), params["w2"], params["b2"]))
    x = pool(conv(conv(x, params["w3"], params["b3"]), params["w4"], params["b4"]))
    x = x.reshape(x.shape[0], -1)                     # NCHW flatten -> (B, h*49)
    return jnp.dot(x, params["wc"], precision=lax.Precision.HIGHEST) + params["bc"]


if __name__ == "__main__":
    batch = 2
    input_shape = 1       # MNIST channels
    hidden_units = 8
    output_shape = 10
    H = W = 28            # classifier in_features = hidden * 7 * 7

    key = jax.random.PRNGKey(0)
    k_params, k_x = jax.random.split(key)
    params = init_params(k_params, input_shape, hidden_units, output_shape)
    prepped = prepare_params(params, batch)
    x = jax.random.normal(k_x, (batch, input_shape, H, W), jnp.float32)

    logits = forward(prepped, x)
    logits = jax.block_until_ready(logits)
    assert logits.shape == (batch, output_shape), logits.shape
    assert bool(jnp.all(jnp.isfinite(logits)))

    ref = reference_forward(params, x)
    assert bool(jnp.allclose(logits, ref, rtol=2e-3, atol=2e-3)), (
        float(jnp.max(jnp.abs(logits - ref))))

    print("KERNEL_OK")
</pallas_src>

<mosaic_0001>
module attributes {stable_mosaic.version = 11 : i64} {
  func.func @_tinyvgg_kernel(%arg0: memref<1x1864xf32, #tpu.memory_space<vmem>>, %arg1: memref<9x8x1xf32, #tpu.memory_space<vmem>>, %arg2: memref<8x1xf32, #tpu.memory_space<vmem>>, %arg3: memref<9x8x8xf32, #tpu.memory_space<vmem>>, %arg4: memref<8x1xf32, #tpu.memory_space<vmem>>, %arg5: memref<9x8x8xf32, #tpu.memory_space<vmem>>, %arg6: memref<8x1xf32, #tpu.memory_space<vmem>>, %arg7: memref<9x8x8xf32, #tpu.memory_space<vmem>>, %arg8: memref<8x1xf32, #tpu.memory_space<vmem>>, %arg9: memref<1x1800xf32, #tpu.memory_space<vmem>>, %arg10: memref<900x256xf32, #tpu.memory_space<vmem>>, %arg11: memref<1x512xf32, #tpu.memory_space<vmem>>, %arg12: memref<8x256x10xf32, #tpu.memory_space<vmem>>, %arg13: memref<1x10xf32, #tpu.memory_space<vmem>>, %arg14: memref<2x10xf32, #tpu.memory_space<vmem>>, %arg15: memref<8x1864xf32, #tpu.memory_space<vmem>>) attributes {dimension_semantics = [], scalar_prefetch = 0 : i64, scratch_operands = 1 : i64, tpu.core_type = #tpu.core_type<tc>} {
    %cst = arith.constant 0.000000e+00 : f32
    %0 = vector.broadcast %cst : f32 to vector<8x32xf32>
    %c0 = arith.constant 0 : index
    %c0_0 = arith.constant 0 : index
    %1 = vector.load %arg15[%c0, %c0_0] : memref<8x1864xf32, #tpu.memory_space<vmem>>, vector<8x32xf32>
    tpu.vector_store %arg15[%c0, %c0_0], %0 {strides = array<i32>} : memref<8x1864xf32, #tpu.memory_space<vmem>>, vector<8x32xf32>,
    %c0_1 = arith.constant 0 : index
    %c1832 = arith.constant 1832 : index
    %2 = vector.load %arg15[%c0_1, %c1832] : memref<8x1864xf32, #tpu.memory_space<vmem>>, vector<8x32xf32>
    tpu.vector_store %arg15[%c0_1, %c1832], %0 {strides = array<i32>} : memref<8x1864xf32, #tpu.memory_space<vmem>>, vector<8x32xf32>,
    %c0_2 = arith.constant 0 : index
    %c1 = arith.constant 1 : index
    %3 = vector.load %arg0[%c0_2, %c1] : memref<1x1864xf32, #tpu.memory_space<vmem>>, vector<1x1800xf32>
    %c0_3 = arith.constant 0 : index
    %c0_4 = arith.constant 0 : index
    %c0_5 = arith.constant 0 : index
    %4 = vector.load %arg1[%c0_3, %c0_4, %c0_5] : memref<9x8x1xf32, #tpu.memory_space<vmem>>, vector<1x8x1xf32>
    %5 = vector.shape_cast %4 : vector<1x8x1xf32> to vector<8x1xf32>
    %6 = vector.broadcast %5 : vector<8x1xf32> to vector<8x1800xf32>
    %7 = vector.broadcast %3 : vector<1x1800xf32> to vector<8x1800xf32>
    %8 = arith.mulf %6, %7 : vector<8x1800xf32>
    %c0_6 = arith.constant 0 : index
    %c2 = arith.constant 2 : index
    %9 = vector.load %arg0[%c0_6, %c2] : memref<1x1864xf32, #tpu.memory_space<vmem>>, vector<1x1800xf32>
    %c1_7 = arith.constant 1 : index
    %c0_8 = arith.constant 0 : index
    %c0_9 = arith.constant 0 : index
    %10 = vector.load %arg1[%c1_7, %c0_8, %c0_9] : memref<9x8x1xf32, #tpu.memory_space<vmem>>, vector<1x8x1xf32>
    %11 = vector.shape_cast %10 : vector<1x8x1xf32> to vector<8x1xf32>
    %12 = vector.broadcast %11 : vector<8x1xf32> to vector<8x1800xf32>
    %13 = vector.broadcast %9 : vector<1x1800xf32> to vector<8x1800xf32>
    %14 = arith.mulf %12, %13 : vector<8x1800xf32>
    %15 = arith.addf %8, %14 : vector<8x1800xf32>
    %c0_10 = arith.constant 0 : index
    %c3 = arith.constant 3 : index
    %16 = vector.load %arg0[%c0_10, %c3] : memref<1x1864xf32, #tpu.memory_space<vmem>>, vector<1x1800xf32>
    %c2_11 = arith.constant 2 : index
    %c0_12 = arith.constant 0 : index
    %c0_13 = arith.constant 0 : index
    %17 = vector.load %arg1[%c2_11, %c0_12, %c0_13] : memref<9x8x1xf32, #tpu.memory_space<vmem>>, vector<1x8x1xf32>
    %18 = vector.shape_cast %17 : vector<1x8x1xf32> to vector<8x1xf32>
    %19 = vector.broadcast %18 : vector<8x1xf32> to vector<8x1800xf32>
    %20 = vector.broadcast %16 : vector<1x1800xf32> to vector<8x1800xf32>
    %21 = arith.mulf %19, %20 : vector<8x1800xf32>
    %22 = arith.addf %15, %21 : vector<8x1800xf32>
    %c0_14 = arith.constant 0 : index
    %c31 = arith.constant 31 : index
    %23 = vector.load %arg0[%c0_14, %c31] : memref<1x1864xf32, #tpu.memory_space<vmem>>, vector<1x1800xf32>
    %c3_15 = arith.constant 3 : index
    %c0_16 = arith.constant 0 : index
    %c0_17 = arith.constant 0 : index
    %24 = vector.load %arg1[%c3_15, %c0_16, %c0_17] : memref<9x8x1xf32, #tpu.memory_space<vmem>>, vector<1x8x1xf32>
    %25 = vector.shape_cast %24 : vector<1x8x1xf32> to vector<8x1xf32>
    %26 = vector.broadcast %25 : vector<8x1xf32> to vector<8x1800xf32>
    %27 = vector.broadcast %23 : vector<1x1800xf32> to vector<8x1800xf32>
    %28 = arith.mulf %26, %27 : vector<8x1800xf32>
    %29 = arith.addf %22, %28 : vector<8x1800xf32>
    %c0_18 = arith.constant 0 : index
    %c32 = arith.constant 32 : index
    %30 = vector.load %arg0[%c0_18, %c32] : memref<1x1864xf32, #tpu.memory_space<vmem>>, vector<1x1800xf32>
    %c4 = arith.constant 4 : index
    %c0_19 = arith.constant 0 : index
    %c0_20 = arith.constant 0 : index
    %31 = vector.load %arg1[%c4, %c0_19, %c0_20] : memref<9x8x1xf32, #tpu.memory_space<vmem>>, vector<1x8x1xf32>
    %32 = vector.shape_cast %31 : vector<1x8x1xf32> to vector<8x1xf32>
    %33 = vector.broadcast %32 : vector<8x1xf32> to vector<8x1800xf32>
    %34 = vector.broadcast %30 : vector<1x1800xf32> to vector<8x1800xf32>
    %35 = arith.mulf %33, %34 : vector<8x1800xf32>
    %36 = arith.addf %29, %35 : vector<8x1800xf32>
    %c0_21 = arith.constant 0 : index
    %c33 = arith.constant 33 : index
    %37 = vector.load %arg0[%c0_21, %c33] : memref<1x1864xf32, #tpu.memory_space<vmem>>, vector<1x1800xf32>
    %c5 = arith.constant 5 : index
    %c0_22 = arith.constant 0 : index
    %c0_23 = arith.constant 0 : index
    %38 = vector.load %arg1[%c5, %c0_22, %c0_23] : memref<9x8x1xf32, #tpu.memory_space<vmem>>, vector<1x8x1xf32>
    %39 = vector.shape_cast %38 : vector<1x8x1xf32> to vector<8x1xf32>
    %40 = vector.broadcast %39 : vector<8x1xf32> to vector<8x1800xf32>
    %41 = vector.broadcast %37 : vector<1x1800xf32> to vector<8x1800xf32>
    %42 = arith.mulf %40, %41 : vector<8x1800xf32>
    %43 = arith.addf %36, %42 : vector<8x1800xf32>
    %c0_24 = arith.constant 0 : index
    %c61 = arith.constant 61 : index
    %44 = vector.load %arg0[%c0_24, %c61] : memref<1x1864xf32, #tpu.memory_space<vmem>>, vector<1x1800xf32>
    %c6 = arith.constant 6 : index
    %c0_25 = arith.constant 0 : index
    %c0_26 = arith.constant 0 : index
    %45 = vector.load %arg1[%c6, %c0_25, %c0_26] : memref<9x8x1xf32, #tpu.memory_space<vmem>>, vector<1x8x1xf32>
    %46 = vector.shape_cast %45 : vector<1x8x1xf32> to vector<8x1xf32>
    %47 = vector.broadcast %46 : vector<8x1xf32> to vector<8x1800xf32>
    %48 = vector.broadcast %44 : vector<1x1800xf32> to vector<8x1800xf32>
    %49 = arith.mulf %47, %48 : vector<8x1800xf32>
    %50 = arith.addf %43, %49 : vector<8x1800xf32>
    %c0_27 = arith.constant 0 : index
    %c62 = arith.constant 62 : index
    %51 = vector.load %arg0[%c0_27, %c62] : memref<1x1864xf32, #tpu.memory_space<vmem>>, vector<1x1800xf32>
    %c7 = arith.constant 7 : index
    %c0_28 = arith.constant 0 : index
    %c0_29 = arith.constant 0 : index
    %52 = vector.load %arg1[%c7, %c0_28, %c0_29] : memref<9x8x1xf32, #tpu.memory_space<vmem>>, vector<1x8x1xf32>
    %53 = vector.shape_cast %52 : vector<1x8x1xf32> to vector<8x1xf32>
    %54 = vector.broadcast %53 : vector<8x1xf32> to vector<8x1800xf32>
    %55 = vector.broadcast %51 : vector<1x1800xf32> to vector<8x1800xf32>
    %56 = arith.mulf %54, %55 : vector<8x1800xf32>
    %57 = arith.addf %50, %56 : vector<8x1800xf32>
    %c0_30 = arith.constant 0 : index
    %c63 = arith.constant 63 : index
    %58 = vector.load %arg0[%c0_30, %c63] : memref<1x1864xf32, #tpu.memory_space<vmem>>, vector<1x1800xf32>
    %c8 = arith.constant 8 : index
    %c0_31 = arith.constant 0 : index
    %c0_32 = arith.constant 0 : index
    %59 = vector.load %arg1[%c8, %c0_31, %c0_32] : memref<9x8x1xf32, #tpu.memory_space<vmem>>, vector<1x8x1xf32>
    %60 = vector.shape_cast %59 : vector<1x8x1xf32> to vector<8x1xf32>
    %61 = vector.broadcast %60 : vector<8x1xf32> to vector<8x1800xf32>
    %62 = vector.broadcast %58 : vector<1x1800xf32> to vector<8x1800xf32>
    %63 = arith.mulf %61, %62 : vector<8x1800xf32>
    %64 = arith.addf %57, %63 : vector<8x1800xf32>
    %c0_33 = arith.constant 0 : index
    %c0_34 = arith.constant 0 : index
    %65 = vector.load %arg2[%c0_33, %c0_34] : memref<8x1xf32, #tpu.memory_space<vmem>>, vector<8x1xf32>
    %66 = vector.broadcast %65 : vector<8x1xf32> to vector<8x1800xf32>
    %67 = arith.addf %64, %66 : vector<8x1800xf32>
    %cst_35 = arith.constant 0.000000e+00 : f32
    %68 = vector.broadcast %cst_35 : f32 to vector<8x1800xf32>
    %69 = arith.maximumf %67, %68 : vector<8x1800xf32>
    %c0_36 = arith.constant 0 : index
    %c0_37 = arith.constant 0 : index
    %70 = vector.load %arg9[%c0_36, %c0_37] : memref<1x1800xf32, #tpu.memory_space<vmem>>, vector<1x1800xf32>
    %71 = vector.broadcast %70 : vector<1x1800xf32> to vector<8x1800xf32>
    %72 = arith.mulf %69, %71 : vector<8x1800xf32>
    %c0_38 = arith.constant 0 : index
    %c32_39 = arith.constant 32 : index
    %73 = vector.load %arg15[%c0_38, %c32_39] : memref<8x1864xf32, #tpu.memory_space<vmem>>, vector<8x1800xf32>
    tpu.vector_store %arg15[%c0_38, %c32_39], %72 {strides = array<i32>} : memref<8x1864xf32, #tpu.memory_space<vmem>>, vector<8x1800xf32>,
    %c0_40 = arith.constant 0 : index
    %c1_41 = arith.constant 1 : index
    %74 = vector.load %arg15[%c0_40, %c1_41] : memref<8x1864xf32, #tpu.memory_space<vmem>>, vector<8x1800xf32>
    %c0_42 = arith.constant 0 : index
    %c0_43 = arith.constant 0 : index
    %c0_44 = arith.constant 0 : index
    %75 = vector.load %arg3[%c0_42, %c0_43, %c0_44] : memref<9x8x8xf32, #tpu.memory_space<vmem>>, vector<1x8x8xf32>
    %76 = vector.shape_cast %75 : vector<1x8x8xf32> to vector<8x8xf32>
    %cst_45 = arith.constant dense<0.000000e+00> : vector<8x1800xf32>
    %77 = tpu.matmul %76, %74, %cst_45 {dimension_numbers = #tpu.dot_dimension_numbers<[1], [0], [0], [1], [0, 0, 1, 1], [], []>} : vector<8x8xf32>, vector<8x1800xf32>, vector<8x1800xf32> -> vector<8x1800xf32>
    %c0_46 = arith.constant 0 : index
    %c2_47 = arith.constant 2 : index
    %78 = vector.load %arg15[%c0_46, %c2_47] : memref<8x1864xf32, #tpu.memory_space<vmem>>, vector<8x1800xf32>
    %c1_48 = arith.constant 1 : index
    %c0_49 = arith.constant 0 : index
    %c0_50 = arith.constant 0 : index
    %79 = vector.load %arg3[%c1_48, %c0_49, %c0_50] : memref<9x8x8xf32, #tpu.memory_space<vmem>>, vector<1x8x8xf32>
    %80 = vector.shape_cast %79 : vector<1x8x8xf32> to vector<8x8xf32>
    %cst_51 = arith.constant dense<0.000000e+00> : vector<8x1800xf32>
    %81 = tpu.matmul %80, %78, %cst_51 {dimension_numbers = #tpu.dot_dimension_numbers<[1], [0], [0], [1], [0, 0, 1, 1], [], []>} : vector<8x8xf32>, vector<8x1800xf32>, vector<8x1800xf32> -> vector<8x1800xf32>
    %82 = arith.addf %77, %81 : vector<8x1800xf32>
    %c0_52 = arith.constant 0 : index
    %c3_53 = arith.constant 3 : index
    %83 = vector.load %arg15[%c0_52, %c3_53] : memref<8x1864xf32, #tpu.memory_space<vmem>>, vector<8x1800xf32>
    %c2_54 = arith.constant 2 : index
    %c0_55 = arith.constant 0 : index
    %c0_56 = arith.constant 0 : index
    %84 = vector.load %arg3[%c2_54, %c0_55, %c0_56] : memref<9x8x8xf32, #tpu.memory_space<vmem>>, vector<1x8x8xf32>
    %85 = vector.shape_cast %84 : vector<1x8x8xf32> to vector<8x8xf32>
    %cst_57 = arith.constant dense<0.000000e+00> : vector<8x1800xf32>
    %86 = tpu.matmul %85, %83, %cst_57 {dimension_numbers = #tpu.dot_dimension_numbers<[1], [0], [0], [1], [0, 0, 1, 1], [], []>} : vector<8x8xf32>, vector<8x1800xf32>, vector<8x1800xf32> -> vector<8x1800xf32>
    %87 = arith.addf %82, %86 : vector<8x1800xf32>
    %c0_58 = arith.constant 0 : index
    %c31_59 = arith.constant 31 : index
    %88 = vector.load %arg15[%c0_58, %c31_59] : memref<8x1864xf32, #tpu.memory_space<vmem>>, vector<8x1800xf32>
    %c3_60 = arith.constant 3 : index
    %c0_61 = arith.constant 0 : index
    %c0_62 = arith.constant 0 : index
    %89 = vector.load %arg3[%c3_60, %c0_61, %c0_62] : memref<9x8x8xf32, #tpu.memory_space<vmem>>, vector<1x8x8xf32>
    %90 = vector.shape_cast %89 : vector<1x8x8xf32> to vector<8x8xf32>
    %cst_63 = arith.constant dense<0.000000e+00> : vector<8x1800xf32>
    %91 = tpu.matmul %90, %88, %cst_63 {dimension_numbers = #tpu.dot_dimension_numbers<[1], [0], [0], [1], [0, 0, 1, 1], [], []>} : vector<8x8xf32>, vector<8x1800xf32>, vector<8x1800xf32> -> vector<8x1800xf32>
    %92 = arith.addf %87, %91 : vector<8x1800xf32>
    %c0_64 = arith.constant 0 : index
    %c32_65 = arith.constant 32 : index
    %93 = vector.load %arg15[%c0_64, %c32_65] : memref<8x1864xf32, #tpu.memory_space<vmem>>, vector<8x1800xf32>
    %c4_66 = arith.constant 4 : index
    %c0_67 = arith.constant 0 : index
    %c0_68 = arith.constant 0 : index
    %94 = vector.load %arg3[%c4_66, %c0_67, %c0_68] : memref<9x8x8xf32, #tpu.memory_space<vmem>>, vector<1x8x8xf32>
    %95 = vector.shape_cast %94 : vector<1x8x8xf32> to vector<8x8xf32>
    %cst_69 = arith.constant dense<0.000000e+00> : vector<8x1800xf32>
    %96 = tpu.matmul %95, %93, %cst_69 {dimension_numbers = #tpu.dot_dimension_numbers<[1], [0], [0], [1], [0, 0, 1, 1], [], []>} : vector<8x8xf32>, vector<8x1800xf32>, vector<8x1800xf32> -> vector<8x1800xf32>
    %97 = arith.addf %92, %96 : vector<8x1800xf32>
    %c0_70 = arith.constant 0 : index
    %c33_71 = arith.constant 33 : index
    %98 = vector.load %arg15[%c0_70, %c33_71] : memref<8x1864xf32, #tpu.memory_space<vmem>>, vector<8x1800xf32>
    %c5_72 = arith.constant 5 : index
    %c0_73 = arith.constant 0 : index
    %c0_74 = arith.constant 0 : index
    %99 = vector.load %arg3[%c5_72, %c0_73, %c0_74] : memref<9x8x8xf32, #tpu.memory_space<vmem>>, vector<1x8x8xf32>
    %100 = vector.shape_cast %99 : vector<1x8x8xf32> to vector<8x8xf32>
    %cst_75 = arith.constant dense<0.000000e+00> : vector<8x1800xf32>
    %101 = tpu.matmul %100, %98, %cst_75 {dimension_numbers = #tpu.dot_dimension_numbers<[1], [0], [0], [1], [0, 0, 1, 1], [], []>} : vector<8x8xf32>, vector<8x1800xf32>, vector<8x1800xf32> -> vector<8x1800xf32>
    %102 = arith.addf %97, %101 : vector<8x1800xf32>
    %c0_76 = arith.constant 0 : index
    %c61_77 = arith.constant 61 : index
    %103 = vector.load %arg15[%c0_76, %c61_77] : memref<8x1864xf32, #tpu.memory_space<vmem>>, vector<8x1800xf32>
    %c6_78 = arith.constant 6 : index
    %c0_79 = arith.constant 0 : index
    %c0_80 = arith.constant 0 : index
    %104 = vector.load %arg3[%c6_78, %c0_79, %c0_80] : memref<9x8x8xf32, #tpu.memory_space<vmem>>, vector<1x8x8xf32>
    %105 = vector.shape_cast %104 : vector<1x8x8xf32> to vector<8x8xf32>
    %cst_81 = arith.constant dense<0.000000e+00> : vector<8x1800xf32>
    %106 = tpu.matmul %105, %103, %cst_81 {dimension_numbers = #tpu.dot_dimension_numbers<[1], [0], [0], [1], [0, 0, 1, 1], [], []>} : vector<8x8xf32>, vector<8x1800xf32>, vector<8x1800xf32> -> vector<8x1800xf32>
    %107 = arith.addf %102, %106 : vector<8x1800xf32>
    %c0_82 = arith.constant 0 : index
    %c62_83 = arith.constant 62 : index
    %108 = vector.load %arg15[%c0_82, %c62_83] : memref<8x1864xf32, #tpu.memory_space<vmem>>, vector<8x1800xf32>
    %c7_84 = arith.constant 7 : index
    %c0_85 = arith.constant 0 : index
    %c0_86 = arith.constant 0 : index
    %109 = vector.load %arg3[%c7_84, %c0_85, %c0_86] : memref<9x8x8xf32, #tpu.memory_space<vmem>>, vector<1x8x8xf32>
    %110 = vector.shape_cast %109 : vector<1x8x8xf32> to vector<8x8xf32>
    %cst_87 = arith.constant dense<0.000000e+00> : vector<8x1800xf32>
    %111 = tpu.matmul %110, %108, %cst_87 {dimension_numbers = #tpu.dot_dimension_numbers<[1], [0], [0], [1], [0, 0, 1, 1], [], []>} : vector<8x8xf32>, vector<8x1800xf32>, vector<8x1800xf32> -> vector<8x1800xf32>
    %112 = arith.addf %107, %111 : vector<8x1800xf32>
    %c0_88 = arith.constant 0 : index
    %c63_89 = arith.constant 63 : index
    %113 = vector.load %arg15[%c0_88, %c63_89] : memref<8x1864xf32, #tpu.memory_space<vmem>>, vector<8x1800xf32>
    %c8_90 = arith.constant 8 : index
    %c0_91 = arith.constant 0 : index
    %c0_92 = arith.constant 0 : index
    %114 = vector.load %arg3[%c8_90, %c0_91, %c0_92] : memref<9x8x8xf32, #tpu.memory_space<vmem>>, vector<1x8x8xf32>
    %115 = vector.shape_cast %114 : vector<1x8x8xf32> to vector<8x8xf32>
    %cst_93 = arith.constant dense<0.000000e+00> : vector<8x1800xf32>
    %116 = tpu.matmul %115, %113, %cst_93 {dimension_numbers = #tpu.dot_dimension_numbers<[1], [0], [0], [1], [0, 0, 1, 1], [], []>} : vector<8x8xf32>, vector<8x1800xf32>, vector<8x1800xf32> -> vector<8x1800xf32>
    %117 = arith.addf %112, %116 : vector<8x1800xf32>
    %c0_94 = arith.constant 0 : index
    %c0_95 = arith.constant 0 : index
    %118 = vector.load %arg4[%c0_94, %c0_95] : memref<8x1xf32, #tpu.memory_space<vmem>>, vector<8x1xf32>
    %119 = vector.broadcast %118 : vector<8x1xf32> to vector<8x1800xf32>
    %120 = arith.addf %117, %119 : vector<8x1800xf32>
    %cst_96 = arith.constant 0.000000e+00 : f32
    %121 = vector.broadcast %cst_96 : f32 to vector<8x1800xf32>
    %122 = arith.maximumf %120, %121 : vector<8x1800xf32>
    %c0_97 = arith.constant 0 : index
    %c32_98 = arith.constant 32 : index
    %123 = vector.load %arg15[%c0_97, %c32_98] : memref<8x1864xf32, #tpu.memory_space<vmem>>, vector<8x1800xf32>
    tpu.vector_store %arg15[%c0_97, %c32_98], %122 {strides = array<i32>} : memref<8x1864xf32, #tpu.memory_space<vmem>>, vector<8x1800xf32>,
    %c0_99 = arith.constant 0 : index
    %c32_100 = arith.constant 32 : index
    %124 = vector.load %arg15[%c0_99, %c32_100] : memref<8x1864xf32, #tpu.memory_space<vmem>>, vector<8x1800xf32>
    %c0_101 = arith.constant 0 : index
    %c33_102 = arith.constant 33 : index
    %125 = vector.load %arg15[%c0_101, %c33_102] : memref<8x1864xf32, #tpu.memory_space<vmem>>, vector<8x1800xf32>
    %c0_103 = arith.constant 0 : index
    %c62_104 = arith.constant 62 : index
    %126 = vector.load %arg15[%c0_103, %c62_104] : memref<8x1864xf32, #tpu.memory_space<vmem>>, vector<8x1800xf32>
    %c0_105 = arith.constant 0 : index
    %c63_106 = arith.constant 63 : index
    %127 = vector.load %arg15[%c0_105, %c63_106] : memref<8x1864xf32, #tpu.memory_space<vmem>>, vector<8x1800xf32>
    %128 = arith.maximumf %124, %125 : vector<8x1800xf32>
    %129 = arith.maximumf %126, %127 : vector<8x1800xf32>
    %130 = arith.maximumf %128, %129 : vector<8x1800xf32>
    %c0_107 = arith.constant 0 : index
    %c32_108 = arith.constant 32 : index
    %131 = vector.load %arg15[%c0_107, %c32_108] : memref<8x1864xf32, #tpu.memory_space<vmem>>, vector<8x1800xf32>
    tpu.vector_store %arg15[%c0_107, %c32_108], %130 {strides = array<i32>} : memref<8x1864xf32, #tpu.memory_space<vmem>>, vector<8x1800xf32>,
    %c0_109 = arith.constant 0 : index
    %c0_110 = arith.constant 0 : index
    %132 = vector.load %arg10[%c0_109, %c0_110] : memref<900x256xf32, #tpu.memory_space<vmem>>, vector<900x256xf32>
    %c0_111 = arith.constant 0 : index
    %c32_112 = arith.constant 32 : index
    %133 = vector.load %arg15[%c0_111, %c32_112] : memref<8x1864xf32, #tpu.memory_space<vmem>>, vector<8x900xf32>
    %cst_113 = arith.constant dense<0.000000e+00> : vector<8x256xf32>
    %134 = tpu.matmul %133, %132, %cst_113 {dimension_numbers = #tpu.dot_dimension_numbers<[1], [0], [0], [1], [0, 0, 1, 1], [], []>} : vector<8x900xf32>, vector<900x256xf32>, vector<8x256xf32> -> vector<8x256xf32>
    %c0_114 = arith.constant 0 : index
    %c32_115 = arith.constant 32 : index
    %135 = vector.load %arg15[%c0_114, %c32_115] : memref<8x1864xf32, #tpu.memory_space<vmem>>, vector<8x256xf32>
    tpu.vector_store %arg15[%c0_114, %c32_115], %134 {strides = array<i32>} : memref<8x1864xf32, #tpu.memory_space<vmem>>, vector<8x256xf32>,
    %c0_116 = arith.constant 0 : index
    %c932 = arith.constant 932 : index
    %136 = vector.load %arg15[%c0_116, %c932] : memref<8x1864xf32, #tpu.memory_space<vmem>>, vector<8x900xf32>
    %cst_117 = arith.constant dense<0.000000e+00> : vector<8x256xf32>
    %137 = tpu.matmul %136, %132, %cst_117 {dimension_numbers = #tpu.dot_dimension_numbers<[1], [0], [0], [1], [0, 0, 1, 1], [], []>} : vector<8x900xf32>, vector<900x256xf32>, vector<8x256xf32> -> vector<8x256xf32>
    %c0_118 = arith.constant 0 : index
    %c288 = arith.constant 288 : index
    %138 = vector.load %arg15[%c0_118, %c288] : memref<8x1864xf32, #tpu.memory_space<vmem>>, vector<8x256xf32>
    tpu.vector_store %arg15[%c0_118, %c288], %137 {strides = array<i32>} : memref<8x1864xf32, #tpu.memory_space<vmem>>, vector<8x256xf32>,
    %c0_119 = arith.constant 0 : index
    %c15 = arith.constant 15 : index
    %139 = vector.load %arg15[%c0_119, %c15] : memref<8x1864xf32, #tpu.memory_space<vmem>>, vector<8x512xf32>
    %c0_120 = arith.constant 0 : index
    %c0_121 = arith.constant 0 : index
    %c0_122 = arith.constant 0 : index
    %140 = vector.load %arg5[%c0_120, %c0_121, %c0_122] : memref<9x8x8xf32, #tpu.memory_space<vmem>>, vector<1x8x8xf32>
    %141 = vector.shape_cast %140 : vector<1x8x8xf32> to vector<8x8xf32>
    %cst_123 = arith.constant dense<0.000000e+00> : vector<8x512xf32>
    %142 = tpu.matmul %141, %139, %cst_123 {dimension_numbers = #tpu.dot_dimension_numbers<[1], [0], [0], [1], [0, 0, 1, 1], [], []>} : vector<8x8xf32>, vector<8x512xf32>, vector<8x512xf32> -> vector<8x512xf32>
    %c0_124 = arith.constant 0 : index
    %c16 = arith.constant 16 : index
    %143 = vector.load %arg15[%c0_124, %c16] : memref<8x1864xf32, #tpu.memory_space<vmem>>, vector<8x512xf32>
    %c1_125 = arith.constant 1 : index
    %c0_126 = arith.constant 0 : index
    %c0_127 = arith.constant 0 : index
    %144 = vector.load %arg5[%c1_125, %c0_126, %c0_127] : memref<9x8x8xf32, #tpu.memory_space<vmem>>, vector<1x8x8xf32>
    %145 = vector.shape_cast %144 : vector<1x8x8xf32> to vector<8x8xf32>
    %cst_128 = arith.constant dense<0.000000e+00> : vector<8x512xf32>
    %146 = tpu.matmul %145, %143, %cst_128 {dimension_numbers = #tpu.dot_dimension_numbers<[1], [0], [0], [1], [0, 0, 1, 1], [], []>} : vector<8x8xf32>, vector<8x512xf32>, vector<8x512xf32> -> vector<8x512xf32>
    %147 = arith.addf %142, %146 : vector<8x512xf32>
    %c0_129 = arith.constant 0 : index
    %c17 = arith.constant 17 : index
    %148 = vector.load %arg15[%c0_129, %c17] : memref<8x1864xf32, #tpu.memory_space<vmem>>, vector<8x512xf32>
    %c2_130 = arith.constant 2 : index
    %c0_131 = arith.constant 0 : index
    %c0_132 = arith.constant 0 : index
    %149 = vector.load %arg5[%c2_130, %c0_131, %c0_132] : memref<9x8x8xf32, #tpu.memory_space<vmem>>, vector<1x8x8xf32>
    %150 = vector.shape_cast %149 : vector<1x8x8xf32> to vector<8x8xf32>
    %cst_133 = arith.constant dense<0.000000e+00> : vector<8x512xf32>
    %151 = tpu.matmul %150, %148, %cst_133 {dimension_numbers = #tpu.dot_dimension_numbers<[1], [0], [0], [1], [0, 0, 1, 1], [], []>} : vector<8x8xf32>, vector<8x512xf32>, vector<8x512xf32> -> vector<8x512xf32>
    %152 = arith.addf %147, %151 : vector<8x512xf32>
    %c0_134 = arith.constant 0 : index
    %c31_135 = arith.constant 31 : index
    %153 = vector.load %arg15[%c0_134, %c31_135] : memref<8x1864xf32, #tpu.memory_space<vmem>>, vector<8x512xf32>
    %c3_136 = arith.constant 3 : index
    %c0_137 = arith.constant 0 : index
    %c0_138 = arith.constant 0 : index
    %154 = vector.load %arg5[%c3_136, %c0_137, %c0_138] : memref<9x8x8xf32, #tpu.memory_space<vmem>>, vector<1x8x8xf32>
    %155 = vector.shape_cast %154 : vector<1x8x8xf32> to vector<8x8xf32>
    %cst_139 = arith.constant dense<0.000000e+00> : vector<8x512xf32>
    %156 = tpu.matmul %155, %153, %cst_139 {dimension_numbers = #tpu.dot_dimension_numbers<[1], [0], [0], [1], [0, 0, 1, 1], [], []>} : vector<8x8xf32>, vector<8x512xf32>, vector<8x512xf32> -> vector<8x512xf32>
    %157 = arith.addf %152, %156 : vector<8x512xf32>
    %c0_140 = arith.constant 0 : index
    %c32_141 = arith.constant 32 : index
    %158 = vector.load %arg15[%c0_140, %c32_141] : memref<8x1864xf32, #tpu.memory_space<vmem>>, vector<8x512xf32>
    %c4_142 = arith.constant 4 : index
    %c0_143 = arith.constant 0 : index
    %c0_144 = arith.constant 0 : index
    %159 = vector.load %arg5[%c4_142, %c0_143, %c0_144] : memref<9x8x8xf32, #tpu.memory_space<vmem>>, vector<1x8x8xf32>
    %160 = vector.shape_cast %159 : vector<1x8x8xf32> to vector<8x8xf32>
    %cst_145 = arith.constant dense<0.000000e+00> : vector<8x512xf32>
    %161 = tpu.matmul %160, %158, %cst_145 {dimension_numbers = #tpu.dot_dimension_numbers<[1], [0], [0], [1], [0, 0, 1, 1], [], []>} : vector<8x8xf32>, vector<8x512xf32>, vector<8x512xf32> -> vector<8x512xf32>
    %162 = arith.addf %157, %161 : vector<8x512xf32>
    %c0_146 = arith.constant 0 : index
    %c33_147 = arith.constant 33 : index
    %163 = vector.load %arg15[%c0_146, %c33_147] : memref<8x1864xf32, #tpu.memory_space<vmem>>, vector<8x512xf32>
    %c5_148 = arith.constant 5 : index
    %c0_149 = arith.constant 0 : index
    %c0_150 = arith.constant 0 : index
    %164 = vector.load %arg5[%c5_148, %c0_149, %c0_150] : memref<9x8x8xf32, #tpu.memory_space<vmem>>, vector<1x8x8xf32>
    %165 = vector.shape_cast %164 : vector<1x8x8xf32> to vector<8x8xf32>
    %cst_151 = arith.constant dense<0.000000e+00> : vector<8x512xf32>
    %166 = tpu.matmul %165, %163, %cst_151 {dimension_numbers = #tpu.dot_dimension_numbers<[1], [0], [0], [1], [0, 0, 1, 1], [], []>} : vector<8x8xf32>, vector<8x512xf32>, vector<8x512xf32> -> vector<8x512xf32>
    %167 = arith.addf %162, %166 : vector<8x512xf32>
    %c0_152 = arith.constant 0 : index
    %c47 = arith.constant 47 : index
    %168 = vector.load %arg15[%c0_152, %c47] : memref<8x1864xf32, #tpu.memory_space<vmem>>, vector<8x512xf32>
    %c6_153 = arith.constant 6 : index
    %c0_154 = arith.constant 0 : index
    %c0_155 = arith.constant 0 : index
    %169 = vector.load %arg5[%c6_153, %c0_154, %c0_155] : memref<9x8x8xf32, #tpu.memory_space<vmem>>, vector<1x8x8xf32>
    %170 = vector.shape_cast %169 : vector<1x8x8xf32> to vector<8x8xf32>
    %cst_156 = arith.constant dense<0.000000e+00> : vector<8x512xf32>
    %171 = tpu.matmul %170, %168, %cst_156 {dimension_numbers = #tpu.dot_dimension_numbers<[1], [0], [0], [1], [0, 0, 1, 1], [], []>} : vector<8x8xf32>, vector<8x512xf32>, vector<8x512xf32> -> vector<8x512xf32>
    %172 = arith.addf %167, %171 : vector<8x512xf32>
    %c0_157 = arith.constant 0 : index
    %c48 = arith.constant 48 : index
    %173 = vector.load %arg15[%c0_157, %c48] : memref<8x1864xf32, #tpu.memory_space<vmem>>, vector<8x512xf32>
    %c7_158 = arith.constant 7 : index
    %c0_159 = arith.constant 0 : index
    %c0_160 = arith.constant 0 : index
    %174 = vector.load %arg5[%c7_158, %c0_159, %c0_160] : memref<9x8x8xf32, #tpu.memory_space<vmem>>, vector<1x8x8xf32>
    %175 = vector.shape_cast %174 : vector<1x8x8xf32> to vector<8x8xf32>
    %cst_161 = arith.constant dense<0.000000e+00> : vector<8x512xf32>
    %176 = tpu.matmul %175, %173, %cst_161 {dimension_numbers = #tpu.dot_dimension_numbers<[1], [0], [0], [1], [0, 0, 1, 1], [], []>} : vector<8x8xf32>, vector<8x512xf32>, vector<8x512xf32> -> vector<8x512xf32>
    %177 = arith.addf %172, %176 : vector<8x512xf32>
    %c0_162 = arith.constant 0 : index
    %c49 = arith.constant 49 : index
    %178 = vector.load %arg15[%c0_162, %c49] : memref<8x1864xf32, #tpu.memory_space<vmem>>, vector<8x512xf32>
    %c8_163 = arith.constant 8 : index
    %c0_164 = arith.constant 0 : index
    %c0_165 = arith.constant 0 : index
    %179 = vector.load %arg5[%c8_163, %c0_164, %c0_165] : memref<9x8x8xf32, #tpu.memory_space<vmem>>, vector<1x8x8xf32>
    %180 = vector.shape_cast %179 : vector<1x8x8xf32> to vector<8x8xf32>
    %cst_166 = arith.constant dense<0.000000e+00> : vector<8x512xf32>
    %181 = tpu.matmul %180, %178, %cst_166 {dimension_numbers = #tpu.dot_dimension_numbers<[1], [0], [0], [1], [0, 0, 1, 1], [], []>} : vector<8x8xf32>, vector<8x512xf32>, vector<8x512xf32> -> vector<8x512xf32>
    %182 = arith.addf %177, %181 : vector<8x512xf32>
    %c0_167 = arith.constant 0 : index
    %c0_168 = arith.constant 0 : index
    %183 = vector.load %arg6[%c0_167, %c0_168] : memref<8x1xf32, #tpu.memory_space<vmem>>, vector<8x1xf32>
    %184 = vector.broadcast %183 : vector<8x1xf32> to vector<8x512xf32>
    %185 = arith.addf %182, %184 : vector<8x512xf32>
    %cst_169 = arith.constant 0.000000e+00 : f32
    %186 = vector.broadcast %cst_169 : f32 to vector<8x512xf32>
    %187 = arith.maximumf %185, %186 : vector<8x512xf32>
    %c0_170 = arith.constant 0 : index
    %c0_171 = arith.constant 0 : index
    %188 = vector.load %arg11[%c0_170, %c0_171] : memref<1x512xf32, #tpu.memory_space<vmem>>, vector<1x512xf32>
    %189 = vector.broadcast %188 : vector<1x512xf32> to vector<8x512xf32>
    %190 = arith.mulf %187, %189 : vector<8x512xf32>
    %c0_172 = arith.constant 0 : index
    %c32_173 = arith.constant 32 : index
    %191 = vector.load %arg15[%c0_172, %c32_173] : memref<8x1864xf32, #tpu.memory_space<vmem>>, vector<8x512xf32>
    tpu.vector_store %arg15[%c0_172, %c32_173], %190 {strides = array<i32>} : memref<8x1864xf32, #tpu.memory_space<vmem>>, vector<8x512xf32>,
    %c0_174 = arith.constant 0 : index
    %c15_175 = arith.constant 15 : index
    %192 = vector.load %arg15[%c0_174, %c15_175] : memref<8x1864xf32, #tpu.memory_space<vmem>>, vector<8x512xf32>
    %c0_176 = arith.constant 0 : index
    %c0_177 = arith.constant 0 : index
    %c0_178 = arith.constant 0 : index
    %193 = vector.load %arg7[%c0_176, %c0_177, %c0_178] : memref<9x8x8xf32, #tpu.memory_space<vmem>>, vector<1x8x8xf32>
    %194 = vector.shape_cast %193 : vector<1x8x8xf32> to vector<8x8xf32>
    %cst_179 = arith.constant dense<0.000000e+00> : vector<8x512xf32>
    %195 = tpu.matmul %194, %192, %cst_179 {dimension_numbers = #tpu.dot_dimension_numbers<[1], [0], [0], [1], [0, 0, 1, 1], [], []>} : vector<8x8xf32>, vector<8x512xf32>, vector<8x512xf32> -> vector<8x512xf32>
    %c0_180 = arith.constant 0 : index
    %c16_181 = arith.constant 16 : index
    %196 = vector.load %arg15[%c0_180, %c16_181] : memref<8x1864xf32, #tpu.memory_space<vmem>>, vector<8x512xf32>
    %c1_182 = arith.constant 1 : index
    %c0_183 = arith.constant 0 : index
    %c0_184 = arith.constant 0 : index
    %197 = vector.load %arg7[%c1_182, %c0_183, %c0_184] : memref<9x8x8xf32, #tpu.memory_space<vmem>>, vector<1x8x8xf32>
    %198 = vector.shape_cast %197 : vector<1x8x8xf32> to vector<8x8xf32>
    %cst_185 = arith.constant dense<0.000000e+00> : vector<8x512xf32>
    %199 = tpu.matmul %198, %196, %cst_185 {dimension_numbers = #tpu.dot_dimension_numbers<[1], [0], [0], [1], [0, 0, 1, 1], [], []>} : vector<8x8xf32>, vector<8x512xf32>, vector<8x512xf32> -> vector<8x512xf32>
    %200 = arith.addf %195, %199 : vector<8x512xf32>
    %c0_186 = arith.constant 0 : index
    %c17_187 = arith.constant 17 : index
    %201 = vector.load %arg15[%c0_186, %c17_187] : memref<8x1864xf32, #tpu.memory_space<vmem>>, vector<8x512xf32>
    %c2_188 = arith.constant 2 : index
    %c0_189 = arith.constant 0 : index
    %c0_190 = arith.constant 0 : index
    %202 = vector.load %arg7[%c2_188, %c0_189, %c0_190] : memref<9x8x8xf32, #tpu.memory_space<vmem>>, vector<1x8x8xf32>
    %203 = vector.shape_cast %202 : vector<1x8x8xf32> to vector<8x8xf32>
    %cst_191 = arith.constant dense<0.000000e+00> : vector<8x512xf32>
    %204 = tpu.matmul %203, %201, %cst_191 {dimension_numbers = #tpu.dot_dimension_numbers<[1], [0], [0], [1], [0, 0, 1, 1], [], []>} : vector<8x8xf32>, vector<8x512xf32>, vector<8x512xf32> -> vector<8x512xf32>
    %205 = arith.addf %200, %204 : vector<8x512xf32>
    %c0_192 = arith.constant 0 : index
    %c31_193 = arith.constant 31 : index
    %206 = vector.load %arg15[%c0_192, %c31_193] : memref<8x1864xf32, #tpu.memory_space<vmem>>, vector<8x512xf32>
    %c3_194 = arith.constant 3 : index
    %c0_195 = arith.constant 0 : index
    %c0_196 = arith.constant 0 : index
    %207 = vector.load %arg7[%c3_194, %c0_195, %c0_196] : memref<9x8x8xf32, #tpu.memory_space<vmem>>, vector<1x8x8xf32>
    %208 = vector.shape_cast %207 : vector<1x8x8xf32> to vector<8x8xf32>
    %cst_197 = arith.constant dense<0.000000e+00> : vector<8x512xf32>
    %209 = tpu.matmul %208, %206, %cst_197 {dimension_numbers = #tpu.dot_dimension_numbers<[1], [0], [0], [1], [0, 0, 1, 1], [], []>} : vector<8x8xf32>, vector<8x512xf32>, vector<8x512xf32> -> vector<8x512xf32>
    %210 = arith.addf %205, %209 : vector<8x512xf32>
    %c0_198 = arith.constant 0 : index
    %c32_199 = arith.constant 32 : index
    %211 = vector.load %arg15[%c0_198, %c32_199] : memref<8x1864xf32, #tpu.memory_space<vmem>>, vector<8x512xf32>
    %c4_200 = arith.constant 4 : index
    %c0_201 = arith.constant 0 : index
    %c0_202 = arith.constant 0 : index
    %212 = vector.load %arg7[%c4_200, %c0_201, %c0_202] : memref<9x8x8xf32, #tpu.memory_space<vmem>>, vector<1x8x8xf32>
    %213 = vector.shape_cast %212 : vector<1x8x8xf32> to vector<8x8xf32>
    %cst_203 = arith.constant dense<0.000000e+00> : vector<8x512xf32>
    %214 = tpu.matmul %213, %211, %cst_203 {dimension_numbers = #tpu.dot_dimension_numbers<[1], [0], [0], [1], [0, 0, 1, 1], [], []>} : vector<8x8xf32>, vector<8x512xf32>, vector<8x512xf32> -> vector<8x512xf32>
    %215 = arith.addf %210, %214 : vector<8x512xf32>
    %c0_204 = arith.constant 0 : index
    %c33_205 = arith.constant 33 : index
    %216 = vector.load %arg15[%c0_204, %c33_205] : memref<8x1864xf32, #tpu.memory_space<vmem>>, vector<8x512xf32>
    %c5_206 = arith.constant 5 : index
    %c0_207 = arith.constant 0 : index
    %c0_208 = arith.constant 0 : index
    %217 = vector.load %arg7[%c5_206, %c0_207, %c0_208] : memref<9x8x8xf32, #tpu.memory_space<vmem>>, vector<1x8x8xf32>
    %218 = vector.shape_cast %217 : vector<1x8x8xf32> to vector<8x8xf32>
    %cst_209 = arith.constant dense<0.000000e+00> : vector<8x512xf32>
    %219 = tpu.matmul %218, %216, %cst_209 {dimension_numbers = #tpu.dot_dimension_numbers<[1], [0], [0], [1], [0, 0, 1, 1], [], []>} : vector<8x8xf32>, vector<8x512xf32>, vector<8x512xf32> -> vector<8x512xf32>
    %220 = arith.addf %215, %219 : vector<8x512xf32>
    %c0_210 = arith.constant 0 : index
    %c47_211 = arith.constant 47 : index
    %221 = vector.load %arg15[%c0_210, %c47_211] : memref<8x1864xf32, #tpu.memory_space<vmem>>, vector<8x512xf32>
    %c6_212 = arith.constant 6 : index
    %c0_213 = arith.constant 0 : index
    %c0_214 = arith.constant 0 : index
    %222 = vector.load %arg7[%c6_212, %c0_213, %c0_214] : memref<9x8x8xf32, #tpu.memory_space<vmem>>, vector<1x8x8xf32>
    %223 = vector.shape_cast %222 : vector<1x8x8xf32> to vector<8x8xf32>
    %cst_215 = arith.constant dense<0.000000e+00> : vector<8x512xf32>
    %224 = tpu.matmul %223, %221, %cst_215 {dimension_numbers = #tpu.dot_dimension_numbers<[1], [0], [0], [1], [0, 0, 1, 1], [], []>} : vector<8x8xf32>, vector<8x512xf32>, vector<8x512xf32> -> vector<8x512xf32>
    %225 = arith.addf %220, %224 : vector<8x512xf32>
    %c0_216 = arith.constant 0 : index
    %c48_217 = arith.constant 48 : index
    %226 = vector.load %arg15[%c0_216, %c48_217] : memref<8x1864xf32, #tpu.memory_space<vmem>>, vector<8x512xf32>
    %c7_218 = arith.constant 7 : index
    %c0_219 = arith.constant 0 : index
    %c0_220 = arith.constant 0 : index
    %227 = vector.load %arg7[%c7_218, %c0_219, %c0_220] : memref<9x8x8xf32, #tpu.memory_space<vmem>>, vector<1x8x8xf32>
    %228 = vector.shape_cast %227 : vector<1x8x8xf32> to vector<8x8xf32>
    %cst_221 = arith.constant dense<0.000000e+00> : vector<8x512xf32>
    %229 = tpu.matmul %228, %226, %cst_221 {dimension_numbers = #tpu.dot_dimension_numbers<[1], [0], [0], [1], [0, 0, 1, 1], [], []>} : vector<8x8xf32>, vector<8x512xf32>, vector<8x512xf32> -> vector<8x512xf32>
    %230 = arith.addf %225, %229 : vector<8x512xf32>
    %c0_222 = arith.constant 0 : index
    %c49_223 = arith.constant 49 : index
    %231 = vector.load %arg15[%c0_222, %c49_223] : memref<8x1864xf32, #tpu.memory_space<vmem>>, vector<8x512xf32>
    %c8_224 = arith.constant 8 : index
    %c0_225 = arith.constant 0 : index
    %c0_226 = arith.constant 0 : index
    %232 = vector.load %arg7[%c8_224, %c0_225, %c0_226] : memref<9x8x8xf32, #tpu.memory_space<vmem>>, vector<1x8x8xf32>
    %233 = vector.shape_cast %232 : vector<1x8x8xf32> to vector<8x8xf32>
    %cst_227 = arith.constant dense<0.000000e+00> : vector<8x512xf32>
    %234 = tpu.matmul %233, %231, %cst_227 {dimension_numbers = #tpu.dot_dimension_numbers<[1], [0], [0], [1], [0, 0, 1, 1], [], []>} : vector<8x8xf32>, vector<8x512xf32>, vector<8x512xf32> -> vector<8x512xf32>
    %235 = arith.addf %230, %234 : vector<8x512xf32>
    %c0_228 = arith.constant 0 : index
    %c0_229 = arith.constant 0 : index
    %236 = vector.load %arg8[%c0_228, %c0_229] : memref<8x1xf32, #tpu.memory_space<vmem>>, vector<8x1xf32>
    %237 = vector.broadcast %236 : vector<8x1xf32> to vector<8x512xf32>
    %238 = arith.addf %235, %237 : vector<8x512xf32>
    %cst_230 = arith.constant 0.000000e+00 : f32
    %239 = vector.broadcast %cst_230 : f32 to vector<8x512xf32>
    %240 = arith.maximumf %238, %239 : vector<8x512xf32>
    %c0_231 = arith.constant 0 : index
    %c32_232 = arith.constant 32 : index
    %241 = vector.load %arg15[%c0_231, %c32_232] : memref<8x1864xf32, #tpu.memory_space<vmem>>, vector<8x512xf32>
    tpu.vector_store %arg15[%c0_231, %c32_232], %240 {strides = array<i32>} : memref<8x1864xf32, #tpu.memory_space<vmem>>, vector<8x512xf32>,
    %c0_233 = arith.constant 0 : index
    %c32_234 = arith.constant 32 : index
    %242 = vector.load %arg15[%c0_233, %c32_234] : memref<8x1864xf32, #tpu.memory_space<vmem>>, vector<8x512xf32>
    %c0_235 = arith.constant 0 : index
    %c33_236 = arith.constant 33 : index
    %243 = vector.load %arg15[%c0_235, %c33_236] : memref<8x1864xf32, #tpu.memory_space<vmem>>, vector<8x512xf32>
    %c0_237 = arith.constant 0 : index
    %c48_238 = arith.constant 48 : index
    %244 = vector.load %arg15[%c0_237, %c48_238] : memref<8x1864xf32, #tpu.memory_space<vmem>>, vector<8x512xf32>
    %c0_239 = arith.constant 0 : index
    %c49_240 = arith.constant 49 : index
    %245 = vector.load %arg15[%c0_239, %c49_240] : memref<8x1864xf32, #tpu.memory_space<vmem>>, vector<8x512xf32>
    %246 = arith.maximumf %242, %243 : vector<8x512xf32>
    %247 = arith.maximumf %244, %245 : vector<8x512xf32>
    %248 = arith.maximumf %246, %247 : vector<8x512xf32>
    %c0_241 = arith.constant 0 : index
    %c32_242 = arith.constant 32 : index
    %249 = vector.load %arg15[%c0_241, %c32_242] : memref<8x1864xf32, #tpu.memory_space<vmem>>, vector<8x512xf32>
    tpu.vector_store %arg15[%c0_241, %c32_242], %248 {strides = array<i32>} : memref<8x1864xf32, #tpu.memory_space<vmem>>, vector<8x512xf32>,
    %c0_243 = arith.constant 0 : index
    %c0_244 = arith.constant 0 : index
    %250 = vector.load %arg13[%c0_243, %c0_244] : memref<1x10xf32, #tpu.memory_space<vmem>>, vector<1x10xf32>
    %c0_245 = arith.constant 0 : index
    %c32_246 = arith.constant 32 : index
    %251 = vector.load %arg15[%c0_245, %c32_246] : memref<8x1864xf32, #tpu.memory_space<vmem>>, vector<1x256xf32>
    %c0_247 = arith.constant 0 : index
    %c0_248 = arith.constant 0 : index
    %c0_249 = arith.constant 0 : index
    %252 = vector.load %arg12[%c0_247, %c0_248, %c0_249] : memref<8x256x10xf32, #tpu.memory_space<vmem>>, vector<1x256x10xf32>
    %253 = vector.shape_cast %252 : vector<1x256x10xf32> to vector<256x10xf32>
    %cst_250 = arith.constant dense<0.000000e+00> : vector<1x10xf32>
    %254 = tpu.matmul %251, %253, %cst_250 {dimension_numbers = #tpu.dot_dimension_numbers<[1], [0], [0], [1], [0, 0, 1, 1], [], []>} : vector<1x256xf32>, vector<256x10xf32>, vector<1x10xf32> -> vector<1x10xf32>
    %255 = arith.addf %250, %254 : vector<1x10xf32>
    %c1_251 = arith.constant 1 : index
    %c32_252 = arith.constant 32 : index
    %256 = vector.load %arg15[%c1_251, %c32_252] : memref<8x1864xf32, #tpu.memory_space<vmem>>, vector<1x256xf32>
    %c1_253 = arith.constant 1 : index
    %c0_254 = arith.constant 0 : index
    %c0_255 = arith.constant 0 : index
    %257 = vector.load %arg12[%c1_253, %c0_254, %c0_255] : memref<8x256x10xf32, #tpu.memory_space<vmem>>, vector<1x256x10xf32>
    %258 = vector.shape_cast %257 : vector<1x256x10xf32> to vector<256x10xf32>
    %cst_256 = arith.constant dense<0.000000e+00> : vector<1x10xf32>
    %259 = tpu.matmul %256, %258, %cst_256 {dimension_numbers = #tpu.dot_dimension_numbers<[1], [0], [0], [1], [0, 0, 1, 1], [], []>} : vector<1x256xf32>, vector<256x10xf32>, vector<1x10xf32> -> vector<1x10xf32>
    %260 = arith.addf %255, %259 : vector<1x10xf32>
    %c2_257 = arith.constant 2 : index
    %c32_258 = arith.constant 32 : index
    %261 = vector.load %arg15[%c2_257, %c32_258] : memref<8x1864xf32, #tpu.memory_space<vmem>>, vector<1x256xf32>
    %c2_259 = arith.constant 2 : index
    %c0_260 = arith.constant 0 : index
    %c0_261 = arith.constant 0 : index
    %262 = vector.load %arg12[%c2_259, %c0_260, %c0_261] : memref<8x256x10xf32, #tpu.memory_space<vmem>>, vector<1x256x10xf32>
    %263 = vector.shape_cast %262 : vector<1x256x10xf32> to vector<256x10xf32>
    %cst_262 = arith.constant dense<0.000000e+00> : vector<1x10xf32>
    %264 = tpu.matmul %261, %263, %cst_262 {dimension_numbers = #tpu.dot_dimension_numbers<[1], [0], [0], [1], [0, 0, 1, 1], [], []>} : vector<1x256xf32>, vector<256x10xf32>, vector<1x10xf32> -> vector<1x10xf32>
    %265 = arith.addf %260, %264 : vector<1x10xf32>
    %c3_263 = arith.constant 3 : index
    %c32_264 = arith.constant 32 : index
    %266 = vector.load %arg15[%c3_263, %c32_264] : memref<8x1864xf32, #tpu.memory_space<vmem>>, vector<1x256xf32>
    %c3_265 = arith.constant 3 : index
    %c0_266 = arith.constant 0 : index
    %c0_267 = arith.constant 0 : index
    %267 = vector.load %arg12[%c3_265, %c0_266, %c0_267] : memref<8x256x10xf32, #tpu.memory_space<vmem>>, vector<1x256x10xf32>
    %268 = vector.shape_cast %267 : vector<1x256x10xf32> to vector<256x10xf32>
    %cst_268 = arith.constant dense<0.000000e+00> : vector<1x10xf32>
    %269 = tpu.matmul %266, %268, %cst_268 {dimension_numbers = #tpu.dot_dimension_numbers<[1], [0], [0], [1], [0, 0, 1, 1], [], []>} : vector<1x256xf32>, vector<256x10xf32>, vector<1x10xf32> -> vector<1x10xf32>
    %270 = arith.addf %265, %269 : vector<1x10xf32>
    %c4_269 = arith.constant 4 : index
    %c32_270 = arith.constant 32 : index
    %271 = vector.load %arg15[%c4_269, %c32_270] : memref<8x1864xf32, #tpu.memory_space<vmem>>, vector<1x256xf32>
    %c4_271 = arith.constant 4 : index
    %c0_272 = arith.constant 0 : index
    %c0_273 = arith.constant 0 : index
    %272 = vector.load %arg12[%c4_271, %c0_272, %c0_273] : memref<8x256x10xf32, #tpu.memory_space<vmem>>, vector<1x256x10xf32>
    %273 = vector.shape_cast %272 : vector<1x256x10xf32> to vector<256x10xf32>
    %cst_274 = arith.constant dense<0.000000e+00> : vector<1x10xf32>
    %274 = tpu.matmul %271, %273, %cst_274 {dimension_numbers = #tpu.dot_dimension_numbers<[1], [0], [0], [1], [0, 0, 1, 1], [], []>} : vector<1x256xf32>, vector<256x10xf32>, vector<1x10xf32> -> vector<1x10xf32>
    %275 = arith.addf %270, %274 : vector<1x10xf32>
    %c5_275 = arith.constant 5 : index
    %c32_276 = arith.constant 32 : index
    %276 = vector.load %arg15[%c5_275, %c32_276] : memref<8x1864xf32, #tpu.memory_space<vmem>>, vector<1x256xf32>
    %c5_277 = arith.constant 5 : index
    %c0_278 = arith.constant 0 : index
    %c0_279 = arith.constant 0 : index
    %277 = vector.load %arg12[%c5_277, %c0_278, %c0_279] : memref<8x256x10xf32, #tpu.memory_space<vmem>>, vector<1x256x10xf32>
    %278 = vector.shape_cast %277 : vector<1x256x10xf32> to vector<256x10xf32>
    %cst_280 = arith.constant dense<0.000000e+00> : vector<1x10xf32>
    %279 = tpu.matmul %276, %278, %cst_280 {dimension_numbers = #tpu.dot_dimension_numbers<[1], [0], [0], [1], [0, 0, 1, 1], [], []>} : vector<1x256xf32>, vector<256x10xf32>, vector<1x10xf32> -> vector<1x10xf32>
    %280 = arith.addf %275, %279 : vector<1x10xf32>
    %c6_281 = arith.constant 6 : index
    %c32_282 = arith.constant 32 : index
    %281 = vector.load %arg15[%c6_281, %c32_282] : memref<8x1864xf32, #tpu.memory_space<vmem>>, vector<1x256xf32>
    %c6_283 = arith.constant 6 : index
    %c0_284 = arith.constant 0 : index
    %c0_285 = arith.constant 0 : index
    %282 = vector.load %arg12[%c6_283, %c0_284, %c0_285] : memref<8x256x10xf32, #tpu.memory_space<vmem>>, vector<1x256x10xf32>
    %283 = vector.shape_cast %282 : vector<1x256x10xf32> to vector<256x10xf32>
    %cst_286 = arith.constant dense<0.000000e+00> : vector<1x10xf32>
    %284 = tpu.matmul %281, %283, %cst_286 {dimension_numbers = #tpu.dot_dimension_numbers<[1], [0], [0], [1], [0, 0, 1, 1], [], []>} : vector<1x256xf32>, vector<256x10xf32>, vector<1x10xf32> -> vector<1x10xf32>
    %285 = arith.addf %280, %284 : vector<1x10xf32>
    %c7_287 = arith.constant 7 : index
    %c32_288 = arith.constant 32 : index
    %286 = vector.load %arg15[%c7_287, %c32_288] : memref<8x1864xf32, #tpu.memory_space<vmem>>, vector<1x256xf32>
    %c7_289 = arith.constant 7 : index
    %c0_290 = arith.constant 0 : index
    %c0_291 = arith.constant 0 : index
    %287 = vector.load %arg12[%c7_289, %c0_290, %c0_291] : memref<8x256x10xf32, #tpu.memory_space<vmem>>, vector<1x256x10xf32>
    %288 = vector.shape_cast %287 : vector<1x256x10xf32> to vector<256x10xf32>
    %cst_292 = arith.constant dense<0.000000e+00> : vector<1x10xf32>
    %289 = tpu.matmul %286, %288, %cst_292 {dimension_numbers = #tpu.dot_dimension_numbers<[1], [0], [0], [1], [0, 0, 1, 1], [], []>} : vector<1x256xf32>, vector<256x10xf32>, vector<1x10xf32> -> vector<1x10xf32>
    %290 = arith.addf %285, %289 : vector<1x10xf32>
    %c0_293 = arith.constant 0 : index
    %c0_294 = arith.constant 0 : index
    %291 = vector.load %arg14[%c0_293, %c0_294] : memref<2x10xf32, #tpu.memory_space<vmem>>, vector<1x10xf32>
    tpu.vector_store %arg14[%c0_293, %c0_294], %290 {strides = array<i32>} : memref<2x10xf32, #tpu.memory_space<vmem>>, vector<1x10xf32>,
    %c0_295 = arith.constant 0 : index
    %c0_296 = arith.constant 0 : index
    %292 = vector.load %arg13[%c0_295, %c0_296] : memref<1x10xf32, #tpu.memory_space<vmem>>, vector<1x10xf32>
    %c0_297 = arith.constant 0 : index
    %c288_298 = arith.constant 288 : index
    %293 = vector.load %arg15[%c0_297, %c288_298] : memref<8x1864xf32, #tpu.memory_space<vmem>>, vector<1x256xf32>
    %c0_299 = arith.constant 0 : index
    %c0_300 = arith.constant 0 : index
    %c0_301 = arith.constant 0 : index
    %294 = vector.load %arg12[%c0_299, %c0_300, %c0_301] : memref<8x256x10xf32, #tpu.memory_space<vmem>>, vector<1x256x10xf32>
    %295 = vector.shape_cast %294 : vector<1x256x10xf32> to vector<256x10xf32>
    %cst_302 = arith.constant dense<0.000000e+00> : vector<1x10xf32>
    %296 = tpu.matmul %293, %295, %cst_302 {dimension_numbers = #tpu.dot_dimension_numbers<[1], [0], [0], [1], [0, 0, 1, 1], [], []>} : vector<1x256xf32>, vector<256x10xf32>, vector<1x10xf32> -> vector<1x10xf32>
    %297 = arith.addf %292, %296 : vector<1x10xf32>
    %c1_303 = arith.constant 1 : index
    %c288_304 = arith.constant 288 : index
    %298 = vector.load %arg15[%c1_303, %c288_304] : memref<8x1864xf32, #tpu.memory_space<vmem>>, vector<1x256xf32>
    %c1_305 = arith.constant 1 : index
    %c0_306 = arith.constant 0 : index
    %c0_307 = arith.constant 0 : index
    %299 = vector.load %arg12[%c1_305, %c0_306, %c0_307] : memref<8x256x10xf32, #tpu.memory_space<vmem>>, vector<1x256x10xf32>
    %300 = vector.shape_cast %299 : vector<1x256x10xf32> to vector<256x10xf32>
    %cst_308 = arith.constant dense<0.000000e+00> : vector<1x10xf32>
    %301 = tpu.matmul %298, %300, %cst_308 {dimension_numbers = #tpu.dot_dimension_numbers<[1], [0], [0], [1], [0, 0, 1, 1], [], []>} : vector<1x256xf32>, vector<256x10xf32>, vector<1x10xf32> -> vector<1x10xf32>
    %302 = arith.addf %297, %301 : vector<1x10xf32>
    %c2_309 = arith.constant 2 : index
    %c288_310 = arith.constant 288 : index
    %303 = vector.load %arg15[%c2_309, %c288_310] : memref<8x1864xf32, #tpu.memory_space<vmem>>, vector<1x256xf32>
    %c2_311 = arith.constant 2 : index
    %c0_312 = arith.constant 0 : index
    %c0_313 = arith.constant 0 : index
    %304 = vector.load %arg12[%c2_311, %c0_312, %c0_313] : memref<8x256x10xf32, #tpu.memory_space<vmem>>, vector<1x256x10xf32>
    %305 = vector.shape_cast %304 : vector<1x256x10xf32> to vector<256x10xf32>
    %cst_314 = arith.constant dense<0.000000e+00> : vector<1x10xf32>
    %306 = tpu.matmul %303, %305, %cst_314 {dimension_numbers = #tpu.dot_dimension_numbers<[1], [0], [0], [1], [0, 0, 1, 1], [], []>} : vector<1x256xf32>, vector<256x10xf32>, vector<1x10xf32> -> vector<1x10xf32>
    %307 = arith.addf %302, %306 : vector<1x10xf32>
    %c3_315 = arith.constant 3 : index
    %c288_316 = arith.constant 288 : index
    %308 = vector.load %arg15[%c3_315, %c288_316] : memref<8x1864xf32, #tpu.memory_space<vmem>>, vector<1x256xf32>
    %c3_317 = arith.constant 3 : index
    %c0_318 = arith.constant 0 : index
    %c0_319 = arith.constant 0 : index
    %309 = vector.load %arg12[%c3_317, %c0_318, %c0_319] : memref<8x256x10xf32, #tpu.memory_space<vmem>>, vector<1x256x10xf32>
    %310 = vector.shape_cast %309 : vector<1x256x10xf32> to vector<256x10xf32>
    %cst_320 = arith.constant dense<0.000000e+00> : vector<1x10xf32>
    %311 = tpu.matmul %308, %310, %cst_320 {dimension_numbers = #tpu.dot_dimension_numbers<[1], [0], [0], [1], [0, 0, 1, 1], [], []>} : vector<1x256xf32>, vector<256x10xf32>, vector<1x10xf32> -> vector<1x10xf32>
    %312 = arith.addf %307, %311 : vector<1x10xf32>
    %c4_321 = arith.constant 4 : index
    %c288_322 = arith.constant 288 : index
    %313 = vector.load %arg15[%c4_321, %c288_322] : memref<8x1864xf32, #tpu.memory_space<vmem>>, vector<1x256xf32>
    %c4_323 = arith.constant 4 : index
    %c0_324 = arith.constant 0 : index
    %c0_325 = arith.constant 0 : index
    %314 = vector.load %arg12[%c4_323, %c0_324, %c0_325] : memref<8x256x10xf32, #tpu.memory_space<vmem>>, vector<1x256x10xf32>
    %315 = vector.shape_cast %314 : vector<1x256x10xf32> to vector<256x10xf32>
    %cst_326 = arith.constant dense<0.000000e+00> : vector<1x10xf32>
    %316 = tpu.matmul %313, %315, %cst_326 {dimension_numbers = #tpu.dot_dimension_numbers<[1], [0], [0], [1], [0, 0, 1, 1], [], []>} : vector<1x256xf32>, vector<256x10xf32>, vector<1x10xf32> -> vector<1x10xf32>
    %317 = arith.addf %312, %316 : vector<1x10xf32>
    %c5_327 = arith.constant 5 : index
    %c288_328 = arith.constant 288 : index
    %318 = vector.load %arg15[%c5_327, %c288_328] : memref<8x1864xf32, #tpu.memory_space<vmem>>, vector<1x256xf32>
    %c5_329 = arith.constant 5 : index
    %c0_330 = arith.constant 0 : index
    %c0_331 = arith.constant 0 : index
    %319 = vector.load %arg12[%c5_329, %c0_330, %c0_331] : memref<8x256x10xf32, #tpu.memory_space<vmem>>, vector<1x256x10xf32>
    %320 = vector.shape_cast %319 : vector<1x256x10xf32> to vector<256x10xf32>
    %cst_332 = arith.constant dense<0.000000e+00> : vector<1x10xf32>
    %321 = tpu.matmul %318, %320, %cst_332 {dimension_numbers = #tpu.dot_dimension_numbers<[1], [0], [0], [1], [0, 0, 1, 1], [], []>} : vector<1x256xf32>, vector<256x10xf32>, vector<1x10xf32> -> vector<1x10xf32>
    %322 = arith.addf %317, %321 : vector<1x10xf32>
    %c6_333 = arith.constant 6 : index
    %c288_334 = arith.constant 288 : index
    %323 = vector.load %arg15[%c6_333, %c288_334] : memref<8x1864xf32, #tpu.memory_space<vmem>>, vector<1x256xf32>
    %c6_335 = arith.constant 6 : index
    %c0_336 = arith.constant 0 : index
    %c0_337 = arith.constant 0 : index
    %324 = vector.load %arg12[%c6_335, %c0_336, %c0_337] : memref<8x256x10xf32, #tpu.memory_space<vmem>>, vector<1x256x10xf32>
    %325 = vector.shape_cast %324 : vector<1x256x10xf32> to vector<256x10xf32>
    %cst_338 = arith.constant dense<0.000000e+00> : vector<1x10xf32>
    %326 = tpu.matmul %323, %325, %cst_338 {dimension_numbers = #tpu.dot_dimension_numbers<[1], [0], [0], [1], [0, 0, 1, 1], [], []>} : vector<1x256xf32>, vector<256x10xf32>, vector<1x10xf32> -> vector<1x10xf32>
    %327 = arith.addf %322, %326 : vector<1x10xf32>
    %c7_339 = arith.constant 7 : index
    %c288_340 = arith.constant 288 : index
    %328 = vector.load %arg15[%c7_339, %c288_340] : memref<8x1864xf32, #tpu.memory_space<vmem>>, vector<1x256xf32>
    %c7_341 = arith.constant 7 : index
    %c0_342 = arith.constant 0 : index
    %c0_343 = arith.constant 0 : index
    %329 = vector.load %arg12[%c7_341, %c0_342, %c0_343] : memref<8x256x10xf32, #tpu.memory_space<vmem>>, vector<1x256x10xf32>
    %330 = vector.shape_cast %329 : vector<1x256x10xf32> to vector<256x10xf32>
    %cst_344 = arith.constant dense<0.000000e+00> : vector<1x10xf32>
    %331 = tpu.matmul %328, %330, %cst_344 {dimension_numbers = #tpu.dot_dimension_numbers<[1], [0], [0], [1], [0, 0, 1, 1], [], []>} : vector<1x256xf32>, vector<256x10xf32>, vector<1x10xf32> -> vector<1x10xf32>
    %332 = arith.addf %327, %331 : vector<1x10xf32>
    %c1_345 = arith.constant 1 : index
    %c0_346 = arith.constant 0 : index
    %333 = vector.load %arg14[%c1_345, %c0_346] : memref<2x10xf32, #tpu.memory_space<vmem>>, vector<1x10xf32>
    tpu.vector_store %arg14[%c1_345, %c0_346], %332 {strides = array<i32>} : memref<2x10xf32, #tpu.memory_space<vmem>>, vector<1x10xf32>,
    return
  }
}

</mosaic_0001>

<llo_original>
// kernel: forward.1
$region0: #{forward.1}
  #allocation0 [shape = 'u32[]', space=smem, size = 0x4, offset = 0x4, fixed_abs, tag = 'smem constant byte address 0x4 - core index']
  #allocation1 [shape = 'u32[72,128]{1,0:T(1,128)}', space=vmem, size = 0x9000, scoped, tag = 'internal scratch']
  #allocation2 [shape = 'f32[8,1864]{1,0:T(8,128)}', space=vmem, size = 0xf000, scoped, tag = 'scratch operand']
  %s0 = inlined_call_operand.vmem [shape: f32[1,1864], index: 0, kind: input, shape index: {}]
  %s1 = inlined_call_operand.vmem [shape: f32[9,8,1], index: 1, kind: input, shape index: {}]
  %s2 = inlined_call_operand.vmem [shape: f32[8,1], index: 2, kind: input, shape index: {}]
  %s3 = inlined_call_operand.vmem [shape: f32[9,8,8], index: 3, kind: input, shape index: {}]
  %s4 = inlined_call_operand.vmem [shape: f32[8,1], index: 4, kind: input, shape index: {}]
  %s5 = inlined_call_operand.vmem [shape: f32[9,8,8], index: 5, kind: input, shape index: {}]
  %s6 = inlined_call_operand.vmem [shape: f32[8,1], index: 6, kind: input, shape index: {}]
  %s7 = inlined_call_operand.vmem [shape: f32[9,8,8], index: 7, kind: input, shape index: {}]
  %s8 = inlined_call_operand.vmem [shape: f32[8,1], index: 8, kind: input, shape index: {}]
  %s9 = inlined_call_operand.vmem [shape: f32[1,1800], index: 9, kind: input, shape index: {}]
  %s10 = inlined_call_operand.vmem [shape: f32[900,256], index: 10, kind: input, shape index: {}]
  %s11 = inlined_call_operand.vmem [shape: f32[1,512], index: 11, kind: input, shape index: {}]
  %s12 = inlined_call_operand.vmem [shape: f32[8,256,10], index: 12, kind: input, shape index: {}]
  %s13 = inlined_call_operand.vmem [shape: f32[1,10], index: 13, kind: input, shape index: {}]
  %s14 = inlined_call_operand.hbm [shape: f32[2,10], index: 14, kind: output, shape index: {}]
  %s15 = sld [smem:[#allocation0]]
  $region66: #{forward.1} parent=0
    _
  %s17 = ssub.s32 1, %s15
  %s18 = scalar_select 0, %s17, %s15
  $region1: #{forward.1} parent=0
    #allocation3 [shape = 'u8[1024]{0}', space=vmem, size = 0x400, scoped, tag = 'output window, operand 0, single buffered']
    #allocation4 [shape = 's32[1]{0}', space=sflag, size = 0x4, scoped, tag = 'scoped memory for forward.1']
    %19 = vsyncpa [#allocation4], 0
    // Predicated region
    $region2: #{forward.1} parent=1 // pred_check
      _
    $region3: #{forward.1} parent=1 // pred_check_branch
      %21 = sbr.rel (0) target = $region5
    $region4: #{forward.1} parent=1 // pred_region
      _
    $region5: #{forward.1} parent=1 // pred_fallthru
      _
    // Predicated region
    $region6: #{forward.1} parent=1 // pred_check
      _
    $region7: #{forward.1} parent=1 // pred_check_branch
      %23 = sbr.rel (0) target = $region9
    $region8: #{forward.1} parent=1 // pred_region
      _
    $region9: #{forward.1} parent=1 // pred_fallthru
      _
    // Predicated region
    $region10: #{forward.1} parent=1 // pred_check
      _
    $region11: #{forward.1} parent=1 // pred_check_branch
      %25 = sbr.rel (0) target = $region13
    $region12: #{forward.1} parent=1 // pred_region
      _
    $region13: #{forward.1} parent=1 // pred_fallthru
      _
    // Predicated region
    $region14: #{forward.1} parent=1 // pred_check
      _
    $region15: #{forward.1} parent=1 // pred_check_branch
      %27 = sbr.rel (0) target = $region17
    $region16: #{forward.1} parent=1 // pred_region
      _
    $region17: #{forward.1} parent=1 // pred_fallthru
      _
    // Predicated region
    $region18: #{forward.1} parent=1 // pred_check
      _
    $region19: #{forward.1} parent=1 // pred_check_branch
      %29 = sbr.rel (0) target = $region21
    $region20: #{forward.1} parent=1 // pred_region
      _
    $region21: #{forward.1} parent=1 // pred_fallthru
      _
    // Predicated region
    $region22: #{forward.1} parent=1 // pred_check
      _
    $region23: #{forward.1} parent=1 // pred_check_branch
      %31 = sbr.rel (0) target = $region25
    $region24: #{forward.1} parent=1 // pred_region
      _
    $region25: #{forward.1} parent=1 // pred_fallthru
      _
    // Predicated region
    $region26: #{forward.1} parent=1 // pred_check
      _
    $region27: #{forward.1} parent=1 // pred_check_branch
      %33 = sbr.rel (0) target = $region29
    $region28: #{forward.1} parent=1 // pred_region
      _
    $region29: #{forward.1} parent=1 // pred_fallthru
      _
    // Predicated region
    $region30: #{forward.1} parent=1 // pred_check
      _
    $region31: #{forward.1} parent=1 // pred_check_branch
      %35 = sbr.rel (0) target = $region33
    $region32: #{forward.1} parent=1 // pred_region
      _
    $region33: #{forward.1} parent=1 // pred_fallthru
      _
    // Predicated region
    $region34: #{forward.1} parent=1 // pred_check
      _
    $region35: #{forward.1} parent=1 // pred_check_branch
      %37 = sbr.rel (0) target = $region37
    $region36: #{forward.1} parent=1 // pred_region
      _
    $region37: #{forward.1} parent=1 // pred_fallthru
      _
    // Predicated region
    $region38: #{forward.1} parent=1 // pred_check
      _
    $region39: #{forward.1} parent=1 // pred_check_branch
      %39 = sbr.rel (0) target = $region41
    $region40: #{forward.1} parent=1 // pred_region
      _
    $region41: #{forward.1} parent=1 // pred_fallthru
      _
    // Predicated region
    $region42: #{forward.1} parent=1 // pred_check
      _
    $region43: #{forward.1} parent=1 // pred_check_branch
      %41 = sbr.rel (0) target = $region45
    $region44: #{forward.1} parent=1 // pred_region
      _
    $region45: #{forward.1} parent=1 // pred_fallthru
      _
    // Predicated region
    $region46: #{forward.1} parent=1 // pred_check
      _
    $region47: #{forward.1} parent=1 // pred_check_branch
      %43 = sbr.rel (0) target = $region49
    $region48: #{forward.1} parent=1 // pred_region
      _
    $region49: #{forward.1} parent=1 // pred_fallthru
      _
    // Predicated region
    $region50: #{forward.1} parent=1 // pred_check
      _
    $region51: #{forward.1} parent=1 // pred_check_branch
      %45 = sbr.rel (0) target = $region53
    $region52: #{forward.1} parent=1 // pred_region
      _
    $region53: #{forward.1} parent=1 // pred_fallthru
      _
    // Predicated region
    $region54: #{forward.1} parent=1 // pred_check
      _
    $region55: #{forward.1} parent=1 // pred_check_branch
      %47 = sbr.rel (0) target = $region57
    $region56: #{forward.1} parent=1 // pred_region
      _
    $region57: #{forward.1} parent=1 // pred_fallthru
      _
    %vm48 = vcmask 261120
    %49 = vst.msk [vmem:[#allocation2] sm:$0xff] %vm48, 0.0
    %vm50 = vcmask 589120
    %51 = vst.msk [vmem:[#allocation2 + $0x70] sm:$0xff] %vm50, 0.0
    %v52 = vld [vmem:[%s0] sm:$0xff]
    %v53 = vld [vmem:[%s0 + $0x8] sm:$0x7f]
    %v54 = vld [vmem:[%s1] sm:$0xff]
    %56 = vset.pattern.permute.xlu0 0
    %57 = vperm.xlu0 %56, %v54
    %v58 = vpop.permute.xlu0 %57
    %v62 = vperm.slane %v52, 0
    %v63 = vperm.slane %v52, 1
    %v64 = vperm.slane %v52, 2
    %v65 = vperm.slane %v52, 3
    %v66 = vperm.slane %v52, 4
    %v67 = vperm.slane %v52, 5
    %v68 = vperm.slane %v52, 6
    %v69 = vperm.slane %v52, 7
    %v70 = vperm.slane %v53, 0
    %v71 = vperm.slane %v53, 1
    %v72 = vperm.slane %v53, 2
    %v73 = vperm.slane %v53, 3
    %v74 = vperm.slane %v53, 4
    %v75 = vperm.slane %v53, 5
    %v76 = vperm.slane %v53, 6
    %v92 = vmul.f32 %v58, %v62
    %v93 = vmul.f32 %v58, %v63
    %v94 = vmul.f32 %v58, %v64
    %v95 = vmul.f32 %v58, %v65
    %v96 = vmul.f32 %v58, %v66
    %v97 = vmul.f32 %v58, %v67
    %v98 = vmul.f32 %v58, %v68
    %v99 = vmul.f32 %v58, %v69
    %v100 = vmul.f32 %v58, %v70
    %v101 = vmul.f32 %v58, %v71
    %v102 = vmul.f32 %v58, %v72
    %v103 = vmul.f32 %v58, %v73
    %v104 = vmul.f32 %v58, %v74
    %v105 = vmul.f32 %v58, %v75
    %v106 = vmul.f32 %v58, %v76
    %s107 = scalar_lea.vmem %s1, 8
    %v108 = vld [vmem:[%s107] sm:$0xff]
    %110 = vset.pattern.permute.xlu0 0
    %111 = vperm.xlu0 %110, %v108
    %v112 = vpop.permute.xlu0 %111
    %v114 = vmul.f32 %v112, %v62
    %v115 = vmul.f32 %v112, %v63
    %v116 = vmul.f32 %v112, %v64
    %v117 = vmul.f32 %v112, %v65
    %v118 = vmul.f32 %v112, %v66
    %v119 = vmul.f32 %v112, %v67
    %v120 = vmul.f32 %v112, %v68
    %v121 = vmul.f32 %v112, %v69
    %v122 = vmul.f32 %v112, %v70
    %v123 = vmul.f32 %v112, %v71
    %v124 = vmul.f32 %v112, %v72
    %v125 = vmul.f32 %v112, %v73
    %v126 = vmul.f32 %v112, %v74
    %v127 = vmul.f32 %v112, %v75
    %v128 = vmul.f32 %v112, %v76
    %144 = vrot.lane.b32.xlu0 %v114, 127
    %v145 = vpop.permute.xlu0 %144
    %146 = vrot.lane.b32.xlu0 %v115, 127
    %v147 = vpop.permute.xlu0 %146
    %148 = vrot.lane.b32.xlu0 %v116, 127
    %v149 = vpop.permute.xlu0 %148
    %150 = vrot.lane.b32.xlu0 %v117, 127
    %v151 = vpop.permute.xlu0 %150
    %152 = vrot.lane.b32.xlu0 %v118, 127
    %v153 = vpop.permute.xlu0 %152
    %154 = vrot.lane.b32.xlu0 %v119, 127
    %v155 = vpop.permute.xlu0 %154
    %156 = vrot.lane.b32.xlu0 %v120, 127
    %v157 = vpop.permute.xlu0 %156
    %158 = vrot.lane.b32.xlu0 %v121, 127
    %v159 = vpop.permute.xlu0 %158
    %160 = vrot.lane.b32.xlu0 %v122, 127
    %v161 = vpop.permute.xlu0 %160
    %162 = vrot.lane.b32.xlu0 %v123, 127
    %v163 = vpop.permute.xlu0 %162
    %164 = vrot.lane.b32.xlu0 %v124, 127
    %v165 = vpop.permute.xlu0 %164
    %166 = vrot.lane.b32.xlu0 %v125, 127
    %v167 = vpop.permute.xlu0 %166
    %168 = vrot.lane.b32.xlu0 %v126, 127
    %v169 = vpop.permute.xlu0 %168
    %170 = vrot.lane.b32.xlu0 %v127, 127
    %v171 = vpop.permute.xlu0 %170
    %172 = vrot.lane.b32.xlu0 %v128, 127
    %v173 = vpop.permute.xlu0 %172
    %vm174 = vcmask 1039360
    %v175 = vsel %vm174, %v145, %v147
    %v176 = vsel %vm174, %v147, %v149
    %v177 = vsel %vm174, %v149, %v151
    %v178 = vsel %vm174, %v151, %v153
    %v179 = vsel %vm174, %v153, %v155
    %v180 = vsel %vm174, %v155, %v157
    %v181 = vsel %vm174, %v157, %v159
    %v182 = vsel %vm174, %v159, %v161
    %v183 = vsel %vm174, %v161, %v163
    %v184 = vsel %vm174, %v163, %v165
    %v185 = vsel %vm174, %v165, %v167
    %v186 = vsel %vm174, %v167, %v169
    %v187 = vsel %vm174, %v169, %v171
    %v188 = vsel %vm174, %v171, %v173
    %v204 = vadd.f32 %v92, %v175
    %v205 = vadd.f32 %v93, %v176
    %v206 = vadd.f32 %v94, %v177
    %v207 = vadd.f32 %v95, %v178
    %v208 = vadd.f32 %v96, %v179
    %v209 = vadd.f32 %v97, %v180
    %v210 = vadd.f32 %v98, %v181
    %v211 = vadd.f32 %v99, %v182
    %v212 = vadd.f32 %v100, %v183
    %v213 = vadd.f32 %v101, %v184
    %v214 = vadd.f32 %v102, %v185
    %v215 = vadd.f32 %v103, %v186
    %v216 = vadd.f32 %v104, %v187
    %v217 = vadd.f32 %v105, %v188
    %v218 = vadd.f32 %v106, %v173
    %s219 = scalar_lea.vmem %s1, 16
    %v220 = vld [vmem:[%s219] sm:$0xff]
    %222 = vset.pattern.permute.xlu0 0
    %223 = vperm.xlu0 %222, %v220
    %v224 = vpop.permute.xlu0 %223
    %v226 = vmul.f32 %v224, %v62
    %v227 = vmul.f32 %v224, %v63
    %v228 = vmul.f32 %v224, %v64
    %v229 = vmul.f32 %v224, %v65
    %v230 = vmul.f32 %v224, %v66
    %v231 = vmul.f32 %v224, %v67
    %v232 = vmul.f32 %v224, %v68
    %v233 = vmul.f32 %v224, %v69
    %v234 = vmul.f32 %v224, %v70
    %v235 = vmul.f32 %v224, %v71
    %v236 = vmul.f32 %v224, %v72
    %v237 = vmul.f32 %v224, %v73
    %v238 = vmul.f32 %v224, %v74
    %v239 = vmul.f32 %v224, %v75
    %v240 = vmul.f32 %v224, %v76
    %256 = vrot.lane.b32.xlu0 %v226, 126
    %v257 = vpop.permute.xlu0 %256
    %258 = vrot.lane.b32.xlu0 %v227, 126
    %v259 = vpop.permute.xlu0 %258
    %260 = vrot.lane.b32.xlu0 %v228, 126
    %v261 = vpop.permute.xlu0 %260
    %262 = vrot.lane.b32.xlu0 %v229, 126
    %v263 = vpop.permute.xlu0 %262
    %264 = vrot.lane.b32.xlu0 %v230, 126
    %v265 = vpop.permute.xlu0 %264
    %266 = vrot.lane.b32.xlu0 %v231, 126
    %v267 = vpop.permute.xlu0 %266
    %268 = vrot.lane.b32.xlu0 %v232, 126
    %v269 = vpop.permute.xlu0 %268
    %270 = vrot.lane.b32.xlu0 %v233, 126
    %v271 = vpop.permute.xlu0 %270
    %272 = vrot.lane.b32.xlu0 %v234, 126
    %v273 = vpop.permute.xlu0 %272
    %274 = vrot.lane.b32.xlu0 %v235, 126
    %v275 = vpop.permute.xlu0 %274
    %276 = vrot.lane.b32.xlu0 %v236, 126
    %v277 = vpop.permute.xlu0 %276
    %278 = vrot.lane.b32.xlu0 %v237, 126
    %v279 = vpop.permute.xlu0 %278
    %280 = vrot.lane.b32.xlu0 %v238, 126
    %v281 = vpop.permute.xlu0 %280
    %282 = vrot.lane.b32.xlu0 %v239, 126
    %v283 = vpop.permute.xlu0 %282
    %284 = vrot.lane.b32.xlu0 %v240, 126
    %v285 = vpop.permute.xlu0 %284
    %vm286 = vcmask 1031168
    %v287 = vsel %vm286, %v257, %v259
    %v288 = vsel %vm286, %v259, %v261
    %v289 = vsel %vm286, %v261, %v263
    %v290 = vsel %vm286, %v263, %v265
    %v291 = vsel %vm286, %v265, %v267
    %v292 = vsel %vm286, %v267, %v269
    %v293 = vsel %vm286, %v269, %v271
    %v294 = vsel %vm286, %v271, %v273
    %v295 = vsel %vm286, %v273, %v275
    %v296 = vsel %vm286, %v275, %v277
    %v297 = vsel %vm286, %v277, %v279
    %v298 = vsel %vm286, %v279, %v281
    %v299 = vsel %vm286, %v281, %v283
    %v300 = vsel %vm286, %v283, %v285
    %v316 = vadd.f32 %v204, %v287
    %v317 = vadd.f32 %v205, %v288
    %v318 = vadd.f32 %v206, %v289
    %v319 = vadd.f32 %v207, %v290
    %v320 = vadd.f32 %v208, %v291
    %v321 = vadd.f32 %v209, %v292
    %v322 = vadd.f32 %v210, %v293
    %v323 = vadd.f32 %v211, %v294
    %v324 = vadd.f32 %v212, %v295
    %v325 = vadd.f32 %v213, %v296
    %v326 = vadd.f32 %v214, %v297
    %v327 = vadd.f32 %v215, %v298
    %v328 = vadd.f32 %v216, %v299
    %v329 = vadd.f32 %v217, %v300
    %v330 = vadd.f32 %v218, %v285
    %s331 = scalar_lea.vmem %s1, 24
    %v332 = vld [vmem:[%s331] sm:$0xff]
    %334 = vset.pattern.permute.xlu0 0
    %335 = vperm.xlu0 %334, %v332
    %v336 = vpop.permute.xlu0 %335
    %v338 = vmul.f32 %v336, %v62
    %v339 = vmul.f32 %v336, %v63
    %v340 = vmul.f32 %v336, %v64
    %v341 = vmul.f32 %v336, %v65
    %v342 = vmul.f32 %v336, %v66
    %v343 = vmul.f32 %v336, %v67
    %v344 = vmul.f32 %v336, %v68
    %v345 = vmul.f32 %v336, %v69
    %v346 = vmul.f32 %v336, %v70
    %v347 = vmul.f32 %v336, %v71
    %v348 = vmul.f32 %v336, %v72
    %v349 = vmul.f32 %v336, %v73
    %v350 = vmul.f32 %v336, %v74
    %v351 = vmul.f32 %v336, %v75
    %v352 = vmul.f32 %v336, %v76
    %368 = vrot.lane.b32.xlu0 %v338, 98
    %v369 = vpop.permute.xlu0 %368
    %370 = vrot.lane.b32.xlu0 %v339, 98
    %v371 = vpop.permute.xlu0 %370
    %372 = vrot.lane.b32.xlu0 %v340, 98
    %v373 = vpop.permute.xlu0 %372
    %374 = vrot.lane.b32.xlu0 %v341, 98
    %v375 = vpop.permute.xlu0 %374
    %376 = vrot.lane.b32.xlu0 %v342, 98
    %v377 = vpop.permute.xlu0 %376
    %378 = vrot.lane.b32.xlu0 %v343, 98
    %v379 = vpop.permute.xlu0 %378
    %380 = vrot.lane.b32.xlu0 %v344, 98
    %v381 = vpop.permute.xlu0 %380
    %382 = vrot.lane.b32.xlu0 %v345, 98
    %v383 = vpop.permute.xlu0 %382
    %384 = vrot.lane.b32.xlu0 %v346, 98
    %v385 = vpop.permute.xlu0 %384
    %386 = vrot.lane.b32.xlu0 %v347, 98
    %v387 = vpop.permute.xlu0 %386
    %388 = vrot.lane.b32.xlu0 %v348, 98
    %v389 = vpop.permute.xlu0 %388
    %390 = vrot.lane.b32.xlu0 %v349, 98
    %v391 = vpop.permute.xlu0 %390
    %392 = vrot.lane.b32.xlu0 %v350, 98
    %v393 = vpop.permute.xlu0 %392
    %394 = vrot.lane.b32.xlu0 %v351, 98
    %v395 = vpop.permute.xlu0 %394
    %396 = vrot.lane.b32.xlu0 %v352, 98
    %v397 = vpop.permute.xlu0 %396
    %vm398 = vcmask 801792
    %v399 = vsel %vm398, %v369, %v371
    %v400 = vsel %vm398, %v371, %v373
    %v401 = vsel %vm398, %v373, %v375
    %v402 = vsel %vm398, %v375, %v377
    %v403 = vsel %vm398, %v377, %v379
    %v404 = vsel %vm398, %v379, %v381
    %v405 = vsel %vm398, %v381, %v383
    %v406 = vsel %vm398, %v383, %v385
    %v407 = vsel %vm398, %v385, %v387
    %v408 = vsel %vm398, %v387, %v389
    %v409 = vsel %vm398, %v389, %v391
    %v410 = vsel %vm398, %v391, %v393
    %v411 = vsel %vm398, %v393, %v395
    %v412 = vsel %vm398, %v395, %v397
    %v428 = vadd.f32 %v316, %v399
    %v429 = vadd.f32 %v317, %v400
    %v430 = vadd.f32 %v318, %v401
    %v431 = vadd.f32 %v319, %v402
    %v432 = vadd.f32 %v320, %v403
    %v433 = vadd.f32 %v321, %v404
    %v434 = vadd.f32 %v322, %v405
    %v435 = vadd.f32 %v323, %v406
    %v436 = vadd.f32 %v324, %v407
    %v437 = vadd.f32 %v325, %v408
    %v438 = vadd.f32 %v326, %v409
    %v439 = vadd.f32 %v327, %v410
    %v440 = vadd.f32 %v328, %v411
    %v441 = vadd.f32 %v329, %v412
    %v442 = vadd.f32 %v330, %v397
    %s443 = scalar_lea.vmem %s1, 32
    %v444 = vld [vmem:[%s443] sm:$0xff]
    %446 = vset.pattern.permute.xlu0 0
    %447 = vperm.xlu0 %446, %v444
    %v448 = vpop.permute.xlu0 %447
    %v450 = vmul.f32 %v448, %v62
    %v451 = vmul.f32 %v448, %v63
    %v452 = vmul.f32 %v448, %v64
    %v453 = vmul.f32 %v448, %v65
    %v454 = vmul.f32 %v448, %v66
    %v455 = vmul.f32 %v448, %v67
    %v456 = vmul.f32 %v448, %v68
    %v457 = vmul.f32 %v448, %v69
    %v458 = vmul.f32 %v448, %v70
    %v459 = vmul.f32 %v448, %v71
    %v460 = vmul.f32 %v448, %v72
    %v461 = vmul.f32 %v448, %v73
    %v462 = vmul.f32 %v448, %v74
    %v463 = vmul.f32 %v448, %v75
    %v464 = vmul.f32 %v448, %v76
    %480 = vrot.lane.b32.xlu0 %v450, 97
    %v481 = vpop.permute.xlu0 %480
    %482 = vrot.lane.b32.xlu0 %v451, 97
    %v483 = vpop.permute.xlu0 %482
    %484 = vrot.lane.b32.xlu0 %v452, 97
    %v485 = vpop.permute.xlu0 %484
    %486 = vrot.lane.b32.xlu0 %v453, 97
    %v487 = vpop.permute.xlu0 %486
    %488 = vrot.lane.b32.xlu0 %v454, 97
    %v489 = vpop.permute.xlu0 %488
    %490 = vrot.lane.b32.xlu0 %v455, 97
    %v491 = vpop.permute.xlu0 %490
    %492 = vrot.lane.b32.xlu0 %v456, 97
    %v493 = vpop.permute.xlu0 %492
    %494 = vrot.lane.b32.xlu0 %v457, 97
    %v495 = vpop.permute.xlu0 %494
    %496 = vrot.lane.b32.xlu0 %v458, 97
    %v497 = vpop.permute.xlu0 %496
    %498 = vrot.lane.b32.xlu0 %v459, 97
    %v499 = vpop.permute.xlu0 %498
    %500 = vrot.lane.b32.xlu0 %v460, 97
    %v501 = vpop.permute.xlu0 %500
    %502 = vrot.lane.b32.xlu0 %v461, 97
    %v503 = vpop.permute.xlu0 %502
    %504 = vrot.lane.b32.xlu0 %v462, 97
    %v505 = vpop.permute.xlu0 %504
    %506 = vrot.lane.b32.xlu0 %v463, 97
    %v507 = vpop.permute.xlu0 %506
    %508 = vrot.lane.b32.xlu0 %v464, 97
    %v509 = vpop.permute.xlu0 %508
    %vm510 = vcmask 793600
    %v511 = vsel %vm510, %v481, %v483
    %v512 = vsel %vm510, %v483, %v485
    %v513 = vsel %vm510, %v485, %v487
    %v514 = vsel %vm510, %v487, %v489
    %v515 = vsel %vm510, %v489, %v491
    %v516 = vsel %vm510, %v491, %v493
    %v517 = vsel %vm510, %v493, %v495
    %v518 = vsel %vm510, %v495, %v497
    %v519 = vsel %vm510, %v497, %v499
    %v520 = vsel %vm510, %v499, %v501
    %v521 = vsel %vm510, %v501, %v503
    %v522 = vsel %vm510, %v503, %v505
    %v523 = vsel %vm510, %v505, %v507
    %v524 = vsel %vm510, %v507, %v509
    %v540 = vadd.f32 %v428, %v511
    %v541 = vadd.f32 %v429, %v512
    %v542 = vadd.f32 %v430, %v513
    %v543 = vadd.f32 %v431, %v514
    %v544 = vadd.f32 %v432, %v515
    %v545 = vadd.f32 %v433, %v516
    %v546 = vadd.f32 %v434, %v517
    %v547 = vadd.f32 %v435, %v518
    %v548 = vadd.f32 %v436, %v519
    %v549 = vadd.f32 %v437, %v520
    %v550 = vadd.f32 %v438, %v521
    %v551 = vadd.f32 %v439, %v522
    %v552 = vadd.f32 %v440, %v523
    %v553 = vadd.f32 %v441, %v524
    %v554 = vadd.f32 %v442, %v509
    %s555 = scalar_lea.vmem %s1, 40
    %v556 = vld [vmem:[%s555] sm:$0xff]
    %558 = vset.pattern.permute.xlu0 0
    %559 = vperm.xlu0 %558, %v556
    %v560 = vpop.permute.xlu0 %559
    %v562 = vmul.f32 %v560, %v62
    %v563 = vmul.f32 %v560, %v63
    %v564 = vmul.f32 %v560, %v64
    %v565 = vmul.f32 %v560, %v65
    %v566 = vmul.f32 %v560, %v66
    %v567 = vmul.f32 %v560, %v67
    %v568 = vmul.f32 %v560, %v68
    %v569 = vmul.f32 %v560, %v69
    %v570 = vmul.f32 %v560, %v70
    %v571 = vmul.f32 %v560, %v71
    %v572 = vmul.f32 %v560, %v72
    %v573 = vmul.f32 %v560, %v73
    %v574 = vmul.f32 %v560, %v74
    %v575 = vmul.f32 %v560, %v75
    %v576 = vmul.f32 %v560, %v76
    %592 = vrot.lane.b32.xlu0 %v562, 96
    %v593 = vpop.permute.xlu0 %592
    %594 = vrot.lane.b32.xlu0 %v563, 96
    %v595 = vpop.permute.xlu0 %594
    %596 = vrot.lane.b32.xlu0 %v564, 96
    %v597 = vpop.permute.xlu0 %596
    %598 = vrot.lane.b32.xlu0 %v565, 96
    %v599 = vpop.permute.xlu0 %598
    %600 = vrot.lane.b32.xlu0 %v566, 96
    %v601 = vpop.permute.xlu0 %600
    %602 = vrot.lane.b32.xlu0 %v567, 96
    %v603 = vpop.permute.xlu0 %602
    %604 = vrot.lane.b32.xlu0 %v568, 96
    %v605 = vpop.permute.xlu0 %604
    %606 = vrot.lane.b32.xlu0 %v569, 96
    %v607 = vpop.permute.xlu0 %606
    %608 = vrot.lane.b32.xlu0 %v570, 96
    %v609 = vpop.permute.xlu0 %608
    %610 = vrot.lane.b32.xlu0 %v571, 96
    %v611 = vpop.permute.xlu0 %610
    %612 = vrot.lane.b32.xlu0 %v572, 96
    %v613 = vpop.permute.xlu0 %612
    %614 = vrot.lane.b32.xlu0 %v573, 96
    %v615 = vpop.permute.xlu0 %614
    %616 = vrot.lane.b32.xlu0 %v574, 96
    %v617 = vpop.permute.xlu0 %616
    %618 = vrot.lane.b32.xlu0 %v575, 96
    %v619 = vpop.permute.xlu0 %618
    %620 = vrot.lane.b32.xlu0 %v576, 96
    %v621 = vpop.permute.xlu0 %620
    %vm622 = vcmask 785408
    %v623 = vsel %vm622, %v593, %v595
    %v624 = vsel %vm622, %v595, %v597
    %v625 = vsel %vm622, %v597, %v599
    %v626 = vsel %vm622, %v599, %v601
    %v627 = vsel %vm622, %v601, %v603
    %v628 = vsel %vm622, %v603, %v605
    %v629 = vsel %vm622, %v605, %v607
    %v630 = vsel %vm622, %v607, %v609
    %v631 = vsel %vm622, %v609, %v611
    %v632 = vsel %vm622, %v611, %v613
    %v633 = vsel %vm622, %v613, %v615
    %v634 = vsel %vm622, %v615, %v617
    %v635 = vsel %vm622, %v617, %v619
    %v636 = vsel %vm622, %v619, %v621
    %v652 = vadd.f32 %v540, %v623
    %v653 = vadd.f32 %v541, %v624
    %v654 = vadd.f32 %v542, %v625
    %v655 = vadd.f32 %v543, %v626
    %v656 = vadd.f32 %v544, %v627
    %v657 = vadd.f32 %v545, %v628
    %v658 = vadd.f32 %v546, %v629
    %v659 = vadd.f32 %v547, %v630
    %v660 = vadd.f32 %v548, %v631
    %v661 = vadd.f32 %v549, %v632
    %v662 = vadd.f32 %v550, %v633
    %v663 = vadd.f32 %v551, %v634
    %v664 = vadd.f32 %v552, %v635
    %v665 = vadd.f32 %v553, %v636
    %v666 = vadd.f32 %v554, %v621
    %s667 = scalar_lea.vmem %s1, 48
    %v668 = vld [vmem:[%s667] sm:$0xff]
    %670 = vset.pattern.permute.xlu0 0
    %671 = vperm.xlu0 %670, %v668
    %v672 = vpop.permute.xlu0 %671
    %v674 = vmul.f32 %v672, %v62
    %v675 = vmul.f32 %v672, %v63
    %v676 = vmul.f32 %v672, %v64
    %v677 = vmul.f32 %v672, %v65
    %v678 = vmul.f32 %v672, %v66
    %v679 = vmul.f32 %v672, %v67
    %v680 = vmul.f32 %v672, %v68
    %v681 = vmul.f32 %v672, %v69
    %v682 = vmul.f32 %v672, %v70
    %v683 = vmul.f32 %v672, %v71
    %v684 = vmul.f32 %v672, %v72
    %v685 = vmul.f32 %v672, %v73
    %v686 = vmul.f32 %v672, %v74
    %v687 = vmul.f32 %v672, %v75
    %v688 = vmul.f32 %v672, %v76
    %704 = vrot.lane.b32.xlu0 %v674, 68
    %v705 = vpop.permute.xlu0 %704
    %706 = vrot.lane.b32.xlu0 %v675, 68
    %v707 = vpop.permute.xlu0 %706
    %708 = vrot.lane.b32.xlu0 %v676, 68
    %v709 = vpop.permute.xlu0 %708
    %710 = vrot.lane.b32.xlu0 %v677, 68
    %v711 = vpop.permute.xlu0 %710
    %712 = vrot.lane.b32.xlu0 %v678, 68
    %v713 = vpop.permute.xlu0 %712
    %714 = vrot.lane.b32.xlu0 %v679, 68
    %v715 = vpop.permute.xlu0 %714
    %716 = vrot.lane.b32.xlu0 %v680, 68
    %v717 = vpop.permute.xlu0 %716
    %718 = vrot.lane.b32.xlu0 %v681, 68
    %v719 = vpop.permute.xlu0 %718
    %720 = vrot.lane.b32.xlu0 %v682, 68
    %v721 = vpop.permute.xlu0 %720
    %722 = vrot.lane.b32.xlu0 %v683, 68
    %v723 = vpop.permute.xlu0 %722
    %724 = vrot.lane.b32.xlu0 %v684, 68
    %v725 = vpop.permute.xlu0 %724
    %726 = vrot.lane.b32.xlu0 %v685, 68
    %v727 = vpop.permute.xlu0 %726
    %728 = vrot.lane.b32.xlu0 %v686, 68
    %v729 = vpop.permute.xlu0 %728
    %730 = vrot.lane.b32.xlu0 %v687, 68
    %v731 = vpop.permute.xlu0 %730
    %732 = vrot.lane.b32.xlu0 %v688, 68
    %v733 = vpop.permute.xlu0 %732
    %vm734 = vcmask 556032
    %v735 = vsel %vm734, %v705, %v707
    %v736 = vsel %vm734, %v707, %v709
    %v737 = vsel %vm734, %v709, %v711
    %v738 = vsel %vm734, %v711, %v713
    %v739 = vsel %vm734, %v713, %v715
    %v740 = vsel %vm734, %v715, %v717
    %v741 = vsel %vm734, %v717, %v719
    %v742 = vsel %vm734, %v719, %v721
    %v743 = vsel %vm734, %v721, %v723
    %v744 = vsel %vm734, %v723, %v725
    %v745 = vsel %vm734, %v725, %v727
    %v746 = vsel %vm734, %v727, %v729
    %v747 = vsel %vm734, %v729, %v731
    %v748 = vsel %vm734, %v731, %v733
    %v764 = vadd.f32 %v652, %v735
    %v765 = vadd.f32 %v653, %v736
    %v766 = vadd.f32 %v654, %v737
    %v767 = vadd.f32 %v655, %v738
    %v768 = vadd.f32 %v656, %v739
    %v769 = vadd.f32 %v657, %v740
    %v770 = vadd.f32 %v658, %v741
    %v771 = vadd.f32 %v659, %v742
    %v772 = vadd.f32 %v660, %v743
    %v773 = vadd.f32 %v661, %v744
    %v774 = vadd.f32 %v662, %v745
    %v775 = vadd.f32 %v663, %v746
    %v776 = vadd.f32 %v664, %v747
    %v777 = vadd.f32 %v665, %v748
    %v778 = vadd.f32 %v666, %v733
    %s779 = scalar_lea.vmem %s1, 56
    %v780 = vld [vmem:[%s779] sm:$0xff]
    %782 = vset.pattern.permute.xlu0 0
    %783 = vperm.xlu0 %782, %v780
    %v784 = vpop.permute.xlu0 %783
    %v786 = vmul.f32 %v784, %v62
    %v787 = vmul.f32 %v784, %v63
    %v788 = vmul.f32 %v784, %v64
    %v789 = vmul.f32 %v784, %v65
    %v790 = vmul.f32 %v784, %v66
    %v791 = vmul.f32 %v784, %v67
    %v792 = vmul.f32 %v784, %v68
    %v793 = vmul.f32 %v784, %v69
    %v794 = vmul.f32 %v784, %v70
    %v795 = vmul.f32 %v784, %v71
    %v796 = vmul.f32 %v784, %v72
    %v797 = vmul.f32 %v784, %v73
    %v798 = vmul.f32 %v784, %v74
    %v799 = vmul.f32 %v784, %v75
    %v800 = vmul.f32 %v784, %v76
    %816 = vrot.lane.b32.xlu0 %v786, 67
    %v817 = vpop.permute.xlu0 %816
    %818 = vrot.lane.b32.xlu0 %v787, 67
    %v819 = vpop.permute.xlu0 %818
    %820 = vrot.lane.b32.xlu0 %v788, 67
    %v821 = vpop.permute.xlu0 %820
    %822 = vrot.lane.b32.xlu0 %v789, 67
    %v823 = vpop.permute.xlu0 %822
    %824 = vrot.lane.b32.xlu0 %v790, 67
    %v825 = vpop.permute.xlu0 %824
    %826 = vrot.lane.b32.xlu0 %v791, 67
    %v827 = vpop.permute.xlu0 %826
    %828 = vrot.lane.b32.xlu0 %v792, 67
    %v829 = vpop.permute.xlu0 %828
    %830 = vrot.lane.b32.xlu0 %v793, 67
    %v831 = vpop.permute.xlu0 %830
    %832 = vrot.lane.b32.xlu0 %v794, 67
    %v833 = vpop.permute.xlu0 %832
    %834 = vrot.lane.b32.xlu0 %v795, 67
    %v835 = vpop.permute.xlu0 %834
    %836 = vrot.lane.b32.xlu0 %v796, 67
    %v837 = vpop.permute.xlu0 %836
    %838 = vrot.lane.b32.xlu0 %v797, 67
    %v839 = vpop.permute.xlu0 %838
    %840 = vrot.lane.b32.xlu0 %v798, 67
    %v841 = vpop.permute.xlu0 %840
    %842 = vrot.lane.b32.xlu0 %v799, 67
    %v843 = vpop.permute.xlu0 %842
    %844 = vrot.lane.b32.xlu0 %v800, 67
    %v845 = vpop.permute.xlu0 %844
    %vm846 = vcmask 547840
    %v847 = vsel %vm846, %v817, %v819
    %v848 = vsel %vm846, %v819, %v821
    %v849 = vsel %vm846, %v821, %v823
    %v850 = vsel %vm846, %v823, %v825
    %v851 = vsel %vm846, %v825, %v827
    %v852 = vsel %vm846, %v827, %v829
    %v853 = vsel %vm846, %v829, %v831
    %v854 = vsel %vm846, %v831, %v833
    %v855 = vsel %vm846, %v833, %v835
    %v856 = vsel %vm846, %v835, %v837
    %v857 = vsel %vm846, %v837, %v839
    %v858 = vsel %vm846, %v839, %v841
    %v859 = vsel %vm846, %v841, %v843
    %v860 = vsel %vm846, %v843, %v845
    %v876 = vadd.f32 %v764, %v847
    %v877 = vadd.f32 %v765, %v848
    %v878 = vadd.f32 %v766, %v849
    %v879 = vadd.f32 %v767, %v850
    %v880 = vadd.f32 %v768, %v851
    %v881 = vadd.f32 %v769, %v852
    %v882 = vadd.f32 %v770, %v853
    %v883 = vadd.f32 %v771, %v854
    %v884 = vadd.f32 %v772, %v855
    %v885 = vadd.f32 %v773, %v856
    %v886 = vadd.f32 %v774, %v857
    %v887 = vadd.f32 %v775, %v858
    %v888 = vadd.f32 %v776, %v859
    %v889 = vadd.f32 %v777, %v860
    %v890 = vadd.f32 %v778, %v845
    %s891 = scalar_lea.vmem %s1, 64
    %v892 = vld [vmem:[%s891] sm:$0xff]
    %894 = vset.pattern.permute.xlu0 0
    %895 = vperm.xlu0 %894, %v892
    %v896 = vpop.permute.xlu0 %895
    %v898 = vmul.f32 %v896, %v62
    %v899 = vmul.f32 %v896, %v63
    %v900 = vmul.f32 %v896, %v64
    %v901 = vmul.f32 %v896, %v65
    %v902 = vmul.f32 %v896, %v66
    %v903 = vmul.f32 %v896, %v67
    %v904 = vmul.f32 %v896, %v68
    %v905 = vmul.f32 %v896, %v69
    %v906 = vmul.f32 %v896, %v70
    %v907 = vmul.f32 %v896, %v71
    %v908 = vmul.f32 %v896, %v72
    %v909 = vmul.f32 %v896, %v73
    %v910 = vmul.f32 %v896, %v74
    %v911 = vmul.f32 %v896, %v75
    %v912 = vmul.f32 %v896, %v76
    %928 = vrot.lane.b32.xlu0 %v898, 66
    %v929 = vpop.permute.xlu0 %928
    %930 = vrot.lane.b32.xlu0 %v899, 66
    %v931 = vpop.permute.xlu0 %930
    %932 = vrot.lane.b32.xlu0 %v900, 66
    %v933 = vpop.permute.xlu0 %932
    %934 = vrot.lane.b32.xlu0 %v901, 66
    %v935 = vpop.permute.xlu0 %934
    %936 = vrot.lane.b32.xlu0 %v902, 66
    %v937 = vpop.permute.xlu0 %936
    %938 = vrot.lane.b32.xlu0 %v903, 66
    %v939 = vpop.permute.xlu0 %938
    %940 = vrot.lane.b32.xlu0 %v904, 66
    %v941 = vpop.permute.xlu0 %940
    %942 = vrot.lane.b32.xlu0 %v905, 66
    %v943 = vpop.permute.xlu0 %942
    %944 = vrot.lane.b32.xlu0 %v906, 66
    %v945 = vpop.permute.xlu0 %944
    %946 = vrot.lane.b32.xlu0 %v907, 66
    %v947 = vpop.permute.xlu0 %946
    %948 = vrot.lane.b32.xlu0 %v908, 66
    %v949 = vpop.permute.xlu0 %948
    %950 = vrot.lane.b32.xlu0 %v909, 66
    %v951 = vpop.permute.xlu0 %950
    %952 = vrot.lane.b32.xlu0 %v910, 66
    %v953 = vpop.permute.xlu0 %952
    %954 = vrot.lane.b32.xlu0 %v911, 66
    %v955 = vpop.permute.xlu0 %954
    %956 = vrot.lane.b32.xlu0 %v912, 66
    %v957 = vpop.permute.xlu0 %956
    %vm958 = vcmask 539648
    %v959 = vsel %vm958, %v929, %v931
    %v960 = vsel %vm958, %v931, %v933
    %v961 = vsel %vm958, %v933, %v935
    %v962 = vsel %vm958, %v935, %v937
    %v963 = vsel %vm958, %v937, %v939
    %v964 = vsel %vm958, %v939, %v941
    %v965 = vsel %vm958, %v941, %v943
    %v966 = vsel %vm958, %v943, %v945
    %v967 = vsel %vm958, %v945, %v947
    %v968 = vsel %vm958, %v947, %v949
    %v969 = vsel %vm958, %v949, %v951
    %v970 = vsel %vm958, %v951, %v953
    %v971 = vsel %vm958, %v953, %v955
    %v972 = vsel %vm958, %v955, %v957
    %v988 = vadd.f32 %v876, %v959
    %v989 = vadd.f32 %v877, %v960
    %v990 = vadd.f32 %v878, %v961
    %v991 = vadd.f32 %v879, %v962
    %v992 = vadd.f32 %v880, %v963
    %v993 = vadd.f32 %v881, %v964
    %v994 = vadd.f32 %v882, %v965
    %v995 = vadd.f32 %v883, %v966
    %v996 = vadd.f32 %v884, %v967
    %v997 = vadd.f32 %v885, %v968
    %v998 = vadd.f32 %v886, %v969
    %v999 = vadd.f32 %v887, %v970
    %v1000 = vadd.f32 %v888, %v971
    %v1001 = vadd.f32 %v889, %v972
    %v1002 = vadd.f32 %v890, %v957
    %v1003 = vld [vmem:[%s2] sm:$0xff]
    %1005 = vset.pattern.permute.xlu0 0
    %1006 = vperm.xlu0 %1005, %v1003
    %v1007 = vpop.permute.xlu0 %1006
    %v1009 = vadd.f32 %v988, %v1007
    %v1010 = vadd.f32 %v989, %v1007
    %v1011 = vadd.f32 %v990, %v1007
    %v1012 = vadd.f32 %v991, %v1007
    %v1013 = vadd.f32 %v992, %v1007
    %v1014 = vadd.f32 %v993, %v1007
    %v1015 = vadd.f32 %v994, %v1007
    %v1016 = vadd.f32 %v995, %v1007
    %v1017 = vadd.f32 %v996, %v1007
    %v1018 = vadd.f32 %v997, %v1007
    %v1019 = vadd.f32 %v998, %v1007
    %v1020 = vadd.f32 %v999, %v1007
    %v1021 = vadd.f32 %v1000, %v1007
    %v1022 = vadd.f32 %v1001, %v1007
    %v1023 = vadd.f32 %v1002, %v1007
    %v1024 = vmax.f32 %v1009, 0.0
    %v1025 = vmax.f32 %v1010, 0.0
    %v1026 = vmax.f32 %v1011, 0.0
    %v1027 = vmax.f32 %v1012, 0.0
    %v1028 = vmax.f32 %v1013, 0.0
    %v1029 = vmax.f32 %v1014, 0.0
    %v1030 = vmax.f32 %v1015, 0.0
    %v1031 = vmax.f32 %v1016, 0.0
    %v1032 = vmax.f32 %v1017, 0.0
    %v1033 = vmax.f32 %v1018, 0.0
    %v1034 = vmax.f32 %v1019, 0.0
    %v1035 = vmax.f32 %v1020, 0.0
    %v1036 = vmax.f32 %v1021, 0.0
    %v1037 = vmax.f32 %v1022, 0.0
    %v1038 = vmax.f32 %v1023, 0.0
    %v1039 = vld [vmem:[%s9] sm:$0xff]
    %v1040 = vld [vmem:[%s9 + $0x8] sm:$0x7f]
    %v1043 = vperm.slane %v1039, 0
    %v1044 = vperm.slane %v1039, 1
    %v1045 = vperm.slane %v1039, 2
    %v1046 = vperm.slane %v1039, 3
    %v1047 = vperm.slane %v1039, 4
    %v1048 = vperm.slane %v1039, 5
    %v1049 = vperm.slane %v1039, 6
    %v1050 = vperm.slane %v1039, 7
    %v1051 = vperm.slane %v1040, 0
    %v1052 = vperm.slane %v1040, 1
    %v1053 = vperm.slane %v1040, 2
    %v1054 = vperm.slane %v1040, 3
    %v1055 = vperm.slane %v1040, 4
    %v1056 = vperm.slane %v1040, 5
    %v1057 = vperm.slane %v1040, 6
    %1058 = vrot.lane.b32.xlu0 %v1043, 1
    %v1059 = vpop.permute.xlu0 %1058
    %1060 = vrot.lane.b32.xlu0 %v1044, 1
    %v1061 = vpop.permute.xlu0 %1060
    %1062 = vrot.lane.b32.xlu0 %v1045, 1
    %v1063 = vpop.permute.xlu0 %1062
    %1064 = vrot.lane.b32.xlu0 %v1046, 1
    %v1065 = vpop.permute.xlu0 %1064
    %1066 = vrot.lane.b32.xlu0 %v1047, 1
    %v1067 = vpop.permute.xlu0 %1066
    %1068 = vrot.lane.b32.xlu0 %v1048, 1
    %v1069 = vpop.permute.xlu0 %1068
    %1070 = vrot.lane.b32.xlu0 %v1049, 1
    %v1071 = vpop.permute.xlu0 %1070
    %1072 = vrot.lane.b32.xlu0 %v1050, 1
    %v1073 = vpop.permute.xlu0 %1072
    %1074 = vrot.lane.b32.xlu0 %v1051, 1
    %v1075 = vpop.permute.xlu0 %1074
    %1076 = vrot.lane.b32.xlu0 %v1052, 1
    %v1077 = vpop.permute.xlu0 %1076
    %1078 = vrot.lane.b32.xlu0 %v1053, 1
    %v1079 = vpop.permute.xlu0 %1078
    %1080 = vrot.lane.b32.xlu0 %v1054, 1
    %v1081 = vpop.permute.xlu0 %1080
    %1082 = vrot.lane.b32.xlu0 %v1055, 1
    %v1083 = vpop.permute.xlu0 %1082
    %1084 = vrot.lane.b32.xlu0 %v1056, 1
    %v1085 = vpop.permute.xlu0 %1084
    %1086 = vrot.lane.b32.xlu0 %v1057, 1
    %v1087 = vpop.permute.xlu0 %1086
    %vm1088 = vcmask 7168
    %v1089 = vsel %vm1088, %v1059, %v1061
    %v1090 = vsel %vm1088, %v1061, %v1063
    %v1091 = vsel %vm1088, %v1063, %v1065
    %v1092 = vsel %vm1088, %v1065, %v1067
    %v1093 = vsel %vm1088, %v1067, %v1069
    %v1094 = vsel %vm1088, %v1069, %v1071
    %v1095 = vsel %vm1088, %v1071, %v1073
    %v1096 = vsel %vm1088, %v1073, %v1075
    %v1097 = vsel %vm1088, %v1075, %v1077
    %v1098 = vsel %vm1088, %v1077, %v1079
    %v1099 = vsel %vm1088, %v1079, %v1081
    %v1100 = vsel %vm1088, %v1081, %v1083
    %v1101 = vsel %vm1088, %v1083, %v1085
    %v1102 = vsel %vm1088, %v1085, %v1087
    %v1118 = vmul.f32 %v1024, %v1059
    %v1119 = vmul.f32 %v1025, %v1089
    %v1120 = vmul.f32 %v1026, %v1090
    %v1121 = vmul.f32 %v1027, %v1091
    %v1122 = vmul.f32 %v1028, %v1092
    %v1123 = vmul.f32 %v1029, %v1093
    %v1124 = vmul.f32 %v1030, %v1094
    %v1125 = vmul.f32 %v1031, %v1095
    %v1126 = vmul.f32 %v1032, %v1096
    %v1127 = vmul.f32 %v1033, %v1097
    %v1128 = vmul.f32 %v1034, %v1098
    %v1129 = vmul.f32 %v1035, %v1099
    %v1130 = vmul.f32 %v1036, %v1100
    %v1131 = vmul.f32 %v1037, %v1101
    %v1132 = vmul.f32 %v1038, %v1102
    %1148 = vrot.lane.b32.xlu0 %v1118, 31
    %v1149 = vpop.permute.xlu0 %1148
    %1150 = vrot.lane.b32.xlu0 %v1119, 31
    %v1151 = vpop.permute.xlu0 %1150
    %1152 = vrot.lane.b32.xlu0 %v1120, 31
    %v1153 = vpop.permute.xlu0 %1152
    %1154 = vrot.lane.b32.xlu0 %v1121, 31
    %v1155 = vpop.permute.xlu0 %1154
    %1156 = vrot.lane.b32.xlu0 %v1122, 31
    %v1157 = vpop.permute.xlu0 %1156
    %1158 = vrot.lane.b32.xlu0 %v1123, 31
    %v1159 = vpop.permute.xlu0 %1158
    %1160 = vrot.lane.b32.xlu0 %v1124, 31
    %v1161 = vpop.permute.xlu0 %1160
    %1162 = vrot.lane.b32.xlu0 %v1125, 31
    %v1163 = vpop.permute.xlu0 %1162
    %1164 = vrot.lane.b32.xlu0 %v1126, 31
    %v1165 = vpop.permute.xlu0 %1164
    %1166 = vrot.lane.b32.xlu0 %v1127, 31
    %v1167 = vpop.permute.xlu0 %1166
    %1168 = vrot.lane.b32.xlu0 %v1128, 31
    %v1169 = vpop.permute.xlu0 %1168
    %1170 = vrot.lane.b32.xlu0 %v1129, 31
    %v1171 = vpop.permute.xlu0 %1170
    %1172 = vrot.lane.b32.xlu0 %v1130, 31
    %v1173 = vpop.permute.xlu0 %1172
    %1174 = vrot.lane.b32.xlu0 %v1131, 31
    %v1175 = vpop.permute.xlu0 %1174
    %1176 = vrot.lane.b32.xlu0 %v1132, 31
    %v1177 = vpop.permute.xlu0 %1176
    %vm1178 = vcmask 252928
    %v1179 = vsel %vm1178, %v1149, %v1151
    %v1180 = vsel %vm1178, %v1151, %v1153
    %v1181 = vsel %vm1178, %v1153, %v1155
    %v1182 = vsel %vm1178, %v1155, %v1157
    %v1183 = vsel %vm1178, %v1157, %v1159
    %v1184 = vsel %vm1178, %v1159, %v1161
    %v1185 = vsel %vm1178, %v1161, %v1163
    %v1186 = vsel %vm1178, %v1163, %v1165
    %v1187 = vsel %vm1178, %v1165, %v1167
    %v1188 = vsel %vm1178, %v1167, %v1169
    %v1189 = vsel %vm1178, %v1169, %v1171
    %v1190 = vsel %vm1178, %v1171, %v1173
    %v1191 = vsel %vm1178, %v1173, %v1175
    %v1192 = vsel %vm1178, %v1175, %v1177
    %vm1208 = vcmask 1047808
    %1209 = vst.msk [vmem:[#allocation2] sm:$0xff] %vm1208, %v1149
    %1210 = vst [vmem:[#allocation2 + $0x8] sm:$0xff] %v1179
    %1211 = vst [vmem:[#allocation2 + $0x10] sm:$0xff] %v1180
    %1212 = vst [vmem:[#allocation2 + $0x18] sm:$0xff] %v1181
    %1213 = vst [vmem:[#allocation2 + $0x20] sm:$0xff] %v1182
    %1214 = vst [vmem:[#allocation2 + $0x28] sm:$0xff] %v1183
    %1215 = vst [vmem:[#allocation2 + $0x30] sm:$0xff] %v1184
    %1216 = vst [vmem:[#allocation2 + $0x38] sm:$0xff] %v1185
    %1217 = vst [vmem:[#allocation2 + $0x40] sm:$0xff] %v1186
    %1218 = vst [vmem:[#allocation2 + $0x48] sm:$0xff] %v1187
    %1219 = vst [vmem:[#allocation2 + $0x50] sm:$0xff] %v1188
    %1220 = vst [vmem:[#allocation2 + $0x58] sm:$0xff] %v1189
    %1221 = vst [vmem:[#allocation2 + $0x60] sm:$0xff] %v1190
    %1222 = vst [vmem:[#allocation2 + $0x68] sm:$0xff] %v1191
    %vm1223 = vcmask 326656
    %1224 = vst.msk [vmem:[#allocation2 + $0x70] sm:$0xff] %vm1223, %v1192
    %v1225 = vld [vmem:[#allocation2] sm:$0xff]
    %v1226 = vld [vmem:[#allocation2 + $0x8] sm:$0xff]
    %v1227 = vld [vmem:[#allocation2 + $0x10] sm:$0xff]
    %v1228 = vld [vmem:[#allocation2 + $0x18] sm:$0xff]
    %v1229 = vld [vmem:[#allocation2 + $0x20] sm:$0xff]
    %v1230 = vld [vmem:[#allocation2 + $0x28] sm:$0xff]
    %v1231 = vld [vmem:[#allocation2 + $0x30] sm:$0xff]
    %v1232 = vld [vmem:[#allocation2 + $0x38] sm:$0xff]
    %v1233 = vld [vmem:[#allocation2 + $0x40] sm:$0xff]
    %v1234 = vld [vmem:[#allocation2 + $0x48] sm:$0xff]
    %v1235 = vld [vmem:[#allocation2 + $0x50] sm:$0xff]
    %v1236 = vld [vmem:[#allocation2 + $0x58] sm:$0xff]
    %v1237 = vld [vmem:[#allocation2 + $0x60] sm:$0xff]
    %v1238 = vld [vmem:[#allocation2 + $0x68] sm:$0xff]
    %v1239 = vld [vmem:[#allocation2 + $0x70] sm:$0xff]
    %v1240 = vld [vmem:[%s3] sm:$0xff]
    %s1241 = scalar_lea.vmem %s3, 8
    %v1242 = vld [vmem:[%s1241] sm:$0xff]
    %1258 = vrot.lane.b32.xlu0 %v1225, 126
    %v1259 = vpop.permute.xlu0 %1258
    %1260 = vrot.lane.b32.xlu0 %v1226, 126
    %v1261 = vpop.permute.xlu0 %1260
    %1262 = vrot.lane.b32.xlu0 %v1227, 126
    %v1263 = vpop.permute.xlu0 %1262
    %1264 = vrot.lane.b32.xlu0 %v1228, 126
    %v1265 = vpop.permute.xlu0 %1264
    %1266 = vrot.lane.b32.xlu0 %v1229, 126
    %v1267 = vpop.permute.xlu0 %1266
    %1268 = vrot.lane.b32.xlu0 %v1230, 126
    %v1269 = vpop.permute.xlu0 %1268
    %1270 = vrot.lane.b32.xlu0 %v1231, 126
    %v1271 = vpop.permute.xlu0 %1270
    %1272 = vrot.lane.b32.xlu0 %v1232, 126
    %v1273 = vpop.permute.xlu0 %1272
    %1274 = vrot.lane.b32.xlu0 %v1233, 126
    %v1275 = vpop.permute.xlu0 %1274
    %1276 = vrot.lane.b32.xlu0 %v1234, 126
    %v1277 = vpop.permute.xlu0 %1276
    %1278 = vrot.lane.b32.xlu0 %v1235, 126
    %v1279 = vpop.permute.xlu0 %1278
    %1280 = vrot.lane.b32.xlu0 %v1236, 126
    %v1281 = vpop.permute.xlu0 %1280
    %1282 = vrot.lane.b32.xlu0 %v1237, 126
    %v1283 = vpop.permute.xlu0 %1282
    %1284 = vrot.lane.b32.xlu0 %v1238, 126
    %v1285 = vpop.permute.xlu0 %1284
    %1286 = vrot.lane.b32.xlu0 %v1239, 126
    %v1287 = vpop.permute.xlu0 %1286
    %v1288 = vsel %vm286, %v1259, %v1261
    %v1289 = vsel %vm286, %v1261, %v1263
    %v1290 = vsel %vm286, %v1263, %v1265
    %v1291 = vsel %vm286, %v1265, %v1267
    %v1292 = vsel %vm286, %v1267, %v1269
    %v1293 = vsel %vm286, %v1269, %v1271
    %v1294 = vsel %vm286, %v1271, %v1273
    %v1295 = vsel %vm286, %v1273, %v1275
    %v1296 = vsel %vm286, %v1275, %v1277
    %v1297 = vsel %vm286, %v1277, %v1279
    %v1298 = vsel %vm286, %v1279, %v1281
    %v1299 = vsel %vm286, %v1281, %v1283
    %v1300 = vsel %vm286, %v1283, %v1285
    %v1301 = vsel %vm286, %v1285, %v1287
    %vm1317 = vcmask 64512
    %v1319 = vsel %vm1317, %v1242, 0
    %1321 = vmatpush.msra.mxu0 0.0
    %1322 = vmatpush.msra.mxu0 0.0
    %1323 = vmatpush.msra.mxu0 0.0
    %1324 = vmatpush.msra.mxu0 0.0
    %1325 = vmatpush.msra.mxu0 0.0
    %1326 = vmatpush.msra.mxu0 0.0
    %1327 = vmatpush.msra.mxu0 0.0
    %1328 = vmatpush.msra.mxu0 0.0
    %1329 = vmatpush.msra.mxu0 0.0
    %1330 = vmatpush.msra.mxu0 0.0
    %1331 = vmatpush.msra.mxu0 0.0
    %1332 = vmatpush.msra.mxu0 0.0
    %1333 = vmatpush.msra.mxu0 0.0
    %1334 = vmatpush.msra.mxu0 0.0
    %1335 = vmatpush.msra.mxu0 0.0
    %1336 = vmatpush.msra.mxu0 %v1288
    %1337 = vmatmul.f32.gmra.mxu0 %v1319
    %v1338 = vpop.f32.mrf.mxu0
    %v1339 = vadd.f32 0.0, %v1338
    %1340 = vdwg.mxu0
    %1341 = vmatpush.msra.mxu0 0.0
    %1342 = vmatpush.msra.mxu0 0.0
    %1343 = vmatpush.msra.mxu0 0.0
    %1344 = vmatpush.msra.mxu0 0.0
    %1345 = vmatpush.msra.mxu0 0.0
    %1346 = vmatpush.msra.mxu0 0.0
    %1347 = vmatpush.msra.mxu0 0.0
    %1348 = vmatpush.msra.mxu0 0.0
    %1349 = vmatpush.msra.mxu0 0.0
    %1350 = vmatpush.msra.mxu0 0.0
    %1351 = vmatpush.msra.mxu0 0.0
    %1352 = vmatpush.msra.mxu0 0.0
    %1353 = vmatpush.msra.mxu0 0.0
    %1354 = vmatpush.msra.mxu0 0.0
    %1355 = vmatpush.msra.mxu0 0.0
    %1356 = vmatpush.msra.mxu0 %v1289
    %1357 = vmatmul.f32.gmra.mxu0 %v1319
    %v1358 = vpop.f32.mrf.mxu0
    %v1359 = vadd.f32 0.0, %v1358
    %1360 = vdwg.mxu0
    %1361 = vmatpush.msra.mxu0 0.0
    %1362 = vmatpush.msra.mxu0 0.0
    %1363 = vmatpush.msra.mxu0 0.0
    %1364 = vmatpush.msra.mxu0 0.0
    %1365 = vmatpush.msra.mxu0 0.0
    %1366 = vmatpush.msra.mxu0 0.0
    %1367 = vmatpush.msra.mxu0 0.0
    %1368 = vmatpush.msra.mxu0 0.0
    %1369 = vmatpush.msra.mxu0 0.0
    %1370 = vmatpush.msra.mxu0 0.0
    %1371 = vmatpush.msra.mxu0 0.0
    %1372 = vmatpush.msra.mxu0 0.0
    %1373 = vmatpush.msra.mxu0 0.0
    %1374 = vmatpush.msra.mxu0 0.0
    %1375 = vmatpush.msra.mxu0 0.0
    %1376 = vmatpush.msra.mxu0 %v1290
    %1377 = vmatmul.f32.gmra.mxu0 %v1319
    %v1378 = vpop.f32.mrf.mxu0
    %v1379 = vadd.f32 0.0, %v1378
    %1380 = vdwg.mxu0
    %1381 = vmatpush.msra.mxu0 0.0
    %1382 = vmatpush.msra.mxu0 0.0
    %1383 = vmatpush.msra.mxu0 0.0
    %1384 = vmatpush.msra.mxu0 0.0
    %1385 = vmatpush.msra.mxu0 0.0
    %1386 = vmatpush.msra.mxu0 0.0
    %1387 = vmatpush.msra.mxu0 0.0
    %1388 = vmatpush.msra.mxu0 0.0
    %1389 = vmatpush.msra.mxu0 0.0
    %1390 = vmatpush.msra.mxu0 0.0
    %1391 = vmatpush.msra.mxu0 0.0
    %1392 = vmatpush.msra.mxu0 0.0
    %1393 = vmatpush.msra.mxu0 0.0
    %1394 = vmatpush.msra.mxu0 0.0
    %1395 = vmatpush.msra.mxu0 0.0
    %1396 = vmatpush.msra.mxu0 %v1291
    %1397 = vmatmul.f32.gmra.mxu0 %v1319
    %v1398 = vpop.f32.mrf.mxu0
    %v1399 = vadd.f32 0.0, %v1398
    %1400 = vdwg.mxu0
    %1401 = vmatpush.msra.mxu0 0.0
    %1402 = vmatpush.msra.mxu0 0.0
    %1403 = vmatpush.msra.mxu0 0.0
    %1404 = vmatpush.msra.mxu0 0.0
    %1405 = vmatpush.msra.mxu0 0.0
    %1406 = vmatpush.msra.mxu0 0.0
    %1407 = vmatpush.msra.mxu0 0.0
    %1408 = vmatpush.msra.mxu0 0.0
    %1409 = vmatpush.msra.mxu0 0.0
    %1410 = vmatpush.msra.mxu0 0.0
    %1411 = vmatpush.msra.mxu0 0.0
    %1412 = vmatpush.msra.mxu0 0.0
    %1413 = vmatpush.msra.mxu0 0.0
    %1414 = vmatpush.msra.mxu0 0.0
    %1415 = vmatpush.msra.mxu0 0.0
    %1416 = vmatpush.msra.mxu0 %v1292
    %1417 = vmatmul.f32.gmra.mxu0 %v1319
    %v1418 = vpop.f32.mrf.mxu0
    %v1419 = vadd.f32 0.0, %v1418
    %1420 = vdwg.mxu0
    %1421 = vmatpush.msra.mxu0 0.0
    %1422 = vmatpush.msra.mxu0 0.0
    %1423 = vmatpush.msra.mxu0 0.0
    %1424 = vmatpush.msra.mxu0 0.0
    %1425 = vmatpush.msra.mxu0 0.0
    %1426 = vmatpush.msra.mxu0 0.0
    %1427 = vmatpush.msra.mxu0 0.0
    %1428 = vmatpush.msra.mxu0 0.0
    %1429 = vmatpush.msra.mxu0 0.0
    %1430 = vmatpush.msra.mxu0 0.0
    %1431 = vmatpush.msra.mxu0 0.0
    %1432 = vmatpush.msra.mxu0 0.0
    %1433 = vmatpush.msra.mxu0 0.0
    %1434 = vmatpush.msra.mxu0 0.0
    %1435 = vmatpush.msra.mxu0 0.0
    %1436 = vmatpush.msra.mxu0 %v1293
    %1437 = vmatmul.f32.gmra.mxu0 %v1319
    %v1438 = vpop.f32.mrf.mxu0
    %v1439 = vadd.f32 0.0, %v1438
    %1440 = vdwg.mxu0
    %1441 = vmatpush.msra.mxu0 0.0
    %1442 = vmatpush.msra.mxu0 0.0
    %1443 = vmatpush.msra.mxu0 0.0
    %1444 = vmatpush.msra.mxu0 0.0
    %1445 = vmatpush.msra.mxu0 0.0
    %1446 = vmatpush.msra.mxu0 0.0
    %1447 = vmatpush.msra.mxu0 0.0
    %1448 = vmatpush.msra.mxu0 0.0
    %1449 = vmatpush.msra.mxu0 0.0
    %1450 = vmatpush.msra.mxu0 0.0
    %1451 = vmatpush.msra.mxu0 0.0
    %1452 = vmatpush.msra.mxu0 0.0
    %1453 = vmatpush.msra.mxu0 0.0
    %1454 = vmatpush.msra.mxu0 0.0
    %1455 = vmatpush.msra.mxu0 0.0
    %1456 = vmatpush.msra.mxu0 %v1294
    %1457 = vmatmul.f32.gmra.mxu0 %v1319
    %v1458 = vpop.f32.mrf.mxu0
    %v1459 = vadd.f32 0.0, %v1458
    %1460 = vdwg.mxu0
    %1461 = vmatpush.msra.mxu0 0.0
    %1462 = vmatpush.msra.mxu0 0.0
    %1463 = vmatpush.msra.mxu0 0.0
    %1464 = vmatpush.msra.mxu0 0.0
    %1465 = vmatpush.msra.mxu0 0.0
    %1466 = vmatpush.msra.mxu0 0.0
    %1467 = vmatpush.msra.mxu0 0.0
    %1468 = vmatpush.msra.mxu0 0.0
    %1469 = vmatpush.msra.mxu0 0.0
    %1470 = vmatpush.msra.mxu0 0.0
    %1471 = vmatpush.msra.mxu0 0.0
    %1472 = vmatpush.msra.mxu0 0.0
    %1473 = vmatpush.msra.mxu0 0.0
    %1474 = vmatpush.msra.mxu0 0.0
    %1475 = vmatpush.msra.mxu0 0.0
    %1476 = vmatpush.msra.mxu0 %v1295
    %1477 = vmatmul.f32.gmra.mxu0 %v1319
    %v1478 = vpop.f32.mrf.mxu0
    %v1479 = vadd.f32 0.0, %v1478
    %1480 = vdwg.mxu0
    %1481 = vmatpush.msra.mxu0 0.0
    %1482 = vmatpush.msra.mxu0 0.0
    %1483 = vmatpush.msra.mxu0 0.0
    %1484 = vmatpush.msra.mxu0 0.0
    %1485 = vmatpush.msra.mxu0 0.0
    %1486 = vmatpush.msra.mxu0 0.0
    %1487 = vmatpush.msra.mxu0 0.0
    %1488 = vmatpush.msra.mxu0 0.0
    %1489 = vmatpush.msra.mxu0 0.0
    %1490 = vmatpush.msra.mxu0 0.0
    %1491 = vmatpush.msra.mxu0 0.0
    %1492 = vmatpush.msra.mxu0 0.0
    %1493 = vmatpush.msra.mxu0 0.0
    %1494 = vmatpush.msra.mxu0 0.0
    %1495 = vmatpush.msra.mxu0 0.0
    %1496 = vmatpush.msra.mxu0 %v1296
    %1497 = vmatmul.f32.gmra.mxu0 %v1319
    %v1498 = vpop.f32.mrf.mxu0
    %v1499 = vadd.f32 0.0, %v1498
    %1500 = vdwg.mxu0
    %1501 = vmatpush.msra.mxu0 0.0
    %1502 = vmatpush.msra.mxu0 0.0
    %1503 = vmatpush.msra.mxu0 0.0
    %1504 = vmatpush.msra.mxu0 0.0
    %1505 = vmatpush.msra.mxu0 0.0
    %1506 = vmatpush.msra.mxu0 0.0
    %1507 = vmatpush.msra.mxu0 0.0
    %1508 = vmatpush.msra.mxu0 0.0
    %1509 = vmatpush.msra.mxu0 0.0
    %1510 = vmatpush.msra.mxu0 0.0
    %1511 = vmatpush.msra.mxu0 0.0
    %1512 = vmatpush.msra.mxu0 0.0
    %1513 = vmatpush.msra.mxu0 0.0
    %1514 = vmatpush.msra.mxu0 0.0
    %1515 = vmatpush.msra.mxu0 0.0
    %1516 = vmatpush.msra.mxu0 %v1297
    %1517 = vmatmul.f32.gmra.mxu0 %v1319
    %v1518 = vpop.f32.mrf.mxu0
    %v1519 = vadd.f32 0.0, %v1518
    %1520 = vdwg.mxu0
    %1521 = vmatpush.msra.mxu0 0.0
    %1522 = vmatpush.msra.mxu0 0.0
    %1523 = vmatpush.msra.mxu0 0.0
    %1524 = vmatpush.msra.mxu0 0.0
    %1525 = vmatpush.msra.mxu0 0.0
    %1526 = vmatpush.msra.mxu0 0.0
    %1527 = vmatpush.msra.mxu0 0.0
    %1528 = vmatpush.msra.mxu0 0.0
    %1529 = vmatpush.msra.mxu0 0.0
    %1530 = vmatpush.msra.mxu0 0.0
    %1531 = vmatpush.msra.mxu0 0.0
    %1532 = vmatpush.msra.mxu0 0.0
    %1533 = vmatpush.msra.mxu0 0.0
    %1534 = vmatpush.msra.mxu0 0.0
    %1535 = vmatpush.msra.mxu0 0.0
    %1536 = vmatpush.msra.mxu0 %v1298
    %1537 = vmatmul.f32.gmra.mxu0 %v1319
    %v1538 = vpop.f32.mrf.mxu0
    %v1539 = vadd.f32 0.0, %v1538
    %1540 = vdwg.mxu0
    %1541 = vmatpush.msra.mxu0 0.0
    %1542 = vmatpush.msra.mxu0 0.0
    %1543 = vmatpush.msra.mxu0 0.0
    %1544 = vmatpush.msra.mxu0 0.0
    %1545 = vmatpush.msra.mxu0 0.0
    %1546 = vmatpush.msra.mxu0 0.0
    %1547 = vmatpush.msra.mxu0 0.0
    %1548 = vmatpush.msra.mxu0 0.0
    %1549 = vmatpush.msra.mxu0 0.0
    %1550 = vmatpush.msra.mxu0 0.0
    %1551 = vmatpush.msra.mxu0 0.0
    %1552 = vmatpush.msra.mxu0 0.0
    %1553 = vmatpush.msra.mxu0 0.0
    %1554 = vmatpush.msra.mxu0 0.0
    %1555 = vmatpush.msra.mxu0 0.0
    %1556 = vmatpush.msra.mxu0 %v1299
    %1557 = vmatmul.f32.gmra.mxu0 %v1319
    %v1558 = vpop.f32.mrf.mxu0
    %v1559 = vadd.f32 0.0, %v1558
    %1560 = vdwg.mxu0
    %1561 = vmatpush.msra.mxu0 0.0
    %1562 = vmatpush.msra.mxu0 0.0
    %1563 = vmatpush.msra.mxu0 0.0
    %1564 = vmatpush.msra.mxu0 0.0
    %1565 = vmatpush.msra.mxu0 0.0
    %1566 = vmatpush.msra.mxu0 0.0
    %1567 = vmatpush.msra.mxu0 0.0
    %1568 = vmatpush.msra.mxu0 0.0
    %1569 = vmatpush.msra.mxu0 0.0
    %1570 = vmatpush.msra.mxu0 0.0
    %1571 = vmatpush.msra.mxu0 0.0
    %1572 = vmatpush.msra.mxu0 0.0
    %1573 = vmatpush.msra.mxu0 0.0
    %1574 = vmatpush.msra.mxu0 0.0
    %1575 = vmatpush.msra.mxu0 0.0
    %1576 = vmatpush.msra.mxu0 %v1300
    %1577 = vmatmul.f32.gmra.mxu0 %v1319
    %v1578 = vpop.f32.mrf.mxu0
    %v1579 = vadd.f32 0.0, %v1578
    %1580 = vdwg.mxu0
    %1581 = vmatpush.msra.mxu0 0.0
    %1582 = vmatpush.msra.mxu0 0.0
    %1583 = vmatpush.msra.mxu0 0.0
    %1584 = vmatpush.msra.mxu0 0.0
    %1585 = vmatpush.msra.mxu0 0.0
    %1586 = vmatpush.msra.mxu0 0.0
    %1587 = vmatpush.msra.mxu0 0.0
    %1588 = vmatpush.msra.mxu0 0.0
    %1589 = vmatpush.msra.mxu0 0.0
    %1590 = vmatpush.msra.mxu0 0.0
    %1591 = vmatpush.msra.mxu0 0.0
    %1592 = vmatpush.msra.mxu0 0.0
    %1593 = vmatpush.msra.mxu0 0.0
    %1594 = vmatpush.msra.mxu0 0.0
    %1595 = vmatpush.msra.mxu0 0.0
    %1596 = vmatpush.msra.mxu0 %v1301
    %1597 = vmatmul.f32.gmra.mxu0 %v1319
    %v1598 = vpop.f32.mrf.mxu0
    %v1599 = vadd.f32 0.0, %v1598
    %1600 = vdwg.mxu0
    %1601 = vmatpush.msra.mxu0 0.0
    %1602 = vmatpush.msra.mxu0 0.0
    %1603 = vmatpush.msra.mxu0 0.0
    %1604 = vmatpush.msra.mxu0 0.0
    %1605 = vmatpush.msra.mxu0 0.0
    %1606 = vmatpush.msra.mxu0 0.0
    %1607 = vmatpush.msra.mxu0 0.0
    %1608 = vmatpush.msra.mxu0 0.0
    %1609 = vmatpush.msra.mxu0 0.0
    %1610 = vmatpush.msra.mxu0 0.0
    %1611 = vmatpush.msra.mxu0 0.0
    %1612 = vmatpush.msra.mxu0 0.0
    %1613 = vmatpush.msra.mxu0 0.0
    %1614 = vmatpush.msra.mxu0 0.0
    %1615 = vmatpush.msra.mxu0 0.0
    %1616 = vmatpush.msra.mxu0 %v1287
    %1617 = vmatmul.f32.gmra.mxu0 %v1319
    %v1618 = vpop.f32.mrf.mxu0
    %v1619 = vadd.f32 0.0, %v1618
    %1620 = vdwg.mxu0
    %1621 = vrot.lane.b32.xlu0 %v1225, 127
    %v1622 = vpop.permute.xlu0 %1621
    %1623 = vrot.lane.b32.xlu0 %v1226, 127
    %v1624 = vpop.permute.xlu0 %1623
    %1625 = vrot.lane.b32.xlu0 %v1227, 127
    %v1626 = vpop.permute.xlu0 %1625
    %1627 = vrot.lane.b32.xlu0 %v1228, 127
    %v1628 = vpop.permute.xlu0 %1627
    %1629 = vrot.lane.b32.xlu0 %v1229, 127
    %v1630 = vpop.permute.xlu0 %1629
    %1631 = vrot.lane.b32.xlu0 %v1230, 127
    %v1632 = vpop.permute.xlu0 %1631
    %1633 = vrot.lane.b32.xlu0 %v1231, 127
    %v1634 = vpop.permute.xlu0 %1633
    %1635 = vrot.lane.b32.xlu0 %v1232, 127
    %v1636 = vpop.permute.xlu0 %1635
    %1637 = vrot.lane.b32.xlu0 %v1233, 127
    %v1638 = vpop.permute.xlu0 %1637
    %1639 = vrot.lane.b32.xlu0 %v1234, 127
    %v1640 = vpop.permute.xlu0 %1639
    %1641 = vrot.lane.b32.xlu0 %v1235, 127
    %v1642 = vpop.permute.xlu0 %1641
    %1643 = vrot.lane.b32.xlu0 %v1236, 127
    %v1644 = vpop.permute.xlu0 %1643
    %1645 = vrot.lane.b32.xlu0 %v1237, 127
    %v1646 = vpop.permute.xlu0 %1645
    %1647 = vrot.lane.b32.xlu0 %v1238, 127
    %v1648 = vpop.permute.xlu0 %1647
    %1649 = vrot.lane.b32.xlu0 %v1239, 127
    %v1650 = vpop.permute.xlu0 %1649
    %v1651 = vsel %vm174, %v1622, %v1624
    %v1652 = vsel %vm174, %v1624, %v1626
    %v1653 = vsel %vm174, %v1626, %v1628
    %v1654 = vsel %vm174, %v1628, %v1630
    %v1655 = vsel %vm174, %v1630, %v1632
    %v1656 = vsel %vm174, %v1632, %v1634
    %v1657 = vsel %vm174, %v1634, %v1636
    %v1658 = vsel %vm174, %v1636, %v1638
    %v1659 = vsel %vm174, %v1638, %v1640
    %v1660 = vsel %vm174, %v1640, %v1642
    %v1661 = vsel %vm174, %v1642, %v1644
    %v1662 = vsel %vm174, %v1644, %v1646
    %v1663 = vsel %vm174, %v1646, %v1648
    %v1664 = vsel %vm174, %v1648, %v1650
    %v1681 = vsel %vm1317, %v1240, 0
    %1683 = vmatpush.msra.mxu0 0.0
    %1684 = vmatpush.msra.mxu0 0.0
    %1685 = vmatpush.msra.mxu0 0.0
    %1686 = vmatpush.msra.mxu0 0.0
    %1687 = vmatpush.msra.mxu0 0.0
    %1688 = vmatpush.msra.mxu0 0.0
    %1689 = vmatpush.msra.mxu0 0.0
    %1690 = vmatpush.msra.mxu0 0.0
    %1691 = vmatpush.msra.mxu0 0.0
    %1692 = vmatpush.msra.mxu0 0.0
    %1693 = vmatpush.msra.mxu0 0.0
    %1694 = vmatpush.msra.mxu0 0.0
    %1695 = vmatpush.msra.mxu0 0.0
    %1696 = vmatpush.msra.mxu0 0.0
    %1697 = vmatpush.msra.mxu0 0.0
    %1698 = vmatpush.msra.mxu0 %v1651
    %1699 = vmatmul.f32.gmra.mxu0 %v1681
    %v1700 = vpop.f32.mrf.mxu0
    %v1701 = vadd.f32 %v1339, %v1700
    %1702 = vdwg.mxu0
    %1703 = vmatpush.msra.mxu0 0.0
    %1704 = vmatpush.msra.mxu0 0.0
    %1705 = vmatpush.msra.mxu0 0.0
    %1706 = vmatpush.msra.mxu0 0.0
    %1707 = vmatpush.msra.mxu0 0.0
    %1708 = vmatpush.msra.mxu0 0.0
    %1709 = vmatpush.msra.mxu0 0.0
    %1710 = vmatpush.msra.mxu0 0.0
    %1711 = vmatpush.msra.mxu0 0.0
    %1712 = vmatpush.msra.mxu0 0.0
    %1713 = vmatpush.msra.mxu0 0.0
    %1714 = vmatpush.msra.mxu0 0.0
    %1715 = vmatpush.msra.mxu0 0.0
    %1716 = vmatpush.msra.mxu0 0.0
    %1717 = vmatpush.msra.mxu0 0.0
    %1718 = vmatpush.msra.mxu0 %v1652
    %1719 = vmatmul.f32.gmra.mxu0 %v1681
    %v1720 = vpop.f32.mrf.mxu0
    %v1721 = vadd.f32 %v1359, %v1720
    %1722 = vdwg.mxu0
    %1723 = vmatpush.msra.mxu0 0.0
    %1724 = vmatpush.msra.mxu0 0.0
    %1725 = vmatpush.msra.mxu0 0.0
    %1726 = vmatpush.msra.mxu0 0.0
    %1727 = vmatpush.msra.mxu0 0.0
    %1728 = vmatpush.msra.mxu0 0.0
    %1729 = vmatpush.msra.mxu0 0.0
    %1730 = vmatpush.msra.mxu0 0.0
    %1731 = vmatpush.msra.mxu0 0.0
    %1732 = vmatpush.msra.mxu0 0.0
    %1733 = vmatpush.msra.mxu0 0.0
    %1734 = vmatpush.msra.mxu0 0.0
    %1735 = vmatpush.msra.mxu0 0.0
    %1736 = vmatpush.msra.mxu0 0.0
    %1737 = vmatpush.msra.mxu0 0.0
    %1738 = vmatpush.msra.mxu0 %v1653
    %1739 = vmatmul.f32.gmra.mxu0 %v1681
    %v1740 = vpop.f32.mrf.mxu0
    %v1741 = vadd.f32 %v1379, %v1740
    %1742 = vdwg.mxu0
    %1743 = vmatpush.msra.mxu0 0.0
    %1744 = vmatpush.msra.mxu0 0.0
    %1745 = vmatpush.msra.mxu0 0.0
    %1746 = vmatpush.msra.mxu0 0.0
    %1747 = vmatpush.msra.mxu0 0.0
    %1748 = vmatpush.msra.mxu0 0.0
    %1749 = vmatpush.msra.mxu0 0.0
    %1750 = vmatpush.msra.mxu0 0.0
    %1751 = vmatpush.msra.mxu0 0.0
    %1752 = vmatpush.msra.mxu0 0.0
    %1753 = vmatpush.msra.mxu0 0.0
    %1754 = vmatpush.msra.mxu0 0.0
    %1755 = vmatpush.msra.mxu0 0.0
    %1756 = vmatpush.msra.mxu0 0.0
    %1757 = vmatpush.msra.mxu0 0.0
    %1758 = vmatpush.msra.mxu0 %v1654
    %1759 = vmatmul.f32.gmra.mxu0 %v1681
    %v1760 = vpop.f32.mrf.mxu0
    %v1761 = vadd.f32 %v1399, %v1760
    %1762 = vdwg.mxu0
    %1763 = vmatpush.msra.mxu0 0.0
    %1764 = vmatpush.msra.mxu0 0.0
    %1765 = vmatpush.msra.mxu0 0.0
    %1766 = vmatpush.msra.mxu0 0.0
    %1767 = vmatpush.msra.mxu0 0.0
    %1768 = vmatpush.msra.mxu0 0.0
    %1769 = vmatpush.msra.mxu0 0.0
    %1770 = vmatpush.msra.mxu0 0.0
    %1771 = vmatpush.msra.mxu0 0.0
    %1772 = vmatpush.msra.mxu0 0.0
    %1773 = vmatpush.msra.mxu0 0.0
    %1774 = vmatpush.msra.mxu0 0.0
    %1775 = vmatpush.msra.mxu0 0.0
    %1776 = vmatpush.msra.mxu0 0.0
    %1777 = vmatpush.msra.mxu0 0.0
    %1778 = vmatpush.msra.mxu0 %v1655
    %1779 = vmatmul.f32.gmra.mxu0 %v1681
    %v1780 = vpop.f32.mrf.mxu0
    %v1781 = vadd.f32 %v1419, %v1780
    %1782 = vdwg.mxu0
    %1783 = vmatpush.msra.mxu0 0.0
    %1784 = vmatpush.msra.mxu0 0.0
    %1785 = vmatpush.msra.mxu0 0.0
    %1786 = vmatpush.msra.mxu0 0.0
    %1787 = vmatpush.msra.mxu0 0.0
    %1788 = vmatpush.msra.mxu0 0.0
    %1789 = vmatpush.msra.mxu0 0.0
    %1790 = vmatpush.msra.mxu0 0.0
    %1791 = vmatpush.msra.mxu0 0.0
    %1792 = vmatpush.msra.mxu0 0.0
    %1793 = vmatpush.msra.mxu0 0.0
    %1794 = vmatpush.msra.mxu0 0.0
    %1795 = vmatpush.msra.mxu0 0.0
    %1796 = vmatpush.msra.mxu0 0.0
    %1797 = vmatpush.msra.mxu0 0.0
    %1798 = vmatpush.msra.mxu0 %v1656
    %1799 = vmatmul.f32.gmra.mxu0 %v1681
    %v1800 = vpop.f32.mrf.mxu0
    %v1801 = vadd.f32 %v1439, %v1800
    %1802 = vdwg.mxu0
    %1803 = vmatpush.msra.mxu0 0.0
    %1804 = vmatpush.msra.mxu0 0.0
    %1805 = vmatpush.msra.mxu0 0.0
    %1806 = vmatpush.msra.mxu0 0.0
    %1807 = vmatpush.msra.mxu0 0.0
    %1808 = vmatpush.msra.mxu0 0.0
    %1809 = vmatpush.msra.mxu0 0.0
    %1810 = vmatpush.msra.mxu0 0.0
    %1811 = vmatpush.msra.mxu0 0.0
    %1812 = vmatpush.msra.mxu0 0.0
    %1813 = vmatpush.msra.mxu0 0.0
    %1814 = vmatpush.msra.mxu0 0.0
    %1815 = vmatpush.msra.mxu0 0.0
    %1816 = vmatpush.msra.mxu0 0.0
    %1817 = vmatpush.msra.mxu0 0.0
    %1818 = vmatpush.msra.mxu0 %v1657
    %1819 = vmatmul.f32.gmra.mxu0 %v1681
    %v1820 = vpop.f32.mrf.mxu0
    %v1821 = vadd.f32 %v1459, %v1820
    %1822 = vdwg.mxu0
    %1823 = vmatpush.msra.mxu0 0.0
    %1824 = vmatpush.msra.mxu0 0.0
    %1825 = vmatpush.msra.mxu0 0.0
    %1826 = vmatpush.msra.mxu0 0.0
    %1827 = vmatpush.msra.mxu0 0.0
    %1828 = vmatpush.msra.mxu0 0.0
    %1829 = vmatpush.msra.mxu0 0.0
    %1830 = vmatpush.msra.mxu0 0.0
    %1831 = vmatpush.msra.mxu0 0.0
    %1832 = vmatpush.msra.mxu0 0.0
    %1833 = vmatpush.msra.mxu0 0.0
    %1834 = vmatpush.msra.mxu0 0.0
    %1835 = vmatpush.msra.mxu0 0.0
    %1836 = vmatpush.msra.mxu0 0.0
    %1837 = vmatpush.msra.mxu0 0.0
    %1838 = vmatpush.msra.mxu0 %v1658
    %1839 = vmatmul.f32.gmra.mxu0 %v1681
    %v1840 = vpop.f32.mrf.mxu0
    %v1841 = vadd.f32 %v1479, %v1840
    %1842 = vdwg.mxu0
    %1843 = vmatpush.msra.mxu0 0.0
    %1844 = vmatpush.msra.mxu0 0.0
    %1845 = vmatpush.msra.mxu0 0.0
    %1846 = vmatpush.msra.mxu0 0.0
    %1847 = vmatpush.msra.mxu0 0.0
    %1848 = vmatpush.msra.mxu0 0.0
    %1849 = vmatpush.msra.mxu0 0.0
    %1850 = vmatpush.msra.mxu0 0.0
    %1851 = vmatpush.msra.mxu0 0.0
    %1852 = vmatpush.msra.mxu0 0.0
    %1853 = vmatpush.msra.mxu0 0.0
    %1854 = vmatpush.msra.mxu0 0.0
    %1855 = vmatpush.msra.mxu0 0.0
    %1856 = vmatpush.msra.mxu0 0.0
    %1857 = vmatpush.msra.mxu0 0.0
    %1858 = vmatpush.msra.mxu0 %v1659
    %1859 = vmatmul.f32.gmra.mxu0 %v1681
    %v1860 = vpop.f32.mrf.mxu0
    %v1861 = vadd.f32 %v1499, %v1860
    %1862 = vdwg.mxu0
    %1863 = vmatpush.msra.mxu0 0.0
    %1864 = vmatpush.msra.mxu0 0.0
    %1865 = vmatpush.msra.mxu0 0.0
    %1866 = vmatpush.msra.mxu0 0.0
    %1867 = vmatpush.msra.mxu0 0.0
    %1868 = vmatpush.msra.mxu0 0.0
    %1869 = vmatpush.msra.mxu0 0.0
    %1870 = vmatpush.msra.mxu0 0.0
    %1871 = vmatpush.msra.mxu0 0.0
    %1872 = vmatpush.msra.mxu0 0.0
    %1873 = vmatpush.msra.mxu0 0.0
    %1874 = vmatpush.msra.mxu0 0.0
    %1875 = vmatpush.msra.mxu0 0.0
    %1876 = vmatpush.msra.mxu0 0.0
    %1877 = vmatpush.msra.mxu0 0.0
    %1878 = vmatpush.msra.mxu0 %v1660
    %1879 = vmatmul.f32.gmra.mxu0 %v1681
    %v1880 = vpop.f32.mrf.mxu0
    %v1881 = vadd.f32 %v1519, %v1880
    %1882 = vdwg.mxu0
    %1883 = vmatpush.msra.mxu0 0.0
    %1884 = vmatpush.msra.mxu0 0.0
    %1885 = vmatpush.msra.mxu0 0.0
    %1886 = vmatpush.msra.mxu0 0.0
    %1887 = vmatpush.msra.mxu0 0.0
    %1888 = vmatpush.msra.mxu0 0.0
    %1889 = vmatpush.msra.mxu0 0.0
    %1890 = vmatpush.msra.mxu0 0.0
    %1891 = vmatpush.msra.mxu0 0.0
    %1892 = vmatpush.msra.mxu0 0.0
    %1893 = vmatpush.msra.mxu0 0.0
    %1894 = vmatpush.msra.mxu0 0.0
    %1895 = vmatpush.msra.mxu0 0.0
    %1896 = vmatpush.msra.mxu0 0.0
    %1897 = vmatpush.msra.mxu0 0.0
    %1898 = vmatpush.msra.mxu0 %v1661
    %1899 = vmatmul.f32.gmra.mxu0 %v1681
    %v1900 = vpop.f32.mrf.mxu0
    %v1901 = vadd.f32 %v1539, %v1900
    %1902 = vdwg.mxu0
    %1903 = vmatpush.msra.mxu0 0.0
    %1904 = vmatpush.msra.mxu0 0.0
    %1905 = vmatpush.msra.mxu0 0.0
    %1906 = vmatpush.msra.mxu0 0.0
    %1907 = vmatpush.msra.mxu0 0.0
    %1908 = vmatpush.msra.mxu0 0.0
    %1909 = vmatpush.msra.mxu0 0.0
    %1910 = vmatpush.msra.mxu0 0.0
    %1911 = vmatpush.msra.mxu0 0.0
    %1912 = vmatpush.msra.mxu0 0.0
    %1913 = vmatpush.msra.mxu0 0.0
    %1914 = vmatpush.msra.mxu0 0.0
    %1915 = vmatpush.msra.mxu0 0.0
    %1916 = vmatpush.msra.mxu0 0.0
    %1917 = vmatpush.msra.mxu0 0.0
    %1918 = vmatpush.msra.mxu0 %v1662
    %1919 = vmatmul.f32.gmra.mxu0 %v1681
    %v1920 = vpop.f32.mrf.mxu0
    %v1921 = vadd.f32 %v1559, %v1920
    %1922 = vdwg.mxu0
    %1923 = vmatpush.msra.mxu0 0.0
    %1924 = vmatpush.msra.mxu0 0.0
    %1925 = vmatpush.msra.mxu0 0.0
    %1926 = vmatpush.msra.mxu0 0.0
    %1927 = vmatpush.msra.mxu0 0.0
    %1928 = vmatpush.msra.mxu0 0.0
    %1929 = vmatpush.msra.mxu0 0.0
    %1930 = vmatpush.msra.mxu0 0.0
    %1931 = vmatpush.msra.mxu0 0.0
    %1932 = vmatpush.msra.mxu0 0.0
    %1933 = vmatpush.msra.mxu0 0.0
    %1934 = vmatpush.msra.mxu0 0.0
    %1935 = vmatpush.msra.mxu0 0.0
    %1936 = vmatpush.msra.mxu0 0.0
    %1937 = vmatpush.msra.mxu0 0.0
    %1938 = vmatpush.msra.mxu0 %v1663
    %1939 = vmatmul.f32.gmra.mxu0 %v1681
    %v1940 = vpop.f32.mrf.mxu0
    %v1941 = vadd.f32 %v1579, %v1940
    %1942 = vdwg.mxu0
    %1943 = vmatpush.msra.mxu0 0.0
    %1944 = vmatpush.msra.mxu0 0.0
    %1945 = vmatpush.msra.mxu0 0.0
    %1946 = vmatpush.msra.mxu0 0.0
    %1947 = vmatpush.msra.mxu0 0.0
    %1948 = vmatpush.msra.mxu0 0.0
    %1949 = vmatpush.msra.mxu0 0.0
    %1950 = vmatpush.msra.mxu0 0.0
    %1951 = vmatpush.msra.mxu0 0.0
    %1952 = vmatpush.msra.mxu0 0.0
    %1953 = vmatpush.msra.mxu0 0.0
    %1954 = vmatpush.msra.mxu0 0.0
    %1955 = vmatpush.msra.mxu0 0.0
    %1956 = vmatpush.msra.mxu0 0.0
    %1957 = vmatpush.msra.mxu0 0.0
    %1958 = vmatpush.msra.mxu0 %v1664
    %1959 = vmatmul.f32.gmra.mxu0 %v1681
    %v1960 = vpop.f32.mrf.mxu0
    %v1961 = vadd.f32 %v1599, %v1960
    %1962 = vdwg.mxu0
    %1963 = vmatpush.msra.mxu0 0.0
    %1964 = vmatpush.msra.mxu0 0.0
    %1965 = vmatpush.msra.mxu0 0.0
    %1966 = vmatpush.msra.mxu0 0.0
    %1967 = vmatpush.msra.mxu0 0.0
    %1968 = vmatpush.msra.mxu0 0.0
    %1969 = vmatpush.msra.mxu0 0.0
    %1970 = vmatpush.msra.mxu0 0.0
    %1971 = vmatpush.msra.mxu0 0.0
    %1972 = vmatpush.msra.mxu0 0.0
    %1973 = vmatpush.msra.mxu0 0.0
    %1974 = vmatpush.msra.mxu0 0.0
    %1975 = vmatpush.msra.mxu0 0.0
    %1976 = vmatpush.msra.mxu0 0.0
    %1977 = vmatpush.msra.mxu0 0.0
    %1978 = vmatpush.msra.mxu0 %v1650
    %1979 = vmatmul.f32.gmra.mxu0 %v1681
    %v1980 = vpop.f32.mrf.mxu0
    %v1981 = vadd.f32 %v1619, %v1980
    %1982 = vdwg.mxu0
    %s1983 = scalar_lea.vmem %s3, 16
    %v1984 = vld [vmem:[%s1983] sm:$0xff]
    %1985 = vrot.lane.b32.xlu0 %v1225, 125
    %v1986 = vpop.permute.xlu0 %1985
    %1987 = vrot.lane.b32.xlu0 %v1226, 125
    %v1988 = vpop.permute.xlu0 %1987
    %1989 = vrot.lane.b32.xlu0 %v1227, 125
    %v1990 = vpop.permute.xlu0 %1989
    %1991 = vrot.lane.b32.xlu0 %v1228, 125
    %v1992 = vpop.permute.xlu0 %1991
    %1993 = vrot.lane.b32.xlu0 %v1229, 125
    %v1994 = vpop.permute.xlu0 %1993
    %1995 = vrot.lane.b32.xlu0 %v1230, 125
    %v1996 = vpop.permute.xlu0 %1995
    %1997 = vrot.lane.b32.xlu0 %v1231, 125
    %v1998 = vpop.permute.xlu0 %1997
    %1999 = vrot.lane.b32.xlu0 %v1232, 125
    %v2000 = vpop.permute.xlu0 %1999
    %2001 = vrot.lane.b32.xlu0 %v1233, 125
    %v2002 = vpop.permute.xlu0 %2001
    %2003 = vrot.lane.b32.xlu0 %v1234, 125
    %v2004 = vpop.permute.xlu0 %2003
    %2005 = vrot.lane.b32.xlu0 %v1235, 125
    %v2006 = vpop.permute.xlu0 %2005
    %2007 = vrot.lane.b32.xlu0 %v1236, 125
    %v2008 = vpop.permute.xlu0 %2007
    %2009 = vrot.lane.b32.xlu0 %v1237, 125
    %v2010 = vpop.permute.xlu0 %2009
    %2011 = vrot.lane.b32.xlu0 %v1238, 125
    %v2012 = vpop.permute.xlu0 %2011
    %2013 = vrot.lane.b32.xlu0 %v1239, 125
    %v2014 = vpop.permute.xlu0 %2013
    %vm2015 = vcmask 1022976
    %v2016 = vsel %vm2015, %v1986, %v1988
    %v2017 = vsel %vm2015, %v1988, %v1990
    %v2018 = vsel %vm2015, %v1990, %v1992
    %v2019 = vsel %vm2015, %v1992, %v1994
    %v2020 = vsel %vm2015, %v1994, %v1996
    %v2021 = vsel %vm2015, %v1996, %v1998
    %v2022 = vsel %vm2015, %v1998, %v2000
    %v2023 = vsel %vm2015, %v2000, %v2002
    %v2024 = vsel %vm2015, %v2002, %v2004
    %v2025 = vsel %vm2015, %v2004, %v2006
    %v2026 = vsel %vm2015, %v2006, %v2008
    %v2027 = vsel %vm2015, %v2008, %v2010
    %v2028 = vsel %vm2015, %v2010, %v2012
    %v2029 = vsel %vm2015, %v2012, %v2014
    %v2046 = vsel %vm1317, %v1984, 0
    %2048 = vmatpush.msra.mxu0 0.0
    %2049 = vmatpush.msra.mxu0 0.0
    %2050 = vmatpush.msra.mxu0 0.0
    %2051 = vmatpush.msra.mxu0 0.0
    %2052 = vmatpush.msra.mxu0 0.0
    %2053 = vmatpush.msra.mxu0 0.0
    %2054 = vmatpush.msra.mxu0 0.0
    %2055 = vmatpush.msra.mxu0 0.0
    %2056 = vmatpush.msra.mxu0 0.0
    %2057 = vmatpush.msra.mxu0 0.0
    %2058 = vmatpush.msra.mxu0 0.0
    %2059 = vmatpush.msra.mxu0 0.0
    %2060 = vmatpush.msra.mxu0 0.0
    %2061 = vmatpush.msra.mxu0 0.0
    %2062 = vmatpush.msra.mxu0 0.0
    %2063 = vmatpush.msra.mxu0 %v2016
    %2064 = vmatmul.f32.gmra.mxu0 %v2046
    %v2065 = vpop.f32.mrf.mxu0
    %v2066 = vadd.f32 0.0, %v2065
    %2067 = vdwg.mxu0
    %2068 = vmatpush.msra.mxu0 0.0
    %2069 = vmatpush.msra.mxu0 0.0
    %2070 = vmatpush.msra.mxu0 0.0
    %2071 = vmatpush.msra.mxu0 0.0
    %2072 = vmatpush.msra.mxu0 0.0
    %2073 = vmatpush.msra.mxu0 0.0
    %2074 = vmatpush.msra.mxu0 0.0
    %2075 = vmatpush.msra.mxu0 0.0
    %2076 = vmatpush.msra.mxu0 0.0
    %2077 = vmatpush.msra.mxu0 0.0
    %2078 = vmatpush.msra.mxu0 0.0
    %2079 = vmatpush.msra.mxu0 0.0
    %2080 = vmatpush.msra.mxu0 0.0
    %2081 = vmatpush.msra.mxu0 0.0
    %2082 = vmatpush.msra.mxu0 0.0
    %2083 = vmatpush.msra.mxu0 %v2017
    %2084 = vmatmul.f32.gmra.mxu0 %v2046
    %v2085 = vpop.f32.mrf.mxu0
    %v2086 = vadd.f32 0.0, %v2085
    %2087 = vdwg.mxu0
    %2088 = vmatpush.msra.mxu0 0.0
    %2089 = vmatpush.msra.mxu0 0.0
    %2090 = vmatpush.msra.mxu0 0.0
    %2091 = vmatpush.msra.mxu0 0.0
    %2092 = vmatpush.msra.mxu0 0.0
    %2093 = vmatpush.msra.mxu0 0.0
    %2094 = vmatpush.msra.mxu0 0.0
    %2095 = vmatpush.msra.mxu0 0.0
    %2096 = vmatpush.msra.mxu0 0.0
    %2097 = vmatpush.msra.mxu0 0.0
    %2098 = vmatpush.msra.mxu0 0.0
    %2099 = vmatpush.msra.mxu0 0.0
    %2100 = vmatpush.msra.mxu0 0.0
    %2101 = vmatpush.msra.mxu0 0.0
    %2102 = vmatpush.msra.mxu0 0.0
    %2103 = vmatpush.msra.mxu0 %v2018
    %2104 = vmatmul.f32.gmra.mxu0 %v2046
    %v2105 = vpop.f32.mrf.mxu0
    %v2106 = vadd.f32 0.0, %v2105
    %2107 = vdwg.mxu0
    %2108 = vmatpush.msra.mxu0 0.0
    %2109 = vmatpush.msra.mxu0 0.0
    %2110 = vmatpush.msra.mxu0 0.0
    %2111 = vmatpush.msra.mxu0 0.0
    %2112 = vmatpush.msra.mxu0 0.0
    %2113 = vmatpush.msra.mxu0 0.0
    %2114 = vmatpush.msra.mxu0 0.0
    %2115 = vmatpush.msra.mxu0 0.0
    %2116 = vmatpush.msra.mxu0 0.0
    %2117 = vmatpush.msra.mxu0 0.0
    %2118 = vmatpush.msra.mxu0 0.0
    %2119 = vmatpush.msra.mxu0 0.0
    %2120 = vmatpush.msra.mxu0 0.0
    %2121 = vmatpush.msra.mxu0 0.0
    %2122 = vmatpush.msra.mxu0 0.0
    %2123 = vmatpush.msra.mxu0 %v2019
    %2124 = vmatmul.f32.gmra.mxu0 %v2046
    %v2125 = vpop.f32.mrf.mxu0
    %v2126 = vadd.f32 0.0, %v2125
    %2127 = vdwg.mxu0
    %2128 = vmatpush.msra.mxu0 0.0
    %2129 = vmatpush.msra.mxu0 0.0
    %2130 = vmatpush.msra.mxu0 0.0
    %2131 = vmatpush.msra.mxu0 0.0
    %2132 = vmatpush.msra.mxu0 0.0
    %2133 = vmatpush.msra.mxu0 0.0
    %2134 = vmatpush.msra.mxu0 0.0
    %2135 = vmatpush.msra.mxu0 0.0
    %2136 = vmatpush.msra.mxu0 0.0
    %2137 = vmatpush.msra.mxu0 0.0
    %2138 = vmatpush.msra.mxu0 0.0
    %2139 = vmatpush.msra.mxu0 0.0
    %2140 = vmatpush.msra.mxu0 0.0
    %2141 = vmatpush.msra.mxu0 0.0
    %2142 = vmatpush.msra.mxu0 0.0
    %2143 = vmatpush.msra.mxu0 %v2020
    %2144 = vmatmul.f32.gmra.mxu0 %v2046
    %v2145 = vpop.f32.mrf.mxu0
    %v2146 = vadd.f32 0.0, %v2145
    %2147 = vdwg.mxu0
    %2148 = vmatpush.msra.mxu0 0.0
    %2149 = vmatpush.msra.mxu0 0.0
    %2150 = vmatpush.msra.mxu0 0.0
    %2151 = vmatpush.msra.mxu0 0.0
    %2152 = vmatpush.msra.mxu0 0.0
    %2153 = vmatpush.msra.mxu0 0.0
    %2154 = vmatpush.msra.mxu0 0.0
    %2155 = vmatpush.msra.mxu0 0.0
    %2156 = vmatpush.msra.mxu0 0.0
    %2157 = vmatpush.msra.mxu0 0.0
    %2158 = vmatpush.msra.mxu0 0.0
    %2159 = vmatpush.msra.mxu0 0.0
    %2160 = vmatpush.msra.mxu0 0.0
    %2161 = vmatpush.msra.mxu0 0.0
    %2162 = vmatpush.msra.mxu0 0.0
    %2163 = vmatpush.msra.mxu0 %v2021
    %2164 = vmatmul.f32.gmra.mxu0 %v2046
    %v2165 = vpop.f32.mrf.mxu0
    %v2166 = vadd.f32 0.0, %v2165
    %2167 = vdwg.mxu0
    %2168 = vmatpush.msra.mxu0 0.0
    %2169 = vmatpush.msra.mxu0 0.0
    %2170 = vmatpush.msra.mxu0 0.0
    %2171 = vmatpush.msra.mxu0 0.0
    %2172 = vmatpush.msra.mxu0 0.0
    %2173 = vmatpush.msra.mxu0 0.0
    %2174 = vmatpush.msra.mxu0 0.0
    %2175 = vmatpush.msra.mxu0 0.0
    %2176 = vmatpush.msra.mxu0 0.0
    %2177 = vmatpush.msra.mxu0 0.0
    %2178 = vmatpush.msra.mxu0 0.0
    %2179 = vmatpush.msra.mxu0 0.0
    %2180 = vmatpush.msra.mxu0 0.0
    %2181 = vmatpush.msra.mxu0 0.0
    %2182 = vmatpush.msra.mxu0 0.0
    %2183 = vmatpush.msra.mxu0 %v2022
    %2184 = vmatmul.f32.gmra.mxu0 %v2046
    %v2185 = vpop.f32.mrf.mxu0
    %v2186 = vadd.f32 0.0, %v2185
    %2187 = vdwg.mxu0
    %2188 = vmatpush.msra.mxu0 0.0
    %2189 = vmatpush.msra.mxu0 0.0
    %2190 = vmatpush.msra.mxu0 0.0
    %2191 = vmatpush.msra.mxu0 0.0
    %2192 = vmatpush.msra.mxu0 0.0
    %2193 = vmatpush.msra.mxu0 0.0
    %2194 = vmatpush.msra.mxu0 0.0
    %2195 = vmatpush.msra.mxu0 0.0
    %2196 = vmatpush.msra.mxu0 0.0
    %2197 = vmatpush.msra.mxu0 0.0
    %2198 = vmatpush.msra.mxu0 0.0
    %2199 = vmatpush.msra.mxu0 0.0
    %2200 = vmatpush.msra.mxu0 0.0
    %2201 = vmatpush.msra.mxu0 0.0
    %2202 = vmatpush.msra.mxu0 0.0
    %2203 = vmatpush.msra.mxu0 %v2023
    %2204 = vmatmul.f32.gmra.mxu0 %v2046
    %v2205 = vpop.f32.mrf.mxu0
    %v2206 = vadd.f32 0.0, %v2205
    %2207 = vdwg.mxu0
    %2208 = vmatpush.msra.mxu0 0.0
    %2209 = vmatpush.msra.mxu0 0.0
    %2210 = vmatpush.msra.mxu0 0.0
    %2211 = vmatpush.msra.mxu0 0.0
    %2212 = vmatpush.msra.mxu0 0.0
    %2213 = vmatpush.msra.mxu0 0.0
    %2214 = vmatpush.msra.mxu0 0.0
    %2215 = vmatpush.msra.mxu0 0.0
    %2216 = vmatpush.msra.mxu0 0.0
    %2217 = vmatpush.msra.mxu0 0.0
    %2218 = vmatpush.msra.mxu0 0.0
    %2219 = vmatpush.msra.mxu0 0.0
    %2220 = vmatpush.msra.mxu0 0.0
    %2221 = vmatpush.msra.mxu0 0.0
    %2222 = vmatpush.msra.mxu0 0.0
    %2223 = vmatpush.msra.mxu0 %v2024
    %2224 = vmatmul.f32.gmra.mxu0 %v2046
    %v2225 = vpop.f32.mrf.mxu0
    %v2226 = vadd.f32 0.0, %v2225
    %2227 = vdwg.mxu0
    %2228 = vmatpush.msra.mxu0 0.0
    %2229 = vmatpush.msra.mxu0 0.0
    %2230 = vmatpush.msra.mxu0 0.0
    %2231 = vmatpush.msra.mxu0 0.0
    %2232 = vmatpush.msra.mxu0 0.0
    %2233 = vmatpush.msra.mxu0 0.0
    %2234 = vmatpush.msra.mxu0 0.0
    %2235 = vmatpush.msra.mxu0 0.0
    %2236 = vmatpush.msra.mxu0 0.0
    %2237 = vmatpush.msra.mxu0 0.0
    %2238 = vmatpush.msra.mxu0 0.0
    %2239 = vmatpush.msra.mxu0 0.0
    %2240 = vmatpush.msra.mxu0 0.0
    %2241 = vmatpush.msra.mxu0 0.0
    %2242 = vmatpush.msra.mxu0 0.0
    %2243 = vmatpush.msra.mxu0 %v2025
    %2244 = vmatmul.f32.gmra.mxu0 %v2046
    %v2245 = vpop.f32.mrf.mxu0
    %v2246 = vadd.f32 0.0, %v2245
    %2247 = vdwg.mxu0
    %2248 = vmatpush.msra.mxu0 0.0
    %2249 = vmatpush.msra.mxu0 0.0
    %2250 = vmatpush.msra.mxu0 0.0
    %2251 = vmatpush.msra.mxu0 0.0
    %2252 = vmatpush.msra.mxu0 0.0
    %2253 = vmatpush.msra.mxu0 0.0
    %2254 = vmatpush.msra.mxu0 0.0
    %2255 = vmatpush.msra.mxu0 0.0
    %2256 = vmatpush.msra.mxu0 0.0
    %2257 = vmatpush.msra.mxu0 0.0
    %2258 = vmatpush.msra.mxu0 0.0
    %2259 = vmatpush.msra.mxu0 0.0
    %2260 = vmatpush.msra.mxu0 0.0
    %2261 = vmatpush.msra.mxu0 0.0
    %2262 = vmatpush.msra.mxu0 0.0
    %2263 = vmatpush.msra.mxu0 %v2026
    %2264 = vmatmul.f32.gmra.mxu0 %v2046
    %v2265 = vpop.f32.mrf.mxu0
    %v2266 = vadd.f32 0.0, %v2265
    %2267 = vdwg.mxu0
    %2268 = vmatpush.msra.mxu0 0.0
    %2269 = vmatpush.msra.mxu0 0.0
    %2270 = vmatpush.msra.mxu0 0.0
    %2271 = vmatpush.msra.mxu0 0.0
    %2272 = vmatpush.msra.mxu0 0.0
    %2273 = vmatpush.msra.mxu0 0.0
    %2274 = vmatpush.msra.mxu0 0.0
    %2275 = vmatpush.msra.mxu0 0.0
    %2276 = vmatpush.msra.mxu0 0.0
    %2277 = vmatpush.msra.mxu0 0.0
    %2278 = vmatpush.msra.mxu0 0.0
    %2279 = vmatpush.msra.mxu0 0.0
    %2280 = vmatpush.msra.mxu0 0.0
    %2281 = vmatpush.msra.mxu0 0.0
    %2282 = vmatpush.msra.mxu0 0.0
    %2283 = vmatpush.msra.mxu0 %v2027
    %2284 = vmatmul.f32.gmra.mxu0 %v2046
    %v2285 = vpop.f32.mrf.mxu0
    %v2286 = vadd.f32 0.0, %v2285
    %2287 = vdwg.mxu0
    %2288 = vmatpush.msra.mxu0 0.0
    %2289 = vmatpush.msra.mxu0 0.0
    %2290 = vmatpush.msra.mxu0 0.0
    %2291 = vmatpush.msra.mxu0 0.0
    %2292 = vmatpush.msra.mxu0 0.0
    %2293 = vmatpush.msra.mxu0 0.0
    %2294 = vmatpush.msra.mxu0 0.0
    %2295 = vmatpush.msra.mxu0 0.0
    %2296 = vmatpush.msra.mxu0 0.0
    %2297 = vmatpush.msra.mxu0 0.0
    %2298 = vmatpush.msra.mxu0 0.0
    %2299 = vmatpush.msra.mxu0 0.0
    %2300 = vmatpush.msra.mxu0 0.0
    %2301 = vmatpush.msra.mxu0 0.0
    %2302 = vmatpush.msra.mxu0 0.0
    %2303 = vmatpush.msra.mxu0 %v2028
    %2304 = vmatmul.f32.gmra.mxu0 %v2046
    %v2305 = vpop.f32.mrf.mxu0
    %v2306 = vadd.f32 0.0, %v2305
    %2307 = vdwg.mxu0
    %2308 = vmatpush.msra.mxu0 0.0
    %2309 = vmatpush.msra.mxu0 0.0
    %2310 = vmatpush.msra.mxu0 0.0
    %2311 = vmatpush.msra.mxu0 0.0
    %2312 = vmatpush.msra.mxu0 0.0
    %2313 = vmatpush.msra.mxu0 0.0
    %2314 = vmatpush.msra.mxu0 0.0
    %2315 = vmatpush.msra.mxu0 0.0
    %2316 = vmatpush.msra.mxu0 0.0
    %2317 = vmatpush.msra.mxu0 0.0
    %2318 = vmatpush.msra.mxu0 0.0
    %2319 = vmatpush.msra.mxu0 0.0
    %2320 = vmatpush.msra.mxu0 0.0
    %2321 = vmatpush.msra.mxu0 0.0
    %2322 = vmatpush.msra.mxu0 0.0
    %2323 = vmatpush.msra.mxu0 %v2029
    %2324 = vmatmul.f32.gmra.mxu0 %v2046
    %v2325 = vpop.f32.mrf.mxu0
    %v2326 = vadd.f32 0.0, %v2325
    %2327 = vdwg.mxu0
    %2328 = vmatpush.msra.mxu0 0.0
    %2329 = vmatpush.msra.mxu0 0.0
    %2330 = vmatpush.msra.mxu0 0.0
    %2331 = vmatpush.msra.mxu0 0.0
    %2332 = vmatpush.msra.mxu0 0.0
    %2333 = vmatpush.msra.mxu0 0.0
    %2334 = vmatpush.msra.mxu0 0.0
    %2335 = vmatpush.msra.mxu0 0.0
    %2336 = vmatpush.msra.mxu0 0.0
    %2337 = vmatpush.msra.mxu0 0.0
    %2338 = vmatpush.msra.mxu0 0.0
    %2339 = vmatpush.msra.mxu0 0.0
    %2340 = vmatpush.msra.mxu0 0.0
    %2341 = vmatpush.msra.mxu0 0.0
    %2342 = vmatpush.msra.mxu0 0.0
    %2343 = vmatpush.msra.mxu0 %v2014
    %2344 = vmatmul.f32.gmra.mxu0 %v2046
    %v2345 = vpop.f32.mrf.mxu0
    %v2346 = vadd.f32 0.0, %v2345
    %2347 = vdwg.mxu0
    %v2348 = vadd.f32 %v1701, %v2066
    %v2349 = vadd.f32 %v1721, %v2086
    %v2350 = vadd.f32 %v1741, %v2106
    %v2351 = vadd.f32 %v1761, %v2126
    %v2352 = vadd.f32 %v1781, %v2146
    %v2353 = vadd.f32 %v1801, %v2166
    %v2354 = vadd.f32 %v1821, %v2186
    %v2355 = vadd.f32 %v1841, %v2206
    %v2356 = vadd.f32 %v1861, %v2226
    %v2357 = vadd.f32 %v1881, %v2246
    %v2358 = vadd.f32 %v1901, %v2266
    %v2359 = vadd.f32 %v1921, %v2286
    %v2360 = vadd.f32 %v1941, %v2306
    %v2361 = vadd.f32 %v1961, %v2326
    %v2362 = vadd.f32 %v1981, %v2346
    %s2363 = scalar_lea.vmem %s3, 24
    %v2364 = vld [vmem:[%s2363] sm:$0xff]
    %2365 = vrot.lane.b32.xlu0 %v1225, 97
    %v2366 = vpop.permute.xlu0 %2365
    %2367 = vrot.lane.b32.xlu0 %v1226, 97
    %v2368 = vpop.permute.xlu0 %2367
    %2369 = vrot.lane.b32.xlu0 %v1227, 97
    %v2370 = vpop.permute.xlu0 %2369
    %2371 = vrot.lane.b32.xlu0 %v1228, 97
    %v2372 = vpop.permute.xlu0 %2371
    %2373 = vrot.lane.b32.xlu0 %v1229, 97
    %v2374 = vpop.permute.xlu0 %2373
    %2375 = vrot.lane.b32.xlu0 %v1230, 97
    %v2376 = vpop.permute.xlu0 %2375
    %2377 = vrot.lane.b32.xlu0 %v1231, 97
    %v2378 = vpop.permute.xlu0 %2377
    %2379 = vrot.lane.b32.xlu0 %v1232, 97
    %v2380 = vpop.permute.xlu0 %2379
    %2381 = vrot.lane.b32.xlu0 %v1233, 97
    %v2382 = vpop.permute.xlu0 %2381
    %2383 = vrot.lane.b32.xlu0 %v1234, 97
    %v2384 = vpop.permute.xlu0 %2383
    %2385 = vrot.lane.b32.xlu0 %v1235, 97
    %v2386 = vpop.permute.xlu0 %2385
    %2387 = vrot.lane.b32.xlu0 %v1236, 97
    %v2388 = vpop.permute.xlu0 %2387
    %2389 = vrot.lane.b32.xlu0 %v1237, 97
    %v2390 = vpop.permute.xlu0 %2389
    %2391 = vrot.lane.b32.xlu0 %v1238, 97
    %v2392 = vpop.permute.xlu0 %2391
    %2393 = vrot.lane.b32.xlu0 %v1239, 97
    %v2394 = vpop.permute.xlu0 %2393
    %v2395 = vsel %vm510, %v2366, %v2368
    %v2396 = vsel %vm510, %v2368, %v2370
    %v2397 = vsel %vm510, %v2370, %v2372
    %v2398 = vsel %vm510, %v2372, %v2374
    %v2399 = vsel %vm510, %v2374, %v2376
    %v2400 = vsel %vm510, %v2376, %v2378
    %v2401 = vsel %vm510, %v2378, %v2380
    %v2402 = vsel %vm510, %v2380, %v2382
    %v2403 = vsel %vm510, %v2382, %v2384
    %v2404 = vsel %vm510, %v2384, %v2386
    %v2405 = vsel %vm510, %v2386, %v2388
    %v2406 = vsel %vm510, %v2388, %v2390
    %v2407 = vsel %vm510, %v2390, %v2392
    %v2408 = vsel %vm510, %v2392, %v2394
    %v2425 = vsel %vm1317, %v2364, 0
    %2427 = vmatpush.msra.mxu0 0.0
    %2428 = vmatpush.msra.mxu0 0.0
    %2429 = vmatpush.msra.mxu0 0.0
    %2430 = vmatpush.msra.mxu0 0.0
    %2431 = vmatpush.msra.mxu0 0.0
    %2432 = vmatpush.msra.mxu0 0.0
    %2433 = vmatpush.msra.mxu0 0.0
    %2434 = vmatpush.msra.mxu0 0.0
    %2435 = vmatpush.msra.mxu0 0.0
    %2436 = vmatpush.msra.mxu0 0.0
    %2437 = vmatpush.msra.mxu0 0.0
    %2438 = vmatpush.msra.mxu0 0.0
    %2439 = vmatpush.msra.mxu0 0.0
    %2440 = vmatpush.msra.mxu0 0.0
    %2441 = vmatpush.msra.mxu0 0.0
    %2442 = vmatpush.msra.mxu0 %v2395
    %2443 = vmatmul.f32.gmra.mxu0 %v2425
    %v2444 = vpop.f32.mrf.mxu0
    %v2445 = vadd.f32 0.0, %v2444
    %2446 = vdwg.mxu0
    %2447 = vmatpush.msra.mxu0 0.0
    %2448 = vmatpush.msra.mxu0 0.0
    %2449 = vmatpush.msra.mxu0 0.0
    %2450 = vmatpush.msra.mxu0 0.0
    %2451 = vmatpush.msra.mxu0 0.0
    %2452 = vmatpush.msra.mxu0 0.0
    %2453 = vmatpush.msra.mxu0 0.0
    %2454 = vmatpush.msra.mxu0 0.0
    %2455 = vmatpush.msra.mxu0 0.0
    %2456 = vmatpush.msra.mxu0 0.0
    %2457 = vmatpush.msra.mxu0 0.0
    %2458 = vmatpush.msra.mxu0 0.0
    %2459 = vmatpush.msra.mxu0 0.0
    %2460 = vmatpush.msra.mxu0 0.0
    %2461 = vmatpush.msra.mxu0 0.0
    %2462 = vmatpush.msra.mxu0 %v2396
    %2463 = vmatmul.f32.gmra.mxu0 %v2425
    %v2464 = vpop.f32.mrf.mxu0
    %v2465 = vadd.f32 0.0, %v2464
    %2466 = vdwg.mxu0
    %2467 = vmatpush.msra.mxu0 0.0
    %2468 = vmatpush.msra.mxu0 0.0
    %2469 = vmatpush.msra.mxu0 0.0
    %2470 = vmatpush.msra.mxu0 0.0
    %2471 = vmatpush.msra.mxu0 0.0
    %2472 = vmatpush.msra.mxu0 0.0
    %2473 = vmatpush.msra.mxu0 0.0
    %2474 = vmatpush.msra.mxu0 0.0
    %2475 = vmatpush.msra.mxu0 0.0
    %2476 = vmatpush.msra.mxu0 0.0
    %2477 = vmatpush.msra.mxu0 0.0
    %2478 = vmatpush.msra.mxu0 0.0
    %2479 = vmatpush.msra.mxu0 0.0
    %2480 = vmatpush.msra.mxu0 0.0
    %2481 = vmatpush.msra.mxu0 0.0
    %2482 = vmatpush.msra.mxu0 %v2397
    %2483 = vmatmul.f32.gmra.mxu0 %v2425
    %v2484 = vpop.f32.mrf.mxu0
    %v2485 = vadd.f32 0.0, %v2484
    %2486 = vdwg.mxu0
    %2487 = vmatpush.msra.mxu0 0.0
    %2488 = vmatpush.msra.mxu0 0.0
    %2489 = vmatpush.msra.mxu0 0.0
    %2490 = vmatpush.msra.mxu0 0.0
    %2491 = vmatpush.msra.mxu0 0.0
    %2492 = vmatpush.msra.mxu0 0.0
    %2493 = vmatpush.msra.mxu0 0.0
    %2494 = vmatpush.msra.mxu0 0.0
    %2495 = vmatpush.msra.mxu0 0.0
    %2496 = vmatpush.msra.mxu0 0.0
    %2497 = vmatpush.msra.mxu0 0.0
    %2498 = vmatpush.msra.mxu0 0.0
    %2499 = vmatpush.msra.mxu0 0.0
    %2500 = vmatpush.msra.mxu0 0.0
    %2501 = vmatpush.msra.mxu0 0.0
    %2502 = vmatpush.msra.mxu0 %v2398
    %2503 = vmatmul.f32.gmra.mxu0 %v2425
    %v2504 = vpop.f32.mrf.mxu0
    %v2505 = vadd.f32 0.0, %v2504
    %2506 = vdwg.mxu0
    %2507 = vmatpush.msra.mxu0 0.0
    %2508 = vmatpush.msra.mxu0 0.0
    %2509 = vmatpush.msra.mxu0 0.0
    %2510 = vmatpush.msra.mxu0 0.0
    %2511 = vmatpush.msra.mxu0 0.0
    %2512 = vmatpush.msra.mxu0 0.0
    %2513 = vmatpush.msra.mxu0 0.0
    %2514 = vmatpush.msra.mxu0 0.0
    %2515 = vmatpush.msra.mxu0 0.0
    %2516 = vmatpush.msra.mxu0 0.0
    %2517 = vmatpush.msra.mxu0 0.0
    %2518 = vmatpush.msra.mxu0 0.0
    %2519 = vmatpush.msra.mxu0 0.0
    %2520 = vmatpush.msra.mxu0 0.0
    %2521 = vmatpush.msra.mxu0 0.0
    %2522 = vmatpush.msra.mxu0 %v2399
    %2523 = vmatmul.f32.gmra.mxu0 %v2425
    %v2524 = vpop.f32.mrf.mxu0
    %v2525 = vadd.f32 0.0, %v2524
    %2526 = vdwg.mxu0
    %2527 = vmatpush.msra.mxu0 0.0
    %2528 = vmatpush.msra.mxu0 0.0
    %2529 = vmatpush.msra.mxu0 0.0
    %2530 = vmatpush.msra.mxu0 0.0
    %2531 = vmatpush.msra.mxu0 0.0
    %2532 = vmatpush.msra.mxu0 0.0
    %2533 = vmatpush.msra.mxu0 0.0
    %2534 = vmatpush.msra.mxu0 0.0
    %2535 = vmatpush.msra.mxu0 0.0
    %2536 = vmatpush.msra.mxu0 0.0
    %2537 = vmatpush.msra.mxu0 0.0
    %2538 = vmatpush.msra.mxu0 0.0
    %2539 = vmatpush.msra.mxu0 0.0
    %2540 = vmatpush.msra.mxu0 0.0
    %2541 = vmatpush.msra.mxu0 0.0
    %2542 = vmatpush.msra.mxu0 %v2400
    %2543 = vmatmul.f32.gmra.mxu0 %v2425
    %v2544 = vpop.f32.mrf.mxu0
    %v2545 = vadd.f32 0.0, %v2544
    %2546 = vdwg.mxu0
    %2547 = vmatpush.msra.mxu0 0.0
    %2548 = vmatpush.msra.mxu0 0.0
    %2549 = vmatpush.msra.mxu0 0.0
    %2550 = vmatpush.msra.mxu0 0.0
    %2551 = vmatpush.msra.mxu0 0.0
    %2552 = vmatpush.msra.mxu0 0.0
    %2553 = vmatpush.msra.mxu0 0.0
    %2554 = vmatpush.msra.mxu0 0.0
    %2555 = vmatpush.msra.mxu0 0.0
    %2556 = vmatpush.msra.mxu0 0.0
    %2557 = vmatpush.msra.mxu0 0.0
    %2558 = vmatpush.msra.mxu0 0.0
    %2559 = vmatpush.msra.mxu0 0.0
    %2560 = vmatpush.msra.mxu0 0.0
    %2561 = vmatpush.msra.mxu0 0.0
    %2562 = vmatpush.msra.mxu0 %v2401
    %2563 = vmatmul.f32.gmra.mxu0 %v2425
    %v2564 = vpop.f32.mrf.mxu0
    %v2565 = vadd.f32 0.0, %v2564
    %2566 = vdwg.mxu0
    %2567 = vmatpush.msra.mxu0 0.0
    %2568 = vmatpush.msra.mxu0 0.0
    %2569 = vmatpush.msra.mxu0 0.0
    %2570 = vmatpush.msra.mxu0 0.0
    %2571 = vmatpush.msra.mxu0 0.0
    %2572 = vmatpush.msra.mxu0 0.0
    %2573 = vmatpush.msra.mxu0 0.0
    %2574 = vmatpush.msra.mxu0 0.0
    %2575 = vmatpush.msra.mxu0 0.0
    %2576 = vmatpush.msra.mxu0 0.0
    %2577 = vmatpush.msra.mxu0 0.0
    %2578 = vmatpush.msra.mxu0 0.0
    %2579 = vmatpush.msra.mxu0 0.0
    %2580 = vmatpush.msra.mxu0 0.0
    %2581 = vmatpush.msra.mxu0 0.0
    %2582 = vmatpush.msra.mxu0 %v2402
    %2583 = vmatmul.f32.gmra.mxu0 %v2425
    %v2584 = vpop.f32.mrf.mxu0
    %v2585 = vadd.f32 0.0, %v2584
    %2586 = vdwg.mxu0
    %2587 = vmatpush.msra.mxu0 0.0
    %2588 = vmatpush.msra.mxu0 0.0
    %2589 = vmatpush.msra.mxu0 0.0
    %2590 = vmatpush.msra.mxu0 0.0
    %2591 = vmatpush.msra.mxu0 0.0
    %2592 = vmatpush.msra.mxu0 0.0
    %2593 = vmatpush.msra.mxu0 0.0
    %2594 = vmatpush.msra.mxu0 0.0
    %2595 = vmatpush.msra.mxu0 0.0
    %2596 = vmatpush.msra.mxu0 0.0
    %2597 = vmatpush.msra.mxu0 0.0
    %2598 = vmatpush.msra.mxu0 0.0
    %2599 = vmatpush.msra.mxu0 0.0
    %2600 = vmatpush.msra.mxu0 0.0
    %2601 = vmatpush.msra.mxu0 0.0
    %2602 = vmatpush.msra.mxu0 %v2403
    %2603 = vmatmul.f32.gmra.mxu0 %v2425
    %v2604 = vpop.f32.mrf.mxu0
    %v2605 = vadd.f32 0.0, %v2604
    %2606 = vdwg.mxu0
    %2607 = vmatpush.msra.mxu0 0.0
    %2608 = vmatpush.msra.mxu0 0.0
    %2609 = vmatpush.msra.mxu0 0.0
    %2610 = vmatpush.msra.mxu0 0.0
    %2611 = vmatpush.msra.mxu0 0.0
    %2612 = vmatpush.msra.mxu0 0.0
    %2613 = vmatpush.msra.mxu0 0.0
    %2614 = vmatpush.msra.mxu0 0.0
    %2615 = vmatpush.msra.mxu0 0.0
    %2616 = vmatpush.msra.mxu0 0.0
    %2617 = vmatpush.msra.mxu0 0.0
    %2618 = vmatpush.msra.mxu0 0.0
    %2619 = vmatpush.msra.mxu0 0.0
    %2620 = vmatpush.msra.mxu0 0.0
    %2621 = vmatpush.msra.mxu0 0.0
    %2622 = vmatpush.msra.mxu0 %v2404
    %2623 = vmatmul.f32.gmra.mxu0 %v2425
    %v2624 = vpop.f32.mrf.mxu0
    %v2625 = vadd.f32 0.0, %v2624
    %2626 = vdwg.mxu0
    %2627 = vmatpush.msra.mxu0 0.0
    %2628 = vmatpush.msra.mxu0 0.0
    %2629 = vmatpush.msra.mxu0 0.0
    %2630 = vmatpush.msra.mxu0 0.0
    %2631 = vmatpush.msra.mxu0 0.0
    %2632 = vmatpush.msra.mxu0 0.0
    %2633 = vmatpush.msra.mxu0 0.0
    %2634 = vmatpush.msra.mxu0 0.0
    %2635 = vmatpush.msra.mxu0 0.0
    %2636 = vmatpush.msra.mxu0 0.0
    %2637 = vmatpush.msra.mxu0 0.0
    %2638 = vmatpush.msra.mxu0 0.0
    %2639 = vmatpush.msra.mxu0 0.0
    %2640 = vmatpush.msra.mxu0 0.0
    %2641 = vmatpush.msra.mxu0 0.0
    %2642 = vmatpush.msra.mxu0 %v2405
    %2643 = vmatmul.f32.gmra.mxu0 %v2425
    %v2644 = vpop.f32.mrf.mxu0
    %v2645 = vadd.f32 0.0, %v2644
    %2646 = vdwg.mxu0
    %2647 = vmatpush.msra.mxu0 0.0
    %2648 = vmatpush.msra.mxu0 0.0
    %2649 = vmatpush.msra.mxu0 0.0
    %2650 = vmatpush.msra.mxu0 0.0
    %2651 = vmatpush.msra.mxu0 0.0
    %2652 = vmatpush.msra.mxu0 0.0
    %2653 = vmatpush.msra.mxu0 0.0
    %2654 = vmatpush.msra.mxu0 0.0
    %2655 = vmatpush.msra.mxu0 0.0
    %2656 = vmatpush.msra.mxu0 0.0
    %2657 = vmatpush.msra.mxu0 0.0
    %2658 = vmatpush.msra.mxu0 0.0
    %2659 = vmatpush.msra.mxu0 0.0
    %2660 = vmatpush.msra.mxu0 0.0
    %2661 = vmatpush.msra.mxu0 0.0
    %2662 = vmatpush.msra.mxu0 %v2406
    %2663 = vmatmul.f32.gmra.mxu0 %v2425
    %v2664 = vpop.f32.mrf.mxu0
    %v2665 = vadd.f32 0.0, %v2664
    %2666 = vdwg.mxu0
    %2667 = vmatpush.msra.mxu0 0.0
    %2668 = vmatpush.msra.mxu0 0.0
    %2669 = vmatpush.msra.mxu0 0.0
    %2670 = vmatpush.msra.mxu0 0.0
    %2671 = vmatpush.msra.mxu0 0.0
    %2672 = vmatpush.msra.mxu0 0.0
    %2673 = vmatpush.msra.mxu0 0.0
    %2674 = vmatpush.msra.mxu0 0.0
    %2675 = vmatpush.msra.mxu0 0.0
    %2676 = vmatpush.msra.mxu0 0.0
    %2677 = vmatpush.msra.mxu0 0.0
    %2678 = vmatpush.msra.mxu0 0.0
    %2679 = vmatpush.msra.mxu0 0.0
    %2680 = vmatpush.msra.mxu0 0.0
    %2681 = vmatpush.msra.mxu0 0.0
    %2682 = vmatpush.msra.mxu0 %v2407
    %2683 = vmatmul.f32.gmra.mxu0 %v2425
    %v2684 = vpop.f32.mrf.mxu0
    %v2685 = vadd.f32 0.0, %v2684
    %2686 = vdwg.mxu0
    %2687 = vmatpush.msra.mxu0 0.0
    %2688 = vmatpush.msra.mxu0 0.0
    %2689 = vmatpush.msra.mxu0 0.0
    %2690 = vmatpush.msra.mxu0 0.0
    %2691 = vmatpush.msra.mxu0 0.0
    %2692 = vmatpush.msra.mxu0 0.0
    %2693 = vmatpush.msra.mxu0 0.0
    %2694 = vmatpush.msra.mxu0 0.0
    %2695 = vmatpush.msra.mxu0 0.0
    %2696 = vmatpush.msra.mxu0 0.0
    %2697 = vmatpush.msra.mxu0 0.0
    %2698 = vmatpush.msra.mxu0 0.0
    %2699 = vmatpush.msra.mxu0 0.0
    %2700 = vmatpush.msra.mxu0 0.0
    %2701 = vmatpush.msra.mxu0 0.0
    %2702 = vmatpush.msra.mxu0 %v2408
    %2703 = vmatmul.f32.gmra.mxu0 %v2425
    %v2704 = vpop.f32.mrf.mxu0
    %v2705 = vadd.f32 0.0, %v2704
    %2706 = vdwg.mxu0
    %2707 = vmatpush.msra.mxu0 0.0
    %2708 = vmatpush.msra.mxu0 0.0
    %2709 = vmatpush.msra.mxu0 0.0
    %2710 = vmatpush.msra.mxu0 0.0
    %2711 = vmatpush.msra.mxu0 0.0
    %2712 = vmatpush.msra.mxu0 0.0
    %2713 = vmatpush.msra.mxu0 0.0
    %2714 = vmatpush.msra.mxu0 0.0
    %2715 = vmatpush.msra.mxu0 0.0
    %2716 = vmatpush.msra.mxu0 0.0
    %2717 = vmatpush.msra.mxu0 0.0
    %2718 = vmatpush.msra.mxu0 0.0
    %2719 = vmatpush.msra.mxu0 0.0
    %2720 = vmatpush.msra.mxu0 0.0
    %2721 = vmatpush.msra.mxu0 0.0
    %2722 = vmatpush.msra.mxu0 %v2394
    %2723 = vmatmul.f32.gmra.mxu0 %v2425
    %v2724 = vpop.f32.mrf.mxu0
    %v2725 = vadd.f32 0.0, %v2724
    %2726 = vdwg.mxu0
    %v2727 = vadd.f32 %v2348, %v2445
    %v2728 = vadd.f32 %v2349, %v2465
    %v2729 = vadd.f32 %v2350, %v2485
    %v2730 = vadd.f32 %v2351, %v2505
    %v2731 = vadd.f32 %v2352, %v2525
    %v2732 = vadd.f32 %v2353, %v2545
    %v2733 = vadd.f32 %v2354, %v2565
    %v2734 = vadd.f32 %v2355, %v2585
    %v2735 = vadd.f32 %v2356, %v2605
    %v2736 = vadd.f32 %v2357, %v2625
    %v2737 = vadd.f32 %v2358, %v2645
    %v2738 = vadd.f32 %v2359, %v2665
    %v2739 = vadd.f32 %v2360, %v2685
    %v2740 = vadd.f32 %v2361, %v2705
    %v2741 = vadd.f32 %v2362, %v2725
    %s2742 = scalar_lea.vmem %s3, 32
    %v2743 = vld [vmem:[%s2742] sm:$0xff]
    %2744 = vrot.lane.b32.xlu0 %v1225, 96
    %v2745 = vpop.permute.xlu0 %2744
    %2746 = vrot.lane.b32.xlu0 %v1226, 96
    %v2747 = vpop.permute.xlu0 %2746
    %2748 = vrot.lane.b32.xlu0 %v1227, 96
    %v2749 = vpop.permute.xlu0 %2748
    %2750 = vrot.lane.b32.xlu0 %v1228, 96
    %v2751 = vpop.permute.xlu0 %2750
    %2752 = vrot.lane.b32.xlu0 %v1229, 96
    %v2753 = vpop.permute.xlu0 %2752
    %2754 = vrot.lane.b32.xlu0 %v1230, 96
    %v2755 = vpop.permute.xlu0 %2754
    %2756 = vrot.lane.b32.xlu0 %v1231, 96
    %v2757 = vpop.permute.xlu0 %2756
    %2758 = vrot.lane.b32.xlu0 %v1232, 96
    %v2759 = vpop.permute.xlu0 %2758
    %2760 = vrot.lane.b32.xlu0 %v1233, 96
    %v2761 = vpop.permute.xlu0 %2760
    %2762 = vrot.lane.b32.xlu0 %v1234, 96
    %v2763 = vpop.permute.xlu0 %2762
    %2764 = vrot.lane.b32.xlu0 %v1235, 96
    %v2765 = vpop.permute.xlu0 %2764
    %2766 = vrot.lane.b32.xlu0 %v1236, 96
    %v2767 = vpop.permute.xlu0 %2766
    %2768 = vrot.lane.b32.xlu0 %v1237, 96
    %v2769 = vpop.permute.xlu0 %2768
    %2770 = vrot.lane.b32.xlu0 %v1238, 96
    %v2771 = vpop.permute.xlu0 %2770
    %2772 = vrot.lane.b32.xlu0 %v1239, 96
    %v2773 = vpop.permute.xlu0 %2772
    %v2774 = vsel %vm622, %v2745, %v2747
    %v2775 = vsel %vm622, %v2747, %v2749
    %v2776 = vsel %vm622, %v2749, %v2751
    %v2777 = vsel %vm622, %v2751, %v2753
    %v2778 = vsel %vm622, %v2753, %v2755
    %v2779 = vsel %vm622, %v2755, %v2757
    %v2780 = vsel %vm622, %v2757, %v2759
    %v2781 = vsel %vm622, %v2759, %v2761
    %v2782 = vsel %vm622, %v2761, %v2763
    %v2783 = vsel %vm622, %v2763, %v2765
    %v2784 = vsel %vm622, %v2765, %v2767
    %v2785 = vsel %vm622, %v2767, %v2769
    %v2786 = vsel %vm622, %v2769, %v2771
    %v2787 = vsel %vm622, %v2771, %v2773
    %v2804 = vsel %vm1317, %v2743, 0
    %2806 = vmatpush.msra.mxu0 0.0
    %2807 = vmatpush.msra.mxu0 0.0
    %2808 = vmatpush.msra.mxu0 0.0
    %2809 = vmatpush.msra.mxu0 0.0
    %2810 = vmatpush.msra.mxu0 0.0
    %2811 = vmatpush.msra.mxu0 0.0
    %2812 = vmatpush.msra.mxu0 0.0
    %2813 = vmatpush.msra.mxu0 0.0
    %2814 = vmatpush.msra.mxu0 0.0
    %2815 = vmatpush.msra.mxu0 0.0
    %2816 = vmatpush.msra.mxu0 0.0
    %2817 = vmatpush.msra.mxu0 0.0
    %2818 = vmatpush.msra.mxu0 0.0
    %2819 = vmatpush.msra.mxu0 0.0
    %2820 = vmatpush.msra.mxu0 0.0
    %2821 = vmatpush.msra.mxu0 %v2774
    %2822 = vmatmul.f32.gmra.mxu0 %v2804
    %v2823 = vpop.f32.mrf.mxu0
    %v2824 = vadd.f32 0.0, %v2823
    %2825 = vdwg.mxu0
    %2826 = vmatpush.msra.mxu0 0.0
    %2827 = vmatpush.msra.mxu0 0.0
    %2828 = vmatpush.msra.mxu0 0.0
    %2829 = vmatpush.msra.mxu0 0.0
    %2830 = vmatpush.msra.mxu0 0.0
    %2831 = vmatpush.msra.mxu0 0.0
    %2832 = vmatpush.msra.mxu0 0.0
    %2833 = vmatpush.msra.mxu0 0.0
    %2834 = vmatpush.msra.mxu0 0.0
    %2835 = vmatpush.msra.mxu0 0.0
    %2836 = vmatpush.msra.mxu0 0.0
    %2837 = vmatpush.msra.mxu0 0.0
    %2838 = vmatpush.msra.mxu0 0.0
    %2839 = vmatpush.msra.mxu0 0.0
    %2840 = vmatpush.msra.mxu0 0.0
    %2841 = vmatpush.msra.mxu0 %v2775
    %2842 = vmatmul.f32.gmra.mxu0 %v2804
    %v2843 = vpop.f32.mrf.mxu0
    %v2844 = vadd.f32 0.0, %v2843
    %2845 = vdwg.mxu0
    %2846 = vmatpush.msra.mxu0 0.0
    %2847 = vmatpush.msra.mxu0 0.0
    %2848 = vmatpush.msra.mxu0 0.0
    %2849 = vmatpush.msra.mxu0 0.0
    %2850 = vmatpush.msra.mxu0 0.0
    %2851 = vmatpush.msra.mxu0 0.0
    %2852 = vmatpush.msra.mxu0 0.0
    %2853 = vmatpush.msra.mxu0 0.0
    %2854 = vmatpush.msra.mxu0 0.0
    %2855 = vmatpush.msra.mxu0 0.0
    %2856 = vmatpush.msra.mxu0 0.0
    %2857 = vmatpush.msra.mxu0 0.0
    %2858 = vmatpush.msra.mxu0 0.0
    %2859 = vmatpush.msra.mxu0 0.0
    %2860 = vmatpush.msra.mxu0 0.0
    %2861 = vmatpush.msra.mxu0 %v2776
    %2862 = vmatmul.f32.gmra.mxu0 %v2804
    %v2863 = vpop.f32.mrf.mxu0
    %v2864 = vadd.f32 0.0, %v2863
    %2865 = vdwg.mxu0
    %2866 = vmatpush.msra.mxu0 0.0
    %2867 = vmatpush.msra.mxu0 0.0
    %2868 = vmatpush.msra.mxu0 0.0
    %2869 = vmatpush.msra.mxu0 0.0
    %2870 = vmatpush.msra.mxu0 0.0
    %2871 = vmatpush.msra.mxu0 0.0
    %2872 = vmatpush.msra.mxu0 0.0
    %2873 = vmatpush.msra.mxu0 0.0
    %2874 = vmatpush.msra.mxu0 0.0
    %2875 = vmatpush.msra.mxu0 0.0
    %2876 = vmatpush.msra.mxu0 0.0
    %2877 = vmatpush.msra.mxu0 0.0
    %2878 = vmatpush.msra.mxu0 0.0
    %2879 = vmatpush.msra.mxu0 0.0
    %2880 = vmatpush.msra.mxu0 0.0
    %2881 = vmatpush.msra.mxu0 %v2777
    %2882 = vmatmul.f32.gmra.mxu0 %v2804
    %v2883 = vpop.f32.mrf.mxu0
    %v2884 = vadd.f32 0.0, %v2883
    %2885 = vdwg.mxu0
    %2886 = vmatpush.msra.mxu0 0.0
    %2887 = vmatpush.msra.mxu0 0.0
    %2888 = vmatpush.msra.mxu0 0.0
    %2889 = vmatpush.msra.mxu0 0.0
    %2890 = vmatpush.msra.mxu0 0.0
    %2891 = vmatpush.msra.mxu0 0.0
    %2892 = vmatpush.msra.mxu0 0.0
    %2893 = vmatpush.msra.mxu0 0.0
    %2894 = vmatpush.msra.mxu0 0.0
    %2895 = vmatpush.msra.mxu0 0.0
    %2896 = vmatpush.msra.mxu0 0.0
    %2897 = vmatpush.msra.mxu0 0.0
    %2898 = vmatpush.msra.mxu0 0.0
    %2899 = vmatpush.msra.mxu0 0.0
    %2900 = vmatpush.msra.mxu0 0.0
    %2901 = vmatpush.msra.mxu0 %v2778
    %2902 = vmatmul.f32.gmra.mxu0 %v2804
    %v2903 = vpop.f32.mrf.mxu0
    %v2904 = vadd.f32 0.0, %v2903
    %2905 = vdwg.mxu0
    %2906 = vmatpush.msra.mxu0 0.0
    %2907 = vmatpush.msra.mxu0 0.0
    %2908 = vmatpush.msra.mxu0 0.0
    %2909 = vmatpush.msra.mxu0 0.0
    %2910 = vmatpush.msra.mxu0 0.0
    %2911 = vmatpush.msra.mxu0 0.0
    %2912 = vmatpush.msra.mxu0 0.0
    %2913 = vmatpush.msra.mxu0 0.0
    %2914 = vmatpush.msra.mxu0 0.0
    %2915 = vmatpush.msra.mxu0 0.0
    %2916 = vmatpush.msra.mxu0 0.0
    %2917 = vmatpush.msra.mxu0 0.0
    %2918 = vmatpush.msra.mxu0 0.0
    %2919 = vmatpush.msra.mxu0 0.0
    %2920 = vmatpush.msra.mxu0 0.0
    %2921 = vmatpush.msra.mxu0 %v2779
    %2922 = vmatmul.f32.gmra.mxu0 %v2804
    %v2923 = vpop.f32.mrf.mxu0
    %v2924 = vadd.f32 0.0, %v2923
    %2925 = vdwg.mxu0
    %2926 = vmatpush.msra.mxu0 0.0
    %2927 = vmatpush.msra.mxu0 0.0
    %2928 = vmatpush.msra.mxu0 0.0
    %2929 = vmatpush.msra.mxu0 0.0
    %2930 = vmatpush.msra.mxu0 0.0
    %2931 = vmatpush.msra.mxu0 0.0
    %2932 = vmatpush.msra.mxu0 0.0
    %2933 = vmatpush.msra.mxu0 0.0
    %2934 = vmatpush.msra.mxu0 0.0
    %2935 = vmatpush.msra.mxu0 0.0
    %2936 = vmatpush.msra.mxu0 0.0
    %2937 = vmatpush.msra.mxu0 0.0
    %2938 = vmatpush.msra.mxu0 0.0
    %2939 = vmatpush.msra.mxu0 0.0
    %2940 = vmatpush.msra.mxu0 0.0
    %2941 = vmatpush.msra.mxu0 %v2780
    %2942 = vmatmul.f32.gmra.mxu0 %v2804
    %v2943 = vpop.f32.mrf.mxu0
    %v2944 = vadd.f32 0.0, %v2943
    %2945 = vdwg.mxu0
    %2946 = vmatpush.msra.mxu0 0.0
    %2947 = vmatpush.msra.mxu0 0.0
    %2948 = vmatpush.msra.mxu0 0.0
    %2949 = vmatpush.msra.mxu0 0.0
    %2950 = vmatpush.msra.mxu0 0.0
    %2951 = vmatpush.msra.mxu0 0.0
    %2952 = vmatpush.msra.mxu0 0.0
    %2953 = vmatpush.msra.mxu0 0.0
    %2954 = vmatpush.msra.mxu0 0.0
    %2955 = vmatpush.msra.mxu0 0.0
    %2956 = vmatpush.msra.mxu0 0.0
    %2957 = vmatpush.msra.mxu0 0.0
    %2958 = vmatpush.msra.mxu0 0.0
    %2959 = vmatpush.msra.mxu0 0.0
    %2960 = vmatpush.msra.mxu0 0.0
    %2961 = vmatpush.msra.mxu0 %v2781
    %2962 = vmatmul.f32.gmra.mxu0 %v2804
    %v2963 = vpop.f32.mrf.mxu0
    %v2964 = vadd.f32 0.0, %v2963
    %2965 = vdwg.mxu0
    %2966 = vmatpush.msra.mxu0 0.0
    %2967 = vmatpush.msra.mxu0 0.0
    %2968 = vmatpush.msra.mxu0 0.0
    %2969 = vmatpush.msra.mxu0 0.0
    %2970 = vmatpush.msra.mxu0 0.0
    %2971 = vmatpush.msra.mxu0 0.0
    %2972 = vmatpush.msra.mxu0 0.0
    %2973 = vmatpush.msra.mxu0 0.0
    %2974 = vmatpush.msra.mxu0 0.0
    %2975 = vmatpush.msra.mxu0 0.0
    %2976 = vmatpush.msra.mxu0 0.0
    %2977 = vmatpush.msra.mxu0 0.0
    %2978 = vmatpush.msra.mxu0 0.0
    %2979 = vmatpush.msra.mxu0 0.0
    %2980 = vmatpush.msra.mxu0 0.0
    %2981 = vmatpush.msra.mxu0 %v2782
    %2982 = vmatmul.f32.gmra.mxu0 %v2804
    %v2983 = vpop.f32.mrf.mxu0
    %v2984 = vadd.f32 0.0, %v2983
    %2985 = vdwg.mxu0
    %2986 = vmatpush.msra.mxu0 0.0
    %2987 = vmatpush.msra.mxu0 0.0
    %2988 = vmatpush.msra.mxu0 0.0
    %2989 = vmatpush.msra.mxu0 0.0
    %2990 = vmatpush.msra.mxu0 0.0
    %2991 = vmatpush.msra.mxu0 0.0
    %2992 = vmatpush.msra.mxu0 0.0
    %2993 = vmatpush.msra.mxu0 0.0
    %2994 = vmatpush.msra.mxu0 0.0
    %2995 = vmatpush.msra.mxu0 0.0
    %2996 = vmatpush.msra.mxu0 0.0
    %2997 = vmatpush.msra.mxu0 0.0
    %2998 = vmatpush.msra.mxu0 0.0
    %2999 = vmatpush.msra.mxu0 0.0
    %3000 = vmatpush.msra.mxu0 0.0
    %3001 = vmatpush.msra.mxu0 %v2783
    %3002 = vmatmul.f32.gmra.mxu0 %v2804
    %v3003 = vpop.f32.mrf.mxu0
    %v3004 = vadd.f32 0.0, %v3003
    %3005 = vdwg.mxu0
    %3006 = vmatpush.msra.mxu0 0.0
    %3007 = vmatpush.msra.mxu0 0.0
    %3008 = vmatpush.msra.mxu0 0.0
    %3009 = vmatpush.msra.mxu0 0.0
    %3010 = vmatpush.msra.mxu0 0.0
    %3011 = vmatpush.msra.mxu0 0.0
    %3012 = vmatpush.msra.mxu0 0.0
    %3013 = vmatpush.msra.mxu0 0.0
    %3014 = vmatpush.msra.mxu0 0.0
    %3015 = vmatpush.msra.mxu0 0.0
    %3016 = vmatpush.msra.mxu0 0.0
    %3017 = vmatpush.msra.mxu0 0.0
    %3018 = vmatpush.msra.mxu0 0.0
    %3019 = vmatpush.msra.mxu0 0.0
    %3020 = vmatpush.msra.mxu0 0.0
    %3021 = vmatpush.msra.mxu0 %v2784
    %3022 = vmatmul.f32.gmra.mxu0 %v2804
    %v3023 = vpop.f32.mrf.mxu0
    %v3024 = vadd.f32 0.0, %v3023
    %3025 = vdwg.mxu0
    %3026 = vmatpush.msra.mxu0 0.0
    %3027 = vmatpush.msra.mxu0 0.0
    %3028 = vmatpush.msra.mxu0 0.0
    %3029 = vmatpush.msra.mxu0 0.0
    %3030 = vmatpush.msra.mxu0 0.0
    %3031 = vmatpush.msra.mxu0 0.0
    %3032 = vmatpush.msra.mxu0 0.0
    %3033 = vmatpush.msra.mxu0 0.0
    %3034 = vmatpush.msra.mxu0 0.0
    %3035 = vmatpush.msra.mxu0 0.0
    %3036 = vmatpush.msra.mxu0 0.0
    %3037 = vmatpush.msra.mxu0 0.0
    %3038 = vmatpush.msra.mxu0 0.0
    %3039 = vmatpush.msra.mxu0 0.0
    %3040 = vmatpush.msra.mxu0 0.0
    %3041 = vmatpush.msra.mxu0 %v2785
    %3042 = vmatmul.f32.gmra.mxu0 %v2804
    %v3043 = vpop.f32.mrf.mxu0
    %v3044 = vadd.f32 0.0, %v3043
    %3045 = vdwg.mxu0
    %3046 = vmatpush.msra.mxu0 0.0
    %3047 = vmatpush.msra.mxu0 0.0
    %3048 = vmatpush.msra.mxu0 0.0
    %3049 = vmatpush.msra.mxu0 0.0
    %3050 = vmatpush.msra.mxu0 0.0
    %3051 = vmatpush.msra.mxu0 0.0
    %3052 = vmatpush.msra.mxu0 0.0
    %3053 = vmatpush.msra.mxu0 0.0
    %3054 = vmatpush.msra.mxu0 0.0
    %3055 = vmatpush.msra.mxu0 0.0
    %3056 = vmatpush.msra.mxu0 0.0
    %3057 = vmatpush.msra.mxu0 0.0
    %3058 = vmatpush.msra.mxu0 0.0
    %3059 = vmatpush.msra.mxu0 0.0
    %3060 = vmatpush.msra.mxu0 0.0
    %3061 = vmatpush.msra.mxu0 %v2786
    %3062 = vmatmul.f32.gmra.mxu0 %v2804
    %v3063 = vpop.f32.mrf.mxu0
    %v3064 = vadd.f32 0.0, %v3063
    %3065 = vdwg.mxu0
    %3066 = vmatpush.msra.mxu0 0.0
    %3067 = vmatpush.msra.mxu0 0.0
    %3068 = vmatpush.msra.mxu0 0.0
    %3069 = vmatpush.msra.mxu0 0.0
    %3070 = vmatpush.msra.mxu0 0.0
    %3071 = vmatpush.msra.mxu0 0.0
    %3072 = vmatpush.msra.mxu0 0.0
    %3073 = vmatpush.msra.mxu0 0.0
    %3074 = vmatpush.msra.mxu0 0.0
    %3075 = vmatpush.msra.mxu0 0.0
    %3076 = vmatpush.msra.mxu0 0.0
    %3077 = vmatpush.msra.mxu0 0.0
    %3078 = vmatpush.msra.mxu0 0.0
    %3079 = vmatpush.msra.mxu0 0.0
    %3080 = vmatpush.msra.mxu0 0.0
    %3081 = vmatpush.msra.mxu0 %v2787
    %3082 = vmatmul.f32.gmra.mxu0 %v2804
    %v3083 = vpop.f32.mrf.mxu0
    %v3084 = vadd.f32 0.0, %v3083
    %3085 = vdwg.mxu0
    %3086 = vmatpush.msra.mxu0 0.0
    %3087 = vmatpush.msra.mxu0 0.0
    %3088 = vmatpush.msra.mxu0 0.0
    %3089 = vmatpush.msra.mxu0 0.0
    %3090 = vmatpush.msra.mxu0 0.0
    %3091 = vmatpush.msra.mxu0 0.0
    %3092 = vmatpush.msra.mxu0 0.0
    %3093 = vmatpush.msra.mxu0 0.0
    %3094 = vmatpush.msra.mxu0 0.0
    %3095 = vmatpush.msra.mxu0 0.0
    %3096 = vmatpush.msra.mxu0 0.0
    %3097 = vmatpush.msra.mxu0 0.0
    %3098 = vmatpush.msra.mxu0 0.0
    %3099 = vmatpush.msra.mxu0 0.0
    %3100 = vmatpush.msra.mxu0 0.0
    %3101 = vmatpush.msra.mxu0 %v2773
    %3102 = vmatmul.f32.gmra.mxu0 %v2804
    %v3103 = vpop.f32.mrf.mxu0
    %v3104 = vadd.f32 0.0, %v3103
    %3105 = vdwg.mxu0
    %v3106 = vadd.f32 %v2727, %v2824
    %v3107 = vadd.f32 %v2728, %v2844
    %v3108 = vadd.f32 %v2729, %v2864
    %v3109 = vadd.f32 %v2730, %v2884
    %v3110 = vadd.f32 %v2731, %v2904
    %v3111 = vadd.f32 %v2732, %v2924
    %v3112 = vadd.f32 %v2733, %v2944
    %v3113 = vadd.f32 %v2734, %v2964
    %v3114 = vadd.f32 %v2735, %v2984
    %v3115 = vadd.f32 %v2736, %v3004
    %v3116 = vadd.f32 %v2737, %v3024
    %v3117 = vadd.f32 %v2738, %v3044
    %v3118 = vadd.f32 %v2739, %v3064
    %v3119 = vadd.f32 %v2740, %v3084
    %v3120 = vadd.f32 %v2741, %v3104
    %s3121 = scalar_lea.vmem %s3, 40
    %v3122 = vld [vmem:[%s3121] sm:$0xff]
    %3123 = vrot.lane.b32.xlu0 %v1225, 95
    %v3124 = vpop.permute.xlu0 %3123
    %3125 = vrot.lane.b32.xlu0 %v1226, 95
    %v3126 = vpop.permute.xlu0 %3125
    %3127 = vrot.lane.b32.xlu0 %v1227, 95
    %v3128 = vpop.permute.xlu0 %3127
    %3129 = vrot.lane.b32.xlu0 %v1228, 95
    %v3130 = vpop.permute.xlu0 %3129
    %3131 = vrot.lane.b32.xlu0 %v1229, 95
    %v3132 = vpop.permute.xlu0 %3131
    %3133 = vrot.lane.b32.xlu0 %v1230, 95
    %v3134 = vpop.permute.xlu0 %3133
    %3135 = vrot.lane.b32.xlu0 %v1231, 95
    %v3136 = vpop.permute.xlu0 %3135
    %3137 = vrot.lane.b32.xlu0 %v1232, 95
    %v3138 = vpop.permute.xlu0 %3137
    %3139 = vrot.lane.b32.xlu0 %v1233, 95
    %v3140 = vpop.permute.xlu0 %3139
    %3141 = vrot.lane.b32.xlu0 %v1234, 95
    %v3142 = vpop.permute.xlu0 %3141
    %3143 = vrot.lane.b32.xlu0 %v1235, 95
    %v3144 = vpop.permute.xlu0 %3143
    %3145 = vrot.lane.b32.xlu0 %v1236, 95
    %v3146 = vpop.permute.xlu0 %3145
    %3147 = vrot.lane.b32.xlu0 %v1237, 95
    %v3148 = vpop.permute.xlu0 %3147
    %3149 = vrot.lane.b32.xlu0 %v1238, 95
    %v3150 = vpop.permute.xlu0 %3149
    %3151 = vrot.lane.b32.xlu0 %v1239, 95
    %v3152 = vpop.permute.xlu0 %3151
    %vm3153 = vcmask 777216
    %v3154 = vsel %vm3153, %v3124, %v3126
    %v3155 = vsel %vm3153, %v3126, %v3128
    %v3156 = vsel %vm3153, %v3128, %v3130
    %v3157 = vsel %vm3153, %v3130, %v3132
    %v3158 = vsel %vm3153, %v3132, %v3134
    %v3159 = vsel %vm3153, %v3134, %v3136
    %v3160 = vsel %vm3153, %v3136, %v3138
    %v3161 = vsel %vm3153, %v3138, %v3140
    %v3162 = vsel %vm3153, %v3140, %v3142
    %v3163 = vsel %vm3153, %v3142, %v3144
    %v3164 = vsel %vm3153, %v3144, %v3146
    %v3165 = vsel %vm3153, %v3146, %v3148
    %v3166 = vsel %vm3153, %v3148, %v3150
    %v3167 = vsel %vm3153, %v3150, %v3152
    %v3184 = vsel %vm1317, %v3122, 0
    %3186 = vmatpush.msra.mxu0 0.0
    %3187 = vmatpush.msra.mxu0 0.0
    %3188 = vmatpush.msra.mxu0 0.0
    %3189 = vmatpush.msra.mxu0 0.0
    %3190 = vmatpush.msra.mxu0 0.0
    %3191 = vmatpush.msra.mxu0 0.0
    %3192 = vmatpush.msra.mxu0 0.0
    %3193 = vmatpush.msra.mxu0 0.0
    %3194 = vmatpush.msra.mxu0 0.0
    %3195 = vmatpush.msra.mxu0 0.0
    %3196 = vmatpush.msra.mxu0 0.0
    %3197 = vmatpush.msra.mxu0 0.0
    %3198 = vmatpush.msra.mxu0 0.0
    %3199 = vmatpush.msra.mxu0 0.0
    %3200 = vmatpush.msra.mxu0 0.0
    %3201 = vmatpush.msra.mxu0 %v3154
    %3202 = vmatmul.f32.gmra.mxu0 %v3184
    %v3203 = vpop.f32.mrf.mxu0
    %v3204 = vadd.f32 0.0, %v3203
    %3205 = vdwg.mxu0
    %3206 = vmatpush.msra.mxu0 0.0
    %3207 = vmatpush.msra.mxu0 0.0
    %3208 = vmatpush.msra.mxu0 0.0
    %3209 = vmatpush.msra.mxu0 0.0
    %3210 = vmatpush.msra.mxu0 0.0
    %3211 = vmatpush.msra.mxu0 0.0
    %3212 = vmatpush.msra.mxu0 0.0
    %3213 = vmatpush.msra.mxu0 0.0
    %3214 = vmatpush.msra.mxu0 0.0
    %3215 = vmatpush.msra.mxu0 0.0
    %3216 = vmatpush.msra.mxu0 0.0
    %3217 = vmatpush.msra.mxu0 0.0
    %3218 = vmatpush.msra.mxu0 0.0
    %3219 = vmatpush.msra.mxu0 0.0
    %3220 = vmatpush.msra.mxu0 0.0
    %3221 = vmatpush.msra.mxu0 %v3155
    %3222 = vmatmul.f32.gmra.mxu0 %v3184
    %v3223 = vpop.f32.mrf.mxu0
    %v3224 = vadd.f32 0.0, %v3223
    %3225 = vdwg.mxu0
    %3226 = vmatpush.msra.mxu0 0.0
    %3227 = vmatpush.msra.mxu0 0.0
    %3228 = vmatpush.msra.mxu0 0.0
    %3229 = vmatpush.msra.mxu0 0.0
    %3230 = vmatpush.msra.mxu0 0.0
    %3231 = vmatpush.msra.mxu0 0.0
    %3232 = vmatpush.msra.mxu0 0.0
    %3233 = vmatpush.msra.mxu0 0.0
    %3234 = vmatpush.msra.mxu0 0.0
    %3235 = vmatpush.msra.mxu0 0.0
    %3236 = vmatpush.msra.mxu0 0.0
    %3237 = vmatpush.msra.mxu0 0.0
    %3238 = vmatpush.msra.mxu0 0.0
    %3239 = vmatpush.msra.mxu0 0.0
    %3240 = vmatpush.msra.mxu0 0.0
    %3241 = vmatpush.msra.mxu0 %v3156
    %3242 = vmatmul.f32.gmra.mxu0 %v3184
    %v3243 = vpop.f32.mrf.mxu0
    %v3244 = vadd.f32 0.0, %v3243
    %3245 = vdwg.mxu0
    %3246 = vmatpush.msra.mxu0 0.0
    %3247 = vmatpush.msra.mxu0 0.0
    %3248 = vmatpush.msra.mxu0 0.0
    %3249 = vmatpush.msra.mxu0 0.0
    %3250 = vmatpush.msra.mxu0 0.0
    %3251 = vmatpush.msra.mxu0 0.0
    %3252 = vmatpush.msra.mxu0 0.0
    %3253 = vmatpush.msra.mxu0 0.0
    %3254 = vmatpush.msra.mxu0 0.0
    %3255 = vmatpush.msra.mxu0 0.0
    %3256 = vmatpush.msra.mxu0 0.0
    %3257 = vmatpush.msra.mxu0 0.0
    %3258 = vmatpush.msra.mxu0 0.0
    %3259 = vmatpush.msra.mxu0 0.0
    %3260 = vmatpush.msra.mxu0 0.0
    %3261 = vmatpush.msra.mxu0 %v3157
    %3262 = vmatmul.f32.gmra.mxu0 %v3184
    %v3263 = vpop.f32.mrf.mxu0
    %v3264 = vadd.f32 0.0, %v3263
    %3265 = vdwg.mxu0
    %3266 = vmatpush.msra.mxu0 0.0
    %3267 = vmatpush.msra.mxu0 0.0
    %3268 = vmatpush.msra.mxu0 0.0
    %3269 = vmatpush.msra.mxu0 0.0
    %3270 = vmatpush.msra.mxu0 0.0
    %3271 = vmatpush.msra.mxu0 0.0
    %3272 = vmatpush.msra.mxu0 0.0
    %3273 = vmatpush.msra.mxu0 0.0
    %3274 = vmatpush.msra.mxu0 0.0
    %3275 = vmatpush.msra.mxu0 0.0
    %3276 = vmatpush.msra.mxu0 0.0
    %3277 = vmatpush.msra.mxu0 0.0
    %3278 = vmatpush.msra.mxu0 0.0
    %3279 = vmatpush.msra.mxu0 0.0
    %3280 = vmatpush.msra.mxu0 0.0
    %3281 = vmatpush.msra.mxu0 %v3158
    %3282 = vmatmul.f32.gmra.mxu0 %v3184
    %v3283 = vpop.f32.mrf.mxu0
    %v3284 = vadd.f32 0.0, %v3283
    %3285 = vdwg.mxu0
    %3286 = vmatpush.msra.mxu0 0.0
    %3287 = vmatpush.msra.mxu0 0.0
    %3288 = vmatpush.msra.mxu0 0.0
    %3289 = vmatpush.msra.mxu0 0.0
    %3290 = vmatpush.msra.mxu0 0.0
    %3291 = vmatpush.msra.mxu0 0.0
    %3292 = vmatpush.msra.mxu0 0.0
    %3293 = vmatpush.msra.mxu0 0.0
    %3294 = vmatpush.msra.mxu0 0.0
    %3295 = vmatpush.msra.mxu0 0.0
    %3296 = vmatpush.msra.mxu0 0.0
    %3297 = vmatpush.msra.mxu0 0.0
    %3298 = vmatpush.msra.mxu0 0.0
    %3299 = vmatpush.msra.mxu0 0.0
    %3300 = vmatpush.msra.mxu0 0.0
    %3301 = vmatpush.msra.mxu0 %v3159
    %3302 = vmatmul.f32.gmra.mxu0 %v3184
    %v3303 = vpop.f32.mrf.mxu0
    %v3304 = vadd.f32 0.0, %v3303
    %3305 = vdwg.mxu0
    %3306 = vmatpush.msra.mxu0 0.0
    %3307 = vmatpush.msra.mxu0 0.0
    %3308 = vmatpush.msra.mxu0 0.0
    %3309 = vmatpush.msra.mxu0 0.0
    %3310 = vmatpush.msra.mxu0 0.0
    %3311 = vmatpush.msra.mxu0 0.0
    %3312 = vmatpush.msra.mxu0 0.0
    %3313 = vmatpush.msra.mxu0 0.0
    %3314 = vmatpush.msra.mxu0 0.0
    %3315 = vmatpush.msra.mxu0 0.0
    %3316 = vmatpush.msra.mxu0 0.0
    %3317 = vmatpush.msra.mxu0 0.0
    %3318 = vmatpush.msra.mxu0 0.0
    %3319 = vmatpush.msra.mxu0 0.0
    %3320 = vmatpush.msra.mxu0 0.0
    %3321 = vmatpush.msra.mxu0 %v3160
    %3322 = vmatmul.f32.gmra.mxu0 %v3184
    %v3323 = vpop.f32.mrf.mxu0
    %v3324 = vadd.f32 0.0, %v3323
    %3325 = vdwg.mxu0
    %3326 = vmatpush.msra.mxu0 0.0
    %3327 = vmatpush.msra.mxu0 0.0
    %3328 = vmatpush.msra.mxu0 0.0
    %3329 = vmatpush.msra.mxu0 0.0
    %3330 = vmatpush.msra.mxu0 0.0
    %3331 = vmatpush.msra.mxu0 0.0
    %3332 = vmatpush.msra.mxu0 0.0
    %3333 = vmatpush.msra.mxu0 0.0
    %3334 = vmatpush.msra.mxu0 0.0
    %3335 = vmatpush.msra.mxu0 0.0
    %3336 = vmatpush.msra.mxu0 0.0
    %3337 = vmatpush.msra.mxu0 0.0
    %3338 = vmatpush.msra.mxu0 0.0
    %3339 = vmatpush.msra.mxu0 0.0
    %3340 = vmatpush.msra.mxu0 0.0
    %3341 = vmatpush.msra.mxu0 %v3161
    %3342 = vmatmul.f32.gmra.mxu0 %v3184
    %v3343 = vpop.f32.mrf.mxu0
    %v3344 = vadd.f32 0.0, %v3343
    %3345 = vdwg.mxu0
    %3346 = vmatpush.msra.mxu0 0.0
    %3347 = vmatpush.msra.mxu0 0.0
    %3348 = vmatpush.msra.mxu0 0.0
    %3349 = vmatpush.msra.mxu0 0.0
    %3350 = vmatpush.msra.mxu0 0.0
    %3351 = vmatpush.msra.mxu0 0.0
    %3352 = vmatpush.msra.mxu0 0.0
    %3353 = vmatpush.msra.mxu0 0.0
    %3354 = vmatpush.msra.mxu0 0.0
    %3355 = vmatpush.msra.mxu0 0.0
    %3356 = vmatpush.msra.mxu0 0.0
    %3357 = vmatpush.msra.mxu0 0.0
    %3358 = vmatpush.msra.mxu0 0.0
    %3359 = vmatpush.msra.mxu0 0.0
    %3360 = vmatpush.msra.mxu0 0.0
    %3361 = vmatpush.msra.mxu0 %v3162
    %3362 = vmatmul.f32.gmra.mxu0 %v3184
    %v3363 = vpop.f32.mrf.mxu0
    %v3364 = vadd.f32 0.0, %v3363
    %3365 = vdwg.mxu0
    %3366 = vmatpush.msra.mxu0 0.0
    %3367 = vmatpush.msra.mxu0 0.0
    %3368 = vmatpush.msra.mxu0 0.0
    %3369 = vmatpush.msra.mxu0 0.0
    %3370 = vmatpush.msra.mxu0 0.0
    %3371 = vmatpush.msra.mxu0 0.0
    %3372 = vmatpush.msra.mxu0 0.0
    %3373 = vmatpush.msra.mxu0 0.0
    %3374 = vmatpush.msra.mxu0 0.0
    %3375 = vmatpush.msra.mxu0 0.0
    %3376 = vmatpush.msra.mxu0 0.0
    %3377 = vmatpush.msra.mxu0 0.0
    %3378 = vmatpush.msra.mxu0 0.0
    %3379 = vmatpush.msra.mxu0 0.0
    %3380 = vmatpush.msra.mxu0 0.0
    %3381 = vmatpush.msra.mxu0 %v3163
    %3382 = vmatmul.f32.gmra.mxu0 %v3184
    %v3383 = vpop.f32.mrf.mxu0
    %v3384 = vadd.f32 0.0, %v3383
    %3385 = vdwg.mxu0
    %3386 = vmatpush.msra.mxu0 0.0
    %3387 = vmatpush.msra.mxu0 0.0
    %3388 = vmatpush.msra.mxu0 0.0
    %3389 = vmatpush.msra.mxu0 0.0
    %3390 = vmatpush.msra.mxu0 0.0
    %3391 = vmatpush.msra.mxu0 0.0
    %3392 = vmatpush.msra.mxu0 0.0
    %3393 = vmatpush.msra.mxu0 0.0
    %3394 = vmatpush.msra.mxu0 0.0
    %3395 = vmatpush.msra.mxu0 0.0
    %3396 = vmatpush.msra.mxu0 0.0
    %3397 = vmatpush.msra.mxu0 0.0
    %3398 = vmatpush.msra.mxu0 0.0
    %3399 = vmatpush.msra.mxu0 0.0
    %3400 = vmatpush.msra.mxu0 0.0
    %3401 = vmatpush.msra.mxu0 %v3164
    %3402 = vmatmul.f32.gmra.mxu0 %v3184
    %v3403 = vpop.f32.mrf.mxu0
    %v3404 = vadd.f32 0.0, %v3403
    %3405 = vdwg.mxu0
    %3406 = vmatpush.msra.mxu0 0.0
    %3407 = vmatpush.msra.mxu0 0.0
    %3408 = vmatpush.msra.mxu0 0.0
    %3409 = vmatpush.msra.mxu0 0.0
    %3410 = vmatpush.msra.mxu0 0.0
    %3411 = vmatpush.msra.mxu0 0.0
    %3412 = vmatpush.msra.mxu0 0.0
    %3413 = vmatpush.msra.mxu0 0.0
    %3414 = vmatpush.msra.mxu0 0.0
    %3415 = vmatpush.msra.mxu0 0.0
    %3416 = vmatpush.msra.mxu0 0.0
    %3417 = vmatpush.msra.mxu0 0.0
    %3418 = vmatpush.msra.mxu0 0.0
    %3419 = vmatpush.msra.mxu0 0.0
    %3420 = vmatpush.msra.mxu0 0.0
    %3421 = vmatpush.msra.mxu0 %v3165
    %3422 = vmatmul.f32.gmra.mxu0 %v3184
    %v3423 = vpop.f32.mrf.mxu0
    %v3424 = vadd.f32 0.0, %v3423
    %3425 = vdwg.mxu0
    %3426 = vmatpush.msra.mxu0 0.0
    %3427 = vmatpush.msra.mxu0 0.0
    %3428 = vmatpush.msra.mxu0 0.0
    %3429 = vmatpush.msra.mxu0 0.0
    %3430 = vmatpush.msra.mxu0 0.0
    %3431 = vmatpush.msra.mxu0 0.0
    %3432 = vmatpush.msra.mxu0 0.0
    %3433 = vmatpush.msra.mxu0 0.0
    %3434 = vmatpush.msra.mxu0 0.0
    %3435 = vmatpush.msra.mxu0 0.0
    %3436 = vmatpush.msra.mxu0 0.0
    %3437 = vmatpush.msra.mxu0 0.0
    %3438 = vmatpush.msra.mxu0 0.0
    %3439 = vmatpush.msra.mxu0 0.0
    %3440 = vmatpush.msra.mxu0 0.0
    %3441 = vmatpush.msra.mxu0 %v3166
    %3442 = vmatmul.f32.gmra.mxu0 %v3184
    %v3443 = vpop.f32.mrf.mxu0
    %v3444 = vadd.f32 0.0, %v3443
    %3445 = vdwg.mxu0
    %3446 = vmatpush.msra.mxu0 0.0
    %3447 = vmatpush.msra.mxu0 0.0
    %3448 = vmatpush.msra.mxu0 0.0
    %3449 = vmatpush.msra.mxu0 0.0
    %3450 = vmatpush.msra.mxu0 0.0
    %3451 = vmatpush.msra.mxu0 0.0
    %3452 = vmatpush.msra.mxu0 0.0
    %3453 = vmatpush.msra.mxu0 0.0
    %3454 = vmatpush.msra.mxu0 0.0
    %3455 = vmatpush.msra.mxu0 0.0
    %3456 = vmatpush.msra.mxu0 0.0
    %3457 = vmatpush.msra.mxu0 0.0
    %3458 = vmatpush.msra.mxu0 0.0
    %3459 = vmatpush.msra.mxu0 0.0
    %3460 = vmatpush.msra.mxu0 0.0
    %3461 = vmatpush.msra.mxu0 %v3167
    %3462 = vmatmul.f32.gmra.mxu0 %v3184
    %v3463 = vpop.f32.mrf.mxu0
    %v3464 = vadd.f32 0.0, %v3463
    %3465 = vdwg.mxu0
    %3466 = vmatpush.msra.mxu0 0.0
    %3467 = vmatpush.msra.mxu0 0.0
    %3468 = vmatpush.msra.mxu0 0.0
    %3469 = vmatpush.msra.mxu0 0.0
    %3470 = vmatpush.msra.mxu0 0.0
    %3471 = vmatpush.msra.mxu0 0.0
    %3472 = vmatpush.msra.mxu0 0.0
    %3473 = vmatpush.msra.mxu0 0.0
    %3474 = vmatpush.msra.mxu0 0.0
    %3475 = vmatpush.msra.mxu0 0.0
    %3476 = vmatpush.msra.mxu0 0.0
    %3477 = vmatpush.msra.mxu0 0.0
    %3478 = vmatpush.msra.mxu0 0.0
    %3479 = vmatpush.msra.mxu0 0.0
    %3480 = vmatpush.msra.mxu0 0.0
    %3481 = vmatpush.msra.mxu0 %v3152
    %3482 = vmatmul.f32.gmra.mxu0 %v3184
    %v3483 = vpop.f32.mrf.mxu0
    %v3484 = vadd.f32 0.0, %v3483
    %3485 = vdwg.mxu0
    %v3486 = vadd.f32 %v3106, %v3204
    %v3487 = vadd.f32 %v3107, %v3224
    %v3488 = vadd.f32 %v3108, %v3244
    %v3489 = vadd.f32 %v3109, %v3264
    %v3490 = vadd.f32 %v3110, %v3284
    %v3491 = vadd.f32 %v3111, %v3304
    %v3492 = vadd.f32 %v3112, %v3324
    %v3493 = vadd.f32 %v3113, %v3344
    %v3494 = vadd.f32 %v3114, %v3364
    %v3495 = vadd.f32 %v3115, %v3384
    %v3496 = vadd.f32 %v3116, %v3404
    %v3497 = vadd.f32 %v3117, %v3424
    %v3498 = vadd.f32 %v3118, %v3444
    %v3499 = vadd.f32 %v3119, %v3464
    %v3500 = vadd.f32 %v3120, %v3484
    %s3501 = scalar_lea.vmem %s3, 48
    %v3502 = vld [vmem:[%s3501] sm:$0xff]
    %3503 = vrot.lane.b32.xlu0 %v1225, 67
    %v3504 = vpop.permute.xlu0 %3503
    %3505 = vrot.lane.b32.xlu0 %v1226, 67
    %v3506 = vpop.permute.xlu0 %3505
    %3507 = vrot.lane.b32.xlu0 %v1227, 67
    %v3508 = vpop.permute.xlu0 %3507
    %3509 = vrot.lane.b32.xlu0 %v1228, 67
    %v3510 = vpop.permute.xlu0 %3509
    %3511 = vrot.lane.b32.xlu0 %v1229, 67
    %v3512 = vpop.permute.xlu0 %3511
    %3513 = vrot.lane.b32.xlu0 %v1230, 67
    %v3514 = vpop.permute.xlu0 %3513
    %3515 = vrot.lane.b32.xlu0 %v1231, 67
    %v3516 = vpop.permute.xlu0 %3515
    %3517 = vrot.lane.b32.xlu0 %v1232, 67
    %v3518 = vpop.permute.xlu0 %3517
    %3519 = vrot.lane.b32.xlu0 %v1233, 67
    %v3520 = vpop.permute.xlu0 %3519
    %3521 = vrot.lane.b32.xlu0 %v1234, 67
    %v3522 = vpop.permute.xlu0 %3521
    %3523 = vrot.lane.b32.xlu0 %v1235, 67
    %v3524 = vpop.permute.xlu0 %3523
    %3525 = vrot.lane.b32.xlu0 %v1236, 67
    %v3526 = vpop.permute.xlu0 %3525
    %3527 = vrot.lane.b32.xlu0 %v1237, 67
    %v3528 = vpop.permute.xlu0 %3527
    %3529 = vrot.lane.b32.xlu0 %v1238, 67
    %v3530 = vpop.permute.xlu0 %3529
    %3531 = vrot.lane.b32.xlu0 %v1239, 67
    %v3532 = vpop.permute.xlu0 %3531
    %v3533 = vsel %vm846, %v3504, %v3506
    %v3534 = vsel %vm846, %v3506, %v3508
    %v3535 = vsel %vm846, %v3508, %v3510
    %v3536 = vsel %vm846, %v3510, %v3512
    %v3537 = vsel %vm846, %v3512, %v3514
    %v3538 = vsel %vm846, %v3514, %v3516
    %v3539 = vsel %vm846, %v3516, %v3518
    %v3540 = vsel %vm846, %v3518, %v3520
    %v3541 = vsel %vm846, %v3520, %v3522
    %v3542 = vsel %vm846, %v3522, %v3524
    %v3543 = vsel %vm846, %v3524, %v3526
    %v3544 = vsel %vm846, %v3526, %v3528
    %v3545 = vsel %vm846, %v3528, %v3530
    %v3546 = vsel %vm846, %v3530, %v3532
    %v3563 = vsel %vm1317, %v3502, 0
    %3565 = vmatpush.msra.mxu0 0.0
    %3566 = vmatpush.msra.mxu0 0.0
    %3567 = vmatpush.msra.mxu0 0.0
    %3568 = vmatpush.msra.mxu0 0.0
    %3569 = vmatpush.msra.mxu0 0.0
    %3570 = vmatpush.msra.mxu0 0.0
    %3571 = vmatpush.msra.mxu0 0.0
    %3572 = vmatpush.msra.mxu0 0.0
    %3573 = vmatpush.msra.mxu0 0.0
    %3574 = vmatpush.msra.mxu0 0.0
    %3575 = vmatpush.msra.mxu0 0.0
    %3576 = vmatpush.msra.mxu0 0.0
    %3577 = vmatpush.msra.mxu0 0.0
    %3578 = vmatpush.msra.mxu0 0.0
    %3579 = vmatpush.msra.mxu0 0.0
    %3580 = vmatpush.msra.mxu0 %v3533
    %3581 = vmatmul.f32.gmra.mxu0 %v3563
    %v3582 = vpop.f32.mrf.mxu0
    %v3583 = vadd.f32 0.0, %v3582
    %3584 = vdwg.mxu0
    %3585 = vmatpush.msra.mxu0 0.0
    %3586 = vmatpush.msra.mxu0 0.0
    %3587 = vmatpush.msra.mxu0 0.0
    %3588 = vmatpush.msra.mxu0 0.0
    %3589 = vmatpush.msra.mxu0 0.0
    %3590 = vmatpush.msra.mxu0 0.0
    %3591 = vmatpush.msra.mxu0 0.0
    %3592 = vmatpush.msra.mxu0 0.0
    %3593 = vmatpush.msra.mxu0 0.0
    %3594 = vmatpush.msra.mxu0 0.0
    %3595 = vmatpush.msra.mxu0 0.0
    %3596 = vmatpush.msra.mxu0 0.0
    %3597 = vmatpush.msra.mxu0 0.0
    %3598 = vmatpush.msra.mxu0 0.0
    %3599 = vmatpush.msra.mxu0 0.0
    %3600 = vmatpush.msra.mxu0 %v3534
    %3601 = vmatmul.f32.gmra.mxu0 %v3563
    %v3602 = vpop.f32.mrf.mxu0
    %v3603 = vadd.f32 0.0, %v3602
    %3604 = vdwg.mxu0
    %3605 = vmatpush.msra.mxu0 0.0
    %3606 = vmatpush.msra.mxu0 0.0
    %3607 = vmatpush.msra.mxu0 0.0
    %3608 = vmatpush.msra.mxu0 0.0
    %3609 = vmatpush.msra.mxu0 0.0
    %3610 = vmatpush.msra.mxu0 0.0
    %3611 = vmatpush.msra.mxu0 0.0
    %3612 = vmatpush.msra.mxu0 0.0
    %3613 = vmatpush.msra.mxu0 0.0
    %3614 = vmatpush.msra.mxu0 0.0
    %3615 = vmatpush.msra.mxu0 0.0
    %3616 = vmatpush.msra.mxu0 0.0
    %3617 = vmatpush.msra.mxu0 0.0
    %3618 = vmatpush.msra.mxu0 0.0
    %3619 = vmatpush.msra.mxu0 0.0
    %3620 = vmatpush.msra.mxu0 %v3535
    %3621 = vmatmul.f32.gmra.mxu0 %v3563
    %v3622 = vpop.f32.mrf.mxu0
    %v3623 = vadd.f32 0.0, %v3622
    %3624 = vdwg.mxu0
    %3625 = vmatpush.msra.mxu0 0.0
    %3626 = vmatpush.msra.mxu0 0.0
    %3627 = vmatpush.msra.mxu0 0.0
    %3628 = vmatpush.msra.mxu0 0.0
    %3629 = vmatpush.msra.mxu0 0.0
    %3630 = vmatpush.msra.mxu0 0.0
    %3631 = vmatpush.msra.mxu0 0.0
    %3632 = vmatpush.msra.mxu0 0.0
    %3633 = vmatpush.msra.mxu0 0.0
    %3634 = vmatpush.msra.mxu0 0.0
    %3635 = vmatpush.msra.mxu0 0.0
    %3636 = vmatpush.msra.mxu0 0.0
    %3637 = vmatpush.msra.mxu0 0.0
    %3638 = vmatpush.msra.mxu0 0.0
    %3639 = vmatpush.msra.mxu0 0.0
    %3640 = vmatpush.msra.mxu0 %v3536
    %3641 = vmatmul.f32.gmra.mxu0 %v3563
    %v3642 = vpop.f32.mrf.mxu0
    %v3643 = vadd.f32 0.0, %v3642
    %3644 = vdwg.mxu0
    %3645 = vmatpush.msra.mxu0 0.0
    %3646 = vmatpush.msra.mxu0 0.0
    %3647 = vmatpush.msra.mxu0 0.0
    %3648 = vmatpush.msra.mxu0 0.0
    %3649 = vmatpush.msra.mxu0 0.0
    %3650 = vmatpush.msra.mxu0 0.0
    %3651 = vmatpush.msra.mxu0 0.0
    %3652 = vmatpush.msra.mxu0 0.0
    %3653 = vmatpush.msra.mxu0 0.0
    %3654 = vmatpush.msra.mxu0 0.0
    %3655 = vmatpush.msra.mxu0 0.0
    %3656 = vmatpush.msra.mxu0 0.0
    %3657 = vmatpush.msra.mxu0 0.0
    %3658 = vmatpush.msra.mxu0 0.0
    %3659 = vmatpush.msra.mxu0 0.0
    %3660 = vmatpush.msra.mxu0 %v3537
    %3661 = vmatmul.f32.gmra.mxu0 %v3563
    %v3662 = vpop.f32.mrf.mxu0
    %v3663 = vadd.f32 0.0, %v3662
    %3664 = vdwg.mxu0
    %3665 = vmatpush.msra.mxu0 0.0
    %3666 = vmatpush.msra.mxu0 0.0
    %3667 = vmatpush.msra.mxu0 0.0
    %3668 = vmatpush.msra.mxu0 0.0
    %3669 = vmatpush.msra.mxu0 0.0
    %3670 = vmatpush.msra.mxu0 0.0
    %3671 = vmatpush.msra.mxu0 0.0
    %3672 = vmatpush.msra.mxu0 0.0
    %3673 = vmatpush.msra.mxu0 0.0
    %3674 = vmatpush.msra.mxu0 0.0
    %3675 = vmatpush.msra.mxu0 0.0
    %3676 = vmatpush.msra.mxu0 0.0
    %3677 = vmatpush.msra.mxu0 0.0
    %3678 = vmatpush.msra.mxu0 0.0
    %3679 = vmatpush.msra.mxu0 0.0
    %3680 = vmatpush.msra.mxu0 %v3538
    %3681 = vmatmul.f32.gmra.mxu0 %v3563
    %v3682 = vpop.f32.mrf.mxu0
    %v3683 = vadd.f32 0.0, %v3682
    %3684 = vdwg.mxu0
    %3685 = vmatpush.msra.mxu0 0.0
    %3686 = vmatpush.msra.mxu0 0.0
    %3687 = vmatpush.msra.mxu0 0.0
    %3688 = vmatpush.msra.mxu0 0.0
    %3689 = vmatpush.msra.mxu0 0.0
    %3690 = vmatpush.msra.mxu0 0.0
    %3691 = vmatpush.msra.mxu0 0.0
    %3692 = vmatpush.msra.mxu0 0.0
    %3693 = vmatpush.msra.mxu0 0.0
    %3694 = vmatpush.msra.mxu0 0.0
    %3695 = vmatpush.msra.mxu0 0.0
    %3696 = vmatpush.msra.mxu0 0.0
    %3697 = vmatpush.msra.mxu0 0.0
    %3698 = vmatpush.msra.mxu0 0.0
    %3699 = vmatpush.msra.mxu0 0.0
    %3700 = vmatpush.msra.mxu0 %v3539
    %3701 = vmatmul.f32.gmra.mxu0 %v3563
    %v3702 = vpop.f32.mrf.mxu0
    %v3703 = vadd.f32 0.0, %v3702
    %3704 = vdwg.mxu0
    %3705 = vmatpush.msra.mxu0 0.0
    %3706 = vmatpush.msra.mxu0 0.0
    %3707 = vmatpush.msra.mxu0 0.0
    %3708 = vmatpush.msra.mxu0 0.0
    %3709 = vmatpush.msra.mxu0 0.0
    %3710 = vmatpush.msra.mxu0 0.0
    %3711 = vmatpush.msra.mxu0 0.0
    %3712 = vmatpush.msra.mxu0 0.0
    %3713 = vmatpush.msra.mxu0 0.0
    %3714 = vmatpush.msra.mxu0 0.0
    %3715 = vmatpush.msra.mxu0 0.0
    %3716 = vmatpush.msra.mxu0 0.0
    %3717 = vmatpush.msra.mxu0 0.0
    %3718 = vmatpush.msra.mxu0 0.0
    %3719 = vmatpush.msra.mxu0 0.0
    %3720 = vmatpush.msra.mxu0 %v3540
    %3721 = vmatmul.f32.gmra.mxu0 %v3563
    %v3722 = vpop.f32.mrf.mxu0
    %v3723 = vadd.f32 0.0, %v3722
    %3724 = vdwg.mxu0
    %3725 = vmatpush.msra.mxu0 0.0
    %3726 = vmatpush.msra.mxu0 0.0
    %3727 = vmatpush.msra.mxu0 0.0
    %3728 = vmatpush.msra.mxu0 0.0
    %3729 = vmatpush.msra.mxu0 0.0
    %3730 = vmatpush.msra.mxu0 0.0
    %3731 = vmatpush.msra.mxu0 0.0
    %3732 = vmatpush.msra.mxu0 0.0
    %3733 = vmatpush.msra.mxu0 0.0
    %3734 = vmatpush.msra.mxu0 0.0
    %3735 = vmatpush.msra.mxu0 0.0
    %3736 = vmatpush.msra.mxu0 0.0
    %3737 = vmatpush.msra.mxu0 0.0
    %3738 = vmatpush.msra.mxu0 0.0
    %3739 = vmatpush.msra.mxu0 0.0
    %3740 = vmatpush.msra.mxu0 %v3541
    %3741 = vmatmul.f32.gmra.mxu0 %v3563
    %v3742 = vpop.f32.mrf.mxu0
    %v3743 = vadd.f32 0.0, %v3742
    %3744 = vdwg.mxu0
    %3745 = vmatpush.msra.mxu0 0.0
    %3746 = vmatpush.msra.mxu0 0.0
    %3747 = vmatpush.msra.mxu0 0.0
    %3748 = vmatpush.msra.mxu0 0.0
    %3749 = vmatpush.msra.mxu0 0.0
    %3750 = vmatpush.msra.mxu0 0.0
    %3751 = vmatpush.msra.mxu0 0.0
    %3752 = vmatpush.msra.mxu0 0.0
    %3753 = vmatpush.msra.mxu0 0.0
    %3754 = vmatpush.msra.mxu0 0.0
    %3755 = vmatpush.msra.mxu0 0.0
    %3756 = vmatpush.msra.mxu0 0.0
    %3757 = vmatpush.msra.mxu0 0.0
    %3758 = vmatpush.msra.mxu0 0.0
    %3759 = vmatpush.msra.mxu0 0.0
    %3760 = vmatpush.msra.mxu0 %v3542
    %3761 = vmatmul.f32.gmra.mxu0 %v3563
    %v3762 = vpop.f32.mrf.mxu0
    %v3763 = vadd.f32 0.0, %v3762
    %3764 = vdwg.mxu0
    %3765 = vmatpush.msra.mxu0 0.0
    %3766 = vmatpush.msra.mxu0 0.0
    %3767 = vmatpush.msra.mxu0 0.0
    %3768 = vmatpush.msra.mxu0 0.0
    %3769 = vmatpush.msra.mxu0 0.0
    %3770 = vmatpush.msra.mxu0 0.0
    %3771 = vmatpush.msra.mxu0 0.0
    %3772 = vmatpush.msra.mxu0 0.0
    %3773 = vmatpush.msra.mxu0 0.0
    %3774 = vmatpush.msra.mxu0 0.0
    %3775 = vmatpush.msra.mxu0 0.0
    %3776 = vmatpush.msra.mxu0 0.0
    %3777 = vmatpush.msra.mxu0 0.0
    %3778 = vmatpush.msra.mxu0 0.0
    %3779 = vmatpush.msra.mxu0 0.0
    %3780 = vmatpush.msra.mxu0 %v3543
    %3781 = vmatmul.f32.gmra.mxu0 %v3563
    %v3782 = vpop.f32.mrf.mxu0
    %v3783 = vadd.f32 0.0, %v3782
    %3784 = vdwg.mxu0
    %3785 = vmatpush.msra.mxu0 0.0
    %3786 = vmatpush.msra.mxu0 0.0
    %3787 = vmatpush.msra.mxu0 0.0
    %3788 = vmatpush.msra.mxu0 0.0
    %3789 = vmatpush.msra.mxu0 0.0
    %3790 = vmatpush.msra.mxu0 0.0
    %3791 = vmatpush.msra.mxu0 0.0
    %3792 = vmatpush.msra.mxu0 0.0
    %3793 = vmatpush.msra.mxu0 0.0
    %3794 = vmatpush.msra.mxu0 0.0
    %3795 = vmatpush.msra.mxu0 0.0
    %3796 = vmatpush.msra.mxu0 0.0
    %3797 = vmatpush.msra.mxu0 0.0
    %3798 = vmatpush.msra.mxu0 0.0
    %3799 = vmatpush.msra.mxu0 0.0
    %3800 = vmatpush.msra.mxu0 %v3544
    %3801 = vmatmul.f32.gmra.mxu0 %v3563
    %v3802 = vpop.f32.mrf.mxu0
    %v3803 = vadd.f32 0.0, %v3802
    %3804 = vdwg.mxu0
    %3805 = vmatpush.msra.mxu0 0.0
    %3806 = vmatpush.msra.mxu0 0.0
    %3807 = vmatpush.msra.mxu0 0.0
    %3808 = vmatpush.msra.mxu0 0.0
    %3809 = vmatpush.msra.mxu0 0.0
    %3810 = vmatpush.msra.mxu0 0.0
    %3811 = vmatpush.msra.mxu0 0.0
    %3812 = vmatpush.msra.mxu0 0.0
    %3813 = vmatpush.msra.mxu0 0.0
    %3814 = vmatpush.msra.mxu0 0.0
    %3815 = vmatpush.msra.mxu0 0.0
    %3816 = vmatpush.msra.mxu0 0.0
    %3817 = vmatpush.msra.mxu0 0.0
    %3818 = vmatpush.msra.mxu0 0.0
    %3819 = vmatpush.msra.mxu0 0.0
    %3820 = vmatpush.msra.mxu0 %v3545
    %3821 = vmatmul.f32.gmra.mxu0 %v3563
    %v3822 = vpop.f32.mrf.mxu0
    %v3823 = vadd.f32 0.0, %v3822
    %3824 = vdwg.mxu0
    %3825 = vmatpush.msra.mxu0 0.0
    %3826 = vmatpush.msra.mxu0 0.0
    %3827 = vmatpush.msra.mxu0 0.0
    %3828 = vmatpush.msra.mxu0 0.0
    %3829 = vmatpush.msra.mxu0 0.0
    %3830 = vmatpush.msra.mxu0 0.0
    %3831 = vmatpush.msra.mxu0 0.0
    %3832 = vmatpush.msra.mxu0 0.0
    %3833 = vmatpush.msra.mxu0 0.0
    %3834 = vmatpush.msra.mxu0 0.0
    %3835 = vmatpush.msra.mxu0 0.0
    %3836 = vmatpush.msra.mxu0 0.0
    %3837 = vmatpush.msra.mxu0 0.0
    %3838 = vmatpush.msra.mxu0 0.0
    %3839 = vmatpush.msra.mxu0 0.0
    %3840 = vmatpush.msra.mxu0 %v3546
    %3841 = vmatmul.f32.gmra.mxu0 %v3563
    %v3842 = vpop.f32.mrf.mxu0
    %v3843 = vadd.f32 0.0, %v3842
    %3844 = vdwg.mxu0
    %3845 = vmatpush.msra.mxu0 0.0
    %3846 = vmatpush.msra.mxu0 0.0
    %3847 = vmatpush.msra.mxu0 0.0
    %3848 = vmatpush.msra.mxu0 0.0
    %3849 = vmatpush.msra.mxu0 0.0
    %3850 = vmatpush.msra.mxu0 0.0
    %3851 = vmatpush.msra.mxu0 0.0
    %3852 = vmatpush.msra.mxu0 0.0
    %3853 = vmatpush.msra.mxu0 0.0
    %3854 = vmatpush.msra.mxu0 0.0
    %3855 = vmatpush.msra.mxu0 0.0
    %3856 = vmatpush.msra.mxu0 0.0
    %3857 = vmatpush.msra.mxu0 0.0
    %3858 = vmatpush.msra.mxu0 0.0
    %3859 = vmatpush.msra.mxu0 0.0
    %3860 = vmatpush.msra.mxu0 %v3532
    %3861 = vmatmul.f32.gmra.mxu0 %v3563
    %v3862 = vpop.f32.mrf.mxu0
    %v3863 = vadd.f32 0.0, %v3862
    %3864 = vdwg.mxu0
    %v3865 = vadd.f32 %v3486, %v3583
    %v3866 = vadd.f32 %v3487, %v3603
    %v3867 = vadd.f32 %v3488, %v3623
    %v3868 = vadd.f32 %v3489, %v3643
    %v3869 = vadd.f32 %v3490, %v3663
    %v3870 = vadd.f32 %v3491, %v3683
    %v3871 = vadd.f32 %v3492, %v3703
    %v3872 = vadd.f32 %v3493, %v3723
    %v3873 = vadd.f32 %v3494, %v3743
    %v3874 = vadd.f32 %v3495, %v3763
    %v3875 = vadd.f32 %v3496, %v3783
    %v3876 = vadd.f32 %v3497, %v3803
    %v3877 = vadd.f32 %v3498, %v3823
    %v3878 = vadd.f32 %v3499, %v3843
    %v3879 = vadd.f32 %v3500, %v3863
    %s3880 = scalar_lea.vmem %s3, 56
    %v3881 = vld [vmem:[%s3880] sm:$0xff]
    %3882 = vrot.lane.b32.xlu0 %v1225, 66
    %v3883 = vpop.permute.xlu0 %3882
    %3884 = vrot.lane.b32.xlu0 %v1226, 66
    %v3885 = vpop.permute.xlu0 %3884
    %3886 = vrot.lane.b32.xlu0 %v1227, 66
    %v3887 = vpop.permute.xlu0 %3886
    %3888 = vrot.lane.b32.xlu0 %v1228, 66
    %v3889 = vpop.permute.xlu0 %3888
    %3890 = vrot.lane.b32.xlu0 %v1229, 66
    %v3891 = vpop.permute.xlu0 %3890
    %3892 = vrot.lane.b32.xlu0 %v1230, 66
    %v3893 = vpop.permute.xlu0 %3892
    %3894 = vrot.lane.b32.xlu0 %v1231, 66
    %v3895 = vpop.permute.xlu0 %3894
    %3896 = vrot.lane.b32.xlu0 %v1232, 66
    %v3897 = vpop.permute.xlu0 %3896
    %3898 = vrot.lane.b32.xlu0 %v1233, 66
    %v3899 = vpop.permute.xlu0 %3898
    %3900 = vrot.lane.b32.xlu0 %v1234, 66
    %v3901 = vpop.permute.xlu0 %3900
    %3902 = vrot.lane.b32.xlu0 %v1235, 66
    %v3903 = vpop.permute.xlu0 %3902
    %3904 = vrot.lane.b32.xlu0 %v1236, 66
    %v3905 = vpop.permute.xlu0 %3904
    %3906 = vrot.lane.b32.xlu0 %v1237, 66
    %v3907 = vpop.permute.xlu0 %3906
    %3908 = vrot.lane.b32.xlu0 %v1238, 66
    %v3909 = vpop.permute.xlu0 %3908
    %3910 = vrot.lane.b32.xlu0 %v1239, 66
    %v3911 = vpop.permute.xlu0 %3910
    %v3912 = vsel %vm958, %v3883, %v3885
    %v3913 = vsel %vm958, %v3885, %v3887
    %v3914 = vsel %vm958, %v3887, %v3889
    %v3915 = vsel %vm958, %v3889, %v3891
    %v3916 = vsel %vm958, %v3891, %v3893
    %v3917 = vsel %vm958, %v3893, %v3895
    %v3918 = vsel %vm958, %v3895, %v3897
    %v3919 = vsel %vm958, %v3897, %v3899
    %v3920 = vsel %vm958, %v3899, %v3901
    %v3921 = vsel %vm958, %v3901, %v3903
    %v3922 = vsel %vm958, %v3903, %v3905
    %v3923 = vsel %vm958, %v3905, %v3907
    %v3924 = vsel %vm958, %v3907, %v3909
    %v3925 = vsel %vm958, %v3909, %v3911
    %v3942 = vsel %vm1317, %v3881, 0
    %3944 = vmatpush.msra.mxu0 0.0
    %3945 = vmatpush.msra.mxu0 0.0
    %3946 = vmatpush.msra.mxu0 0.0
    %3947 = vmatpush.msra.mxu0 0.0
    %3948 = vmatpush.msra.mxu0 0.0
    %3949 = vmatpush.msra.mxu0 0.0
    %3950 = vmatpush.msra.mxu0 0.0
    %3951 = vmatpush.msra.mxu0 0.0
    %3952 = vmatpush.msra.mxu0 0.0
    %3953 = vmatpush.msra.mxu0 0.0
    %3954 = vmatpush.msra.mxu0 0.0
    %3955 = vmatpush.msra.mxu0 0.0
    %3956 = vmatpush.msra.mxu0 0.0
    %3957 = vmatpush.msra.mxu0 0.0
    %3958 = vmatpush.msra.mxu0 0.0
    %3959 = vmatpush.msra.mxu0 %v3912
    %3960 = vmatmul.f32.gmra.mxu0 %v3942
    %v3961 = vpop.f32.mrf.mxu0
    %v3962 = vadd.f32 0.0, %v3961
    %3963 = vdwg.mxu0
    %3964 = vmatpush.msra.mxu0 0.0
    %3965 = vmatpush.msra.mxu0 0.0
    %3966 = vmatpush.msra.mxu0 0.0
    %3967 = vmatpush.msra.mxu0 0.0
    %3968 = vmatpush.msra.mxu0 0.0
    %3969 = vmatpush.msra.mxu0 0.0
    %3970 = vmatpush.msra.mxu0 0.0
    %3971 = vmatpush.msra.mxu0 0.0
    %3972 = vmatpush.msra.mxu0 0.0
    %3973 = vmatpush.msra.mxu0 0.0
    %3974 = vmatpush.msra.mxu0 0.0
    %3975 = vmatpush.msra.mxu0 0.0
    %3976 = vmatpush.msra.mxu0 0.0
    %3977 = vmatpush.msra.mxu0 0.0
    %3978 = vmatpush.msra.mxu0 0.0
    %3979 = vmatpush.msra.mxu0 %v3913
    %3980 = vmatmul.f32.gmra.mxu0 %v3942
    %v3981 = vpop.f32.mrf.mxu0
    %v3982 = vadd.f32 0.0, %v3981
    %3983 = vdwg.mxu0
    %3984 = vmatpush.msra.mxu0 0.0
    %3985 = vmatpush.msra.mxu0 0.0
    %3986 = vmatpush.msra.mxu0 0.0
    %3987 = vmatpush.msra.mxu0 0.0
    %3988 = vmatpush.msra.mxu0 0.0
    %3989 = vmatpush.msra.mxu0 0.0
    %3990 = vmatpush.msra.mxu0 0.0
    %3991 = vmatpush.msra.mxu0 0.0
    %3992 = vmatpush.msra.mxu0 0.0
    %3993 = vmatpush.msra.mxu0 0.0
    %3994 = vmatpush.msra.mxu0 0.0
    %3995 = vmatpush.msra.mxu0 0.0
    %3996 = vmatpush.msra.mxu0 0.0
    %3997 = vmatpush.msra.mxu0 0.0
    %3998 = vmatpush.msra.mxu0 0.0
    %3999 = vmatpush.msra.mxu0 %v3914
    %4000 = vmatmul.f32.gmra.mxu0 %v3942
    %v4001 = vpop.f32.mrf.mxu0
    %v4002 = vadd.f32 0.0, %v4001
    %4003 = vdwg.mxu0
    %4004 = vmatpush.msra.mxu0 0.0
    %4005 = vmatpush.msra.mxu0 0.0
    %4006 = vmatpush.msra.mxu0 0.0
    %4007 = vmatpush.msra.mxu0 0.0
    %4008 = vmatpush.msra.mxu0 0.0
    %4009 = vmatpush.msra.mxu0 0.0
    %4010 = vmatpush.msra.mxu0 0.0
    %4011 = vmatpush.msra.mxu0 0.0
    %4012 = vmatpush.msra.mxu0 0.0
    %4013 = vmatpush.msra.mxu0 0.0
    %4014 = vmatpush.msra.mxu0 0.0
    %4015 = vmatpush.msra.mxu0 0.0
    %4016 = vmatpush.msra.mxu0 0.0
    %4017 = vmatpush.msra.mxu0 0.0
    %4018 = vmatpush.msra.mxu0 0.0
    %4019 = vmatpush.msra.mxu0 %v3915
    %4020 = vmatmul.f32.gmra.mxu0 %v3942
    %v4021 = vpop.f32.mrf.mxu0
    %v4022 = vadd.f32 0.0, %v4021
    %4023 = vdwg.mxu0
    %4024 = vmatpush.msra.mxu0 0.0
    %4025 = vmatpush.msra.mxu0 0.0
    %4026 = vmatpush.msra.mxu0 0.0
    %4027 = vmatpush.msra.mxu0 0.0
    %4028 = vmatpush.msra.mxu0 0.0
    %4029 = vmatpush.msra.mxu0 0.0
    %4030 = vmatpush.msra.mxu0 0.0
    %4031 = vmatpush.msra.mxu0 0.0
    %4032 = vmatpush.msra.mxu0 0.0
    %4033 = vmatpush.msra.mxu0 0.0
    %4034 = vmatpush.msra.mxu0 0.0
    %4035 = vmatpush.msra.mxu0 0.0
    %4036 = vmatpush.msra.mxu0 0.0
    %4037 = vmatpush.msra.mxu0 0.0
    %4038 = vmatpush.msra.mxu0 0.0
    %4039 = vmatpush.msra.mxu0 %v3916
    %4040 = vmatmul.f32.gmra.mxu0 %v3942
    %v4041 = vpop.f32.mrf.mxu0
    %v4042 = vadd.f32 0.0, %v4041
    %4043 = vdwg.mxu0
    %4044 = vmatpush.msra.mxu0 0.0
    %4045 = vmatpush.msra.mxu0 0.0
    %4046 = vmatpush.msra.mxu0 0.0
    %4047 = vmatpush.msra.mxu0 0.0
    %4048 = vmatpush.msra.mxu0 0.0
    %4049 = vmatpush.msra.mxu0 0.0
    %4050 = vmatpush.msra.mxu0 0.0
    %4051 = vmatpush.msra.mxu0 0.0
    %4052 = vmatpush.msra.mxu0 0.0
    %4053 = vmatpush.msra.mxu0 0.0
    %4054 = vmatpush.msra.mxu0 0.0
    %4055 = vmatpush.msra.mxu0 0.0
    %4056 = vmatpush.msra.mxu0 0.0
    %4057 = vmatpush.msra.mxu0 0.0
    %4058 = vmatpush.msra.mxu0 0.0
    %4059 = vmatpush.msra.mxu0 %v3917
    %4060 = vmatmul.f32.gmra.mxu0 %v3942
    %v4061 = vpop.f32.mrf.mxu0
    %v4062 = vadd.f32 0.0, %v4061
    %4063 = vdwg.mxu0
    %4064 = vmatpush.msra.mxu0 0.0
    %4065 = vmatpush.msra.mxu0 0.0
    %4066 = vmatpush.msra.mxu0 0.0
    %4067 = vmatpush.msra.mxu0 0.0
    %4068 = vmatpush.msra.mxu0 0.0
    %4069 = vmatpush.msra.mxu0 0.0
    %4070 = vmatpush.msra.mxu0 0.0
    %4071 = vmatpush.msra.mxu0 0.0
    %4072 = vmatpush.msra.mxu0 0.0
    %4073 = vmatpush.msra.mxu0 0.0
    %4074 = vmatpush.msra.mxu0 0.0
    %4075 = vmatpush.msra.mxu0 0.0
    %4076 = vmatpush.msra.mxu0 0.0
    %4077 = vmatpush.msra.mxu0 0.0
    %4078 = vmatpush.msra.mxu0 0.0
    %4079 = vmatpush.msra.mxu0 %v3918
    %4080 = vmatmul.f32.gmra.mxu0 %v3942
    %v4081 = vpop.f32.mrf.mxu0
    %v4082 = vadd.f32 0.0, %v4081
    %4083 = vdwg.mxu0
    %4084 = vmatpush.msra.mxu0 0.0
    %4085 = vmatpush.msra.mxu0 0.0
    %4086 = vmatpush.msra.mxu0 0.0
    %4087 = vmatpush.msra.mxu0 0.0
    %4088 = vmatpush.msra.mxu0 0.0
    %4089 = vmatpush.msra.mxu0 0.0
    %4090 = vmatpush.msra.mxu0 0.0
    %4091 = vmatpush.msra.mxu0 0.0
    %4092 = vmatpush.msra.mxu0 0.0
    %4093 = vmatpush.msra.mxu0 0.0
    %4094 = vmatpush.msra.mxu0 0.0
    %4095 = vmatpush.msra.mxu0 0.0
    %4096 = vmatpush.msra.mxu0 0.0
    %4097 = vmatpush.msra.mxu0 0.0
    %4098 = vmatpush.msra.mxu0 0.0
    %4099 = vmatpush.msra.mxu0 %v3919
    %4100 = vmatmul.f32.gmra.mxu0 %v3942
    %v4101 = vpop.f32.mrf.mxu0
    %v4102 = vadd.f32 0.0, %v4101
    %4103 = vdwg.mxu0
    %4104 = vmatpush.msra.mxu0 0.0
    %4105 = vmatpush.msra.mxu0 0.0
    %4106 = vmatpush.msra.mxu0 0.0
    %4107 = vmatpush.msra.mxu0 0.0
    %4108 = vmatpush.msra.mxu0 0.0
    %4109 = vmatpush.msra.mxu0 0.0
    %4110 = vmatpush.msra.mxu0 0.0
    %4111 = vmatpush.msra.mxu0 0.0
    %4112 = vmatpush.msra.mxu0 0.0
    %4113 = vmatpush.msra.mxu0 0.0
    %4114 = vmatpush.msra.mxu0 0.0
    %4115 = vmatpush.msra.mxu0 0.0
    %4116 = vmatpush.msra.mxu0 0.0
    %4117 = vmatpush.msra.mxu0 0.0
    %4118 = vmatpush.msra.mxu0 0.0
    %4119 = vmatpush.msra.mxu0 %v3920
    %4120 = vmatmul.f32.gmra.mxu0 %v3942
    %v4121 = vpop.f32.mrf.mxu0
    %v4122 = vadd.f32 0.0, %v4121
    %4123 = vdwg.mxu0
    %4124 = vmatpush.msra.mxu0 0.0
    %4125 = vmatpush.msra.mxu0 0.0
    %4126 = vmatpush.msra.mxu0 0.0
    %4127 = vmatpush.msra.mxu0 0.0
    %4128 = vmatpush.msra.mxu0 0.0
    %4129 = vmatpush.msra.mxu0 0.0
    %4130 = vmatpush.msra.mxu0 0.0
    %4131 = vmatpush.msra.mxu0 0.0
    %4132 = vmatpush.msra.mxu0 0.0
    %4133 = vmatpush.msra.mxu0 0.0
    %4134 = vmatpush.msra.mxu0 0.0
    %4135 = vmatpush.msra.mxu0 0.0
    %4136 = vmatpush.msra.mxu0 0.0
    %4137 = vmatpush.msra.mxu0 0.0
    %4138 = vmatpush.msra.mxu0 0.0
    %4139 = vmatpush.msra.mxu0 %v3921
    %4140 = vmatmul.f32.gmra.mxu0 %v3942
    %v4141 = vpop.f32.mrf.mxu0
    %v4142 = vadd.f32 0.0, %v4141
    %4143 = vdwg.mxu0
    %4144 = vmatpush.msra.mxu0 0.0
    %4145 = vmatpush.msra.mxu0 0.0
    %4146 = vmatpush.msra.mxu0 0.0
    %4147 = vmatpush.msra.mxu0 0.0
    %4148 = vmatpush.msra.mxu0 0.0
    %4149 = vmatpush.msra.mxu0 0.0
    %4150 = vmatpush.msra.mxu0 0.0
    %4151 = vmatpush.msra.mxu0 0.0
    %4152 = vmatpush.msra.mxu0 0.0
    %4153 = vmatpush.msra.mxu0 0.0
    %4154 = vmatpush.msra.mxu0 0.0
    %4155 = vmatpush.msra.mxu0 0.0
    %4156 = vmatpush.msra.mxu0 0.0
    %4157 = vmatpush.msra.mxu0 0.0
    %4158 = vmatpush.msra.mxu0 0.0
    %4159 = vmatpush.msra.mxu0 %v3922
    %4160 = vmatmul.f32.gmra.mxu0 %v3942
    %v4161 = vpop.f32.mrf.mxu0
    %v4162 = vadd.f32 0.0, %v4161
    %4163 = vdwg.mxu0
    %4164 = vmatpush.msra.mxu0 0.0
    %4165 = vmatpush.msra.mxu0 0.0
    %4166 = vmatpush.msra.mxu0 0.0
    %4167 = vmatpush.msra.mxu0 0.0
    %4168 = vmatpush.msra.mxu0 0.0
    %4169 = vmatpush.msra.mxu0 0.0
    %4170 = vmatpush.msra.mxu0 0.0
    %4171 = vmatpush.msra.mxu0 0.0
    %4172 = vmatpush.msra.mxu0 0.0
    %4173 = vmatpush.msra.mxu0 0.0
    %4174 = vmatpush.msra.mxu0 0.0
    %4175 = vmatpush.msra.mxu0 0.0
    %4176 = vmatpush.msra.mxu0 0.0
    %4177 = vmatpush.msra.mxu0 0.0
    %4178 = vmatpush.msra.mxu0 0.0
    %4179 = vmatpush.msra.mxu0 %v3923
    %4180 = vmatmul.f32.gmra.mxu0 %v3942
    %v4181 = vpop.f32.mrf.mxu0
    %v4182 = vadd.f32 0.0, %v4181
    %4183 = vdwg.mxu0
    %4184 = vmatpush.msra.mxu0 0.0
    %4185 = vmatpush.msra.mxu0 0.0
    %4186 = vmatpush.msra.mxu0 0.0
    %4187 = vmatpush.msra.mxu0 0.0
    %4188 = vmatpush.msra.mxu0 0.0
    %4189 = vmatpush.msra.mxu0 0.0
    %4190 = vmatpush.msra.mxu0 0.0
    %4191 = vmatpush.msra.mxu0 0.0
    %4192 = vmatpush.msra.mxu0 0.0
    %4193 = vmatpush.msra.mxu0 0.0
    %4194 = vmatpush.msra.mxu0 0.0
    %4195 = vmatpush.msra.mxu0 0.0
    %4196 = vmatpush.msra.mxu0 0.0
    %4197 = vmatpush.msra.mxu0 0.0
    %4198 = vmatpush.msra.mxu0 0.0
    %4199 = vmatpush.msra.mxu0 %v3924
    %4200 = vmatmul.f32.gmra.mxu0 %v3942
    %v4201 = vpop.f32.mrf.mxu0
    %v4202 = vadd.f32 0.0, %v4201
    %4203 = vdwg.mxu0
    %4204 = vmatpush.msra.mxu0 0.0
    %4205 = vmatpush.msra.mxu0 0.0
    %4206 = vmatpush.msra.mxu0 0.0
    %4207 = vmatpush.msra.mxu0 0.0
    %4208 = vmatpush.msra.mxu0 0.0
    %4209 = vmatpush.msra.mxu0 0.0
    %4210 = vmatpush.msra.mxu0 0.0
    %4211 = vmatpush.msra.mxu0 0.0
    %4212 = vmatpush.msra.mxu0 0.0
    %4213 = vmatpush.msra.mxu0 0.0
    %4214 = vmatpush.msra.mxu0 0.0
    %4215 = vmatpush.msra.mxu0 0.0
    %4216 = vmatpush.msra.mxu0 0.0
    %4217 = vmatpush.msra.mxu0 0.0
    %4218 = vmatpush.msra.mxu0 0.0
    %4219 = vmatpush.msra.mxu0 %v3925
    %4220 = vmatmul.f32.gmra.mxu0 %v3942
    %v4221 = vpop.f32.mrf.mxu0
    %v4222 = vadd.f32 0.0, %v4221
    %4223 = vdwg.mxu0
    %4224 = vmatpush.msra.mxu0 0.0
    %4225 = vmatpush.msra.mxu0 0.0
    %4226 = vmatpush.msra.mxu0 0.0
    %4227 = vmatpush.msra.mxu0 0.0
    %4228 = vmatpush.msra.mxu0 0.0
    %4229 = vmatpush.msra.mxu0 0.0
    %4230 = vmatpush.msra.mxu0 0.0
    %4231 = vmatpush.msra.mxu0 0.0
    %4232 = vmatpush.msra.mxu0 0.0
    %4233 = vmatpush.msra.mxu0 0.0
    %4234 = vmatpush.msra.mxu0 0.0
    %4235 = vmatpush.msra.mxu0 0.0
    %4236 = vmatpush.msra.mxu0 0.0
    %4237 = vmatpush.msra.mxu0 0.0
    %4238 = vmatpush.msra.mxu0 0.0
    %4239 = vmatpush.msra.mxu0 %v3911
    %4240 = vmatmul.f32.gmra.mxu0 %v3942
    %v4241 = vpop.f32.mrf.mxu0
    %v4242 = vadd.f32 0.0, %v4241
    %4243 = vdwg.mxu0
    %v4244 = vadd.f32 %v3865, %v3962
    %v4245 = vadd.f32 %v3866, %v3982
    %v4246 = vadd.f32 %v3867, %v4002
    %v4247 = vadd.f32 %v3868, %v4022
    %v4248 = vadd.f32 %v3869, %v4042
    %v4249 = vadd.f32 %v3870, %v4062
    %v4250 = vadd.f32 %v3871, %v4082
    %v4251 = vadd.f32 %v3872, %v4102
    %v4252 = vadd.f32 %v3873, %v4122
    %v4253 = vadd.f32 %v3874, %v4142
    %v4254 = vadd.f32 %v3875, %v4162
    %v4255 = vadd.f32 %v3876, %v4182
    %v4256 = vadd.f32 %v3877, %v4202
    %v4257 = vadd.f32 %v3878, %v4222
    %v4258 = vadd.f32 %v3879, %v4242
    %s4259 = scalar_lea.vmem %s3, 64
    %v4260 = vld [vmem:[%s4259] sm:$0xff]
    %4261 = vrot.lane.b32.xlu0 %v1225, 65
    %v4262 = vpop.permute.xlu0 %4261
    %4263 = vrot.lane.b32.xlu0 %v1226, 65
    %v4264 = vpop.permute.xlu0 %4263
    %4265 = vrot.lane.b32.xlu0 %v1227, 65
    %v4266 = vpop.permute.xlu0 %4265
    %4267 = vrot.lane.b32.xlu0 %v1228, 65
    %v4268 = vpop.permute.xlu0 %4267
    %4269 = vrot.lane.b32.xlu0 %v1229, 65
    %v4270 = vpop.permute.xlu0 %4269
    %4271 = vrot.lane.b32.xlu0 %v1230, 65
    %v4272 = vpop.permute.xlu0 %4271
    %4273 = vrot.lane.b32.xlu0 %v1231, 65
    %v4274 = vpop.permute.xlu0 %4273
    %4275 = vrot.lane.b32.xlu0 %v1232, 65
    %v4276 = vpop.permute.xlu0 %4275
    %4277 = vrot.lane.b32.xlu0 %v1233, 65
    %v4278 = vpop.permute.xlu0 %4277
    %4279 = vrot.lane.b32.xlu0 %v1234, 65
    %v4280 = vpop.permute.xlu0 %4279
    %4281 = vrot.lane.b32.xlu0 %v1235, 65
    %v4282 = vpop.permute.xlu0 %4281
    %4283 = vrot.lane.b32.xlu0 %v1236, 65
    %v4284 = vpop.permute.xlu0 %4283
    %4285 = vrot.lane.b32.xlu0 %v1237, 65
    %v4286 = vpop.permute.xlu0 %4285
    %4287 = vrot.lane.b32.xlu0 %v1238, 65
    %v4288 = vpop.permute.xlu0 %4287
    %4289 = vrot.lane.b32.xlu0 %v1239, 65
    %v4290 = vpop.permute.xlu0 %4289
    %vm4291 = vcmask 531456
    %v4292 = vsel %vm4291, %v4262, %v4264
    %v4293 = vsel %vm4291, %v4264, %v4266
    %v4294 = vsel %vm4291, %v4266, %v4268
    %v4295 = vsel %vm4291, %v4268, %v4270
    %v4296 = vsel %vm4291, %v4270, %v4272
    %v4297 = vsel %vm4291, %v4272, %v4274
    %v4298 = vsel %vm4291, %v4274, %v4276
    %v4299 = vsel %vm4291, %v4276, %v4278
    %v4300 = vsel %vm4291, %v4278, %v4280
    %v4301 = vsel %vm4291, %v4280, %v4282
    %v4302 = vsel %vm4291, %v4282, %v4284
    %v4303 = vsel %vm4291, %v4284, %v4286
    %v4304 = vsel %vm4291, %v4286, %v4288
    %v4305 = vsel %vm4291, %v4288, %v4290
    %v4322 = vsel %vm1317, %v4260, 0
    %4324 = vmatpush.msra.mxu0 0.0
    %4325 = vmatpush.msra.mxu0 0.0
    %4326 = vmatpush.msra.mxu0 0.0
    %4327 = vmatpush.msra.mxu0 0.0
    %4328 = vmatpush.msra.mxu0 0.0
    %4329 = vmatpush.msra.mxu0 0.0
    %4330 = vmatpush.msra.mxu0 0.0
    %4331 = vmatpush.msra.mxu0 0.0
    %4332 = vmatpush.msra.mxu0 0.0
    %4333 = vmatpush.msra.mxu0 0.0
    %4334 = vmatpush.msra.mxu0 0.0
    %4335 = vmatpush.msra.mxu0 0.0
    %4336 = vmatpush.msra.mxu0 0.0
    %4337 = vmatpush.msra.mxu0 0.0
    %4338 = vmatpush.msra.mxu0 0.0
    %4339 = vmatpush.msra.mxu0 %v4292
    %4340 = vmatmul.f32.gmra.mxu0 %v4322
    %v4341 = vpop.f32.mrf.mxu0
    %v4342 = vadd.f32 0.0, %v4341
    %4343 = vdwg.mxu0
    %4344 = vmatpush.msra.mxu0 0.0
    %4345 = vmatpush.msra.mxu0 0.0
    %4346 = vmatpush.msra.mxu0 0.0
    %4347 = vmatpush.msra.mxu0 0.0
    %4348 = vmatpush.msra.mxu0 0.0
    %4349 = vmatpush.msra.mxu0 0.0
    %4350 = vmatpush.msra.mxu0 0.0
    %4351 = vmatpush.msra.mxu0 0.0
    %4352 = vmatpush.msra.mxu0 0.0
    %4353 = vmatpush.msra.mxu0 0.0
    %4354 = vmatpush.msra.mxu0 0.0
    %4355 = vmatpush.msra.mxu0 0.0
    %4356 = vmatpush.msra.mxu0 0.0
    %4357 = vmatpush.msra.mxu0 0.0
    %4358 = vmatpush.msra.mxu0 0.0
    %4359 = vmatpush.msra.mxu0 %v4293
    %4360 = vmatmul.f32.gmra.mxu0 %v4322
    %v4361 = vpop.f32.mrf.mxu0
    %v4362 = vadd.f32 0.0, %v4361
    %4363 = vdwg.mxu0
    %4364 = vmatpush.msra.mxu0 0.0
    %4365 = vmatpush.msra.mxu0 0.0
    %4366 = vmatpush.msra.mxu0 0.0
    %4367 = vmatpush.msra.mxu0 0.0
    %4368 = vmatpush.msra.mxu0 0.0
    %4369 = vmatpush.msra.mxu0 0.0
    %4370 = vmatpush.msra.mxu0 0.0
    %4371 = vmatpush.msra.mxu0 0.0
    %4372 = vmatpush.msra.mxu0 0.0
    %4373 = vmatpush.msra.mxu0 0.0
    %4374 = vmatpush.msra.mxu0 0.0
    %4375 = vmatpush.msra.mxu0 0.0
    %4376 = vmatpush.msra.mxu0 0.0
    %4377 = vmatpush.msra.mxu0 0.0
    %4378 = vmatpush.msra.mxu0 0.0
    %4379 = vmatpush.msra.mxu0 %v4294
    %4380 = vmatmul.f32.gmra.mxu0 %v4322
    %v4381 = vpop.f32.mrf.mxu0
    %v4382 = vadd.f32 0.0, %v4381
    %4383 = vdwg.mxu0
    %4384 = vmatpush.msra.mxu0 0.0
    %4385 = vmatpush.msra.mxu0 0.0
    %4386 = vmatpush.msra.mxu0 0.0
    %4387 = vmatpush.msra.mxu0 0.0
    %4388 = vmatpush.msra.mxu0 0.0
    %4389 = vmatpush.msra.mxu0 0.0
    %4390 = vmatpush.msra.mxu0 0.0
    %4391 = vmatpush.msra.mxu0 0.0
    %4392 = vmatpush.msra.mxu0 0.0
    %4393 = vmatpush.msra.mxu0 0.0
    %4394 = vmatpush.msra.mxu0 0.0
    %4395 = vmatpush.msra.mxu0 0.0
    %4396 = vmatpush.msra.mxu0 0.0
    %4397 = vmatpush.msra.mxu0 0.0
    %4398 = vmatpush.msra.mxu0 0.0
    %4399 = vmatpush.msra.mxu0 %v4295
    %4400 = vmatmul.f32.gmra.mxu0 %v4322
    %v4401 = vpop.f32.mrf.mxu0
    %v4402 = vadd.f32 0.0, %v4401
    %4403 = vdwg.mxu0
    %4404 = vmatpush.msra.mxu0 0.0
    %4405 = vmatpush.msra.mxu0 0.0
    %4406 = vmatpush.msra.mxu0 0.0
    %4407 = vmatpush.msra.mxu0 0.0
    %4408 = vmatpush.msra.mxu0 0.0
    %4409 = vmatpush.msra.mxu0 0.0
    %4410 = vmatpush.msra.mxu0 0.0
    %4411 = vmatpush.msra.mxu0 0.0
    %4412 = vmatpush.msra.mxu0 0.0
    %4413 = vmatpush.msra.mxu0 0.0
    %4414 = vmatpush.msra.mxu0 0.0
    %4415 = vmatpush.msra.mxu0 0.0
    %4416 = vmatpush.msra.mxu0 0.0
    %4417 = vmatpush.msra.mxu0 0.0
    %4418 = vmatpush.msra.mxu0 0.0
    %4419 = vmatpush.msra.mxu0 %v4296
    %4420 = vmatmul.f32.gmra.mxu0 %v4322
    %v4421 = vpop.f32.mrf.mxu0
    %v4422 = vadd.f32 0.0, %v4421
    %4423 = vdwg.mxu0
    %4424 = vmatpush.msra.mxu0 0.0
    %4425 = vmatpush.msra.mxu0 0.0
    %4426 = vmatpush.msra.mxu0 0.0
    %4427 = vmatpush.msra.mxu0 0.0
    %4428 = vmatpush.msra.mxu0 0.0
    %4429 = vmatpush.msra.mxu0 0.0
    %4430 = vmatpush.msra.mxu0 0.0
    %4431 = vmatpush.msra.mxu0 0.0
    %4432 = vmatpush.msra.mxu0 0.0
    %4433 = vmatpush.msra.mxu0 0.0
    %4434 = vmatpush.msra.mxu0 0.0
    %4435 = vmatpush.msra.mxu0 0.0
    %4436 = vmatpush.msra.mxu0 0.0
    %4437 = vmatpush.msra.mxu0 0.0
    %4438 = vmatpush.msra.mxu0 0.0
    %4439 = vmatpush.msra.mxu0 %v4297
    %4440 = vmatmul.f32.gmra.mxu0 %v4322
    %v4441 = vpop.f32.mrf.mxu0
    %v4442 = vadd.f32 0.0, %v4441
    %4443 = vdwg.mxu0
    %4444 = vmatpush.msra.mxu0 0.0
    %4445 = vmatpush.msra.mxu0 0.0
    %4446 = vmatpush.msra.mxu0 0.0
    %4447 = vmatpush.msra.mxu0 0.0
    %4448 = vmatpush.msra.mxu0 0.0
    %4449 = vmatpush.msra.mxu0 0.0
    %4450 = vmatpush.msra.mxu0 0.0
    %4451 = vmatpush.msra.mxu0 0.0
    %4452 = vmatpush.msra.mxu0 0.0
    %4453 = vmatpush.msra.mxu0 0.0
    %4454 = vmatpush.msra.mxu0 0.0
    %4455 = vmatpush.msra.mxu0 0.0
    %4456 = vmatpush.msra.mxu0 0.0
    %4457 = vmatpush.msra.mxu0 0.0
    %4458 = vmatpush.msra.mxu0 0.0
    %4459 = vmatpush.msra.mxu0 %v4298
    %4460 = vmatmul.f32.gmra.mxu0 %v4322
    %v4461 = vpop.f32.mrf.mxu0
    %v4462 = vadd.f32 0.0, %v4461
    %4463 = vdwg.mxu0
    %4464 = vmatpush.msra.mxu0 0.0
    %4465 = vmatpush.msra.mxu0 0.0
    %4466 = vmatpush.msra.mxu0 0.0
    %4467 = vmatpush.msra.mxu0 0.0
    %4468 = vmatpush.msra.mxu0 0.0
    %4469 = vmatpush.msra.mxu0 0.0
    %4470 = vmatpush.msra.mxu0 0.0
    %4471 = vmatpush.msra.mxu0 0.0
    %4472 = vmatpush.msra.mxu0 0.0
    %4473 = vmatpush.msra.mxu0 0.0
    %4474 = vmatpush.msra.mxu0 0.0
    %4475 = vmatpush.msra.mxu0 0.0
    %4476 = vmatpush.msra.mxu0 0.0
    %4477 = vmatpush.msra.mxu0 0.0
    %4478 = vmatpush.msra.mxu0 0.0
    %4479 = vmatpush.msra.mxu0 %v4299
    %4480 = vmatmul.f32.gmra.mxu0 %v4322
    %v4481 = vpop.f32.mrf.mxu0
    %v4482 = vadd.f32 0.0, %v4481
    %4483 = vdwg.mxu0
    %4484 = vmatpush.msra.mxu0 0.0
    %4485 = vmatpush.msra.mxu0 0.0
    %4486 = vmatpush.msra.mxu0 0.0
    %4487 = vmatpush.msra.mxu0 0.0
    %4488 = vmatpush.msra.mxu0 0.0
    %4489 = vmatpush.msra.mxu0 0.0
    %4490 = vmatpush.msra.mxu0 0.0
    %4491 = vmatpush.msra.mxu0 0.0
    %4492 = vmatpush.msra.mxu0 0.0
    %4493 = vmatpush.msra.mxu0 0.0
    %4494 = vmatpush.msra.mxu0 0.0
    %4495 = vmatpush.msra.mxu0 0.0
    %4496 = vmatpush.msra.mxu0 0.0
    %4497 = vmatpush.msra.mxu0 0.0
    %4498 = vmatpush.msra.mxu0 0.0
    %4499 = vmatpush.msra.mxu0 %v4300
    %4500 = vmatmul.f32.gmra.mxu0 %v4322
    %v4501 = vpop.f32.mrf.mxu0
    %v4502 = vadd.f32 0.0, %v4501
    %4503 = vdwg.mxu0
    %4504 = vmatpush.msra.mxu0 0.0
    %4505 = vmatpush.msra.mxu0 0.0
    %4506 = vmatpush.msra.mxu0 0.0
    %4507 = vmatpush.msra.mxu0 0.0
    %4508 = vmatpush.msra.mxu0 0.0
    %4509 = vmatpush.msra.mxu0 0.0
    %4510 = vmatpush.msra.mxu0 0.0
    %4511 = vmatpush.msra.mxu0 0.0
    %4512 = vmatpush.msra.mxu0 0.0
    %4513 = vmatpush.msra.mxu0 0.0
    %4514 = vmatpush.msra.mxu0 0.0
    %4515 = vmatpush.msra.mxu0 0.0
    %4516 = vmatpush.msra.mxu0 0.0
    %4517 = vmatpush.msra.mxu0 0.0
    %4518 = vmatpush.msra.mxu0 0.0
    %4519 = vmatpush.msra.mxu0 %v4301
    %4520 = vmatmul.f32.gmra.mxu0 %v4322
    %v4521 = vpop.f32.mrf.mxu0
    %v4522 = vadd.f32 0.0, %v4521
    %4523 = vdwg.mxu0
    %4524 = vmatpush.msra.mxu0 0.0
    %4525 = vmatpush.msra.mxu0 0.0
    %4526 = vmatpush.msra.mxu0 0.0
    %4527 = vmatpush.msra.mxu0 0.0
    %4528 = vmatpush.msra.mxu0 0.0
    %4529 = vmatpush.msra.mxu0 0.0
    %4530 = vmatpush.msra.mxu0 0.0
    %4531 = vmatpush.msra.mxu0 0.0
    %4532 = vmatpush.msra.mxu0 0.0
    %4533 = vmatpush.msra.mxu0 0.0
    %4534 = vmatpush.msra.mxu0 0.0
    %4535 = vmatpush.msra.mxu0 0.0
    %4536 = vmatpush.msra.mxu0 0.0
    %4537 = vmatpush.msra.mxu0 0.0
    %4538 = vmatpush.msra.mxu0 0.0
    %4539 = vmatpush.msra.mxu0 %v4302
    %4540 = vmatmul.f32.gmra.mxu0 %v4322
    %v4541 = vpop.f32.mrf.mxu0
    %v4542 = vadd.f32 0.0, %v4541
    %4543 = vdwg.mxu0
    %4544 = vmatpush.msra.mxu0 0.0
    %4545 = vmatpush.msra.mxu0 0.0
    %4546 = vmatpush.msra.mxu0 0.0
    %4547 = vmatpush.msra.mxu0 0.0
    %4548 = vmatpush.msra.mxu0 0.0
    %4549 = vmatpush.msra.mxu0 0.0
    %4550 = vmatpush.msra.mxu0 0.0
    %4551 = vmatpush.msra.mxu0 0.0
    %4552 = vmatpush.msra.mxu0 0.0
    %4553 = vmatpush.msra.mxu0 0.0
    %4554 = vmatpush.msra.mxu0 0.0
    %4555 = vmatpush.msra.mxu0 0.0
    %4556 = vmatpush.msra.mxu0 0.0
    %4557 = vmatpush.msra.mxu0 0.0
    %4558 = vmatpush.msra.mxu0 0.0
    %4559 = vmatpush.msra.mxu0 %v4303
    %4560 = vmatmul.f32.gmra.mxu0 %v4322
    %v4561 = vpop.f32.mrf.mxu0
    %v4562 = vadd.f32 0.0, %v4561
    %4563 = vdwg.mxu0
    %4564 = vmatpush.msra.mxu0 0.0
    %4565 = vmatpush.msra.mxu0 0.0
    %4566 = vmatpush.msra.mxu0 0.0
    %4567 = vmatpush.msra.mxu0 0.0
    %4568 = vmatpush.msra.mxu0 0.0
    %4569 = vmatpush.msra.mxu0 0.0
    %4570 = vmatpush.msra.mxu0 0.0
    %4571 = vmatpush.msra.mxu0 0.0
    %4572 = vmatpush.msra.mxu0 0.0
    %4573 = vmatpush.msra.mxu0 0.0
    %4574 = vmatpush.msra.mxu0 0.0
    %4575 = vmatpush.msra.mxu0 0.0
    %4576 = vmatpush.msra.mxu0 0.0
    %4577 = vmatpush.msra.mxu0 0.0
    %4578 = vmatpush.msra.mxu0 0.0
    %4579 = vmatpush.msra.mxu0 %v4304
    %4580 = vmatmul.f32.gmra.mxu0 %v4322
    %v4581 = vpop.f32.mrf.mxu0
    %v4582 = vadd.f32 0.0, %v4581
    %4583 = vdwg.mxu0
    %4584 = vmatpush.msra.mxu0 0.0
    %4585 = vmatpush.msra.mxu0 0.0
    %4586 = vmatpush.msra.mxu0 0.0
    %4587 = vmatpush.msra.mxu0 0.0
    %4588 = vmatpush.msra.mxu0 0.0
    %4589 = vmatpush.msra.mxu0 0.0
    %4590 = vmatpush.msra.mxu0 0.0
    %4591 = vmatpush.msra.mxu0 0.0
    %4592 = vmatpush.msra.mxu0 0.0
    %4593 = vmatpush.msra.mxu0 0.0
    %4594 = vmatpush.msra.mxu0 0.0
    %4595 = vmatpush.msra.mxu0 0.0
    %4596 = vmatpush.msra.mxu0 0.0
    %4597 = vmatpush.msra.mxu0 0.0
    %4598 = vmatpush.msra.mxu0 0.0
    %4599 = vmatpush.msra.mxu0 %v4305
    %4600 = vmatmul.f32.gmra.mxu0 %v4322
    %v4601 = vpop.f32.mrf.mxu0
    %v4602 = vadd.f32 0.0, %v4601
    %4603 = vdwg.mxu0
    %4604 = vmatpush.msra.mxu0 0.0
    %4605 = vmatpush.msra.mxu0 0.0
    %4606 = vmatpush.msra.mxu0 0.0
    %4607 = vmatpush.msra.mxu0 0.0
    %4608 = vmatpush.msra.mxu0 0.0
    %4609 = vmatpush.msra.mxu0 0.0
    %4610 = vmatpush.msra.mxu0 0.0
    %4611 = vmatpush.msra.mxu0 0.0
    %4612 = vmatpush.msra.mxu0 0.0
    %4613 = vmatpush.msra.mxu0 0.0
    %4614 = vmatpush.msra.mxu0 0.0
    %4615 = vmatpush.msra.mxu0 0.0
    %4616 = vmatpush.msra.mxu0 0.0
    %4617 = vmatpush.msra.mxu0 0.0
    %4618 = vmatpush.msra.mxu0 0.0
    %4619 = vmatpush.msra.mxu0 %v4290
    %4620 = vmatmul.f32.gmra.mxu0 %v4322
    %v4621 = vpop.f32.mrf.mxu0
    %v4622 = vadd.f32 0.0, %v4621
    %4623 = vdwg.mxu0
    %v4624 = vadd.f32 %v4244, %v4342
    %v4625 = vadd.f32 %v4245, %v4362
    %v4626 = vadd.f32 %v4246, %v4382
    %v4627 = vadd.f32 %v4247, %v4402
    %v4628 = vadd.f32 %v4248, %v4422
    %v4629 = vadd.f32 %v4249, %v4442
    %v4630 = vadd.f32 %v4250, %v4462
    %v4631 = vadd.f32 %v4251, %v4482
    %v4632 = vadd.f32 %v4252, %v4502
    %v4633 = vadd.f32 %v4253, %v4522
    %v4634 = vadd.f32 %v4254, %v4542
    %v4635 = vadd.f32 %v4255, %v4562
    %v4636 = vadd.f32 %v4256, %v4582
    %v4637 = vadd.f32 %v4257, %v4602
    %v4638 = vadd.f32 %v4258, %v4622
    %v4639 = vld [vmem:[%s4] sm:$0xff]
    %4641 = vset.pattern.permute.xlu0 0
    %4642 = vperm.xlu0 %4641, %v4639
    %v4643 = vpop.permute.xlu0 %4642
    %v4645 = vadd.f32 %v4624, %v4643
    %v4646 = vadd.f32 %v4625, %v4643
    %v4647 = vadd.f32 %v4626, %v4643
    %v4648 = vadd.f32 %v4627, %v4643
    %v4649 = vadd.f32 %v4628, %v4643
    %v4650 = vadd.f32 %v4629, %v4643
    %v4651 = vadd.f32 %v4630, %v4643
    %v4652 = vadd.f32 %v4631, %v4643
    %v4653 = vadd.f32 %v4632, %v4643
    %v4654 = vadd.f32 %v4633, %v4643
    %v4655 = vadd.f32 %v4634, %v4643
    %v4656 = vadd.f32 %v4635, %v4643
    %v4657 = vadd.f32 %v4636, %v4643
    %v4658 = vadd.f32 %v4637, %v4643
    %v4659 = vadd.f32 %v4638, %v4643
    %v4660 = vmax.f32 %v4645, 0.0
    %v4661 = vmax.f32 %v4646, 0.0
    %v4662 = vmax.f32 %v4647, 0.0
    %v4663 = vmax.f32 %v4648, 0.0
    %v4664 = vmax.f32 %v4649, 0.0
    %v4665 = vmax.f32 %v4650, 0.0
    %v4666 = vmax.f32 %v4651, 0.0
    %v4667 = vmax.f32 %v4652, 0.0
    %v4668 = vmax.f32 %v4653, 0.0
    %v4669 = vmax.f32 %v4654, 0.0
    %v4670 = vmax.f32 %v4655, 0.0
    %v4671 = vmax.f32 %v4656, 0.0
    %v4672 = vmax.f32 %v4657, 0.0
    %v4673 = vmax.f32 %v4658, 0.0
    %v4674 = vmax.f32 %v4659, 0.0
    %4690 = vrot.lane.b32.xlu0 %v4660, 32
    %v4691 = vpop.permute.xlu0 %4690
    %4692 = vrot.lane.b32.xlu0 %v4661, 32
    %v4693 = vpop.permute.xlu0 %4692
    %4694 = vrot.lane.b32.xlu0 %v4662, 32
    %v4695 = vpop.permute.xlu0 %4694
    %4696 = vrot.lane.b32.xlu0 %v4663, 32
    %v4697 = vpop.permute.xlu0 %4696
    %4698 = vrot.lane.b32.xlu0 %v4664, 32
    %v4699 = vpop.permute.xlu0 %4698
    %4700 = vrot.lane.b32.xlu0 %v4665, 32
    %v4701 = vpop.permute.xlu0 %4700
    %4702 = vrot.lane.b32.xlu0 %v4666, 32
    %v4703 = vpop.permute.xlu0 %4702
    %4704 = vrot.lane.b32.xlu0 %v4667, 32
    %v4705 = vpop.permute.xlu0 %4704
    %4706 = vrot.lane.b32.xlu0 %v4668, 32
    %v4707 = vpop.permute.xlu0 %4706
    %4708 = vrot.lane.b32.xlu0 %v4669, 32
    %v4709 = vpop.permute.xlu0 %4708
    %4710 = vrot.lane.b32.xlu0 %v4670, 32
    %v4711 = vpop.permute.xlu0 %4710
    %4712 = vrot.lane.b32.xlu0 %v4671, 32
    %v4713 = vpop.permute.xlu0 %4712
    %4714 = vrot.lane.b32.xlu0 %v4672, 32
    %v4715 = vpop.permute.xlu0 %4714
    %4716 = vrot.lane.b32.xlu0 %v4673, 32
    %v4717 = vpop.permute.xlu0 %4716
    %4718 = vrot.lane.b32.xlu0 %v4674, 32
    %v4719 = vpop.permute.xlu0 %4718
    %v4720 = vsel %vm48, %v4691, %v4693
    %v4721 = vsel %vm48, %v4693, %v4695
    %v4722 = vsel %vm48, %v4695, %v4697
    %v4723 = vsel %vm48, %v4697, %v4699
    %v4724 = vsel %vm48, %v4699, %v4701
    %v4725 = vsel %vm48, %v4701, %v4703
    %v4726 = vsel %vm48, %v4703, %v4705
    %v4727 = vsel %vm48, %v4705, %v4707
    %v4728 = vsel %vm48, %v4707, %v4709
    %v4729 = vsel %vm48, %v4709, %v4711
    %v4730 = vsel %vm48, %v4711, %v4713
    %v4731 = vsel %vm48, %v4713, %v4715
    %v4732 = vsel %vm48, %v4715, %v4717
    %v4733 = vsel %vm48, %v4717, %v4719
    %4749 = vst.msk [vmem:[#allocation2] sm:$0xff] %vm1208, %v4691
    %4750 = vst [vmem:[#allocation2 + $0x8] sm:$0xff] %v4720
    %4751 = vst [vmem:[#allocation2 + $0x10] sm:$0xff] %v4721
    %4752 = vst [vmem:[#allocation2 + $0x18] sm:$0xff] %v4722
    %4753 = vst [vmem:[#allocation2 + $0x20] sm:$0xff] %v4723
    %4754 = vst [vmem:[#allocation2 + $0x28] sm:$0xff] %v4724
    %4755 = vst [vmem:[#allocation2 + $0x30] sm:$0xff] %v4725
    %4756 = vst [vmem:[#allocation2 + $0x38] sm:$0xff] %v4726
    %4757 = vst [vmem:[#allocation2 + $0x40] sm:$0xff] %v4727
    %4758 = vst [vmem:[#allocation2 + $0x48] sm:$0xff] %v4728
    %4759 = vst [vmem:[#allocation2 + $0x50] sm:$0xff] %v4729
    %4760 = vst [vmem:[#allocation2 + $0x58] sm:$0xff] %v4730
    %4761 = vst [vmem:[#allocation2 + $0x60] sm:$0xff] %v4731
    %4762 = vst [vmem:[#allocation2 + $0x68] sm:$0xff] %v4732
    %4763 = vst.msk [vmem:[#allocation2 + $0x70] sm:$0xff] %vm1223, %v4733
    %v4764 = vld [vmem:[#allocation2] sm:$0xff]
    %v4765 = vld [vmem:[#allocation2 + $0x8] sm:$0xff]
    %v4766 = vld [vmem:[#allocation2 + $0x10] sm:$0xff]
    %v4767 = vld [vmem:[#allocation2 + $0x18] sm:$0xff]
    %v4768 = vld [vmem:[#allocation2 + $0x20] sm:$0xff]
    %v4769 = vld [vmem:[#allocation2 + $0x28] sm:$0xff]
    %v4770 = vld [vmem:[#allocation2 + $0x30] sm:$0xff]
    %v4771 = vld [vmem:[#allocation2 + $0x38] sm:$0xff]
    %v4772 = vld [vmem:[#allocation2 + $0x40] sm:$0xff]
    %v4773 = vld [vmem:[#allocation2 + $0x48] sm:$0xff]
    %v4774 = vld [vmem:[#allocation2 + $0x50] sm:$0xff]
    %v4775 = vld [vmem:[#allocation2 + $0x58] sm:$0xff]
    %v4776 = vld [vmem:[#allocation2 + $0x60] sm:$0xff]
    %v4777 = vld [vmem:[#allocation2 + $0x68] sm:$0xff]
    %v4778 = vld [vmem:[#allocation2 + $0x70] sm:$0xff]
    %4794 = vrot.lane.b32.xlu0 %v4764, 127
    %v4795 = vpop.permute.xlu0 %4794
    %4796 = vrot.lane.b32.xlu0 %v4765, 127
    %v4797 = vpop.permute.xlu0 %4796
    %4798 = vrot.lane.b32.xlu0 %v4766, 127
    %v4799 = vpop.permute.xlu0 %4798
    %4800 = vrot.lane.b32.xlu0 %v4767, 127
    %v4801 = vpop.permute.xlu0 %4800
    %4802 = vrot.lane.b32.xlu0 %v4768, 127
    %v4803 = vpop.permute.xlu0 %4802
    %4804 = vrot.lane.b32.xlu0 %v4769, 127
    %v4805 = vpop.permute.xlu0 %4804
    %4806 = vrot.lane.b32.xlu0 %v4770, 127
    %v4807 = vpop.permute.xlu0 %4806
    %4808 = vrot.lane.b32.xlu0 %v4771, 127
    %v4809 = vpop.permute.xlu0 %4808
    %4810 = vrot.lane.b32.xlu0 %v4772, 127
    %v4811 = vpop.permute.xlu0 %4810
    %4812 = vrot.lane.b32.xlu0 %v4773, 127
    %v4813 = vpop.permute.xlu0 %4812
    %4814 = vrot.lane.b32.xlu0 %v4774, 127
    %v4815 = vpop.permute.xlu0 %4814
    %4816 = vrot.lane.b32.xlu0 %v4775, 127
    %v4817 = vpop.permute.xlu0 %4816
    %4818 = vrot.lane.b32.xlu0 %v4776, 127
    %v4819 = vpop.permute.xlu0 %4818
    %4820 = vrot.lane.b32.xlu0 %v4777, 127
    %v4821 = vpop.permute.xlu0 %4820
    %4822 = vrot.lane.b32.xlu0 %v4778, 127
    %v4823 = vpop.permute.xlu0 %4822
    %v4824 = vsel %vm174, %v4795, %v4797
    %v4825 = vsel %vm174, %v4797, %v4799
    %v4826 = vsel %vm174, %v4799, %v4801
    %v4827 = vsel %vm174, %v4801, %v4803
    %v4828 = vsel %vm174, %v4803, %v4805
    %v4829 = vsel %vm174, %v4805, %v4807
    %v4830 = vsel %vm174, %v4807, %v4809
    %v4831 = vsel %vm174, %v4809, %v4811
    %v4832 = vsel %vm174, %v4811, %v4813
    %v4833 = vsel %vm174, %v4813, %v4815
    %v4834 = vsel %vm174, %v4815, %v4817
    %v4835 = vsel %vm174, %v4817, %v4819
    %v4836 = vsel %vm174, %v4819, %v4821
    %v4837 = vsel %vm174, %v4821, %v4823
    %v4853 = vmax.f32 %v4764, %v4824
    %v4854 = vmax.f32 %v4765, %v4825
    %v4855 = vmax.f32 %v4766, %v4826
    %v4856 = vmax.f32 %v4767, %v4827
    %v4857 = vmax.f32 %v4768, %v4828
    %v4858 = vmax.f32 %v4769, %v4829
    %v4859 = vmax.f32 %v4770, %v4830
    %v4860 = vmax.f32 %v4771, %v4831
    %v4861 = vmax.f32 %v4772, %v4832
    %v4862 = vmax.f32 %v4773, %v4833
    %v4863 = vmax.f32 %v4774, %v4834
    %v4864 = vmax.f32 %v4775, %v4835
    %v4865 = vmax.f32 %v4776, %v4836
    %v4866 = vmax.f32 %v4777, %v4837
    %v4867 = vmax.f32 %v4778, %v4823
    %4883 = vrot.lane.b32.xlu0 %v4853, 98
    %v4884 = vpop.permute.xlu0 %4883
    %4885 = vrot.lane.b32.xlu0 %v4854, 98
    %v4886 = vpop.permute.xlu0 %4885
    %4887 = vrot.lane.b32.xlu0 %v4855, 98
    %v4888 = vpop.permute.xlu0 %4887
    %4889 = vrot.lane.b32.xlu0 %v4856, 98
    %v4890 = vpop.permute.xlu0 %4889
    %4891 = vrot.lane.b32.xlu0 %v4857, 98
    %v4892 = vpop.permute.xlu0 %4891
    %4893 = vrot.lane.b32.xlu0 %v4858, 98
    %v4894 = vpop.permute.xlu0 %4893
    %4895 = vrot.lane.b32.xlu0 %v4859, 98
    %v4896 = vpop.permute.xlu0 %4895
    %4897 = vrot.lane.b32.xlu0 %v4860, 98
    %v4898 = vpop.permute.xlu0 %4897
    %4899 = vrot.lane.b32.xlu0 %v4861, 98
    %v4900 = vpop.permute.xlu0 %4899
    %4901 = vrot.lane.b32.xlu0 %v4862, 98
    %v4902 = vpop.permute.xlu0 %4901
    %4903 = vrot.lane.b32.xlu0 %v4863, 98
    %v4904 = vpop.permute.xlu0 %4903
    %4905 = vrot.lane.b32.xlu0 %v4864, 98
    %v4906 = vpop.permute.xlu0 %4905
    %4907 = vrot.lane.b32.xlu0 %v4865, 98
    %v4908 = vpop.permute.xlu0 %4907
    %4909 = vrot.lane.b32.xlu0 %v4866, 98
    %v4910 = vpop.permute.xlu0 %4909
    %4911 = vrot.lane.b32.xlu0 %v4867, 98
    %v4912 = vpop.permute.xlu0 %4911
    %v4913 = vsel %vm398, %v4884, %v4886
    %v4914 = vsel %vm398, %v4886, %v4888
    %v4915 = vsel %vm398, %v4888, %v4890
    %v4916 = vsel %vm398, %v4890, %v4892
    %v4917 = vsel %vm398, %v4892, %v4894
    %v4918 = vsel %vm398, %v4894, %v4896
    %v4919 = vsel %vm398, %v4896, %v4898
    %v4920 = vsel %vm398, %v4898, %v4900
    %v4921 = vsel %vm398, %v4900, %v4902
    %v4922 = vsel %vm398, %v4902, %v4904
    %v4923 = vsel %vm398, %v4904, %v4906
    %v4924 = vsel %vm398, %v4906, %v4908
    %v4925 = vsel %vm398, %v4908, %v4910
    %v4926 = vsel %vm398, %v4910, %v4912
    %v4942 = vmax.f32 %v4853, %v4913
    %v4943 = vmax.f32 %v4854, %v4914
    %v4944 = vmax.f32 %v4855, %v4915
    %v4945 = vmax.f32 %v4856, %v4916
    %v4946 = vmax.f32 %v4857, %v4917
    %v4947 = vmax.f32 %v4858, %v4918
    %v4948 = vmax.f32 %v4859, %v4919
    %v4949 = vmax.f32 %v4860, %v4920
    %v4950 = vmax.f32 %v4861, %v4921
    %v4951 = vmax.f32 %v4862, %v4922
    %v4952 = vmax.f32 %v4863, %v4923
    %v4953 = vmax.f32 %v4864, %v4924
    %v4954 = vmax.f32 %v4865, %v4925
    %v4955 = vmax.f32 %v4866, %v4926
    %v4956 = vmax.f32 %v4867, %v4912
    %4957 = vst.msk [vmem:[#allocation2] sm:$0xff] %vm1208, %v4942
    %4958 = vst [vmem:[#allocation2 + $0x8] sm:$0xff] %v4943
    %4959 = vst [vmem:[#allocation2 + $0x10] sm:$0xff] %v4944
    %4960 = vst [vmem:[#allocation2 + $0x18] sm:$0xff] %v4945
    %4961 = vst [vmem:[#allocation2 + $0x20] sm:$0xff] %v4946
    %4962 = vst [vmem:[#allocation2 + $0x28] sm:$0xff] %v4947
    %4963 = vst [vmem:[#allocation2 + $0x30] sm:$0xff] %v4948
    %4964 = vst [vmem:[#allocation2 + $0x38] sm:$0xff] %v4949
    %4965 = vst [vmem:[#allocation2 + $0x40] sm:$0xff] %v4950
    %4966 = vst [vmem:[#allocation2 + $0x48] sm:$0xff] %v4951
    %4967 = vst [vmem:[#allocation2 + $0x50] sm:$0xff] %v4952
    %4968 = vst [vmem:[#allocation2 + $0x58] sm:$0xff] %v4953
    %4969 = vst [vmem:[#allocation2 + $0x60] sm:$0xff] %v4954
    %4970 = vst [vmem:[#allocation2 + $0x68] sm:$0xff] %v4955
    %4971 = vst.msk [vmem:[#allocation2 + $0x70] sm:$0xff] %vm1223, %v4956
    %v4972 = vld [vmem:[%s10] sm:$0xff]
    %v4973 = vld [vmem:[%s10 + $0x8] sm:$0xff]
    %v4974 = vld [vmem:[%s10 + $0x10] sm:$0xff]
    %v4975 = vld [vmem:[%s10 + $0x18] sm:$0xff]
    %v4976 = vld [vmem:[%s10 + $0x20] sm:$0xff]
    %v4977 = vld [vmem:[%s10 + $0x28] sm:$0xff]
    %v4978 = vld [vmem:[%s10 + $0x30] sm:$0xff]
    %v4979 = vld [vmem:[%s10 + $0x38] sm:$0xff]
    %v4980 = vld [vmem:[%s10 + $0x40] sm:$0xff]
    %v4981 = vld [vmem:[%s10 + $0x48] sm:$0xff]
    %v4982 = vld [vmem:[%s10 + $0x50] sm:$0xff]
    %v4983 = vld [vmem:[%s10 + $0x58] sm:$0xff]
    %v4984 = vld [vmem:[%s10 + $0x60] sm:$0xff]
    %v4985 = vld [vmem:[%s10 + $0x68] sm:$0xff]
    %v4986 = vld [vmem:[%s10 + $0x70] sm:$0xff]
    %v4987 = vld [vmem:[%s10 + $0x78] sm:$0xff]
    %v4988 = vld [vmem:[%s10 + $0x80] sm:$0xff]
    %v4989 = vld [vmem:[%s10 + $0x88] sm:$0xff]
    %v4990 = vld [vmem:[%s10 + $0x90] sm:$0xff]
    %v4991 = vld [vmem:[%s10 + $0x98] sm:$0xff]
    %v4992 = vld [vmem:[%s10 + $0xa0] sm:$0xff]
    %v4993 = vld [vmem:[%s10 + $0xa8] sm:$0xff]
    %v4994 = vld [vmem:[%s10 + $0xb0] sm:$0xff]
    %v4995 = vld [vmem:[%s10 + $0xb8] sm:$0xff]
    %v4996 = vld [vmem:[%s10 + $0xc0] sm:$0xff]
    %v4997 = vld [vmem:[%s10 + $0xc8] sm:$0xff]
    %v4998 = vld [vmem:[%s10 + $0xd0] sm:$0xff]
    %v4999 = vld [vmem:[%s10 + $0xd8] sm:$0xff]
    %v5000 = vld [vmem:[%s10 + $0xe0] sm:$0xff]
    %v5001 = vld [vmem:[%s10 + $0xe8] sm:$0xff]
    %v5002 = vld [vmem:[%s10 + $0xf0] sm:$0xff]
    %v5003 = vld [vmem:[%s10 + $0xf8] sm:$0xff]
    %v5004 = vld [vmem:[%s10 + $0x100] sm:$0xff]
    %v5005 = vld [vmem:[%s10 + $0x108] sm:$0xff]
    %v5006 = vld [vmem:[%s10 + $0x110] sm:$0xff]
    %v5007 = vld [vmem:[%s10 + $0x118] sm:$0xff]
    %v5008 = vld [vmem:[%s10 + $0x120] sm:$0xff]
    %v5009 = vld [vmem:[%s10 + $0x128] sm:$0xff]
    %v5010 = vld [vmem:[%s10 + $0x130] sm:$0xff]
    %v5011 = vld [vmem:[%s10 + $0x138] sm:$0xff]
    %v5012 = vld [vmem:[%s10 + $0x140] sm:$0xff]
    %v5013 = vld [vmem:[%s10 + $0x148] sm:$0xff]
    %v5014 = vld [vmem:[%s10 + $0x150] sm:$0xff]
    %v5015 = vld [vmem:[%s10 + $0x158] sm:$0xff]
    %v5016 = vld [vmem:[%s10 + $0x160] sm:$0xff]
    %v5017 = vld [vmem:[%s10 + $0x168] sm:$0xff]
    %v5018 = vld [vmem:[%s10 + $0x170] sm:$0xff]
    %v5019 = vld [vmem:[%s10 + $0x178] sm:$0xff]
    %v5020 = vld [vmem:[%s10 + $0x180] sm:$0xff]
    %v5021 = vld [vmem:[%s10 + $0x188] sm:$0xff]
    %v5022 = vld [vmem:[%s10 + $0x190] sm:$0xff]
    %v5023 = vld [vmem:[%s10 + $0x198] sm:$0xff]
    %v5024 = vld [vmem:[%s10 + $0x1a0] sm:$0xff]
    %v5025 = vld [vmem:[%s10 + $0x1a8] sm:$0xff]
    %v5026 = vld [vmem:[%s10 + $0x1b0] sm:$0xff]
    %v5027 = vld [vmem:[%s10 + $0x1b8] sm:$0xff]
    %v5028 = vld [vmem:[%s10 + $0x1c0] sm:$0xff]
    %v5029 = vld [vmem:[%s10 + $0x1c8] sm:$0xff]
    %v5030 = vld [vmem:[%s10 + $0x1d0] sm:$0xff]
    %v5031 = vld [vmem:[%s10 + $0x1d8] sm:$0xff]
    %v5032 = vld [vmem:[%s10 + $0x1e0] sm:$0xff]
    %v5033 = vld [vmem:[%s10 + $0x1e8] sm:$0xff]
    %v5034 = vld [vmem:[%s10 + $0x1f0] sm:$0xff]
    %v5035 = vld [vmem:[%s10 + $0x1f8] sm:$0xff]
    %v5036 = vld [vmem:[%s10 + $0x200] sm:$0xff]
    %v5037 = vld [vmem:[%s10 + $0x208] sm:$0xff]
    %v5038 = vld [vmem:[%s10 + $0x210] sm:$0xff]
    %v5039 = vld [vmem:[%s10 + $0x218] sm:$0xff]
    %v5040 = vld [vmem:[%s10 + $0x220] sm:$0xff]
    %v5041 = vld [vmem:[%s10 + $0x228] sm:$0xff]
    %v5042 = vld [vmem:[%s10 + $0x230] sm:$0xff]
    %v5043 = vld [vmem:[%s10 + $0x238] sm:$0xff]
    %v5044 = vld [vmem:[%s10 + $0x240] sm:$0xff]
    %v5045 = vld [vmem:[%s10 + $0x248] sm:$0xff]
    %v5046 = vld [vmem:[%s10 + $0x250] sm:$0xff]
    %v5047 = vld [vmem:[%s10 + $0x258] sm:$0xff]
    %v5048 = vld [vmem:[%s10 + $0x260] sm:$0xff]
    %v5049 = vld [vmem:[%s10 + $0x268] sm:$0xff]
    %v5050 = vld [vmem:[%s10 + $0x270] sm:$0xff]
    %v5051 = vld [vmem:[%s10 + $0x278] sm:$0xff]
    %v5052 = vld [vmem:[%s10 + $0x280] sm:$0xff]
    %v5053 = vld [vmem:[%s10 + $0x288] sm:$0xff]
    %v5054 = vld [vmem:[%s10 + $0x290] sm:$0xff]
    %v5055 = vld [vmem:[%s10 + $0x298] sm:$0xff]
    %v5056 = vld [vmem:[%s10 + $0x2a0] sm:$0xff]
    %v5057 = vld [vmem:[%s10 + $0x2a8] sm:$0xff]
    %v5058 = vld [vmem:[%s10 + $0x2b0] sm:$0xff]
    %v5059 = vld [vmem:[%s10 + $0x2b8] sm:$0xff]
    %v5060 = vld [vmem:[%s10 + $0x2c0] sm:$0xff]
    %v5061 = vld [vmem:[%s10 + $0x2c8] sm:$0xff]
    %v5062 = vld [vmem:[%s10 + $0x2d0] sm:$0xff]
    %v5063 = vld [vmem:[%s10 + $0x2d8] sm:$0xff]
    %v5064 = vld [vmem:[%s10 + $0x2e0] sm:$0xff]
    %v5065 = vld [vmem:[%s10 + $0x2e8] sm:$0xff]
    %v5066 = vld [vmem:[%s10 + $0x2f0] sm:$0xff]
    %v5067 = vld [vmem:[%s10 + $0x2f8] sm:$0xff]
    %v5068 = vld [vmem:[%s10 + $0x300] sm:$0xff]
    %v5069 = vld [vmem:[%s10 + $0x308] sm:$0xff]
    %v5070 = vld [vmem:[%s10 + $0x310] sm:$0xff]
    %v5071 = vld [vmem:[%s10 + $0x318] sm:$0xff]
    %v5072 = vld [vmem:[%s10 + $0x320] sm:$0xff]
    %v5073 = vld [vmem:[%s10 + $0x328] sm:$0xff]
    %v5074 = vld [vmem:[%s10 + $0x330] sm:$0xff]
    %v5075 = vld [vmem:[%s10 + $0x338] sm:$0xff]
    %v5076 = vld [vmem:[%s10 + $0x340] sm:$0xff]
    %v5077 = vld [vmem:[%s10 + $0x348] sm:$0xff]
    %v5078 = vld [vmem:[%s10 + $0x350] sm:$0xff]
    %v5079 = vld [vmem:[%s10 + $0x358] sm:$0xff]
    %v5080 = vld [vmem:[%s10 + $0x360] sm:$0xff]
    %v5081 = vld [vmem:[%s10 + $0x368] sm:$0xff]
    %v5082 = vld [vmem:[%s10 + $0x370] sm:$0xff]
    %v5083 = vld [vmem:[%s10 + $0x378] sm:$0xff]
    %v5084 = vld [vmem:[%s10 + $0x380] sm:$0xff]
    %v5085 = vld [vmem:[%s10 + $0x388] sm:$0xff]
    %v5086 = vld [vmem:[%s10 + $0x390] sm:$0xff]
    %v5087 = vld [vmem:[%s10 + $0x398] sm:$0xff]
    %v5088 = vld [vmem:[%s10 + $0x3a0] sm:$0xff]
    %v5089 = vld [vmem:[%s10 + $0x3a8] sm:$0xff]
    %v5090 = vld [vmem:[%s10 + $0x3b0] sm:$0xff]
    %v5091 = vld [vmem:[%s10 + $0x3b8] sm:$0xff]
    %v5092 = vld [vmem:[%s10 + $0x3c0] sm:$0xff]
    %v5093 = vld [vmem:[%s10 + $0x3c8] sm:$0xff]
    %v5094 = vld [vmem:[%s10 + $0x3d0] sm:$0xff]
    %v5095 = vld [vmem:[%s10 + $0x3d8] sm:$0xff]
    %v5096 = vld [vmem:[%s10 + $0x3e0] sm:$0xff]
    %v5097 = vld [vmem:[%s10 + $0x3e8] sm:$0xff]
    %v5098 = vld [vmem:[%s10 + $0x3f0] sm:$0xff]
    %v5099 = vld [vmem:[%s10 + $0x3f8] sm:$0xff]
    %v5100 = vld [vmem:[%s10 + $0x400] sm:$0xff]
    %v5101 = vld [vmem:[%s10 + $0x408] sm:$0xff]
    %v5102 = vld [vmem:[%s10 + $0x410] sm:$0xff]
    %v5103 = vld [vmem:[%s10 + $0x418] sm:$0xff]
    %v5104 = vld [vmem:[%s10 + $0x420] sm:$0xff]
    %v5105 = vld [vmem:[%s10 + $0x428] sm:$0xff]
    %v5106 = vld [vmem:[%s10 + $0x430] sm:$0xff]
    %v5107 = vld [vmem:[%s10 + $0x438] sm:$0xff]
    %v5108 = vld [vmem:[%s10 + $0x440] sm:$0xff]
    %v5109 = vld [vmem:[%s10 + $0x448] sm:$0xff]
    %v5110 = vld [vmem:[%s10 + $0x450] sm:$0xff]
    %v5111 = vld [vmem:[%s10 + $0x458] sm:$0xff]
    %v5112 = vld [vmem:[%s10 + $0x460] sm:$0xff]
    %v5113 = vld [vmem:[%s10 + $0x468] sm:$0xff]
    %v5114 = vld [vmem:[%s10 + $0x470] sm:$0xff]
    %v5115 = vld [vmem:[%s10 + $0x478] sm:$0xff]
    %v5116 = vld [vmem:[%s10 + $0x480] sm:$0xff]
    %v5117 = vld [vmem:[%s10 + $0x488] sm:$0xff]
    %v5118 = vld [vmem:[%s10 + $0x490] sm:$0xff]
    %v5119 = vld [vmem:[%s10 + $0x498] sm:$0xff]
    %v5120 = vld [vmem:[%s10 + $0x4a0] sm:$0xff]
    %v5121 = vld [vmem:[%s10 + $0x4a8] sm:$0xff]
    %v5122 = vld [vmem:[%s10 + $0x4b0] sm:$0xff]
    %v5123 = vld [vmem:[%s10 + $0x4b8] sm:$0xff]
    %v5124 = vld [vmem:[%s10 + $0x4c0] sm:$0xff]
    %v5125 = vld [vmem:[%s10 + $0x4c8] sm:$0xff]
    %v5126 = vld [vmem:[%s10 + $0x4d0] sm:$0xff]
    %v5127 = vld [vmem:[%s10 + $0x4d8] sm:$0xff]
    %v5128 = vld [vmem:[%s10 + $0x4e0] sm:$0xff]
    %v5129 = vld [vmem:[%s10 + $0x4e8] sm:$0xff]
    %v5130 = vld [vmem:[%s10 + $0x4f0] sm:$0xff]
    %v5131 = vld [vmem:[%s10 + $0x4f8] sm:$0xff]
    %v5132 = vld [vmem:[%s10 + $0x500] sm:$0xff]
    %v5133 = vld [vmem:[%s10 + $0x508] sm:$0xff]
    %v5134 = vld [vmem:[%s10 + $0x510] sm:$0xff]
    %v5135 = vld [vmem:[%s10 + $0x518] sm:$0xff]
    %v5136 = vld [vmem:[%s10 + $0x520] sm:$0xff]
    %v5137 = vld [vmem:[%s10 + $0x528] sm:$0xff]
    %v5138 = vld [vmem:[%s10 + $0x530] sm:$0xff]
    %v5139 = vld [vmem:[%s10 + $0x538] sm:$0xff]
    %v5140 = vld [vmem:[%s10 + $0x540] sm:$0xff]
    %v5141 = vld [vmem:[%s10 + $0x548] sm:$0xff]
    %v5142 = vld [vmem:[%s10 + $0x550] sm:$0xff]
    %v5143 = vld [vmem:[%s10 + $0x558] sm:$0xff]
    %v5144 = vld [vmem:[%s10 + $0x560] sm:$0xff]
    %v5145 = vld [vmem:[%s10 + $0x568] sm:$0xff]
    %v5146 = vld [vmem:[%s10 + $0x570] sm:$0xff]
    %v5147 = vld [vmem:[%s10 + $0x578] sm:$0xff]
    %v5148 = vld [vmem:[%s10 + $0x580] sm:$0xff]
    %v5149 = vld [vmem:[%s10 + $0x588] sm:$0xff]
    %v5150 = vld [vmem:[%s10 + $0x590] sm:$0xff]
    %v5151 = vld [vmem:[%s10 + $0x598] sm:$0xff]
    %v5152 = vld [vmem:[%s10 + $0x5a0] sm:$0xff]
    %v5153 = vld [vmem:[%s10 + $0x5a8] sm:$0xff]
    %v5154 = vld [vmem:[%s10 + $0x5b0] sm:$0xff]
    %v5155 = vld [vmem:[%s10 + $0x5b8] sm:$0xff]
    %v5156 = vld [vmem:[%s10 + $0x5c0] sm:$0xff]
    %v5157 = vld [vmem:[%s10 + $0x5c8] sm:$0xff]
    %v5158 = vld [vmem:[%s10 + $0x5d0] sm:$0xff]
    %v5159 = vld [vmem:[%s10 + $0x5d8] sm:$0xff]
    %v5160 = vld [vmem:[%s10 + $0x5e0] sm:$0xff]
    %v5161 = vld [vmem:[%s10 + $0x5e8] sm:$0xff]
    %v5162 = vld [vmem:[%s10 + $0x5f0] sm:$0xff]
    %v5163 = vld [vmem:[%s10 + $0x5f8] sm:$0xff]
    %v5164 = vld [vmem:[%s10 + $0x600] sm:$0xff]
    %v5165 = vld [vmem:[%s10 + $0x608] sm:$0xff]
    %v5166 = vld [vmem:[%s10 + $0x610] sm:$0xff]
    %v5167 = vld [vmem:[%s10 + $0x618] sm:$0xff]
    %v5168 = vld [vmem:[%s10 + $0x620] sm:$0xff]
    %v5169 = vld [vmem:[%s10 + $0x628] sm:$0xff]
    %v5170 = vld [vmem:[%s10 + $0x630] sm:$0xff]
    %v5171 = vld [vmem:[%s10 + $0x638] sm:$0xff]
    %v5172 = vld [vmem:[%s10 + $0x640] sm:$0xff]
    %v5173 = vld [vmem:[%s10 + $0x648] sm:$0xff]
    %v5174 = vld [vmem:[%s10 + $0x650] sm:$0xff]
    %v5175 = vld [vmem:[%s10 + $0x658] sm:$0xff]
    %v5176 = vld [vmem:[%s10 + $0x660] sm:$0xff]
    %v5177 = vld [vmem:[%s10 + $0x668] sm:$0xff]
    %v5178 = vld [vmem:[%s10 + $0x670] sm:$0xff]
    %v5179 = vld [vmem:[%s10 + $0x678] sm:$0xff]
    %v5180 = vld [vmem:[%s10 + $0x680] sm:$0xff]
    %v5181 = vld [vmem:[%s10 + $0x688] sm:$0xff]
    %v5182 = vld [vmem:[%s10 + $0x690] sm:$0xff]
    %v5183 = vld [vmem:[%s10 + $0x698] sm:$0xff]
    %v5184 = vld [vmem:[%s10 + $0x6a0] sm:$0xff]
    %v5185 = vld [vmem:[%s10 + $0x6a8] sm:$0xff]
    %v5186 = vld [vmem:[%s10 + $0x6b0] sm:$0xff]
    %v5187 = vld [vmem:[%s10 + $0x6b8] sm:$0xff]
    %v5188 = vld [vmem:[%s10 + $0x6c0] sm:$0xff]
    %v5189 = vld [vmem:[%s10 + $0x6c8] sm:$0xff]
    %v5190 = vld [vmem:[%s10 + $0x6d0] sm:$0xff]
    %v5191 = vld [vmem:[%s10 + $0x6d8] sm:$0xff]
    %v5192 = vld [vmem:[%s10 + $0x6e0] sm:$0xff]
    %v5193 = vld [vmem:[%s10 + $0x6e8] sm:$0xff]
    %v5194 = vld [vmem:[%s10 + $0x6f0] sm:$0xff]
    %v5195 = vld [vmem:[%s10 + $0x6f8] sm:$0xff]
    %v5196 = vld [vmem:[%s10 + $0x700] sm:$0xf]
    %v5197 = vld [vmem:[%s10 + $0x708] sm:$0xf]
    %v5198 = vld [vmem:[#allocation2] sm:$0xff]
    %v5199 = vld [vmem:[#allocation2 + $0x8] sm:$0xff]
    %v5200 = vld [vmem:[#allocation2 + $0x10] sm:$0xff]
    %v5201 = vld [vmem:[#allocation2 + $0x18] sm:$0xff]
    %v5202 = vld [vmem:[#allocation2 + $0x20] sm:$0xff]
    %v5203 = vld [vmem:[#allocation2 + $0x28] sm:$0xff]
    %v5204 = vld [vmem:[#allocation2 + $0x30] sm:$0xff]
    %v5205 = vld [vmem:[#allocation2 + $0x38] sm:$0xff]
    %5214 = vrot.lane.b32.xlu0 %v5198, 96
    %v5215 = vpop.permute.xlu0 %5214
    %5216 = vrot.lane.b32.xlu0 %v5199, 96
    %v5217 = vpop.permute.xlu0 %5216
    %5218 = vrot.lane.b32.xlu0 %v5200, 96
    %v5219 = vpop.permute.xlu0 %5218
    %5220 = vrot.lane.b32.xlu0 %v5201, 96
    %v5221 = vpop.permute.xlu0 %5220
    %5222 = vrot.lane.b32.xlu0 %v5202, 96
    %v5223 = vpop.permute.xlu0 %5222
    %5224 = vrot.lane.b32.xlu0 %v5203, 96
    %v5225 = vpop.permute.xlu0 %5224
    %5226 = vrot.lane.b32.xlu0 %v5204, 96
    %v5227 = vpop.permute.xlu0 %5226
    %5228 = vrot.lane.b32.xlu0 %v5205, 96
    %v5229 = vpop.permute.xlu0 %5228
    %v5230 = vsel %vm622, %v5215, %v5217
    %v5231 = vsel %vm622, %v5217, %v5219
    %v5232 = vsel %vm622, %v5219, %v5221
    %v5233 = vsel %vm622, %v5221, %v5223
    %v5234 = vsel %vm622, %v5223, %v5225
    %v5235 = vsel %vm622, %v5225, %v5227
    %v5236 = vsel %vm622, %v5227, %v5229
    %vm5244 = vcmask 31744
    %v5245 = vsel %vm5244, %v5229, 0
    %vm5247 = vcmask 1043456
    %v5249 = vsel %vm5247, %v5196, 0
    %v5252 = vsel %vm5247, %v5197, 0
    %5254 = vmatpush.msra.mxu0 %v5002
    %5255 = vmatpush.msra.mxu0 %v5000
    %5256 = vmatpush.msra.mxu0 %v4998
    %5257 = vmatpush.msra.mxu0 %v4996
    %5258 = vmatpush.msra.mxu0 %v4994
    %5259 = vmatpush.msra.mxu0 %v4992
    %5260 = vmatpush.msra.mxu0 %v4990
    %5261 = vmatpush.msra.mxu0 %v4988
    %5262 = vmatpush.msra.mxu0 %v4986
    %5263 = vmatpush.msra.mxu0 %v4984
    %5264 = vmatpush.msra.mxu0 %v4982
    %5265 = vmatpush.msra.mxu0 %v4980
    %5266 = vmatpush.msra.mxu0 %v4978
    %5267 = vmatpush.msra.mxu0 %v4976
    %5268 = vmatpush.msra.mxu0 %v4974
    %5269 = vmatpush.msra.mxu0 %v4972
    %5270 = vmatmul.f32.gmra.mxu0 %v5230
    %v5271 = vpop.f32.mrf.mxu0
    %v5272 = vadd.f32 0.0, %v5271
    %5273 = vdwg.mxu0
    %5274 = vmatpush.msra.mxu0 %v5034
    %5275 = vmatpush.msra.mxu0 %v5032
    %5276 = vmatpush.msra.mxu0 %v5030
    %5277 = vmatpush.msra.mxu0 %v5028
    %5278 = vmatpush.msra.mxu0 %v5026
    %5279 = vmatpush.msra.mxu0 %v5024
    %5280 = vmatpush.msra.mxu0 %v5022
    %5281 = vmatpush.msra.mxu0 %v5020
    %5282 = vmatpush.msra.mxu0 %v5018
    %5283 = vmatpush.msra.mxu0 %v5016
    %5284 = vmatpush.msra.mxu0 %v5014
    %5285 = vmatpush.msra.mxu0 %v5012
    %5286 = vmatpush.msra.mxu0 %v5010
    %5287 = vmatpush.msra.mxu0 %v5008
    %5288 = vmatpush.msra.mxu0 %v5006
    %5289 = vmatpush.msra.mxu0 %v5004
    %5290 = vmatmul.f32.gmra.mxu0 %v5231
    %v5291 = vpop.f32.mrf.mxu0
    %v5292 = vadd.f32 %v5272, %v5291
    %5293 = vdwg.mxu0
    %5294 = vmatpush.msra.mxu0 %v5066
    %5295 = vmatpush.msra.mxu0 %v5064
    %5296 = vmatpush.msra.mxu0 %v5062
    %5297 = vmatpush.msra.mxu0 %v5060
    %5298 = vmatpush.msra.mxu0 %v5058
    %5299 = vmatpush.msra.mxu0 %v5056
    %5300 = vmatpush.msra.mxu0 %v5054
    %5301 = vmatpush.msra.mxu0 %v5052
    %5302 = vmatpush.msra.mxu0 %v5050
    %5303 = vmatpush.msra.mxu0 %v5048
    %5304 = vmatpush.msra.mxu0 %v5046
    %5305 = vmatpush.msra.mxu0 %v5044
    %5306 = vmatpush.msra.mxu0 %v5042
    %5307 = vmatpush.msra.mxu0 %v5040
    %5308 = vmatpush.msra.mxu0 %v5038
    %5309 = vmatpush.msra.mxu0 %v5036
    %5310 = vmatmul.f32.gmra.mxu0 %v5232
    %v5311 = vpop.f32.mrf.mxu0
    %v5312 = vadd.f32 %v5292, %v5311
    %5313 = vdwg.mxu0
    %5314 = vmatpush.msra.mxu0 %v5098
    %5315 = vmatpush.msra.mxu0 %v5096
    %5316 = vmatpush.msra.mxu0 %v5094
    %5317 = vmatpush.msra.mxu0 %v5092
    %5318 = vmatpush.msra.mxu0 %v5090
    %5319 = vmatpush.msra.mxu0 %v5088
    %5320 = vmatpush.msra.mxu0 %v5086
    %5321 = vmatpush.msra.mxu0 %v5084
    %5322 = vmatpush.msra.mxu0 %v5082
    %5323 = vmatpush.msra.mxu0 %v5080
    %5324 = vmatpush.msra.mxu0 %v5078
    %5325 = vmatpush.msra.mxu0 %v5076
    %5326 = vmatpush.msra.mxu0 %v5074
    %5327 = vmatpush.msra.mxu0 %v5072
    %5328 = vmatpush.msra.mxu0 %v5070
    %5329 = vmatpush.msra.mxu0 %v5068
    %5330 = vmatmul.f32.gmra.mxu0 %v5233
    %v5331 = vpop.f32.mrf.mxu0
    %v5332 = vadd.f32 %v5312, %v5331
    %5333 = vdwg.mxu0
    %5334 = vmatpush.msra.mxu0 %v5130
    %5335 = vmatpush.msra.mxu0 %v5128
    %5336 = vmatpush.msra.mxu0 %v5126
    %5337 = vmatpush.msra.mxu0 %v5124
    %5338 = vmatpush.msra.mxu0 %v5122
    %5339 = vmatpush.msra.mxu0 %v5120
    %5340 = vmatpush.msra.mxu0 %v5118
    %5341 = vmatpush.msra.mxu0 %v5116
    %5342 = vmatpush.msra.mxu0 %v5114
    %5343 = vmatpush.msra.mxu0 %v5112
    %5344 = vmatpush.msra.mxu0 %v5110
    %5345 = vmatpush.msra.mxu0 %v5108
    %5346 = vmatpush.msra.mxu0 %v5106
    %5347 = vmatpush.msra.mxu0 %v5104
    %5348 = vmatpush.msra.mxu0 %v5102
    %5349 = vmatpush.msra.mxu0 %v5100
    %5350 = vmatmul.f32.gmra.mxu0 %v5234
    %v5351 = vpop.f32.mrf.mxu0
    %v5352 = vadd.f32 %v5332, %v5351
    %5353 = vdwg.mxu0
    %5354 = vmatpush.msra.mxu0 %v5162
    %5355 = vmatpush.msra.mxu0 %v5160
    %5356 = vmatpush.msra.mxu0 %v5158
    %5357 = vmatpush.msra.mxu0 %v5156
    %5358 = vmatpush.msra.mxu0 %v5154
    %5359 = vmatpush.msra.mxu0 %v5152
    %5360 = vmatpush.msra.mxu0 %v5150
    %5361 = vmatpush.msra.mxu0 %v5148
    %5362 = vmatpush.msra.mxu0 %v5146
    %5363 = vmatpush.msra.mxu0 %v5144
    %5364 = vmatpush.msra.mxu0 %v5142
    %5365 = vmatpush.msra.mxu0 %v5140
    %5366 = vmatpush.msra.mxu0 %v5138
    %5367 = vmatpush.msra.mxu0 %v5136
    %5368 = vmatpush.msra.mxu0 %v5134
    %5369 = vmatpush.msra.mxu0 %v5132
    %5370 = vmatmul.f32.gmra.mxu0 %v5235
    %v5371 = vpop.f32.mrf.mxu0
    %v5372 = vadd.f32 %v5352, %v5371
    %5373 = vdwg.mxu0
    %5374 = vmatpush.msra.mxu0 %v5194
    %5375 = vmatpush.msra.mxu0 %v5192
    %5376 = vmatpush.msra.mxu0 %v5190
    %5377 = vmatpush.msra.mxu0 %v5188
    %5378 = vmatpush.msra.mxu0 %v5186
    %5379 = vmatpush.msra.mxu0 %v5184
    %5380 = vmatpush.msra.mxu0 %v5182
    %5381 = vmatpush.msra.mxu0 %v5180
    %5382 = vmatpush.msra.mxu0 %v5178
    %5383 = vmatpush.msra.mxu0 %v5176
    %5384 = vmatpush.msra.mxu0 %v5174
    %5385 = vmatpush.msra.mxu0 %v5172
    %5386 = vmatpush.msra.mxu0 %v5170
    %5387 = vmatpush.msra.mxu0 %v5168
    %5388 = vmatpush.msra.mxu0 %v5166
    %5389 = vmatpush.msra.mxu0 %v5164
    %5390 = vmatmul.f32.gmra.mxu0 %v5236
    %v5391 = vpop.f32.mrf.mxu0
    %v5392 = vadd.f32 %v5372, %v5391
    %5393 = vdwg.mxu0
    %5394 = vmatpush.msra.mxu0 0.0
    %5395 = vmatpush.msra.mxu0 0.0
    %5396 = vmatpush.msra.mxu0 0.0
    %5397 = vmatpush.msra.mxu0 0.0
    %5398 = vmatpush.msra.mxu0 0.0
    %5399 = vmatpush.msra.mxu0 0.0
    %5400 = vmatpush.msra.mxu0 0.0
    %5401 = vmatpush.msra.mxu0 0.0
    %5402 = vmatpush.msra.mxu0 0.0
    %5403 = vmatpush.msra.mxu0 0.0
    %5404 = vmatpush.msra.mxu0 0.0
    %5405 = vmatpush.msra.mxu0 0.0
    %5406 = vmatpush.msra.mxu0 0.0
    %5407 = vmatpush.msra.mxu0 0.0
    %5408 = vmatpush.msra.mxu0 0.0
    %5409 = vmatpush.msra.mxu0 %v5249
    %5410 = vmatmul.f32.gmra.mxu0 %v5245
    %v5411 = vpop.f32.mrf.mxu0
    %v5412 = vadd.f32 %v5392, %v5411
    %5413 = vdwg.mxu0
    %5414 = vmatpush.msra.mxu0 %v5003
    %5415 = vmatpush.msra.mxu0 %v5001
    %5416 = vmatpush.msra.mxu0 %v4999
    %5417 = vmatpush.msra.mxu0 %v4997
    %5418 = vmatpush.msra.mxu0 %v4995
    %5419 = vmatpush.msra.mxu0 %v4993
    %5420 = vmatpush.msra.mxu0 %v4991
    %5421 = vmatpush.msra.mxu0 %v4989
    %5422 = vmatpush.msra.mxu0 %v4987
    %5423 = vmatpush.msra.mxu0 %v4985
    %5424 = vmatpush.msra.mxu0 %v4983
    %5425 = vmatpush.msra.mxu0 %v4981
    %5426 = vmatpush.msra.mxu0 %v4979
    %5427 = vmatpush.msra.mxu0 %v4977
    %5428 = vmatpush.msra.mxu0 %v4975
    %5429 = vmatpush.msra.mxu0 %v4973
    %5430 = vmatmul.f32.gmra.mxu0 %v5230
    %v5431 = vpop.f32.mrf.mxu0
    %v5432 = vadd.f32 0.0, %v5431
    %5433 = vdwg.mxu0
    %5434 = vmatpush.msra.mxu0 %v5035
    %5435 = vmatpush.msra.mxu0 %v5033
    %5436 = vmatpush.msra.mxu0 %v5031
    %5437 = vmatpush.msra.mxu0 %v5029
    %5438 = vmatpush.msra.mxu0 %v5027
    %5439 = vmatpush.msra.mxu0 %v5025
    %5440 = vmatpush.msra.mxu0 %v5023
    %5441 = vmatpush.msra.mxu0 %v5021
    %5442 = vmatpush.msra.mxu0 %v5019
    %5443 = vmatpush.msra.mxu0 %v5017
    %5444 = vmatpush.msra.mxu0 %v5015
    %5445 = vmatpush.msra.mxu0 %v5013
    %5446 = vmatpush.msra.mxu0 %v5011
    %5447 = vmatpush.msra.mxu0 %v5009
    %5448 = vmatpush.msra.mxu0 %v5007
    %5449 = vmatpush.msra.mxu0 %v5005
    %5450 = vmatmul.f32.gmra.mxu0 %v5231
    %v5451 = vpop.f32.mrf.mxu0
    %v5452 = vadd.f32 %v5432, %v5451
    %5453 = vdwg.mxu0
    %5454 = vmatpush.msra.mxu0 %v5067
    %5455 = vmatpush.msra.mxu0 %v5065
    %5456 = vmatpush.msra.mxu0 %v5063
    %5457 = vmatpush.msra.mxu0 %v5061
    %5458 = vmatpush.msra.mxu0 %v5059
    %5459 = vmatpush.msra.mxu0 %v5057
    %5460 = vmatpush.msra.mxu0 %v5055
    %5461 = vmatpush.msra.mxu0 %v5053
    %5462 = vmatpush.msra.mxu0 %v5051
    %5463 = vmatpush.msra.mxu0 %v5049
    %5464 = vmatpush.msra.mxu0 %v5047
    %5465 = vmatpush.msra.mxu0 %v5045
    %5466 = vmatpush.msra.mxu0 %v5043
    %5467 = vmatpush.msra.mxu0 %v5041
    %5468 = vmatpush.msra.mxu0 %v5039
    %5469 = vmatpush.msra.mxu0 %v5037
    %5470 = vmatmul.f32.gmra.mxu0 %v5232
    %v5471 = vpop.f32.mrf.mxu0
    %v5472 = vadd.f32 %v5452, %v5471
    %5473 = vdwg.mxu0
    %5474 = vmatpush.msra.mxu0 %v5099
    %5475 = vmatpush.msra.mxu0 %v5097
    %5476 = vmatpush.msra.mxu0 %v5095
    %5477 = vmatpush.msra.mxu0 %v5093
    %5478 = vmatpush.msra.mxu0 %v5091
    %5479 = vmatpush.msra.mxu0 %v5089
    %5480 = vmatpush.msra.mxu0 %v5087
    %5481 = vmatpush.msra.mxu0 %v5085
    %5482 = vmatpush.msra.mxu0 %v5083
    %5483 = vmatpush.msra.mxu0 %v5081
    %5484 = vmatpush.msra.mxu0 %v5079
    %5485 = vmatpush.msra.mxu0 %v5077
    %5486 = vmatpush.msra.mxu0 %v5075
    %5487 = vmatpush.msra.mxu0 %v5073
    %5488 = vmatpush.msra.mxu0 %v5071
    %5489 = vmatpush.msra.mxu0 %v5069
    %5490 = vmatmul.f32.gmra.mxu0 %v5233
    %v5491 = vpop.f32.mrf.mxu0
    %v5492 = vadd.f32 %v5472, %v5491
    %5493 = vdwg.mxu0
    %5494 = vmatpush.msra.mxu0 %v5131
    %5495 = vmatpush.msra.mxu0 %v5129
    %5496 = vmatpush.msra.mxu0 %v5127
    %5497 = vmatpush.msra.mxu0 %v5125
    %5498 = vmatpush.msra.mxu0 %v5123
    %5499 = vmatpush.msra.mxu0 %v5121
    %5500 = vmatpush.msra.mxu0 %v5119
    %5501 = vmatpush.msra.mxu0 %v5117
    %5502 = vmatpush.msra.mxu0 %v5115
    %5503 = vmatpush.msra.mxu0 %v5113
    %5504 = vmatpush.msra.mxu0 %v5111
    %5505 = vmatpush.msra.mxu0 %v5109
    %5506 = vmatpush.msra.mxu0 %v5107
    %5507 = vmatpush.msra.mxu0 %v5105
    %5508 = vmatpush.msra.mxu0 %v5103
    %5509 = vmatpush.msra.mxu0 %v5101
    %5510 = vmatmul.f32.gmra.mxu0 %v5234
    %v5511 = vpop.f32.mrf.mxu0
    %v5512 = vadd.f32 %v5492, %v5511
    %5513 = vdwg.mxu0
    %5514 = vmatpush.msra.mxu0 %v5163
    %5515 = vmatpush.msra.mxu0 %v5161
    %5516 = vmatpush.msra.mxu0 %v5159
    %5517 = vmatpush.msra.mxu0 %v5157
    %5518 = vmatpush.msra.mxu0 %v5155
    %5519 = vmatpush.msra.mxu0 %v5153
    %5520 = vmatpush.msra.mxu0 %v5151
    %5521 = vmatpush.msra.mxu0 %v5149
    %5522 = vmatpush.msra.mxu0 %v5147
    %5523 = vmatpush.msra.mxu0 %v5145
    %5524 = vmatpush.msra.mxu0 %v5143
    %5525 = vmatpush.msra.mxu0 %v5141
    %5526 = vmatpush.msra.mxu0 %v5139
    %5527 = vmatpush.msra.mxu0 %v5137
    %5528 = vmatpush.msra.mxu0 %v5135
    %5529 = vmatpush.msra.mxu0 %v5133
    %5530 = vmatmul.f32.gmra.mxu0 %v5235
    %v5531 = vpop.f32.mrf.mxu0
    %v5532 = vadd.f32 %v5512, %v5531
    %5533 = vdwg.mxu0
    %5534 = vmatpush.msra.mxu0 %v5195
    %5535 = vmatpush.msra.mxu0 %v5193
    %5536 = vmatpush.msra.mxu0 %v5191
    %5537 = vmatpush.msra.mxu0 %v5189
    %5538 = vmatpush.msra.mxu0 %v5187
    %5539 = vmatpush.msra.mxu0 %v5185
    %5540 = vmatpush.msra.mxu0 %v5183
    %5541 = vmatpush.msra.mxu0 %v5181
    %5542 = vmatpush.msra.mxu0 %v5179
    %5543 = vmatpush.msra.mxu0 %v5177
    %5544 = vmatpush.msra.mxu0 %v5175
    %5545 = vmatpush.msra.mxu0 %v5173
    %5546 = vmatpush.msra.mxu0 %v5171
    %5547 = vmatpush.msra.mxu0 %v5169
    %5548 = vmatpush.msra.mxu0 %v5167
    %5549 = vmatpush.msra.mxu0 %v5165
    %5550 = vmatmul.f32.gmra.mxu0 %v5236
    %v5551 = vpop.f32.mrf.mxu0
    %v5552 = vadd.f32 %v5532, %v5551
    %5553 = vdwg.mxu0
    %5554 = vmatpush.msra.mxu0 0.0
    %5555 = vmatpush.msra.mxu0 0.0
    %5556 = vmatpush.msra.mxu0 0.0
    %5557 = vmatpush.msra.mxu0 0.0
    %5558 = vmatpush.msra.mxu0 0.0
    %5559 = vmatpush.msra.mxu0 0.0
    %5560 = vmatpush.msra.mxu0 0.0
    %5561 = vmatpush.msra.mxu0 0.0
    %5562 = vmatpush.msra.mxu0 0.0
    %5563 = vmatpush.msra.mxu0 0.0
    %5564 = vmatpush.msra.mxu0 0.0
    %5565 = vmatpush.msra.mxu0 0.0
    %5566 = vmatpush.msra.mxu0 0.0
    %5567 = vmatpush.msra.mxu0 0.0
    %5568 = vmatpush.msra.mxu0 0.0
    %5569 = vmatpush.msra.mxu0 %v5252
    %5570 = vmatmul.f32.gmra.mxu0 %v5245
    %v5571 = vpop.f32.mrf.mxu0
    %v5572 = vadd.f32 %v5552, %v5571
    %5573 = vdwg.mxu0
    %5576 = vrot.lane.b32.xlu0 %v5412, 32
    %v5577 = vpop.permute.xlu0 %5576
    %5578 = vrot.lane.b32.xlu0 %v5572, 32
    %v5579 = vpop.permute.xlu0 %5578
    %v5580 = vsel %vm48, %v5577, %v5579
    %5584 = vst.msk [vmem:[#allocation2] sm:$0xff] %vm1208, %v5577
    %5585 = vst [vmem:[#allocation2 + $0x8] sm:$0xff] %v5580
    %5586 = vst.msk [vmem:[#allocation2 + $0x10] sm:$0xff] %vm48, %v5579
    %v5587 = vld [vmem:[#allocation2 + $0x38] sm:$0xff]
    %v5588 = vld [vmem:[#allocation2 + $0x40] sm:$0xff]
    %v5589 = vld [vmem:[#allocation2 + $0x48] sm:$0xff]
    %v5590 = vld [vmem:[#allocation2 + $0x50] sm:$0xff]
    %v5591 = vld [vmem:[#allocation2 + $0x58] sm:$0xff]
    %v5592 = vld [vmem:[#allocation2 + $0x60] sm:$0xff]
    %v5593 = vld [vmem:[#allocation2 + $0x68] sm:$0xff]
    %v5594 = vld [vmem:[#allocation2 + $0x70] sm:$0xff]
    %5603 = vrot.lane.b32.xlu0 %v5587, 92
    %v5604 = vpop.permute.xlu0 %5603
    %5605 = vrot.lane.b32.xlu0 %v5588, 92
    %v5606 = vpop.permute.xlu0 %5605
    %5607 = vrot.lane.b32.xlu0 %v5589, 92
    %v5608 = vpop.permute.xlu0 %5607
    %5609 = vrot.lane.b32.xlu0 %v5590, 92
    %v5610 = vpop.permute.xlu0 %5609
    %5611 = vrot.lane.b32.xlu0 %v5591, 92
    %v5612 = vpop.permute.xlu0 %5611
    %5613 = vrot.lane.b32.xlu0 %v5592, 92
    %v5614 = vpop.permute.xlu0 %5613
    %5615 = vrot.lane.b32.xlu0 %v5593, 92
    %v5616 = vpop.permute.xlu0 %5615
    %5617 = vrot.lane.b32.xlu0 %v5594, 92
    %v5618 = vpop.permute.xlu0 %5617
    %vm5619 = vcmask 752640
    %v5620 = vsel %vm5619, %v5604, %v5606
    %v5621 = vsel %vm5619, %v5606, %v5608
    %v5622 = vsel %vm5619, %v5608, %v5610
    %v5623 = vsel %vm5619, %v5610, %v5612
    %v5624 = vsel %vm5619, %v5612, %v5614
    %v5625 = vsel %vm5619, %v5614, %v5616
    %v5626 = vsel %vm5619, %v5616, %v5618
    %v5634 = vsel %vm5244, %v5618, 0
    %5636 = vmatpush.msra.mxu0 %v5002
    %5637 = vmatpush.msra.mxu0 %v5000
    %5638 = vmatpush.msra.mxu0 %v4998
    %5639 = vmatpush.msra.mxu0 %v4996
    %5640 = vmatpush.msra.mxu0 %v4994
    %5641 = vmatpush.msra.mxu0 %v4992
    %5642 = vmatpush.msra.mxu0 %v4990
    %5643 = vmatpush.msra.mxu0 %v4988
    %5644 = vmatpush.msra.mxu0 %v4986
    %5645 = vmatpush.msra.mxu0 %v4984
    %5646 = vmatpush.msra.mxu0 %v4982
    %5647 = vmatpush.msra.mxu0 %v4980
    %5648 = vmatpush.msra.mxu0 %v4978
    %5649 = vmatpush.msra.mxu0 %v4976
    %5650 = vmatpush.msra.mxu0 %v4974
    %5651 = vmatpush.msra.mxu0 %v4972
    %5652 = vmatmul.f32.gmra.mxu0 %v5620
    %v5653 = vpop.f32.mrf.mxu0
    %v5654 = vadd.f32 0.0, %v5653
    %5655 = vdwg.mxu0
    %5656 = vmatpush.msra.mxu0 %v5034
    %5657 = vmatpush.msra.mxu0 %v5032
    %5658 = vmatpush.msra.mxu0 %v5030
    %5659 = vmatpush.msra.mxu0 %v5028
    %5660 = vmatpush.msra.mxu0 %v5026
    %5661 = vmatpush.msra.mxu0 %v5024
    %5662 = vmatpush.msra.mxu0 %v5022
    %5663 = vmatpush.msra.mxu0 %v5020
    %5664 = vmatpush.msra.mxu0 %v5018
    %5665 = vmatpush.msra.mxu0 %v5016
    %5666 = vmatpush.msra.mxu0 %v5014
    %5667 = vmatpush.msra.mxu0 %v5012
    %5668 = vmatpush.msra.mxu0 %v5010
    %5669 = vmatpush.msra.mxu0 %v5008
    %5670 = vmatpush.msra.mxu0 %v5006
    %5671 = vmatpush.msra.mxu0 %v5004
    %5672 = vmatmul.f32.gmra.mxu0 %v5621
    %v5673 = vpop.f32.mrf.mxu0
    %v5674 = vadd.f32 %v5654, %v5673
    %5675 = vdwg.mxu0
    %5676 = vmatpush.msra.mxu0 %v5066
    %5677 = vmatpush.msra.mxu0 %v5064
    %5678 = vmatpush.msra.mxu0 %v5062
    %5679 = vmatpush.msra.mxu0 %v5060
    %5680 = vmatpush.msra.mxu0 %v5058
    %5681 = vmatpush.msra.mxu0 %v5056
    %5682 = vmatpush.msra.mxu0 %v5054
    %5683 = vmatpush.msra.mxu0 %v5052
    %5684 = vmatpush.msra.mxu0 %v5050
    %5685 = vmatpush.msra.mxu0 %v5048
    %5686 = vmatpush.msra.mxu0 %v5046
    %5687 = vmatpush.msra.mxu0 %v5044
    %5688 = vmatpush.msra.mxu0 %v5042
    %5689 = vmatpush.msra.mxu0 %v5040
    %5690 = vmatpush.msra.mxu0 %v5038
    %5691 = vmatpush.msra.mxu0 %v5036
    %5692 = vmatmul.f32.gmra.mxu0 %v5622
    %v5693 = vpop.f32.mrf.mxu0
    %v5694 = vadd.f32 %v5674, %v5693
    %5695 = vdwg.mxu0
    %5696 = vmatpush.msra.mxu0 %v5098
    %5697 = vmatpush.msra.mxu0 %v5096
    %5698 = vmatpush.msra.mxu0 %v5094
    %5699 = vmatpush.msra.mxu0 %v5092
    %5700 = vmatpush.msra.mxu0 %v5090
    %5701 = vmatpush.msra.mxu0 %v5088
    %5702 = vmatpush.msra.mxu0 %v5086
    %5703 = vmatpush.msra.mxu0 %v5084
    %5704 = vmatpush.msra.mxu0 %v5082
    %5705 = vmatpush.msra.mxu0 %v5080
    %5706 = vmatpush.msra.mxu0 %v5078
    %5707 = vmatpush.msra.mxu0 %v5076
    %5708 = vmatpush.msra.mxu0 %v5074
    %5709 = vmatpush.msra.mxu0 %v5072
    %5710 = vmatpush.msra.mxu0 %v5070
    %5711 = vmatpush.msra.mxu0 %v5068
    %5712 = vmatmul.f32.gmra.mxu0 %v5623
    %v5713 = vpop.f32.mrf.mxu0
    %v5714 = vadd.f32 %v5694, %v5713
    %5715 = vdwg.mxu0
    %5716 = vmatpush.msra.mxu0 %v5130
    %5717 = vmatpush.msra.mxu0 %v5128
    %5718 = vmatpush.msra.mxu0 %v5126
    %5719 = vmatpush.msra.mxu0 %v5124
    %5720 = vmatpush.msra.mxu0 %v5122
    %5721 = vmatpush.msra.mxu0 %v5120
    %5722 = vmatpush.msra.mxu0 %v5118
    %5723 = vmatpush.msra.mxu0 %v5116
    %5724 = vmatpush.msra.mxu0 %v5114
    %5725 = vmatpush.msra.mxu0 %v5112
    %5726 = vmatpush.msra.mxu0 %v5110
    %5727 = vmatpush.msra.mxu0 %v5108
    %5728 = vmatpush.msra.mxu0 %v5106
    %5729 = vmatpush.msra.mxu0 %v5104
    %5730 = vmatpush.msra.mxu0 %v5102
    %5731 = vmatpush.msra.mxu0 %v5100
    %5732 = vmatmul.f32.gmra.mxu0 %v5624
    %v5733 = vpop.f32.mrf.mxu0
    %v5734 = vadd.f32 %v5714, %v5733
    %5735 = vdwg.mxu0
    %5736 = vmatpush.msra.mxu0 %v5162
    %5737 = vmatpush.msra.mxu0 %v5160
    %5738 = vmatpush.msra.mxu0 %v5158
    %5739 = vmatpush.msra.mxu0 %v5156
    %5740 = vmatpush.msra.mxu0 %v5154
    %5741 = vmatpush.msra.mxu0 %v5152
    %5742 = vmatpush.msra.mxu0 %v5150
    %5743 = vmatpush.msra.mxu0 %v5148
    %5744 = vmatpush.msra.mxu0 %v5146
    %5745 = vmatpush.msra.mxu0 %v5144
    %5746 = vmatpush.msra.mxu0 %v5142
    %5747 = vmatpush.msra.mxu0 %v5140
    %5748 = vmatpush.msra.mxu0 %v5138
    %5749 = vmatpush.msra.mxu0 %v5136
    %5750 = vmatpush.msra.mxu0 %v5134
    %5751 = vmatpush.msra.mxu0 %v5132
    %5752 = vmatmul.f32.gmra.mxu0 %v5625
    %v5753 = vpop.f32.mrf.mxu0
    %v5754 = vadd.f32 %v5734, %v5753
    %5755 = vdwg.mxu0
    %5756 = vmatpush.msra.mxu0 %v5194
    %5757 = vmatpush.msra.mxu0 %v5192
    %5758 = vmatpush.msra.mxu0 %v5190
    %5759 = vmatpush.msra.mxu0 %v5188
    %5760 = vmatpush.msra.mxu0 %v5186
    %5761 = vmatpush.msra.mxu0 %v5184
    %5762 = vmatpush.msra.mxu0 %v5182
    %5763 = vmatpush.msra.mxu0 %v5180
    %5764 = vmatpush.msra.mxu0 %v5178
    %5765 = vmatpush.msra.mxu0 %v5176
    %5766 = vmatpush.msra.mxu0 %v5174
    %5767 = vmatpush.msra.mxu0 %v5172
    %5768 = vmatpush.msra.mxu0 %v5170
    %5769 = vmatpush.msra.mxu0 %v5168
    %5770 = vmatpush.msra.mxu0 %v5166
    %5771 = vmatpush.msra.mxu0 %v5164
    %5772 = vmatmul.f32.gmra.mxu0 %v5626
    %v5773 = vpop.f32.mrf.mxu0
    %v5774 = vadd.f32 %v5754, %v5773
    %5775 = vdwg.mxu0
    %5776 = vmatpush.msra.mxu0 0.0
    %5777 = vmatpush.msra.mxu0 0.0
    %5778 = vmatpush.msra.mxu0 0.0
    %5779 = vmatpush.msra.mxu0 0.0
    %5780 = vmatpush.msra.mxu0 0.0
    %5781 = vmatpush.msra.mxu0 0.0
    %5782 = vmatpush.msra.mxu0 0.0
    %5783 = vmatpush.msra.mxu0 0.0
    %5784 = vmatpush.msra.mxu0 0.0
    %5785 = vmatpush.msra.mxu0 0.0
    %5786 = vmatpush.msra.mxu0 0.0
    %5787 = vmatpush.msra.mxu0 0.0
    %5788 = vmatpush.msra.mxu0 0.0
    %5789 = vmatpush.msra.mxu0 0.0
    %5790 = vmatpush.msra.mxu0 0.0
    %5791 = vmatpush.msra.mxu0 %v5249
    %5792 = vmatmul.f32.gmra.mxu0 %v5634
    %v5793 = vpop.f32.mrf.mxu0
    %v5794 = vadd.f32 %v5774, %v5793
    %5795 = vdwg.mxu0
    %5796 = vmatpush.msra.mxu0 %v5003
    %5797 = vmatpush.msra.mxu0 %v5001
    %5798 = vmatpush.msra.mxu0 %v4999
    %5799 = vmatpush.msra.mxu0 %v4997
    %5800 = vmatpush.msra.mxu0 %v4995
    %5801 = vmatpush.msra.mxu0 %v4993
    %5802 = vmatpush.msra.mxu0 %v4991
    %5803 = vmatpush.msra.mxu0 %v4989
    %5804 = vmatpush.msra.mxu0 %v4987
    %5805 = vmatpush.msra.mxu0 %v4985
    %5806 = vmatpush.msra.mxu0 %v4983
    %5807 = vmatpush.msra.mxu0 %v4981
    %5808 = vmatpush.msra.mxu0 %v4979
    %5809 = vmatpush.msra.mxu0 %v4977
    %5810 = vmatpush.msra.mxu0 %v4975
    %5811 = vmatpush.msra.mxu0 %v4973
    %5812 = vmatmul.f32.gmra.mxu0 %v5620
    %v5813 = vpop.f32.mrf.mxu0
    %v5814 = vadd.f32 0.0, %v5813
    %5815 = vdwg.mxu0
    %5816 = vmatpush.msra.mxu0 %v5035
    %5817 = vmatpush.msra.mxu0 %v5033
    %5818 = vmatpush.msra.mxu0 %v5031
    %5819 = vmatpush.msra.mxu0 %v5029
    %5820 = vmatpush.msra.mxu0 %v5027
    %5821 = vmatpush.msra.mxu0 %v5025
    %5822 = vmatpush.msra.mxu0 %v5023
    %5823 = vmatpush.msra.mxu0 %v5021
    %5824 = vmatpush.msra.mxu0 %v5019
    %5825 = vmatpush.msra.mxu0 %v5017
    %5826 = vmatpush.msra.mxu0 %v5015
    %5827 = vmatpush.msra.mxu0 %v5013
    %5828 = vmatpush.msra.mxu0 %v5011
    %5829 = vmatpush.msra.mxu0 %v5009
    %5830 = vmatpush.msra.mxu0 %v5007
    %5831 = vmatpush.msra.mxu0 %v5005
    %5832 = vmatmul.f32.gmra.mxu0 %v5621
    %v5833 = vpop.f32.mrf.mxu0
    %v5834 = vadd.f32 %v5814, %v5833
    %5835 = vdwg.mxu0
    %5836 = vmatpush.msra.mxu0 %v5067
    %5837 = vmatpush.msra.mxu0 %v5065
    %5838 = vmatpush.msra.mxu0 %v5063
    %5839 = vmatpush.msra.mxu0 %v5061
    %5840 = vmatpush.msra.mxu0 %v5059
    %5841 = vmatpush.msra.mxu0 %v5057
    %5842 = vmatpush.msra.mxu0 %v5055
    %5843 = vmatpush.msra.mxu0 %v5053
    %5844 = vmatpush.msra.mxu0 %v5051
    %5845 = vmatpush.msra.mxu0 %v5049
    %5846 = vmatpush.msra.mxu0 %v5047
    %5847 = vmatpush.msra.mxu0 %v5045
    %5848 = vmatpush.msra.mxu0 %v5043
    %5849 = vmatpush.msra.mxu0 %v5041
    %5850 = vmatpush.msra.mxu0 %v5039
    %5851 = vmatpush.msra.mxu0 %v5037
    %5852 = vmatmul.f32.gmra.mxu0 %v5622
    %v5853 = vpop.f32.mrf.mxu0
    %v5854 = vadd.f32 %v5834, %v5853
    %5855 = vdwg.mxu0
    %5856 = vmatpush.msra.mxu0 %v5099
    %5857 = vmatpush.msra.mxu0 %v5097
    %5858 = vmatpush.msra.mxu0 %v5095
    %5859 = vmatpush.msra.mxu0 %v5093
    %5860 = vmatpush.msra.mxu0 %v5091
    %5861 = vmatpush.msra.mxu0 %v5089
    %5862 = vmatpush.msra.mxu0 %v5087
    %5863 = vmatpush.msra.mxu0 %v5085
    %5864 = vmatpush.msra.mxu0 %v5083
    %5865 = vmatpush.msra.mxu0 %v5081
    %5866 = vmatpush.msra.mxu0 %v5079
    %5867 = vmatpush.msra.mxu0 %v5077
    %5868 = vmatpush.msra.mxu0 %v5075
    %5869 = vmatpush.msra.mxu0 %v5073
    %5870 = vmatpush.msra.mxu0 %v5071
    %5871 = vmatpush.msra.mxu0 %v5069
    %5872 = vmatmul.f32.gmra.mxu0 %v5623
    %v5873 = vpop.f32.mrf.mxu0
    %v5874 = vadd.f32 %v5854, %v5873
    %5875 = vdwg.mxu0
    %5876 = vmatpush.msra.mxu0 %v5131
    %5877 = vmatpush.msra.mxu0 %v5129
    %5878 = vmatpush.msra.mxu0 %v5127
    %5879 = vmatpush.msra.mxu0 %v5125
    %5880 = vmatpush.msra.mxu0 %v5123
    %5881 = vmatpush.msra.mxu0 %v5121
    %5882 = vmatpush.msra.mxu0 %v5119
    %5883 = vmatpush.msra.mxu0 %v5117
    %5884 = vmatpush.msra.mxu0 %v5115
    %5885 = vmatpush.msra.mxu0 %v5113
    %5886 = vmatpush.msra.mxu0 %v5111
    %5887 = vmatpush.msra.mxu0 %v5109
    %5888 = vmatpush.msra.mxu0 %v5107
    %5889 = vmatpush.msra.mxu0 %v5105
    %5890 = vmatpush.msra.mxu0 %v5103
    %5891 = vmatpush.msra.mxu0 %v5101
    %5892 = vmatmul.f32.gmra.mxu0 %v5624
    %v5893 = vpop.f32.mrf.mxu0
    %v5894 = vadd.f32 %v5874, %v5893
    %5895 = vdwg.mxu0
    %5896 = vmatpush.msra.mxu0 %v5163
    %5897 = vmatpush.msra.mxu0 %v5161
    %5898 = vmatpush.msra.mxu0 %v5159
    %5899 = vmatpush.msra.mxu0 %v5157
    %5900 = vmatpush.msra.mxu0 %v5155
    %5901 = vmatpush.msra.mxu0 %v5153
    %5902 = vmatpush.msra.mxu0 %v5151
    %5903 = vmatpush.msra.mxu0 %v5149
    %5904 = vmatpush.msra.mxu0 %v5147
    %5905 = vmatpush.msra.mxu0 %v5145
    %5906 = vmatpush.msra.mxu0 %v5143
    %5907 = vmatpush.msra.mxu0 %v5141
    %5908 = vmatpush.msra.mxu0 %v5139
    %5909 = vmatpush.msra.mxu0 %v5137
    %5910 = vmatpush.msra.mxu0 %v5135
    %5911 = vmatpush.msra.mxu0 %v5133
    %5912 = vmatmul.f32.gmra.mxu0 %v5625
    %v5913 = vpop.f32.mrf.mxu0
    %v5914 = vadd.f32 %v5894, %v5913
    %5915 = vdwg.mxu0
    %5916 = vmatpush.msra.mxu0 %v5195
    %5917 = vmatpush.msra.mxu0 %v5193
    %5918 = vmatpush.msra.mxu0 %v5191
    %5919 = vmatpush.msra.mxu0 %v5189
    %5920 = vmatpush.msra.mxu0 %v5187
    %5921 = vmatpush.msra.mxu0 %v5185
    %5922 = vmatpush.msra.mxu0 %v5183
    %5923 = vmatpush.msra.mxu0 %v5181
    %5924 = vmatpush.msra.mxu0 %v5179
    %5925 = vmatpush.msra.mxu0 %v5177
    %5926 = vmatpush.msra.mxu0 %v5175
    %5927 = vmatpush.msra.mxu0 %v5173
    %5928 = vmatpush.msra.mxu0 %v5171
    %5929 = vmatpush.msra.mxu0 %v5169
    %5930 = vmatpush.msra.mxu0 %v5167
    %5931 = vmatpush.msra.mxu0 %v5165
    %5932 = vmatmul.f32.gmra.mxu0 %v5626
    %v5933 = vpop.f32.mrf.mxu0
    %v5934 = vadd.f32 %v5914, %v5933
    %5935 = vdwg.mxu0
    %5936 = vmatpush.msra.mxu0 0.0
    %5937 = vmatpush.msra.mxu0 0.0
    %5938 = vmatpush.msra.mxu0 0.0
    %5939 = vmatpush.msra.mxu0 0.0
    %5940 = vmatpush.msra.mxu0 0.0
    %5941 = vmatpush.msra.mxu0 0.0
    %5942 = vmatpush.msra.mxu0 0.0
    %5943 = vmatpush.msra.mxu0 0.0
    %5944 = vmatpush.msra.mxu0 0.0
    %5945 = vmatpush.msra.mxu0 0.0
    %5946 = vmatpush.msra.mxu0 0.0
    %5947 = vmatpush.msra.mxu0 0.0
    %5948 = vmatpush.msra.mxu0 0.0
    %5949 = vmatpush.msra.mxu0 0.0
    %5950 = vmatpush.msra.mxu0 0.0
    %5951 = vmatpush.msra.mxu0 %v5252
    %5952 = vmatmul.f32.gmra.mxu0 %v5634
    %v5953 = vpop.f32.mrf.mxu0
    %v5954 = vadd.f32 %v5934, %v5953
    %5955 = vdwg.mxu0
    %5958 = vrot.lane.b32.xlu0 %v5794, 32
    %v5959 = vpop.permute.xlu0 %5958
    %5960 = vrot.lane.b32.xlu0 %v5954, 32
    %v5961 = vpop.permute.xlu0 %5960
    %v5962 = vsel %vm48, %v5959, %v5961
    %5966 = vst.msk [vmem:[#allocation2 + $0x10] sm:$0xff] %vm1208, %v5959
    %5967 = vst [vmem:[#allocation2 + $0x18] sm:$0xff] %v5962
    %5968 = vst.msk [vmem:[#allocation2 + $0x20] sm:$0xff] %vm48, %v5961
    %v5969 = vld [vmem:[#allocation2] sm:$0xff]
    %v5970 = vld [vmem:[#allocation2 + $0x8] sm:$0xff]
    %v5971 = vld [vmem:[#allocation2 + $0x10] sm:$0xff]
    %v5972 = vld [vmem:[#allocation2 + $0x18] sm:$0xff]
    %v5973 = vld [vmem:[#allocation2 + $0x20] sm:$0xff]
    %v5974 = vld [vmem:[%s5] sm:$0xff]
    %s5975 = scalar_lea.vmem %s5, 8
    %v5976 = vld [vmem:[%s5975] sm:$0xff]
    %5982 = vrot.lane.b32.xlu0 %v5969, 112
    %v5983 = vpop.permute.xlu0 %5982
    %5984 = vrot.lane.b32.xlu0 %v5970, 112
    %v5985 = vpop.permute.xlu0 %5984
    %5986 = vrot.lane.b32.xlu0 %v5971, 112
    %v5987 = vpop.permute.xlu0 %5986
    %5988 = vrot.lane.b32.xlu0 %v5972, 112
    %v5989 = vpop.permute.xlu0 %5988
    %5990 = vrot.lane.b32.xlu0 %v5973, 112
    %v5991 = vpop.permute.xlu0 %5990
    %vm5992 = vcmask 916480
    %v5993 = vsel %vm5992, %v5983, %v5985
    %v5994 = vsel %vm5992, %v5985, %v5987
    %v5995 = vsel %vm5992, %v5987, %v5989
    %v5996 = vsel %vm5992, %v5989, %v5991
    %v6002 = vsel %vm1317, %v5976, 0
    %6004 = vmatpush.msra.mxu0 0.0
    %6005 = vmatpush.msra.mxu0 0.0
    %6006 = vmatpush.msra.mxu0 0.0
    %6007 = vmatpush.msra.mxu0 0.0
    %6008 = vmatpush.msra.mxu0 0.0
    %6009 = vmatpush.msra.mxu0 0.0
    %6010 = vmatpush.msra.mxu0 0.0
    %6011 = vmatpush.msra.mxu0 0.0
    %6012 = vmatpush.msra.mxu0 0.0
    %6013 = vmatpush.msra.mxu0 0.0
    %6014 = vmatpush.msra.mxu0 0.0
    %6015 = vmatpush.msra.mxu0 0.0
    %6016 = vmatpush.msra.mxu0 0.0
    %6017 = vmatpush.msra.mxu0 0.0
    %6018 = vmatpush.msra.mxu0 0.0
    %6019 = vmatpush.msra.mxu0 %v5993
    %6020 = vmatmul.f32.gmra.mxu0 %v6002
    %v6021 = vpop.f32.mrf.mxu0
    %v6022 = vadd.f32 0.0, %v6021
    %6023 = vdwg.mxu0
    %6024 = vmatpush.msra.mxu0 0.0
    %6025 = vmatpush.msra.mxu0 0.0
    %6026 = vmatpush.msra.mxu0 0.0
    %6027 = vmatpush.msra.mxu0 0.0
    %6028 = vmatpush.msra.mxu0 0.0
    %6029 = vmatpush.msra.mxu0 0.0
    %6030 = vmatpush.msra.mxu0 0.0
    %6031 = vmatpush.msra.mxu0 0.0
    %6032 = vmatpush.msra.mxu0 0.0
    %6033 = vmatpush.msra.mxu0 0.0
    %6034 = vmatpush.msra.mxu0 0.0
    %6035 = vmatpush.msra.mxu0 0.0
    %6036 = vmatpush.msra.mxu0 0.0
    %6037 = vmatpush.msra.mxu0 0.0
    %6038 = vmatpush.msra.mxu0 0.0
    %6039 = vmatpush.msra.mxu0 %v5994
    %6040 = vmatmul.f32.gmra.mxu0 %v6002
    %v6041 = vpop.f32.mrf.mxu0
    %v6042 = vadd.f32 0.0, %v6041
    %6043 = vdwg.mxu0
    %6044 = vmatpush.msra.mxu0 0.0
    %6045 = vmatpush.msra.mxu0 0.0
    %6046 = vmatpush.msra.mxu0 0.0
    %6047 = vmatpush.msra.mxu0 0.0
    %6048 = vmatpush.msra.mxu0 0.0
    %6049 = vmatpush.msra.mxu0 0.0
    %6050 = vmatpush.msra.mxu0 0.0
    %6051 = vmatpush.msra.mxu0 0.0
    %6052 = vmatpush.msra.mxu0 0.0
    %6053 = vmatpush.msra.mxu0 0.0
    %6054 = vmatpush.msra.mxu0 0.0
    %6055 = vmatpush.msra.mxu0 0.0
    %6056 = vmatpush.msra.mxu0 0.0
    %6057 = vmatpush.msra.mxu0 0.0
    %6058 = vmatpush.msra.mxu0 0.0
    %6059 = vmatpush.msra.mxu0 %v5995
    %6060 = vmatmul.f32.gmra.mxu0 %v6002
    %v6061 = vpop.f32.mrf.mxu0
    %v6062 = vadd.f32 0.0, %v6061
    %6063 = vdwg.mxu0
    %6064 = vmatpush.msra.mxu0 0.0
    %6065 = vmatpush.msra.mxu0 0.0
    %6066 = vmatpush.msra.mxu0 0.0
    %6067 = vmatpush.msra.mxu0 0.0
    %6068 = vmatpush.msra.mxu0 0.0
    %6069 = vmatpush.msra.mxu0 0.0
    %6070 = vmatpush.msra.mxu0 0.0
    %6071 = vmatpush.msra.mxu0 0.0
    %6072 = vmatpush.msra.mxu0 0.0
    %6073 = vmatpush.msra.mxu0 0.0
    %6074 = vmatpush.msra.mxu0 0.0
    %6075 = vmatpush.msra.mxu0 0.0
    %6076 = vmatpush.msra.mxu0 0.0
    %6077 = vmatpush.msra.mxu0 0.0
    %6078 = vmatpush.msra.mxu0 0.0
    %6079 = vmatpush.msra.mxu0 %v5996
    %6080 = vmatmul.f32.gmra.mxu0 %v6002
    %v6081 = vpop.f32.mrf.mxu0
    %v6082 = vadd.f32 0.0, %v6081
    %6083 = vdwg.mxu0
    %6084 = vrot.lane.b32.xlu0 %v5969, 113
    %v6085 = vpop.permute.xlu0 %6084
    %6086 = vrot.lane.b32.xlu0 %v5970, 113
    %v6087 = vpop.permute.xlu0 %6086
    %6088 = vrot.lane.b32.xlu0 %v5971, 113
    %v6089 = vpop.permute.xlu0 %6088
    %6090 = vrot.lane.b32.xlu0 %v5972, 113
    %v6091 = vpop.permute.xlu0 %6090
    %6092 = vrot.lane.b32.xlu0 %v5973, 113
    %v6093 = vpop.permute.xlu0 %6092
    %vm6094 = vcmask 924672
    %v6095 = vsel %vm6094, %v6085, %v6087
    %v6096 = vsel %vm6094, %v6087, %v6089
    %v6097 = vsel %vm6094, %v6089, %v6091
    %v6098 = vsel %vm6094, %v6091, %v6093
    %v6104 = vsel %vm1317, %v5974, 0
    %6106 = vmatpush.msra.mxu0 0.0
    %6107 = vmatpush.msra.mxu0 0.0
    %6108 = vmatpush.msra.mxu0 0.0
    %6109 = vmatpush.msra.mxu0 0.0
    %6110 = vmatpush.msra.mxu0 0.0
    %6111 = vmatpush.msra.mxu0 0.0
    %6112 = vmatpush.msra.mxu0 0.0
    %6113 = vmatpush.msra.mxu0 0.0
    %6114 = vmatpush.msra.mxu0 0.0
    %6115 = vmatpush.msra.mxu0 0.0
    %6116 = vmatpush.msra.mxu0 0.0
    %6117 = vmatpush.msra.mxu0 0.0
    %6118 = vmatpush.msra.mxu0 0.0
    %6119 = vmatpush.msra.mxu0 0.0
    %6120 = vmatpush.msra.mxu0 0.0
    %6121 = vmatpush.msra.mxu0 %v6095
    %6122 = vmatmul.f32.gmra.mxu0 %v6104
    %v6123 = vpop.f32.mrf.mxu0
    %v6124 = vadd.f32 %v6022, %v6123
    %6125 = vdwg.mxu0
    %6126 = vmatpush.msra.mxu0 0.0
    %6127 = vmatpush.msra.mxu0 0.0
    %6128 = vmatpush.msra.mxu0 0.0
    %6129 = vmatpush.msra.mxu0 0.0
    %6130 = vmatpush.msra.mxu0 0.0
    %6131 = vmatpush.msra.mxu0 0.0
    %6132 = vmatpush.msra.mxu0 0.0
    %6133 = vmatpush.msra.mxu0 0.0
    %6134 = vmatpush.msra.mxu0 0.0
    %6135 = vmatpush.msra.mxu0 0.0
    %6136 = vmatpush.msra.mxu0 0.0
    %6137 = vmatpush.msra.mxu0 0.0
    %6138 = vmatpush.msra.mxu0 0.0
    %6139 = vmatpush.msra.mxu0 0.0
    %6140 = vmatpush.msra.mxu0 0.0
    %6141 = vmatpush.msra.mxu0 %v6096
    %6142 = vmatmul.f32.gmra.mxu0 %v6104
    %v6143 = vpop.f32.mrf.mxu0
    %v6144 = vadd.f32 %v6042, %v6143
    %6145 = vdwg.mxu0
    %6146 = vmatpush.msra.mxu0 0.0
    %6147 = vmatpush.msra.mxu0 0.0
    %6148 = vmatpush.msra.mxu0 0.0
    %6149 = vmatpush.msra.mxu0 0.0
    %6150 = vmatpush.msra.mxu0 0.0
    %6151 = vmatpush.msra.mxu0 0.0
    %6152 = vmatpush.msra.mxu0 0.0
    %6153 = vmatpush.msra.mxu0 0.0
    %6154 = vmatpush.msra.mxu0 0.0
    %6155 = vmatpush.msra.mxu0 0.0
    %6156 = vmatpush.msra.mxu0 0.0
    %6157 = vmatpush.msra.mxu0 0.0
    %6158 = vmatpush.msra.mxu0 0.0
    %6159 = vmatpush.msra.mxu0 0.0
    %6160 = vmatpush.msra.mxu0 0.0
    %6161 = vmatpush.msra.mxu0 %v6097
    %6162 = vmatmul.f32.gmra.mxu0 %v6104
    %v6163 = vpop.f32.mrf.mxu0
    %v6164 = vadd.f32 %v6062, %v6163
    %6165 = vdwg.mxu0
    %6166 = vmatpush.msra.mxu0 0.0
    %6167 = vmatpush.msra.mxu0 0.0
    %6168 = vmatpush.msra.mxu0 0.0
    %6169 = vmatpush.msra.mxu0 0.0
    %6170 = vmatpush.msra.mxu0 0.0
    %6171 = vmatpush.msra.mxu0 0.0
    %6172 = vmatpush.msra.mxu0 0.0
    %6173 = vmatpush.msra.mxu0 0.0
    %6174 = vmatpush.msra.mxu0 0.0
    %6175 = vmatpush.msra.mxu0 0.0
    %6176 = vmatpush.msra.mxu0 0.0
    %6177 = vmatpush.msra.mxu0 0.0
    %6178 = vmatpush.msra.mxu0 0.0
    %6179 = vmatpush.msra.mxu0 0.0
    %6180 = vmatpush.msra.mxu0 0.0
    %6181 = vmatpush.msra.mxu0 %v6098
    %6182 = vmatmul.f32.gmra.mxu0 %v6104
    %v6183 = vpop.f32.mrf.mxu0
    %v6184 = vadd.f32 %v6082, %v6183
    %6185 = vdwg.mxu0
    %s6186 = scalar_lea.vmem %s5, 16
    %v6187 = vld [vmem:[%s6186] sm:$0xff]
    %6188 = vrot.lane.b32.xlu0 %v5969, 111
    %v6189 = vpop.permute.xlu0 %6188
    %6190 = vrot.lane.b32.xlu0 %v5970, 111
    %v6191 = vpop.permute.xlu0 %6190
    %6192 = vrot.lane.b32.xlu0 %v5971, 111
    %v6193 = vpop.permute.xlu0 %6192
    %6194 = vrot.lane.b32.xlu0 %v5972, 111
    %v6195 = vpop.permute.xlu0 %6194
    %6196 = vrot.lane.b32.xlu0 %v5973, 111
    %v6197 = vpop.permute.xlu0 %6196
    %vm6198 = vcmask 908288
    %v6199 = vsel %vm6198, %v6189, %v6191
    %v6200 = vsel %vm6198, %v6191, %v6193
    %v6201 = vsel %vm6198, %v6193, %v6195
    %v6202 = vsel %vm6198, %v6195, %v6197
    %v6208 = vsel %vm1317, %v6187, 0
    %6210 = vmatpush.msra.mxu0 0.0
    %6211 = vmatpush.msra.mxu0 0.0
    %6212 = vmatpush.msra.mxu0 0.0
    %6213 = vmatpush.msra.mxu0 0.0
    %6214 = vmatpush.msra.mxu0 0.0
    %6215 = vmatpush.msra.mxu0 0.0
    %6216 = vmatpush.msra.mxu0 0.0
    %6217 = vmatpush.msra.mxu0 0.0
    %6218 = vmatpush.msra.mxu0 0.0
    %6219 = vmatpush.msra.mxu0 0.0
    %6220 = vmatpush.msra.mxu0 0.0
    %6221 = vmatpush.msra.mxu0 0.0
    %6222 = vmatpush.msra.mxu0 0.0
    %6223 = vmatpush.msra.mxu0 0.0
    %6224 = vmatpush.msra.mxu0 0.0
    %6225 = vmatpush.msra.mxu0 %v6199
    %6226 = vmatmul.f32.gmra.mxu0 %v6208
    %v6227 = vpop.f32.mrf.mxu0
    %v6228 = vadd.f32 0.0, %v6227
    %6229 = vdwg.mxu0
    %6230 = vmatpush.msra.mxu0 0.0
    %6231 = vmatpush.msra.mxu0 0.0
    %6232 = vmatpush.msra.mxu0 0.0
    %6233 = vmatpush.msra.mxu0 0.0
    %6234 = vmatpush.msra.mxu0 0.0
    %6235 = vmatpush.msra.mxu0 0.0
    %6236 = vmatpush.msra.mxu0 0.0
    %6237 = vmatpush.msra.mxu0 0.0
    %6238 = vmatpush.msra.mxu0 0.0
    %6239 = vmatpush.msra.mxu0 0.0
    %6240 = vmatpush.msra.mxu0 0.0
    %6241 = vmatpush.msra.mxu0 0.0
    %6242 = vmatpush.msra.mxu0 0.0
    %6243 = vmatpush.msra.mxu0 0.0
    %6244 = vmatpush.msra.mxu0 0.0
    %6245 = vmatpush.msra.mxu0 %v6200
    %6246 = vmatmul.f32.gmra.mxu0 %v6208
    %v6247 = vpop.f32.mrf.mxu0
    %v6248 = vadd.f32 0.0, %v6247
    %6249 = vdwg.mxu0
    %6250 = vmatpush.msra.mxu0 0.0
    %6251 = vmatpush.msra.mxu0 0.0
    %6252 = vmatpush.msra.mxu0 0.0
    %6253 = vmatpush.msra.mxu0 0.0
    %6254 = vmatpush.msra.mxu0 0.0
    %6255 = vmatpush.msra.mxu0 0.0
    %6256 = vmatpush.msra.mxu0 0.0
    %6257 = vmatpush.msra.mxu0 0.0
    %6258 = vmatpush.msra.mxu0 0.0
    %6259 = vmatpush.msra.mxu0 0.0
    %6260 = vmatpush.msra.mxu0 0.0
    %6261 = vmatpush.msra.mxu0 0.0
    %6262 = vmatpush.msra.mxu0 0.0
    %6263 = vmatpush.msra.mxu0 0.0
    %6264 = vmatpush.msra.mxu0 0.0
    %6265 = vmatpush.msra.mxu0 %v6201
    %6266 = vmatmul.f32.gmra.mxu0 %v6208
    %v6267 = vpop.f32.mrf.mxu0
    %v6268 = vadd.f32 0.0, %v6267
    %6269 = vdwg.mxu0
    %6270 = vmatpush.msra.mxu0 0.0
    %6271 = vmatpush.msra.mxu0 0.0
    %6272 = vmatpush.msra.mxu0 0.0
    %6273 = vmatpush.msra.mxu0 0.0
    %6274 = vmatpush.msra.mxu0 0.0
    %6275 = vmatpush.msra.mxu0 0.0
    %6276 = vmatpush.msra.mxu0 0.0
    %6277 = vmatpush.msra.mxu0 0.0
    %6278 = vmatpush.msra.mxu0 0.0
    %6279 = vmatpush.msra.mxu0 0.0
    %6280 = vmatpush.msra.mxu0 0.0
    %6281 = vmatpush.msra.mxu0 0.0
    %6282 = vmatpush.msra.mxu0 0.0
    %6283 = vmatpush.msra.mxu0 0.0
    %6284 = vmatpush.msra.mxu0 0.0
    %6285 = vmatpush.msra.mxu0 %v6202
    %6286 = vmatmul.f32.gmra.mxu0 %v6208
    %v6287 = vpop.f32.mrf.mxu0
    %v6288 = vadd.f32 0.0, %v6287
    %6289 = vdwg.mxu0
    %v6290 = vadd.f32 %v6124, %v6228
    %v6291 = vadd.f32 %v6144, %v6248
    %v6292 = vadd.f32 %v6164, %v6268
    %v6293 = vadd.f32 %v6184, %v6288
    %s6294 = scalar_lea.vmem %s5, 24
    %v6295 = vld [vmem:[%s6294] sm:$0xff]
    %6296 = vrot.lane.b32.xlu0 %v5969, 97
    %v6297 = vpop.permute.xlu0 %6296
    %6298 = vrot.lane.b32.xlu0 %v5970, 97
    %v6299 = vpop.permute.xlu0 %6298
    %6300 = vrot.lane.b32.xlu0 %v5971, 97
    %v6301 = vpop.permute.xlu0 %6300
    %6302 = vrot.lane.b32.xlu0 %v5972, 97
    %v6303 = vpop.permute.xlu0 %6302
    %6304 = vrot.lane.b32.xlu0 %v5973, 97
    %v6305 = vpop.permute.xlu0 %6304
    %v6306 = vsel %vm510, %v6297, %v6299
    %v6307 = vsel %vm510, %v6299, %v6301
    %v6308 = vsel %vm510, %v6301, %v6303
    %v6309 = vsel %vm510, %v6303, %v6305
    %v6315 = vsel %vm1317, %v6295, 0
    %6317 = vmatpush.msra.mxu0 0.0
    %6318 = vmatpush.msra.mxu0 0.0
    %6319 = vmatpush.msra.mxu0 0.0
    %6320 = vmatpush.msra.mxu0 0.0
    %6321 = vmatpush.msra.mxu0 0.0
    %6322 = vmatpush.msra.mxu0 0.0
    %6323 = vmatpush.msra.mxu0 0.0
    %6324 = vmatpush.msra.mxu0 0.0
    %6325 = vmatpush.msra.mxu0 0.0
    %6326 = vmatpush.msra.mxu0 0.0
    %6327 = vmatpush.msra.mxu0 0.0
    %6328 = vmatpush.msra.mxu0 0.0
    %6329 = vmatpush.msra.mxu0 0.0
    %6330 = vmatpush.msra.mxu0 0.0
    %6331 = vmatpush.msra.mxu0 0.0
    %6332 = vmatpush.msra.mxu0 %v6306
    %6333 = vmatmul.f32.gmra.mxu0 %v6315
    %v6334 = vpop.f32.mrf.mxu0
    %v6335 = vadd.f32 0.0, %v6334
    %6336 = vdwg.mxu0
    %6337 = vmatpush.msra.mxu0 0.0
    %6338 = vmatpush.msra.mxu0 0.0
    %6339 = vmatpush.msra.mxu0 0.0
    %6340 = vmatpush.msra.mxu0 0.0
    %6341 = vmatpush.msra.mxu0 0.0
    %6342 = vmatpush.msra.mxu0 0.0
    %6343 = vmatpush.msra.mxu0 0.0
    %6344 = vmatpush.msra.mxu0 0.0
    %6345 = vmatpush.msra.mxu0 0.0
    %6346 = vmatpush.msra.mxu0 0.0
    %6347 = vmatpush.msra.mxu0 0.0
    %6348 = vmatpush.msra.mxu0 0.0
    %6349 = vmatpush.msra.mxu0 0.0
    %6350 = vmatpush.msra.mxu0 0.0
    %6351 = vmatpush.msra.mxu0 0.0
    %6352 = vmatpush.msra.mxu0 %v6307
    %6353 = vmatmul.f32.gmra.mxu0 %v6315
    %v6354 = vpop.f32.mrf.mxu0
    %v6355 = vadd.f32 0.0, %v6354
    %6356 = vdwg.mxu0
    %6357 = vmatpush.msra.mxu0 0.0
    %6358 = vmatpush.msra.mxu0 0.0
    %6359 = vmatpush.msra.mxu0 0.0
    %6360 = vmatpush.msra.mxu0 0.0
    %6361 = vmatpush.msra.mxu0 0.0
    %6362 = vmatpush.msra.mxu0 0.0
    %6363 = vmatpush.msra.mxu0 0.0
    %6364 = vmatpush.msra.mxu0 0.0
    %6365 = vmatpush.msra.mxu0 0.0
    %6366 = vmatpush.msra.mxu0 0.0
    %6367 = vmatpush.msra.mxu0 0.0
    %6368 = vmatpush.msra.mxu0 0.0
    %6369 = vmatpush.msra.mxu0 0.0
    %6370 = vmatpush.msra.mxu0 0.0
    %6371 = vmatpush.msra.mxu0 0.0
    %6372 = vmatpush.msra.mxu0 %v6308
    %6373 = vmatmul.f32.gmra.mxu0 %v6315
    %v6374 = vpop.f32.mrf.mxu0
    %v6375 = vadd.f32 0.0, %v6374
    %6376 = vdwg.mxu0
    %6377 = vmatpush.msra.mxu0 0.0
    %6378 = vmatpush.msra.mxu0 0.0
    %6379 = vmatpush.msra.mxu0 0.0
    %6380 = vmatpush.msra.mxu0 0.0
    %6381 = vmatpush.msra.mxu0 0.0
    %6382 = vmatpush.msra.mxu0 0.0
    %6383 = vmatpush.msra.mxu0 0.0
    %6384 = vmatpush.msra.mxu0 0.0
    %6385 = vmatpush.msra.mxu0 0.0
    %6386 = vmatpush.msra.mxu0 0.0
    %6387 = vmatpush.msra.mxu0 0.0
    %6388 = vmatpush.msra.mxu0 0.0
    %6389 = vmatpush.msra.mxu0 0.0
    %6390 = vmatpush.msra.mxu0 0.0
    %6391 = vmatpush.msra.mxu0 0.0
    %6392 = vmatpush.msra.mxu0 %v6309
    %6393 = vmatmul.f32.gmra.mxu0 %v6315
    %v6394 = vpop.f32.mrf.mxu0
    %v6395 = vadd.f32 0.0, %v6394
    %6396 = vdwg.mxu0
    %v6397 = vadd.f32 %v6290, %v6335
    %v6398 = vadd.f32 %v6291, %v6355
    %v6399 = vadd.f32 %v6292, %v6375
    %v6400 = vadd.f32 %v6293, %v6395
    %s6401 = scalar_lea.vmem %s5, 32
    %v6402 = vld [vmem:[%s6401] sm:$0xff]
    %6403 = vrot.lane.b32.xlu0 %v5969, 96
    %v6404 = vpop.permute.xlu0 %6403
    %6405 = vrot.lane.b32.xlu0 %v5970, 96
    %v6406 = vpop.permute.xlu0 %6405
    %6407 = vrot.lane.b32.xlu0 %v5971, 96
    %v6408 = vpop.permute.xlu0 %6407
    %6409 = vrot.lane.b32.xlu0 %v5972, 96
    %v6410 = vpop.permute.xlu0 %6409
    %6411 = vrot.lane.b32.xlu0 %v5973, 96
    %v6412 = vpop.permute.xlu0 %6411
    %v6413 = vsel %vm622, %v6404, %v6406
    %v6414 = vsel %vm622, %v6406, %v6408
    %v6415 = vsel %vm622, %v6408, %v6410
    %v6416 = vsel %vm622, %v6410, %v6412
    %v6422 = vsel %vm1317, %v6402, 0
    %6424 = vmatpush.msra.mxu0 0.0
    %6425 = vmatpush.msra.mxu0 0.0
    %6426 = vmatpush.msra.mxu0 0.0
    %6427 = vmatpush.msra.mxu0 0.0
    %6428 = vmatpush.msra.mxu0 0.0
    %6429 = vmatpush.msra.mxu0 0.0
    %6430 = vmatpush.msra.mxu0 0.0
    %6431 = vmatpush.msra.mxu0 0.0
    %6432 = vmatpush.msra.mxu0 0.0
    %6433 = vmatpush.msra.mxu0 0.0
    %6434 = vmatpush.msra.mxu0 0.0
    %6435 = vmatpush.msra.mxu0 0.0
    %6436 = vmatpush.msra.mxu0 0.0
    %6437 = vmatpush.msra.mxu0 0.0
    %6438 = vmatpush.msra.mxu0 0.0
    %6439 = vmatpush.msra.mxu0 %v6413
    %6440 = vmatmul.f32.gmra.mxu0 %v6422
    %v6441 = vpop.f32.mrf.mxu0
    %v6442 = vadd.f32 0.0, %v6441
    %6443 = vdwg.mxu0
    %6444 = vmatpush.msra.mxu0 0.0
    %6445 = vmatpush.msra.mxu0 0.0
    %6446 = vmatpush.msra.mxu0 0.0
    %6447 = vmatpush.msra.mxu0 0.0
    %6448 = vmatpush.msra.mxu0 0.0
    %6449 = vmatpush.msra.mxu0 0.0
    %6450 = vmatpush.msra.mxu0 0.0
    %6451 = vmatpush.msra.mxu0 0.0
    %6452 = vmatpush.msra.mxu0 0.0
    %6453 = vmatpush.msra.mxu0 0.0
    %6454 = vmatpush.msra.mxu0 0.0
    %6455 = vmatpush.msra.mxu0 0.0
    %6456 = vmatpush.msra.mxu0 0.0
    %6457 = vmatpush.msra.mxu0 0.0
    %6458 = vmatpush.msra.mxu0 0.0
    %6459 = vmatpush.msra.mxu0 %v6414
    %6460 = vmatmul.f32.gmra.mxu0 %v6422
    %v6461 = vpop.f32.mrf.mxu0
    %v6462 = vadd.f32 0.0, %v6461
    %6463 = vdwg.mxu0
    %6464 = vmatpush.msra.mxu0 0.0
    %6465 = vmatpush.msra.mxu0 0.0
    %6466 = vmatpush.msra.mxu0 0.0
    %6467 = vmatpush.msra.mxu0 0.0
    %6468 = vmatpush.msra.mxu0 0.0
    %6469 = vmatpush.msra.mxu0 0.0
    %6470 = vmatpush.msra.mxu0 0.0
    %6471 = vmatpush.msra.mxu0 0.0
    %6472 = vmatpush.msra.mxu0 0.0
    %6473 = vmatpush.msra.mxu0 0.0
    %6474 = vmatpush.msra.mxu0 0.0
    %6475 = vmatpush.msra.mxu0 0.0
    %6476 = vmatpush.msra.mxu0 0.0
    %6477 = vmatpush.msra.mxu0 0.0
    %6478 = vmatpush.msra.mxu0 0.0
    %6479 = vmatpush.msra.mxu0 %v6415
    %6480 = vmatmul.f32.gmra.mxu0 %v6422
    %v6481 = vpop.f32.mrf.mxu0
    %v6482 = vadd.f32 0.0, %v6481
    %6483 = vdwg.mxu0
    %6484 = vmatpush.msra.mxu0 0.0
    %6485 = vmatpush.msra.mxu0 0.0
    %6486 = vmatpush.msra.mxu0 0.0
    %6487 = vmatpush.msra.mxu0 0.0
    %6488 = vmatpush.msra.mxu0 0.0
    %6489 = vmatpush.msra.mxu0 0.0
    %6490 = vmatpush.msra.mxu0 0.0
    %6491 = vmatpush.msra.mxu0 0.0
    %6492 = vmatpush.msra.mxu0 0.0
    %6493 = vmatpush.msra.mxu0 0.0
    %6494 = vmatpush.msra.mxu0 0.0
    %6495 = vmatpush.msra.mxu0 0.0
    %6496 = vmatpush.msra.mxu0 0.0
    %6497 = vmatpush.msra.mxu0 0.0
    %6498 = vmatpush.msra.mxu0 0.0
    %6499 = vmatpush.msra.mxu0 %v6416
    %6500 = vmatmul.f32.gmra.mxu0 %v6422
    %v6501 = vpop.f32.mrf.mxu0
    %v6502 = vadd.f32 0.0, %v6501
    %6503 = vdwg.mxu0
    %v6504 = vadd.f32 %v6397, %v6442
    %v6505 = vadd.f32 %v6398, %v6462
    %v6506 = vadd.f32 %v6399, %v6482
    %v6507 = vadd.f32 %v6400, %v6502
    %s6508 = scalar_lea.vmem %s5, 40
    %v6509 = vld [vmem:[%s6508] sm:$0xff]
    %6510 = vrot.lane.b32.xlu0 %v5969, 95
    %v6511 = vpop.permute.xlu0 %6510
    %6512 = vrot.lane.b32.xlu0 %v5970, 95
    %v6513 = vpop.permute.xlu0 %6512
    %6514 = vrot.lane.b32.xlu0 %v5971, 95
    %v6515 = vpop.permute.xlu0 %6514
    %6516 = vrot.lane.b32.xlu0 %v5972, 95
    %v6517 = vpop.permute.xlu0 %6516
    %6518 = vrot.lane.b32.xlu0 %v5973, 95
    %v6519 = vpop.permute.xlu0 %6518
    %v6520 = vsel %vm3153, %v6511, %v6513
    %v6521 = vsel %vm3153, %v6513, %v6515
    %v6522 = vsel %vm3153, %v6515, %v6517
    %v6523 = vsel %vm3153, %v6517, %v6519
    %v6529 = vsel %vm1317, %v6509, 0
    %6531 = vmatpush.msra.mxu0 0.0
    %6532 = vmatpush.msra.mxu0 0.0
    %6533 = vmatpush.msra.mxu0 0.0
    %6534 = vmatpush.msra.mxu0 0.0
    %6535 = vmatpush.msra.mxu0 0.0
    %6536 = vmatpush.msra.mxu0 0.0
    %6537 = vmatpush.msra.mxu0 0.0
    %6538 = vmatpush.msra.mxu0 0.0
    %6539 = vmatpush.msra.mxu0 0.0
    %6540 = vmatpush.msra.mxu0 0.0
    %6541 = vmatpush.msra.mxu0 0.0
    %6542 = vmatpush.msra.mxu0 0.0
    %6543 = vmatpush.msra.mxu0 0.0
    %6544 = vmatpush.msra.mxu0 0.0
    %6545 = vmatpush.msra.mxu0 0.0
    %6546 = vmatpush.msra.mxu0 %v6520
    %6547 = vmatmul.f32.gmra.mxu0 %v6529
    %v6548 = vpop.f32.mrf.mxu0
    %v6549 = vadd.f32 0.0, %v6548
    %6550 = vdwg.mxu0
    %6551 = vmatpush.msra.mxu0 0.0
    %6552 = vmatpush.msra.mxu0 0.0
    %6553 = vmatpush.msra.mxu0 0.0
    %6554 = vmatpush.msra.mxu0 0.0
    %6555 = vmatpush.msra.mxu0 0.0
    %6556 = vmatpush.msra.mxu0 0.0
    %6557 = vmatpush.msra.mxu0 0.0
    %6558 = vmatpush.msra.mxu0 0.0
    %6559 = vmatpush.msra.mxu0 0.0
    %6560 = vmatpush.msra.mxu0 0.0
    %6561 = vmatpush.msra.mxu0 0.0
    %6562 = vmatpush.msra.mxu0 0.0
    %6563 = vmatpush.msra.mxu0 0.0
    %6564 = vmatpush.msra.mxu0 0.0
    %6565 = vmatpush.msra.mxu0 0.0
    %6566 = vmatpush.msra.mxu0 %v6521
    %6567 = vmatmul.f32.gmra.mxu0 %v6529
    %v6568 = vpop.f32.mrf.mxu0
    %v6569 = vadd.f32 0.0, %v6568
    %6570 = vdwg.mxu0
    %6571 = vmatpush.msra.mxu0 0.0
    %6572 = vmatpush.msra.mxu0 0.0
    %6573 = vmatpush.msra.mxu0 0.0
    %6574 = vmatpush.msra.mxu0 0.0
    %6575 = vmatpush.msra.mxu0 0.0
    %6576 = vmatpush.msra.mxu0 0.0
    %6577 = vmatpush.msra.mxu0 0.0
    %6578 = vmatpush.msra.mxu0 0.0
    %6579 = vmatpush.msra.mxu0 0.0
    %6580 = vmatpush.msra.mxu0 0.0
    %6581 = vmatpush.msra.mxu0 0.0
    %6582 = vmatpush.msra.mxu0 0.0
    %6583 = vmatpush.msra.mxu0 0.0
    %6584 = vmatpush.msra.mxu0 0.0
    %6585 = vmatpush.msra.mxu0 0.0
    %6586 = vmatpush.msra.mxu0 %v6522
    %6587 = vmatmul.f32.gmra.mxu0 %v6529
    %v6588 = vpop.f32.mrf.mxu0
    %v6589 = vadd.f32 0.0, %v6588
    %6590 = vdwg.mxu0
    %6591 = vmatpush.msra.mxu0 0.0
    %6592 = vmatpush.msra.mxu0 0.0
    %6593 = vmatpush.msra.mxu0 0.0
    %6594 = vmatpush.msra.mxu0 0.0
    %6595 = vmatpush.msra.mxu0 0.0
    %6596 = vmatpush.msra.mxu0 0.0
    %6597 = vmatpush.msra.mxu0 0.0
    %6598 = vmatpush.msra.mxu0 0.0
    %6599 = vmatpush.msra.mxu0 0.0
    %6600 = vmatpush.msra.mxu0 0.0
    %6601 = vmatpush.msra.mxu0 0.0
    %6602 = vmatpush.msra.mxu0 0.0
    %6603 = vmatpush.msra.mxu0 0.0
    %6604 = vmatpush.msra.mxu0 0.0
    %6605 = vmatpush.msra.mxu0 0.0
    %6606 = vmatpush.msra.mxu0 %v6523
    %6607 = vmatmul.f32.gmra.mxu0 %v6529
    %v6608 = vpop.f32.mrf.mxu0
    %v6609 = vadd.f32 0.0, %v6608
    %6610 = vdwg.mxu0
    %v6611 = vadd.f32 %v6504, %v6549
    %v6612 = vadd.f32 %v6505, %v6569
    %v6613 = vadd.f32 %v6506, %v6589
    %v6614 = vadd.f32 %v6507, %v6609
    %s6615 = scalar_lea.vmem %s5, 48
    %v6616 = vld [vmem:[%s6615] sm:$0xff]
    %6617 = vrot.lane.b32.xlu0 %v5969, 81
    %v6618 = vpop.permute.xlu0 %6617
    %6619 = vrot.lane.b32.xlu0 %v5970, 81
    %v6620 = vpop.permute.xlu0 %6619
    %6621 = vrot.lane.b32.xlu0 %v5971, 81
    %v6622 = vpop.permute.xlu0 %6621
    %6623 = vrot.lane.b32.xlu0 %v5972, 81
    %v6624 = vpop.permute.xlu0 %6623
    %6625 = vrot.lane.b32.xlu0 %v5973, 81
    %v6626 = vpop.permute.xlu0 %6625
    %vm6627 = vcmask 662528
    %v6628 = vsel %vm6627, %v6618, %v6620
    %v6629 = vsel %vm6627, %v6620, %v6622
    %v6630 = vsel %vm6627, %v6622, %v6624
    %v6631 = vsel %vm6627, %v6624, %v6626
    %v6637 = vsel %vm1317, %v6616, 0
    %6639 = vmatpush.msra.mxu0 0.0
    %6640 = vmatpush.msra.mxu0 0.0
    %6641 = vmatpush.msra.mxu0 0.0
    %6642 = vmatpush.msra.mxu0 0.0
    %6643 = vmatpush.msra.mxu0 0.0
    %6644 = vmatpush.msra.mxu0 0.0
    %6645 = vmatpush.msra.mxu0 0.0
    %6646 = vmatpush.msra.mxu0 0.0
    %6647 = vmatpush.msra.mxu0 0.0
    %6648 = vmatpush.msra.mxu0 0.0
    %6649 = vmatpush.msra.mxu0 0.0
    %6650 = vmatpush.msra.mxu0 0.0
    %6651 = vmatpush.msra.mxu0 0.0
    %6652 = vmatpush.msra.mxu0 0.0
    %6653 = vmatpush.msra.mxu0 0.0
    %6654 = vmatpush.msra.mxu0 %v6628
    %6655 = vmatmul.f32.gmra.mxu0 %v6637
    %v6656 = vpop.f32.mrf.mxu0
    %v6657 = vadd.f32 0.0, %v6656
    %6658 = vdwg.mxu0
    %6659 = vmatpush.msra.mxu0 0.0
    %6660 = vmatpush.msra.mxu0 0.0
    %6661 = vmatpush.msra.mxu0 0.0
    %6662 = vmatpush.msra.mxu0 0.0
    %6663 = vmatpush.msra.mxu0 0.0
    %6664 = vmatpush.msra.mxu0 0.0
    %6665 = vmatpush.msra.mxu0 0.0
    %6666 = vmatpush.msra.mxu0 0.0
    %6667 = vmatpush.msra.mxu0 0.0
    %6668 = vmatpush.msra.mxu0 0.0
    %6669 = vmatpush.msra.mxu0 0.0
    %6670 = vmatpush.msra.mxu0 0.0
    %6671 = vmatpush.msra.mxu0 0.0
    %6672 = vmatpush.msra.mxu0 0.0
    %6673 = vmatpush.msra.mxu0 0.0
    %6674 = vmatpush.msra.mxu0 %v6629
    %6675 = vmatmul.f32.gmra.mxu0 %v6637
    %v6676 = vpop.f32.mrf.mxu0
    %v6677 = vadd.f32 0.0, %v6676
    %6678 = vdwg.mxu0
    %6679 = vmatpush.msra.mxu0 0.0
    %6680 = vmatpush.msra.mxu0 0.0
    %6681 = vmatpush.msra.mxu0 0.0
    %6682 = vmatpush.msra.mxu0 0.0
    %6683 = vmatpush.msra.mxu0 0.0
    %6684 = vmatpush.msra.mxu0 0.0
    %6685 = vmatpush.msra.mxu0 0.0
    %6686 = vmatpush.msra.mxu0 0.0
    %6687 = vmatpush.msra.mxu0 0.0
    %6688 = vmatpush.msra.mxu0 0.0
    %6689 = vmatpush.msra.mxu0 0.0
    %6690 = vmatpush.msra.mxu0 0.0
    %6691 = vmatpush.msra.mxu0 0.0
    %6692 = vmatpush.msra.mxu0 0.0
    %6693 = vmatpush.msra.mxu0 0.0
    %6694 = vmatpush.msra.mxu0 %v6630
    %6695 = vmatmul.f32.gmra.mxu0 %v6637
    %v6696 = vpop.f32.mrf.mxu0
    %v6697 = vadd.f32 0.0, %v6696
    %6698 = vdwg.mxu0
    %6699 = vmatpush.msra.mxu0 0.0
    %6700 = vmatpush.msra.mxu0 0.0
    %6701 = vmatpush.msra.mxu0 0.0
    %6702 = vmatpush.msra.mxu0 0.0
    %6703 = vmatpush.msra.mxu0 0.0
    %6704 = vmatpush.msra.mxu0 0.0
    %6705 = vmatpush.msra.mxu0 0.0
    %6706 = vmatpush.msra.mxu0 0.0
    %6707 = vmatpush.msra.mxu0 0.0
    %6708 = vmatpush.msra.mxu0 0.0
    %6709 = vmatpush.msra.mxu0 0.0
    %6710 = vmatpush.msra.mxu0 0.0
    %6711 = vmatpush.msra.mxu0 0.0
    %6712 = vmatpush.msra.mxu0 0.0
    %6713 = vmatpush.msra.mxu0 0.0
    %6714 = vmatpush.msra.mxu0 %v6631
    %6715 = vmatmul.f32.gmra.mxu0 %v6637
    %v6716 = vpop.f32.mrf.mxu0
    %v6717 = vadd.f32 0.0, %v6716
    %6718 = vdwg.mxu0
    %v6719 = vadd.f32 %v6611, %v6657
    %v6720 = vadd.f32 %v6612, %v6677
    %v6721 = vadd.f32 %v6613, %v6697
    %v6722 = vadd.f32 %v6614, %v6717
    %s6723 = scalar_lea.vmem %s5, 56
    %v6724 = vld [vmem:[%s6723] sm:$0xff]
    %6725 = vrot.lane.b32.xlu0 %v5969, 80
    %v6726 = vpop.permute.xlu0 %6725
    %6727 = vrot.lane.b32.xlu0 %v5970, 80
    %v6728 = vpop.permute.xlu0 %6727
    %6729 = vrot.lane.b32.xlu0 %v5971, 80
    %v6730 = vpop.permute.xlu0 %6729
    %6731 = vrot.lane.b32.xlu0 %v5972, 80
    %v6732 = vpop.permute.xlu0 %6731
    %6733 = vrot.lane.b32.xlu0 %v5973, 80
    %v6734 = vpop.permute.xlu0 %6733
    %vm6735 = vcmask 654336
    %v6736 = vsel %vm6735, %v6726, %v6728
    %v6737 = vsel %vm6735, %v6728, %v6730
    %v6738 = vsel %vm6735, %v6730, %v6732
    %v6739 = vsel %vm6735, %v6732, %v6734
    %v6745 = vsel %vm1317, %v6724, 0
    %6747 = vmatpush.msra.mxu0 0.0
    %6748 = vmatpush.msra.mxu0 0.0
    %6749 = vmatpush.msra.mxu0 0.0
    %6750 = vmatpush.msra.mxu0 0.0
    %6751 = vmatpush.msra.mxu0 0.0
    %6752 = vmatpush.msra.mxu0 0.0
    %6753 = vmatpush.msra.mxu0 0.0
    %6754 = vmatpush.msra.mxu0 0.0
    %6755 = vmatpush.msra.mxu0 0.0
    %6756 = vmatpush.msra.mxu0 0.0
    %6757 = vmatpush.msra.mxu0 0.0
    %6758 = vmatpush.msra.mxu0 0.0
    %6759 = vmatpush.msra.mxu0 0.0
    %6760 = vmatpush.msra.mxu0 0.0
    %6761 = vmatpush.msra.mxu0 0.0
    %6762 = vmatpush.msra.mxu0 %v6736
    %6763 = vmatmul.f32.gmra.mxu0 %v6745
    %v6764 = vpop.f32.mrf.mxu0
    %v6765 = vadd.f32 0.0, %v6764
    %6766 = vdwg.mxu0
    %6767 = vmatpush.msra.mxu0 0.0
    %6768 = vmatpush.msra.mxu0 0.0
    %6769 = vmatpush.msra.mxu0 0.0
    %6770 = vmatpush.msra.mxu0 0.0
    %6771 = vmatpush.msra.mxu0 0.0
    %6772 = vmatpush.msra.mxu0 0.0
    %6773 = vmatpush.msra.mxu0 0.0
    %6774 = vmatpush.msra.mxu0 0.0
    %6775 = vmatpush.msra.mxu0 0.0
    %6776 = vmatpush.msra.mxu0 0.0
    %6777 = vmatpush.msra.mxu0 0.0
    %6778 = vmatpush.msra.mxu0 0.0
    %6779 = vmatpush.msra.mxu0 0.0
    %6780 = vmatpush.msra.mxu0 0.0
    %6781 = vmatpush.msra.mxu0 0.0
    %6782 = vmatpush.msra.mxu0 %v6737
    %6783 = vmatmul.f32.gmra.mxu0 %v6745
    %v6784 = vpop.f32.mrf.mxu0
    %v6785 = vadd.f32 0.0, %v6784
    %6786 = vdwg.mxu0
    %6787 = vmatpush.msra.mxu0 0.0
    %6788 = vmatpush.msra.mxu0 0.0
    %6789 = vmatpush.msra.mxu0 0.0
    %6790 = vmatpush.msra.mxu0 0.0
    %6791 = vmatpush.msra.mxu0 0.0
    %6792 = vmatpush.msra.mxu0 0.0
    %6793 = vmatpush.msra.mxu0 0.0
    %6794 = vmatpush.msra.mxu0 0.0
    %6795 = vmatpush.msra.mxu0 0.0
    %6796 = vmatpush.msra.mxu0 0.0
    %6797 = vmatpush.msra.mxu0 0.0
    %6798 = vmatpush.msra.mxu0 0.0
    %6799 = vmatpush.msra.mxu0 0.0
    %6800 = vmatpush.msra.mxu0 0.0
    %6801 = vmatpush.msra.mxu0 0.0
    %6802 = vmatpush.msra.mxu0 %v6738
    %6803 = vmatmul.f32.gmra.mxu0 %v6745
    %v6804 = vpop.f32.mrf.mxu0
    %v6805 = vadd.f32 0.0, %v6804
    %6806 = vdwg.mxu0
    %6807 = vmatpush.msra.mxu0 0.0
    %6808 = vmatpush.msra.mxu0 0.0
    %6809 = vmatpush.msra.mxu0 0.0
    %6810 = vmatpush.msra.mxu0 0.0
    %6811 = vmatpush.msra.mxu0 0.0
    %6812 = vmatpush.msra.mxu0 0.0
    %6813 = vmatpush.msra.mxu0 0.0
    %6814 = vmatpush.msra.mxu0 0.0
    %6815 = vmatpush.msra.mxu0 0.0
    %6816 = vmatpush.msra.mxu0 0.0
    %6817 = vmatpush.msra.mxu0 0.0
    %6818 = vmatpush.msra.mxu0 0.0
    %6819 = vmatpush.msra.mxu0 0.0
    %6820 = vmatpush.msra.mxu0 0.0
    %6821 = vmatpush.msra.mxu0 0.0
    %6822 = vmatpush.msra.mxu0 %v6739
    %6823 = vmatmul.f32.gmra.mxu0 %v6745
    %v6824 = vpop.f32.mrf.mxu0
    %v6825 = vadd.f32 0.0, %v6824
    %6826 = vdwg.mxu0
    %v6827 = vadd.f32 %v6719, %v6765
    %v6828 = vadd.f32 %v6720, %v6785
    %v6829 = vadd.f32 %v6721, %v6805
    %v6830 = vadd.f32 %v6722, %v6825
    %s6831 = scalar_lea.vmem %s5, 64
    %v6832 = vld [vmem:[%s6831] sm:$0xff]
    %6833 = vrot.lane.b32.xlu0 %v5969, 79
    %v6834 = vpop.permute.xlu0 %6833
    %6835 = vrot.lane.b32.xlu0 %v5970, 79
    %v6836 = vpop.permute.xlu0 %6835
    %6837 = vrot.lane.b32.xlu0 %v5971, 79
    %v6838 = vpop.permute.xlu0 %6837
    %6839 = vrot.lane.b32.xlu0 %v5972, 79
    %v6840 = vpop.permute.xlu0 %6839
    %6841 = vrot.lane.b32.xlu0 %v5973, 79
    %v6842 = vpop.permute.xlu0 %6841
    %vm6843 = vcmask 646144
    %v6844 = vsel %vm6843, %v6834, %v6836
    %v6845 = vsel %vm6843, %v6836, %v6838
    %v6846 = vsel %vm6843, %v6838, %v6840
    %v6847 = vsel %vm6843, %v6840, %v6842
    %v6853 = vsel %vm1317, %v6832, 0
    %6855 = vmatpush.msra.mxu0 0.0
    %6856 = vmatpush.msra.mxu0 0.0
    %6857 = vmatpush.msra.mxu0 0.0
    %6858 = vmatpush.msra.mxu0 0.0
    %6859 = vmatpush.msra.mxu0 0.0
    %6860 = vmatpush.msra.mxu0 0.0
    %6861 = vmatpush.msra.mxu0 0.0
    %6862 = vmatpush.msra.mxu0 0.0
    %6863 = vmatpush.msra.mxu0 0.0
    %6864 = vmatpush.msra.mxu0 0.0
    %6865 = vmatpush.msra.mxu0 0.0
    %6866 = vmatpush.msra.mxu0 0.0
    %6867 = vmatpush.msra.mxu0 0.0
    %6868 = vmatpush.msra.mxu0 0.0
    %6869 = vmatpush.msra.mxu0 0.0
    %6870 = vmatpush.msra.mxu0 %v6844
    %6871 = vmatmul.f32.gmra.mxu0 %v6853
    %v6872 = vpop.f32.mrf.mxu0
    %v6873 = vadd.f32 0.0, %v6872
    %6874 = vdwg.mxu0
    %6875 = vmatpush.msra.mxu0 0.0
    %6876 = vmatpush.msra.mxu0 0.0
    %6877 = vmatpush.msra.mxu0 0.0
    %6878 = vmatpush.msra.mxu0 0.0
    %6879 = vmatpush.msra.mxu0 0.0
    %6880 = vmatpush.msra.mxu0 0.0
    %6881 = vmatpush.msra.mxu0 0.0
    %6882 = vmatpush.msra.mxu0 0.0
    %6883 = vmatpush.msra.mxu0 0.0
    %6884 = vmatpush.msra.mxu0 0.0
    %6885 = vmatpush.msra.mxu0 0.0
    %6886 = vmatpush.msra.mxu0 0.0
    %6887 = vmatpush.msra.mxu0 0.0
    %6888 = vmatpush.msra.mxu0 0.0
    %6889 = vmatpush.msra.mxu0 0.0
    %6890 = vmatpush.msra.mxu0 %v6845
    %6891 = vmatmul.f32.gmra.mxu0 %v6853
    %v6892 = vpop.f32.mrf.mxu0
    %v6893 = vadd.f32 0.0, %v6892
    %6894 = vdwg.mxu0
    %6895 = vmatpush.msra.mxu0 0.0
    %6896 = vmatpush.msra.mxu0 0.0
    %6897 = vmatpush.msra.mxu0 0.0
    %6898 = vmatpush.msra.mxu0 0.0
    %6899 = vmatpush.msra.mxu0 0.0
    %6900 = vmatpush.msra.mxu0 0.0
    %6901 = vmatpush.msra.mxu0 0.0
    %6902 = vmatpush.msra.mxu0 0.0
    %6903 = vmatpush.msra.mxu0 0.0
    %6904 = vmatpush.msra.mxu0 0.0
    %6905 = vmatpush.msra.mxu0 0.0
    %6906 = vmatpush.msra.mxu0 0.0
    %6907 = vmatpush.msra.mxu0 0.0
    %6908 = vmatpush.msra.mxu0 0.0
    %6909 = vmatpush.msra.mxu0 0.0
    %6910 = vmatpush.msra.mxu0 %v6846
    %6911 = vmatmul.f32.gmra.mxu0 %v6853
    %v6912 = vpop.f32.mrf.mxu0
    %v6913 = vadd.f32 0.0, %v6912
    %6914 = vdwg.mxu0
    %6915 = vmatpush.msra.mxu0 0.0
    %6916 = vmatpush.msra.mxu0 0.0
    %6917 = vmatpush.msra.mxu0 0.0
    %6918 = vmatpush.msra.mxu0 0.0
    %6919 = vmatpush.msra.mxu0 0.0
    %6920 = vmatpush.msra.mxu0 0.0
    %6921 = vmatpush.msra.mxu0 0.0
    %6922 = vmatpush.msra.mxu0 0.0
    %6923 = vmatpush.msra.mxu0 0.0
    %6924 = vmatpush.msra.mxu0 0.0
    %6925 = vmatpush.msra.mxu0 0.0
    %6926 = vmatpush.msra.mxu0 0.0
    %6927 = vmatpush.msra.mxu0 0.0
    %6928 = vmatpush.msra.mxu0 0.0
    %6929 = vmatpush.msra.mxu0 0.0
    %6930 = vmatpush.msra.mxu0 %v6847
    %6931 = vmatmul.f32.gmra.mxu0 %v6853
    %v6932 = vpop.f32.mrf.mxu0
    %v6933 = vadd.f32 0.0, %v6932
    %6934 = vdwg.mxu0
    %v6935 = vadd.f32 %v6827, %v6873
    %v6936 = vadd.f32 %v6828, %v6893
    %v6937 = vadd.f32 %v6829, %v6913
    %v6938 = vadd.f32 %v6830, %v6933
    %v6939 = vld [vmem:[%s6] sm:$0xff]
    %6941 = vset.pattern.permute.xlu0 0
    %6942 = vperm.xlu0 %6941, %v6939
    %v6943 = vpop.permute.xlu0 %6942
    %v6945 = vadd.f32 %v6935, %v6943
    %v6946 = vadd.f32 %v6936, %v6943
    %v6947 = vadd.f32 %v6937, %v6943
    %v6948 = vadd.f32 %v6938, %v6943
    %v6949 = vmax.f32 %v6945, 0.0
    %v6950 = vmax.f32 %v6946, 0.0
    %v6951 = vmax.f32 %v6947, 0.0
    %v6952 = vmax.f32 %v6948, 0.0
    %v6953 = vld [vmem:[%s11] sm:$0xf]
    %v6955 = vperm.slane %v6953, 0
    %v6956 = vperm.slane %v6953, 1
    %v6957 = vperm.slane %v6953, 2
    %v6958 = vperm.slane %v6953, 3
    %v6963 = vmul.f32 %v6949, %v6955
    %v6964 = vmul.f32 %v6950, %v6956
    %v6965 = vmul.f32 %v6951, %v6957
    %v6966 = vmul.f32 %v6952, %v6958
    %6971 = vrot.lane.b32.xlu0 %v6963, 32
    %v6972 = vpop.permute.xlu0 %6971
    %6973 = vrot.lane.b32.xlu0 %v6964, 32
    %v6974 = vpop.permute.xlu0 %6973
    %6975 = vrot.lane.b32.xlu0 %v6965, 32
    %v6976 = vpop.permute.xlu0 %6975
    %6977 = vrot.lane.b32.xlu0 %v6966, 32
    %v6978 = vpop.permute.xlu0 %6977
    %v6979 = vsel %vm48, %v6972, %v6974
    %v6980 = vsel %vm48, %v6974, %v6976
    %v6981 = vsel %vm48, %v6976, %v6978
    %6987 = vst.msk [vmem:[#allocation2] sm:$0xff] %vm1208, %v6972
    %6988 = vst [vmem:[#allocation2 + $0x8] sm:$0xff] %v6979
    %6989 = vst [vmem:[#allocation2 + $0x10] sm:$0xff] %v6980
    %6990 = vst [vmem:[#allocation2 + $0x18] sm:$0xff] %v6981
    %6991 = vst.msk [vmem:[#allocation2 + $0x20] sm:$0xff] %vm48, %v6978
    %v6992 = vld [vmem:[#allocation2] sm:$0xff]
    %v6993 = vld [vmem:[#allocation2 + $0x8] sm:$0xff]
    %v6994 = vld [vmem:[#allocation2 + $0x10] sm:$0xff]
    %v6995 = vld [vmem:[#allocation2 + $0x18] sm:$0xff]
    %v6996 = vld [vmem:[#allocation2 + $0x20] sm:$0xff]
    %v6997 = vld [vmem:[%s7] sm:$0xff]
    %s6998 = scalar_lea.vmem %s7, 8
    %v6999 = vld [vmem:[%s6998] sm:$0xff]
    %7005 = vrot.lane.b32.xlu0 %v6992, 112
    %v7006 = vpop.permute.xlu0 %7005
    %7007 = vrot.lane.b32.xlu0 %v6993, 112
    %v7008 = vpop.permute.xlu0 %7007
    %7009 = vrot.lane.b32.xlu0 %v6994, 112
    %v7010 = vpop.permute.xlu0 %7009
    %7011 = vrot.lane.b32.xlu0 %v6995, 112
    %v7012 = vpop.permute.xlu0 %7011
    %7013 = vrot.lane.b32.xlu0 %v6996, 112
    %v7014 = vpop.permute.xlu0 %7013
    %v7015 = vsel %vm5992, %v7006, %v7008
    %v7016 = vsel %vm5992, %v7008, %v7010
    %v7017 = vsel %vm5992, %v7010, %v7012
    %v7018 = vsel %vm5992, %v7012, %v7014
    %v7024 = vsel %vm1317, %v6999, 0
    %7026 = vmatpush.msra.mxu0 0.0
    %7027 = vmatpush.msra.mxu0 0.0
    %7028 = vmatpush.msra.mxu0 0.0
    %7029 = vmatpush.msra.mxu0 0.0
    %7030 = vmatpush.msra.mxu0 0.0
    %7031 = vmatpush.msra.mxu0 0.0
    %7032 = vmatpush.msra.mxu0 0.0
    %7033 = vmatpush.msra.mxu0 0.0
    %7034 = vmatpush.msra.mxu0 0.0
    %7035 = vmatpush.msra.mxu0 0.0
    %7036 = vmatpush.msra.mxu0 0.0
    %7037 = vmatpush.msra.mxu0 0.0
    %7038 = vmatpush.msra.mxu0 0.0
    %7039 = vmatpush.msra.mxu0 0.0
    %7040 = vmatpush.msra.mxu0 0.0
    %7041 = vmatpush.msra.mxu0 %v7015
    %7042 = vmatmul.f32.gmra.mxu0 %v7024
    %v7043 = vpop.f32.mrf.mxu0
    %v7044 = vadd.f32 0.0, %v7043
    %7045 = vdwg.mxu0
    %7046 = vmatpush.msra.mxu0 0.0
    %7047 = vmatpush.msra.mxu0 0.0
    %7048 = vmatpush.msra.mxu0 0.0
    %7049 = vmatpush.msra.mxu0 0.0
    %7050 = vmatpush.msra.mxu0 0.0
    %7051 = vmatpush.msra.mxu0 0.0
    %7052 = vmatpush.msra.mxu0 0.0
    %7053 = vmatpush.msra.mxu0 0.0
    %7054 = vmatpush.msra.mxu0 0.0
    %7055 = vmatpush.msra.mxu0 0.0
    %7056 = vmatpush.msra.mxu0 0.0
    %7057 = vmatpush.msra.mxu0 0.0
    %7058 = vmatpush.msra.mxu0 0.0
    %7059 = vmatpush.msra.mxu0 0.0
    %7060 = vmatpush.msra.mxu0 0.0
    %7061 = vmatpush.msra.mxu0 %v7016
    %7062 = vmatmul.f32.gmra.mxu0 %v7024
    %v7063 = vpop.f32.mrf.mxu0
    %v7064 = vadd.f32 0.0, %v7063
    %7065 = vdwg.mxu0
    %7066 = vmatpush.msra.mxu0 0.0
    %7067 = vmatpush.msra.mxu0 0.0
    %7068 = vmatpush.msra.mxu0 0.0
    %7069 = vmatpush.msra.mxu0 0.0
    %7070 = vmatpush.msra.mxu0 0.0
    %7071 = vmatpush.msra.mxu0 0.0
    %7072 = vmatpush.msra.mxu0 0.0
    %7073 = vmatpush.msra.mxu0 0.0
    %7074 = vmatpush.msra.mxu0 0.0
    %7075 = vmatpush.msra.mxu0 0.0
    %7076 = vmatpush.msra.mxu0 0.0
    %7077 = vmatpush.msra.mxu0 0.0
    %7078 = vmatpush.msra.mxu0 0.0
    %7079 = vmatpush.msra.mxu0 0.0
    %7080 = vmatpush.msra.mxu0 0.0
    %7081 = vmatpush.msra.mxu0 %v7017
    %7082 = vmatmul.f32.gmra.mxu0 %v7024
    %v7083 = vpop.f32.mrf.mxu0
    %v7084 = vadd.f32 0.0, %v7083
    %7085 = vdwg.mxu0
    %7086 = vmatpush.msra.mxu0 0.0
    %7087 = vmatpush.msra.mxu0 0.0
    %7088 = vmatpush.msra.mxu0 0.0
    %7089 = vmatpush.msra.mxu0 0.0
    %7090 = vmatpush.msra.mxu0 0.0
    %7091 = vmatpush.msra.mxu0 0.0
    %7092 = vmatpush.msra.mxu0 0.0
    %7093 = vmatpush.msra.mxu0 0.0
    %7094 = vmatpush.msra.mxu0 0.0
    %7095 = vmatpush.msra.mxu0 0.0
    %7096 = vmatpush.msra.mxu0 0.0
    %7097 = vmatpush.msra.mxu0 0.0
    %7098 = vmatpush.msra.mxu0 0.0
    %7099 = vmatpush.msra.mxu0 0.0
    %7100 = vmatpush.msra.mxu0 0.0
    %7101 = vmatpush.msra.mxu0 %v7018
    %7102 = vmatmul.f32.gmra.mxu0 %v7024
    %v7103 = vpop.f32.mrf.mxu0
    %v7104 = vadd.f32 0.0, %v7103
    %7105 = vdwg.mxu0
    %7106 = vrot.lane.b32.xlu0 %v6992, 113
    %v7107 = vpop.permute.xlu0 %7106
    %7108 = vrot.lane.b32.xlu0 %v6993, 113
    %v7109 = vpop.permute.xlu0 %7108
    %7110 = vrot.lane.b32.xlu0 %v6994, 113
    %v7111 = vpop.permute.xlu0 %7110
    %7112 = vrot.lane.b32.xlu0 %v6995, 113
    %v7113 = vpop.permute.xlu0 %7112
    %7114 = vrot.lane.b32.xlu0 %v6996, 113
    %v7115 = vpop.permute.xlu0 %7114
    %v7116 = vsel %vm6094, %v7107, %v7109
    %v7117 = vsel %vm6094, %v7109, %v7111
    %v7118 = vsel %vm6094, %v7111, %v7113
    %v7119 = vsel %vm6094, %v7113, %v7115
    %v7125 = vsel %vm1317, %v6997, 0
    %7127 = vmatpush.msra.mxu0 0.0
    %7128 = vmatpush.msra.mxu0 0.0
    %7129 = vmatpush.msra.mxu0 0.0
    %7130 = vmatpush.msra.mxu0 0.0
    %7131 = vmatpush.msra.mxu0 0.0
    %7132 = vmatpush.msra.mxu0 0.0
    %7133 = vmatpush.msra.mxu0 0.0
    %7134 = vmatpush.msra.mxu0 0.0
    %7135 = vmatpush.msra.mxu0 0.0
    %7136 = vmatpush.msra.mxu0 0.0
    %7137 = vmatpush.msra.mxu0 0.0
    %7138 = vmatpush.msra.mxu0 0.0
    %7139 = vmatpush.msra.mxu0 0.0
    %7140 = vmatpush.msra.mxu0 0.0
    %7141 = vmatpush.msra.mxu0 0.0
    %7142 = vmatpush.msra.mxu0 %v7116
    %7143 = vmatmul.f32.gmra.mxu0 %v7125
    %v7144 = vpop.f32.mrf.mxu0
    %v7145 = vadd.f32 %v7044, %v7144
    %7146 = vdwg.mxu0
    %7147 = vmatpush.msra.mxu0 0.0
    %7148 = vmatpush.msra.mxu0 0.0
    %7149 = vmatpush.msra.mxu0 0.0
    %7150 = vmatpush.msra.mxu0 0.0
    %7151 = vmatpush.msra.mxu0 0.0
    %7152 = vmatpush.msra.mxu0 0.0
    %7153 = vmatpush.msra.mxu0 0.0
    %7154 = vmatpush.msra.mxu0 0.0
    %7155 = vmatpush.msra.mxu0 0.0
    %7156 = vmatpush.msra.mxu0 0.0
    %7157 = vmatpush.msra.mxu0 0.0
    %7158 = vmatpush.msra.mxu0 0.0
    %7159 = vmatpush.msra.mxu0 0.0
    %7160 = vmatpush.msra.mxu0 0.0
    %7161 = vmatpush.msra.mxu0 0.0
    %7162 = vmatpush.msra.mxu0 %v7117
    %7163 = vmatmul.f32.gmra.mxu0 %v7125
    %v7164 = vpop.f32.mrf.mxu0
    %v7165 = vadd.f32 %v7064, %v7164
    %7166 = vdwg.mxu0
    %7167 = vmatpush.msra.mxu0 0.0
    %7168 = vmatpush.msra.mxu0 0.0
    %7169 = vmatpush.msra.mxu0 0.0
    %7170 = vmatpush.msra.mxu0 0.0
    %7171 = vmatpush.msra.mxu0 0.0
    %7172 = vmatpush.msra.mxu0 0.0
    %7173 = vmatpush.msra.mxu0 0.0
    %7174 = vmatpush.msra.mxu0 0.0
    %7175 = vmatpush.msra.mxu0 0.0
    %7176 = vmatpush.msra.mxu0 0.0
    %7177 = vmatpush.msra.mxu0 0.0
    %7178 = vmatpush.msra.mxu0 0.0
    %7179 = vmatpush.msra.mxu0 0.0
    %7180 = vmatpush.msra.mxu0 0.0
    %7181 = vmatpush.msra.mxu0 0.0
    %7182 = vmatpush.msra.mxu0 %v7118
    %7183 = vmatmul.f32.gmra.mxu0 %v7125
    %v7184 = vpop.f32.mrf.mxu0
    %v7185 = vadd.f32 %v7084, %v7184
    %7186 = vdwg.mxu0
    %7187 = vmatpush.msra.mxu0 0.0
    %7188 = vmatpush.msra.mxu0 0.0
    %7189 = vmatpush.msra.mxu0 0.0
    %7190 = vmatpush.msra.mxu0 0.0
    %7191 = vmatpush.msra.mxu0 0.0
    %7192 = vmatpush.msra.mxu0 0.0
    %7193 = vmatpush.msra.mxu0 0.0
    %7194 = vmatpush.msra.mxu0 0.0
    %7195 = vmatpush.msra.mxu0 0.0
    %7196 = vmatpush.msra.mxu0 0.0
    %7197 = vmatpush.msra.mxu0 0.0
    %7198 = vmatpush.msra.mxu0 0.0
    %7199 = vmatpush.msra.mxu0 0.0
    %7200 = vmatpush.msra.mxu0 0.0
    %7201 = vmatpush.msra.mxu0 0.0
    %7202 = vmatpush.msra.mxu0 %v7119
    %7203 = vmatmul.f32.gmra.mxu0 %v7125
    %v7204 = vpop.f32.mrf.mxu0
    %v7205 = vadd.f32 %v7104, %v7204
    %7206 = vdwg.mxu0
    %s7207 = scalar_lea.vmem %s7, 16
    %v7208 = vld [vmem:[%s7207] sm:$0xff]
    %7209 = vrot.lane.b32.xlu0 %v6992, 111
    %v7210 = vpop.permute.xlu0 %7209
    %7211 = vrot.lane.b32.xlu0 %v6993, 111
    %v7212 = vpop.permute.xlu0 %7211
    %7213 = vrot.lane.b32.xlu0 %v6994, 111
    %v7214 = vpop.permute.xlu0 %7213
    %7215 = vrot.lane.b32.xlu0 %v6995, 111
    %v7216 = vpop.permute.xlu0 %7215
    %7217 = vrot.lane.b32.xlu0 %v6996, 111
    %v7218 = vpop.permute.xlu0 %7217
    %v7219 = vsel %vm6198, %v7210, %v7212
    %v7220 = vsel %vm6198, %v7212, %v7214
    %v7221 = vsel %vm6198, %v7214, %v7216
    %v7222 = vsel %vm6198, %v7216, %v7218
    %v7228 = vsel %vm1317, %v7208, 0
    %7230 = vmatpush.msra.mxu0 0.0
    %7231 = vmatpush.msra.mxu0 0.0
    %7232 = vmatpush.msra.mxu0 0.0
    %7233 = vmatpush.msra.mxu0 0.0
    %7234 = vmatpush.msra.mxu0 0.0
    %7235 = vmatpush.msra.mxu0 0.0
    %7236 = vmatpush.msra.mxu0 0.0
    %7237 = vmatpush.msra.mxu0 0.0
    %7238 = vmatpush.msra.mxu0 0.0
    %7239 = vmatpush.msra.mxu0 0.0
    %7240 = vmatpush.msra.mxu0 0.0
    %7241 = vmatpush.msra.mxu0 0.0
    %7242 = vmatpush.msra.mxu0 0.0
    %7243 = vmatpush.msra.mxu0 0.0
    %7244 = vmatpush.msra.mxu0 0.0
    %7245 = vmatpush.msra.mxu0 %v7219
    %7246 = vmatmul.f32.gmra.mxu0 %v7228
    %v7247 = vpop.f32.mrf.mxu0
    %v7248 = vadd.f32 0.0, %v7247
    %7249 = vdwg.mxu0
    %7250 = vmatpush.msra.mxu0 0.0
    %7251 = vmatpush.msra.mxu0 0.0
    %7252 = vmatpush.msra.mxu0 0.0
    %7253 = vmatpush.msra.mxu0 0.0
    %7254 = vmatpush.msra.mxu0 0.0
    %7255 = vmatpush.msra.mxu0 0.0
    %7256 = vmatpush.msra.mxu0 0.0
    %7257 = vmatpush.msra.mxu0 0.0
    %7258 = vmatpush.msra.mxu0 0.0
    %7259 = vmatpush.msra.mxu0 0.0
    %7260 = vmatpush.msra.mxu0 0.0
    %7261 = vmatpush.msra.mxu0 0.0
    %7262 = vmatpush.msra.mxu0 0.0
    %7263 = vmatpush.msra.mxu0 0.0
    %7264 = vmatpush.msra.mxu0 0.0
    %7265 = vmatpush.msra.mxu0 %v7220
    %7266 = vmatmul.f32.gmra.mxu0 %v7228
    %v7267 = vpop.f32.mrf.mxu0
    %v7268 = vadd.f32 0.0, %v7267
    %7269 = vdwg.mxu0
    %7270 = vmatpush.msra.mxu0 0.0
    %7271 = vmatpush.msra.mxu0 0.0
    %7272 = vmatpush.msra.mxu0 0.0
    %7273 = vmatpush.msra.mxu0 0.0
    %7274 = vmatpush.msra.mxu0 0.0
    %7275 = vmatpush.msra.mxu0 0.0
    %7276 = vmatpush.msra.mxu0 0.0
    %7277 = vmatpush.msra.mxu0 0.0
    %7278 = vmatpush.msra.mxu0 0.0
    %7279 = vmatpush.msra.mxu0 0.0
    %7280 = vmatpush.msra.mxu0 0.0
    %7281 = vmatpush.msra.mxu0 0.0
    %7282 = vmatpush.msra.mxu0 0.0
    %7283 = vmatpush.msra.mxu0 0.0
    %7284 = vmatpush.msra.mxu0 0.0
    %7285 = vmatpush.msra.mxu0 %v7221
    %7286 = vmatmul.f32.gmra.mxu0 %v7228
    %v7287 = vpop.f32.mrf.mxu0
    %v7288 = vadd.f32 0.0, %v7287
    %7289 = vdwg.mxu0
    %7290 = vmatpush.msra.mxu0 0.0
    %7291 = vmatpush.msra.mxu0 0.0
    %7292 = vmatpush.msra.mxu0 0.0
    %7293 = vmatpush.msra.mxu0 0.0
    %7294 = vmatpush.msra.mxu0 0.0
    %7295 = vmatpush.msra.mxu0 0.0
    %7296 = vmatpush.msra.mxu0 0.0
    %7297 = vmatpush.msra.mxu0 0.0
    %7298 = vmatpush.msra.mxu0 0.0
    %7299 = vmatpush.msra.mxu0 0.0
    %7300 = vmatpush.msra.mxu0 0.0
    %7301 = vmatpush.msra.mxu0 0.0
    %7302 = vmatpush.msra.mxu0 0.0
    %7303 = vmatpush.msra.mxu0 0.0
    %7304 = vmatpush.msra.mxu0 0.0
    %7305 = vmatpush.msra.mxu0 %v7222
    %7306 = vmatmul.f32.gmra.mxu0 %v7228
    %v7307 = vpop.f32.mrf.mxu0
    %v7308 = vadd.f32 0.0, %v7307
    %7309 = vdwg.mxu0
    %v7310 = vadd.f32 %v7145, %v7248
    %v7311 = vadd.f32 %v7165, %v7268
    %v7312 = vadd.f32 %v7185, %v7288
    %v7313 = vadd.f32 %v7205, %v7308
    %s7314 = scalar_lea.vmem %s7, 24
    %v7315 = vld [vmem:[%s7314] sm:$0xff]
    %7316 = vrot.lane.b32.xlu0 %v6992, 97
    %v7317 = vpop.permute.xlu0 %7316
    %7318 = vrot.lane.b32.xlu0 %v6993, 97
    %v7319 = vpop.permute.xlu0 %7318
    %7320 = vrot.lane.b32.xlu0 %v6994, 97
    %v7321 = vpop.permute.xlu0 %7320
    %7322 = vrot.lane.b32.xlu0 %v6995, 97
    %v7323 = vpop.permute.xlu0 %7322
    %7324 = vrot.lane.b32.xlu0 %v6996, 97
    %v7325 = vpop.permute.xlu0 %7324
    %v7326 = vsel %vm510, %v7317, %v7319
    %v7327 = vsel %vm510, %v7319, %v7321
    %v7328 = vsel %vm510, %v7321, %v7323
    %v7329 = vsel %vm510, %v7323, %v7325
    %v7335 = vsel %vm1317, %v7315, 0
    %7337 = vmatpush.msra.mxu0 0.0
    %7338 = vmatpush.msra.mxu0 0.0
    %7339 = vmatpush.msra.mxu0 0.0
    %7340 = vmatpush.msra.mxu0 0.0
    %7341 = vmatpush.msra.mxu0 0.0
    %7342 = vmatpush.msra.mxu0 0.0
    %7343 = vmatpush.msra.mxu0 0.0
    %7344 = vmatpush.msra.mxu0 0.0
    %7345 = vmatpush.msra.mxu0 0.0
    %7346 = vmatpush.msra.mxu0 0.0
    %7347 = vmatpush.msra.mxu0 0.0
    %7348 = vmatpush.msra.mxu0 0.0
    %7349 = vmatpush.msra.mxu0 0.0
    %7350 = vmatpush.msra.mxu0 0.0
    %7351 = vmatpush.msra.mxu0 0.0
    %7352 = vmatpush.msra.mxu0 %v7326
    %7353 = vmatmul.f32.gmra.mxu0 %v7335
    %v7354 = vpop.f32.mrf.mxu0
    %v7355 = vadd.f32 0.0, %v7354
    %7356 = vdwg.mxu0
    %7357 = vmatpush.msra.mxu0 0.0
    %7358 = vmatpush.msra.mxu0 0.0
    %7359 = vmatpush.msra.mxu0 0.0
    %7360 = vmatpush.msra.mxu0 0.0
    %7361 = vmatpush.msra.mxu0 0.0
    %7362 = vmatpush.msra.mxu0 0.0
    %7363 = vmatpush.msra.mxu0 0.0
    %7364 = vmatpush.msra.mxu0 0.0
    %7365 = vmatpush.msra.mxu0 0.0
    %7366 = vmatpush.msra.mxu0 0.0
    %7367 = vmatpush.msra.mxu0 0.0
    %7368 = vmatpush.msra.mxu0 0.0
    %7369 = vmatpush.msra.mxu0 0.0
    %7370 = vmatpush.msra.mxu0 0.0
    %7371 = vmatpush.msra.mxu0 0.0
    %7372 = vmatpush.msra.mxu0 %v7327
    %7373 = vmatmul.f32.gmra.mxu0 %v7335
    %v7374 = vpop.f32.mrf.mxu0
    %v7375 = vadd.f32 0.0, %v7374
    %7376 = vdwg.mxu0
    %7377 = vmatpush.msra.mxu0 0.0
    %7378 = vmatpush.msra.mxu0 0.0
    %7379 = vmatpush.msra.mxu0 0.0
    %7380 = vmatpush.msra.mxu0 0.0
    %7381 = vmatpush.msra.mxu0 0.0
    %7382 = vmatpush.msra.mxu0 0.0
    %7383 = vmatpush.msra.mxu0 0.0
    %7384 = vmatpush.msra.mxu0 0.0
    %7385 = vmatpush.msra.mxu0 0.0
    %7386 = vmatpush.msra.mxu0 0.0
    %7387 = vmatpush.msra.mxu0 0.0
    %7388 = vmatpush.msra.mxu0 0.0
    %7389 = vmatpush.msra.mxu0 0.0
    %7390 = vmatpush.msra.mxu0 0.0
    %7391 = vmatpush.msra.mxu0 0.0
    %7392 = vmatpush.msra.mxu0 %v7328
    %7393 = vmatmul.f32.gmra.mxu0 %v7335
    %v7394 = vpop.f32.mrf.mxu0
    %v7395 = vadd.f32 0.0, %v7394
    %7396 = vdwg.mxu0
    %7397 = vmatpush.msra.mxu0 0.0
    %7398 = vmatpush.msra.mxu0 0.0
    %7399 = vmatpush.msra.mxu0 0.0
    %7400 = vmatpush.msra.mxu0 0.0
    %7401 = vmatpush.msra.mxu0 0.0
    %7402 = vmatpush.msra.mxu0 0.0
    %7403 = vmatpush.msra.mxu0 0.0
    %7404 = vmatpush.msra.mxu0 0.0
    %7405 = vmatpush.msra.mxu0 0.0
    %7406 = vmatpush.msra.mxu0 0.0
    %7407 = vmatpush.msra.mxu0 0.0
    %7408 = vmatpush.msra.mxu0 0.0
    %7409 = vmatpush.msra.mxu0 0.0
    %7410 = vmatpush.msra.mxu0 0.0
    %7411 = vmatpush.msra.mxu0 0.0
    %7412 = vmatpush.msra.mxu0 %v7329
    %7413 = vmatmul.f32.gmra.mxu0 %v7335
    %v7414 = vpop.f32.mrf.mxu0
    %v7415 = vadd.f32 0.0, %v7414
    %7416 = vdwg.mxu0
    %v7417 = vadd.f32 %v7310, %v7355
    %v7418 = vadd.f32 %v7311, %v7375
    %v7419 = vadd.f32 %v7312, %v7395
    %v7420 = vadd.f32 %v7313, %v7415
    %s7421 = scalar_lea.vmem %s7, 32
    %v7422 = vld [vmem:[%s7421] sm:$0xff]
    %7423 = vrot.lane.b32.xlu0 %v6992, 96
    %v7424 = vpop.permute.xlu0 %7423
    %7425 = vrot.lane.b32.xlu0 %v6993, 96
    %v7426 = vpop.permute.xlu0 %7425
    %7427 = vrot.lane.b32.xlu0 %v6994, 96
    %v7428 = vpop.permute.xlu0 %7427
    %7429 = vrot.lane.b32.xlu0 %v6995, 96
    %v7430 = vpop.permute.xlu0 %7429
    %7431 = vrot.lane.b32.xlu0 %v6996, 96
    %v7432 = vpop.permute.xlu0 %7431
    %v7433 = vsel %vm622, %v7424, %v7426
    %v7434 = vsel %vm622, %v7426, %v7428
    %v7435 = vsel %vm622, %v7428, %v7430
    %v7436 = vsel %vm622, %v7430, %v7432
    %v7442 = vsel %vm1317, %v7422, 0
    %7444 = vmatpush.msra.mxu0 0.0
    %7445 = vmatpush.msra.mxu0 0.0
    %7446 = vmatpush.msra.mxu0 0.0
    %7447 = vmatpush.msra.mxu0 0.0
    %7448 = vmatpush.msra.mxu0 0.0
    %7449 = vmatpush.msra.mxu0 0.0
    %7450 = vmatpush.msra.mxu0 0.0
    %7451 = vmatpush.msra.mxu0 0.0
    %7452 = vmatpush.msra.mxu0 0.0
    %7453 = vmatpush.msra.mxu0 0.0
    %7454 = vmatpush.msra.mxu0 0.0
    %7455 = vmatpush.msra.mxu0 0.0
    %7456 = vmatpush.msra.mxu0 0.0
    %7457 = vmatpush.msra.mxu0 0.0
    %7458 = vmatpush.msra.mxu0 0.0
    %7459 = vmatpush.msra.mxu0 %v7433
    %7460 = vmatmul.f32.gmra.mxu0 %v7442
    %v7461 = vpop.f32.mrf.mxu0
    %v7462 = vadd.f32 0.0, %v7461
    %7463 = vdwg.mxu0
    %7464 = vmatpush.msra.mxu0 0.0
    %7465 = vmatpush.msra.mxu0 0.0
    %7466 = vmatpush.msra.mxu0 0.0
    %7467 = vmatpush.msra.mxu0 0.0
    %7468 = vmatpush.msra.mxu0 0.0
    %7469 = vmatpush.msra.mxu0 0.0
    %7470 = vmatpush.msra.mxu0 0.0
    %7471 = vmatpush.msra.mxu0 0.0
    %7472 = vmatpush.msra.mxu0 0.0
    %7473 = vmatpush.msra.mxu0 0.0
    %7474 = vmatpush.msra.mxu0 0.0
    %7475 = vmatpush.msra.mxu0 0.0
    %7476 = vmatpush.msra.mxu0 0.0
    %7477 = vmatpush.msra.mxu0 0.0
    %7478 = vmatpush.msra.mxu0 0.0
    %7479 = vmatpush.msra.mxu0 %v7434
    %7480 = vmatmul.f32.gmra.mxu0 %v7442
    %v7481 = vpop.f32.mrf.mxu0
    %v7482 = vadd.f32 0.0, %v7481
    %7483 = vdwg.mxu0
    %7484 = vmatpush.msra.mxu0 0.0
    %7485 = vmatpush.msra.mxu0 0.0
    %7486 = vmatpush.msra.mxu0 0.0
    %7487 = vmatpush.msra.mxu0 0.0
    %7488 = vmatpush.msra.mxu0 0.0
    %7489 = vmatpush.msra.mxu0 0.0
    %7490 = vmatpush.msra.mxu0 0.0
    %7491 = vmatpush.msra.mxu0 0.0
    %7492 = vmatpush.msra.mxu0 0.0
    %7493 = vmatpush.msra.mxu0 0.0
    %7494 = vmatpush.msra.mxu0 0.0
    %7495 = vmatpush.msra.mxu0 0.0
    %7496 = vmatpush.msra.mxu0 0.0
    %7497 = vmatpush.msra.mxu0 0.0
    %7498 = vmatpush.msra.mxu0 0.0
    %7499 = vmatpush.msra.mxu0 %v7435
    %7500 = vmatmul.f32.gmra.mxu0 %v7442
    %v7501 = vpop.f32.mrf.mxu0
    %v7502 = vadd.f32 0.0, %v7501
    %7503 = vdwg.mxu0
    %7504 = vmatpush.msra.mxu0 0.0
    %7505 = vmatpush.msra.mxu0 0.0
    %7506 = vmatpush.msra.mxu0 0.0
    %7507 = vmatpush.msra.mxu0 0.0
    %7508 = vmatpush.msra.mxu0 0.0
    %7509 = vmatpush.msra.mxu0 0.0
    %7510 = vmatpush.msra.mxu0 0.0
    %7511 = vmatpush.msra.mxu0 0.0
    %7512 = vmatpush.msra.mxu0 0.0
    %7513 = vmatpush.msra.mxu0 0.0
    %7514 = vmatpush.msra.mxu0 0.0
    %7515 = vmatpush.msra.mxu0 0.0
    %7516 = vmatpush.msra.mxu0 0.0
    %7517 = vmatpush.msra.mxu0 0.0
    %7518 = vmatpush.msra.mxu0 0.0
    %7519 = vmatpush.msra.mxu0 %v7436
    %7520 = vmatmul.f32.gmra.mxu0 %v7442
    %v7521 = vpop.f32.mrf.mxu0
    %v7522 = vadd.f32 0.0, %v7521
    %7523 = vdwg.mxu0
    %v7524 = vadd.f32 %v7417, %v7462
    %v7525 = vadd.f32 %v7418, %v7482
    %v7526 = vadd.f32 %v7419, %v7502
    %v7527 = vadd.f32 %v7420, %v7522
    %s7528 = scalar_lea.vmem %s7, 40
    %v7529 = vld [vmem:[%s7528] sm:$0xff]
    %7530 = vrot.lane.b32.xlu0 %v6992, 95
    %v7531 = vpop.permute.xlu0 %7530
    %7532 = vrot.lane.b32.xlu0 %v6993, 95
    %v7533 = vpop.permute.xlu0 %7532
    %7534 = vrot.lane.b32.xlu0 %v6994, 95
    %v7535 = vpop.permute.xlu0 %7534
    %7536 = vrot.lane.b32.xlu0 %v6995, 95
    %v7537 = vpop.permute.xlu0 %7536
    %7538 = vrot.lane.b32.xlu0 %v6996, 95
    %v7539 = vpop.permute.xlu0 %7538
    %v7540 = vsel %vm3153, %v7531, %v7533
    %v7541 = vsel %vm3153, %v7533, %v7535
    %v7542 = vsel %vm3153, %v7535, %v7537
    %v7543 = vsel %vm3153, %v7537, %v7539
    %v7549 = vsel %vm1317, %v7529, 0
    %7551 = vmatpush.msra.mxu0 0.0
    %7552 = vmatpush.msra.mxu0 0.0
    %7553 = vmatpush.msra.mxu0 0.0
    %7554 = vmatpush.msra.mxu0 0.0
    %7555 = vmatpush.msra.mxu0 0.0
    %7556 = vmatpush.msra.mxu0 0.0
    %7557 = vmatpush.msra.mxu0 0.0
    %7558 = vmatpush.msra.mxu0 0.0
    %7559 = vmatpush.msra.mxu0 0.0
    %7560 = vmatpush.msra.mxu0 0.0
    %7561 = vmatpush.msra.mxu0 0.0
    %7562 = vmatpush.msra.mxu0 0.0
    %7563 = vmatpush.msra.mxu0 0.0
    %7564 = vmatpush.msra.mxu0 0.0
    %7565 = vmatpush.msra.mxu0 0.0
    %7566 = vmatpush.msra.mxu0 %v7540
    %7567 = vmatmul.f32.gmra.mxu0 %v7549
    %v7568 = vpop.f32.mrf.mxu0
    %v7569 = vadd.f32 0.0, %v7568
    %7570 = vdwg.mxu0
    %7571 = vmatpush.msra.mxu0 0.0
    %7572 = vmatpush.msra.mxu0 0.0
    %7573 = vmatpush.msra.mxu0 0.0
    %7574 = vmatpush.msra.mxu0 0.0
    %7575 = vmatpush.msra.mxu0 0.0
    %7576 = vmatpush.msra.mxu0 0.0
    %7577 = vmatpush.msra.mxu0 0.0
    %7578 = vmatpush.msra.mxu0 0.0
    %7579 = vmatpush.msra.mxu0 0.0
    %7580 = vmatpush.msra.mxu0 0.0
    %7581 = vmatpush.msra.mxu0 0.0
    %7582 = vmatpush.msra.mxu0 0.0
    %7583 = vmatpush.msra.mxu0 0.0
    %7584 = vmatpush.msra.mxu0 0.0
    %7585 = vmatpush.msra.mxu0 0.0
    %7586 = vmatpush.msra.mxu0 %v7541
    %7587 = vmatmul.f32.gmra.mxu0 %v7549
    %v7588 = vpop.f32.mrf.mxu0
    %v7589 = vadd.f32 0.0, %v7588
    %7590 = vdwg.mxu0
    %7591 = vmatpush.msra.mxu0 0.0
    %7592 = vmatpush.msra.mxu0 0.0
    %7593 = vmatpush.msra.mxu0 0.0
    %7594 = vmatpush.msra.mxu0 0.0
    %7595 = vmatpush.msra.mxu0 0.0
    %7596 = vmatpush.msra.mxu0 0.0
    %7597 = vmatpush.msra.mxu0 0.0
    %7598 = vmatpush.msra.mxu0 0.0
    %7599 = vmatpush.msra.mxu0 0.0
    %7600 = vmatpush.msra.mxu0 0.0
    %7601 = vmatpush.msra.mxu0 0.0
    %7602 = vmatpush.msra.mxu0 0.0
    %7603 = vmatpush.msra.mxu0 0.0
    %7604 = vmatpush.msra.mxu0 0.0
    %7605 = vmatpush.msra.mxu0 0.0
    %7606 = vmatpush.msra.mxu0 %v7542
    %7607 = vmatmul.f32.gmra.mxu0 %v7549
    %v7608 = vpop.f32.mrf.mxu0
    %v7609 = vadd.f32 0.0, %v7608
    %7610 = vdwg.mxu0
    %7611 = vmatpush.msra.mxu0 0.0
    %7612 = vmatpush.msra.mxu0 0.0
    %7613 = vmatpush.msra.mxu0 0.0
    %7614 = vmatpush.msra.mxu0 0.0
    %7615 = vmatpush.msra.mxu0 0.0
    %7616 = vmatpush.msra.mxu0 0.0
    %7617 = vmatpush.msra.mxu0 0.0
    %7618 = vmatpush.msra.mxu0 0.0
    %7619 = vmatpush.msra.mxu0 0.0
    %7620 = vmatpush.msra.mxu0 0.0
    %7621 = vmatpush.msra.mxu0 0.0
    %7622 = vmatpush.msra.mxu0 0.0
    %7623 = vmatpush.msra.mxu0 0.0
    %7624 = vmatpush.msra.mxu0 0.0
    %7625 = vmatpush.msra.mxu0 0.0
    %7626 = vmatpush.msra.mxu0 %v7543
    %7627 = vmatmul.f32.gmra.mxu0 %v7549
    %v7628 = vpop.f32.mrf.mxu0
    %v7629 = vadd.f32 0.0, %v7628
    %7630 = vdwg.mxu0
    %v7631 = vadd.f32 %v7524, %v7569
    %v7632 = vadd.f32 %v7525, %v7589
    %v7633 = vadd.f32 %v7526, %v7609
    %v7634 = vadd.f32 %v7527, %v7629
    %s7635 = scalar_lea.vmem %s7, 48
    %v7636 = vld [vmem:[%s7635] sm:$0xff]
    %7637 = vrot.lane.b32.xlu0 %v6992, 81
    %v7638 = vpop.permute.xlu0 %7637
    %7639 = vrot.lane.b32.xlu0 %v6993, 81
    %v7640 = vpop.permute.xlu0 %7639
    %7641 = vrot.lane.b32.xlu0 %v6994, 81
    %v7642 = vpop.permute.xlu0 %7641
    %7643 = vrot.lane.b32.xlu0 %v6995, 81
    %v7644 = vpop.permute.xlu0 %7643
    %7645 = vrot.lane.b32.xlu0 %v6996, 81
    %v7646 = vpop.permute.xlu0 %7645
    %v7647 = vsel %vm6627, %v7638, %v7640
    %v7648 = vsel %vm6627, %v7640, %v7642
    %v7649 = vsel %vm6627, %v7642, %v7644
    %v7650 = vsel %vm6627, %v7644, %v7646
    %v7656 = vsel %vm1317, %v7636, 0
    %7658 = vmatpush.msra.mxu0 0.0
    %7659 = vmatpush.msra.mxu0 0.0
    %7660 = vmatpush.msra.mxu0 0.0
    %7661 = vmatpush.msra.mxu0 0.0
    %7662 = vmatpush.msra.mxu0 0.0
    %7663 = vmatpush.msra.mxu0 0.0
    %7664 = vmatpush.msra.mxu0 0.0
    %7665 = vmatpush.msra.mxu0 0.0
    %7666 = vmatpush.msra.mxu0 0.0
    %7667 = vmatpush.msra.mxu0 0.0
    %7668 = vmatpush.msra.mxu0 0.0
    %7669 = vmatpush.msra.mxu0 0.0
    %7670 = vmatpush.msra.mxu0 0.0
    %7671 = vmatpush.msra.mxu0 0.0
    %7672 = vmatpush.msra.mxu0 0.0
    %7673 = vmatpush.msra.mxu0 %v7647
    %7674 = vmatmul.f32.gmra.mxu0 %v7656
    %v7675 = vpop.f32.mrf.mxu0
    %v7676 = vadd.f32 0.0, %v7675
    %7677 = vdwg.mxu0
    %7678 = vmatpush.msra.mxu0 0.0
    %7679 = vmatpush.msra.mxu0 0.0
    %7680 = vmatpush.msra.mxu0 0.0
    %7681 = vmatpush.msra.mxu0 0.0
    %7682 = vmatpush.msra.mxu0 0.0
    %7683 = vmatpush.msra.mxu0 0.0
    %7684 = vmatpush.msra.mxu0 0.0
    %7685 = vmatpush.msra.mxu0 0.0
    %7686 = vmatpush.msra.mxu0 0.0
    %7687 = vmatpush.msra.mxu0 0.0
    %7688 = vmatpush.msra.mxu0 0.0
    %7689 = vmatpush.msra.mxu0 0.0
    %7690 = vmatpush.msra.mxu0 0.0
    %7691 = vmatpush.msra.mxu0 0.0
    %7692 = vmatpush.msra.mxu0 0.0
    %7693 = vmatpush.msra.mxu0 %v7648
    %7694 = vmatmul.f32.gmra.mxu0 %v7656
    %v7695 = vpop.f32.mrf.mxu0
    %v7696 = vadd.f32 0.0, %v7695
    %7697 = vdwg.mxu0
    %7698 = vmatpush.msra.mxu0 0.0
    %7699 = vmatpush.msra.mxu0 0.0
    %7700 = vmatpush.msra.mxu0 0.0
    %7701 = vmatpush.msra.mxu0 0.0
    %7702 = vmatpush.msra.mxu0 0.0
    %7703 = vmatpush.msra.mxu0 0.0
    %7704 = vmatpush.msra.mxu0 0.0
    %7705 = vmatpush.msra.mxu0 0.0
    %7706 = vmatpush.msra.mxu0 0.0
    %7707 = vmatpush.msra.mxu0 0.0
    %7708 = vmatpush.msra.mxu0 0.0
    %7709 = vmatpush.msra.mxu0 0.0
    %7710 = vmatpush.msra.mxu0 0.0
    %7711 = vmatpush.msra.mxu0 0.0
    %7712 = vmatpush.msra.mxu0 0.0
    %7713 = vmatpush.msra.mxu0 %v7649
    %7714 = vmatmul.f32.gmra.mxu0 %v7656
    %v7715 = vpop.f32.mrf.mxu0
    %v7716 = vadd.f32 0.0, %v7715
    %7717 = vdwg.mxu0
    %7718 = vmatpush.msra.mxu0 0.0
    %7719 = vmatpush.msra.mxu0 0.0
    %7720 = vmatpush.msra.mxu0 0.0
    %7721 = vmatpush.msra.mxu0 0.0
    %7722 = vmatpush.msra.mxu0 0.0
    %7723 = vmatpush.msra.mxu0 0.0
    %7724 = vmatpush.msra.mxu0 0.0
    %7725 = vmatpush.msra.mxu0 0.0
    %7726 = vmatpush.msra.mxu0 0.0
    %7727 = vmatpush.msra.mxu0 0.0
    %7728 = vmatpush.msra.mxu0 0.0
    %7729 = vmatpush.msra.mxu0 0.0
    %7730 = vmatpush.msra.mxu0 0.0
    %7731 = vmatpush.msra.mxu0 0.0
    %7732 = vmatpush.msra.mxu0 0.0
    %7733 = vmatpush.msra.mxu0 %v7650
    %7734 = vmatmul.f32.gmra.mxu0 %v7656
    %v7735 = vpop.f32.mrf.mxu0
    %v7736 = vadd.f32 0.0, %v7735
    %7737 = vdwg.mxu0
    %v7738 = vadd.f32 %v7631, %v7676
    %v7739 = vadd.f32 %v7632, %v7696
    %v7740 = vadd.f32 %v7633, %v7716
    %v7741 = vadd.f32 %v7634, %v7736
    %s7742 = scalar_lea.vmem %s7, 56
    %v7743 = vld [vmem:[%s7742] sm:$0xff]
    %7744 = vrot.lane.b32.xlu0 %v6992, 80
    %v7745 = vpop.permute.xlu0 %7744
    %7746 = vrot.lane.b32.xlu0 %v6993, 80
    %v7747 = vpop.permute.xlu0 %7746
    %7748 = vrot.lane.b32.xlu0 %v6994, 80
    %v7749 = vpop.permute.xlu0 %7748
    %7750 = vrot.lane.b32.xlu0 %v6995, 80
    %v7751 = vpop.permute.xlu0 %7750
    %7752 = vrot.lane.b32.xlu0 %v6996, 80
    %v7753 = vpop.permute.xlu0 %7752
    %v7754 = vsel %vm6735, %v7745, %v7747
    %v7755 = vsel %vm6735, %v7747, %v7749
    %v7756 = vsel %vm6735, %v7749, %v7751
    %v7757 = vsel %vm6735, %v7751, %v7753
    %v7763 = vsel %vm1317, %v7743, 0
    %7765 = vmatpush.msra.mxu0 0.0
    %7766 = vmatpush.msra.mxu0 0.0
    %7767 = vmatpush.msra.mxu0 0.0
    %7768 = vmatpush.msra.mxu0 0.0
    %7769 = vmatpush.msra.mxu0 0.0
    %7770 = vmatpush.msra.mxu0 0.0
    %7771 = vmatpush.msra.mxu0 0.0
    %7772 = vmatpush.msra.mxu0 0.0
    %7773 = vmatpush.msra.mxu0 0.0
    %7774 = vmatpush.msra.mxu0 0.0
    %7775 = vmatpush.msra.mxu0 0.0
    %7776 = vmatpush.msra.mxu0 0.0
    %7777 = vmatpush.msra.mxu0 0.0
    %7778 = vmatpush.msra.mxu0 0.0
    %7779 = vmatpush.msra.mxu0 0.0
    %7780 = vmatpush.msra.mxu0 %v7754
    %7781 = vmatmul.f32.gmra.mxu0 %v7763
    %v7782 = vpop.f32.mrf.mxu0
    %v7783 = vadd.f32 0.0, %v7782
    %7784 = vdwg.mxu0
    %7785 = vmatpush.msra.mxu0 0.0
    %7786 = vmatpush.msra.mxu0 0.0
    %7787 = vmatpush.msra.mxu0 0.0
    %7788 = vmatpush.msra.mxu0 0.0
    %7789 = vmatpush.msra.mxu0 0.0
    %7790 = vmatpush.msra.mxu0 0.0
    %7791 = vmatpush.msra.mxu0 0.0
    %7792 = vmatpush.msra.mxu0 0.0
    %7793 = vmatpush.msra.mxu0 0.0
    %7794 = vmatpush.msra.mxu0 0.0
    %7795 = vmatpush.msra.mxu0 0.0
    %7796 = vmatpush.msra.mxu0 0.0
    %7797 = vmatpush.msra.mxu0 0.0
    %7798 = vmatpush.msra.mxu0 0.0
    %7799 = vmatpush.msra.mxu0 0.0
    %7800 = vmatpush.msra.mxu0 %v7755
    %7801 = vmatmul.f32.gmra.mxu0 %v7763
    %v7802 = vpop.f32.mrf.mxu0
    %v7803 = vadd.f32 0.0, %v7802
    %7804 = vdwg.mxu0
    %7805 = vmatpush.msra.mxu0 0.0
    %7806 = vmatpush.msra.mxu0 0.0
    %7807 = vmatpush.msra.mxu0 0.0
    %7808 = vmatpush.msra.mxu0 0.0
    %7809 = vmatpush.msra.mxu0 0.0
    %7810 = vmatpush.msra.mxu0 0.0
    %7811 = vmatpush.msra.mxu0 0.0
    %7812 = vmatpush.msra.mxu0 0.0
    %7813 = vmatpush.msra.mxu0 0.0
    %7814 = vmatpush.msra.mxu0 0.0
    %7815 = vmatpush.msra.mxu0 0.0
    %7816 = vmatpush.msra.mxu0 0.0
    %7817 = vmatpush.msra.mxu0 0.0
    %7818 = vmatpush.msra.mxu0 0.0
    %7819 = vmatpush.msra.mxu0 0.0
    %7820 = vmatpush.msra.mxu0 %v7756
    %7821 = vmatmul.f32.gmra.mxu0 %v7763
    %v7822 = vpop.f32.mrf.mxu0
    %v7823 = vadd.f32 0.0, %v7822
    %7824 = vdwg.mxu0
    %7825 = vmatpush.msra.mxu0 0.0
    %7826 = vmatpush.msra.mxu0 0.0
    %7827 = vmatpush.msra.mxu0 0.0
    %7828 = vmatpush.msra.mxu0 0.0
    %7829 = vmatpush.msra.mxu0 0.0
    %7830 = vmatpush.msra.mxu0 0.0
    %7831 = vmatpush.msra.mxu0 0.0
    %7832 = vmatpush.msra.mxu0 0.0
    %7833 = vmatpush.msra.mxu0 0.0
    %7834 = vmatpush.msra.mxu0 0.0
    %7835 = vmatpush.msra.mxu0 0.0
    %7836 = vmatpush.msra.mxu0 0.0
    %7837 = vmatpush.msra.mxu0 0.0
    %7838 = vmatpush.msra.mxu0 0.0
    %7839 = vmatpush.msra.mxu0 0.0
    %7840 = vmatpush.msra.mxu0 %v7757
    %7841 = vmatmul.f32.gmra.mxu0 %v7763
    %v7842 = vpop.f32.mrf.mxu0
    %v7843 = vadd.f32 0.0, %v7842
    %7844 = vdwg.mxu0
    %v7845 = vadd.f32 %v7738, %v7783
    %v7846 = vadd.f32 %v7739, %v7803
    %v7847 = vadd.f32 %v7740, %v7823
    %v7848 = vadd.f32 %v7741, %v7843
    %s7849 = scalar_lea.vmem %s7, 64
    %v7850 = vld [vmem:[%s7849] sm:$0xff]
    %7851 = vrot.lane.b32.xlu0 %v6992, 79
    %v7852 = vpop.permute.xlu0 %7851
    %7853 = vrot.lane.b32.xlu0 %v6993, 79
    %v7854 = vpop.permute.xlu0 %7853
    %7855 = vrot.lane.b32.xlu0 %v6994, 79
    %v7856 = vpop.permute.xlu0 %7855
    %7857 = vrot.lane.b32.xlu0 %v6995, 79
    %v7858 = vpop.permute.xlu0 %7857
    %7859 = vrot.lane.b32.xlu0 %v6996, 79
    %v7860 = vpop.permute.xlu0 %7859
    %v7861 = vsel %vm6843, %v7852, %v7854
    %v7862 = vsel %vm6843, %v7854, %v7856
    %v7863 = vsel %vm6843, %v7856, %v7858
    %v7864 = vsel %vm6843, %v7858, %v7860
    %v7870 = vsel %vm1317, %v7850, 0
    %7872 = vmatpush.msra.mxu0 0.0
    %7873 = vmatpush.msra.mxu0 0.0
    %7874 = vmatpush.msra.mxu0 0.0
    %7875 = vmatpush.msra.mxu0 0.0
    %7876 = vmatpush.msra.mxu0 0.0
    %7877 = vmatpush.msra.mxu0 0.0
    %7878 = vmatpush.msra.mxu0 0.0
    %7879 = vmatpush.msra.mxu0 0.0
    %7880 = vmatpush.msra.mxu0 0.0
    %7881 = vmatpush.msra.mxu0 0.0
    %7882 = vmatpush.msra.mxu0 0.0
    %7883 = vmatpush.msra.mxu0 0.0
    %7884 = vmatpush.msra.mxu0 0.0
    %7885 = vmatpush.msra.mxu0 0.0
    %7886 = vmatpush.msra.mxu0 0.0
    %7887 = vmatpush.msra.mxu0 %v7861
    %7888 = vmatmul.f32.gmra.mxu0 %v7870
    %v7889 = vpop.f32.mrf.mxu0
    %v7890 = vadd.f32 0.0, %v7889
    %7891 = vdwg.mxu0
    %7892 = vmatpush.msra.mxu0 0.0
    %7893 = vmatpush.msra.mxu0 0.0
    %7894 = vmatpush.msra.mxu0 0.0
    %7895 = vmatpush.msra.mxu0 0.0
    %7896 = vmatpush.msra.mxu0 0.0
    %7897 = vmatpush.msra.mxu0 0.0
    %7898 = vmatpush.msra.mxu0 0.0
    %7899 = vmatpush.msra.mxu0 0.0
    %7900 = vmatpush.msra.mxu0 0.0
    %7901 = vmatpush.msra.mxu0 0.0
    %7902 = vmatpush.msra.mxu0 0.0
    %7903 = vmatpush.msra.mxu0 0.0
    %7904 = vmatpush.msra.mxu0 0.0
    %7905 = vmatpush.msra.mxu0 0.0
    %7906 = vmatpush.msra.mxu0 0.0
    %7907 = vmatpush.msra.mxu0 %v7862
    %7908 = vmatmul.f32.gmra.mxu0 %v7870
    %v7909 = vpop.f32.mrf.mxu0
    %v7910 = vadd.f32 0.0, %v7909
    %7911 = vdwg.mxu0
    %7912 = vmatpush.msra.mxu0 0.0
    %7913 = vmatpush.msra.mxu0 0.0
    %7914 = vmatpush.msra.mxu0 0.0
    %7915 = vmatpush.msra.mxu0 0.0
    %7916 = vmatpush.msra.mxu0 0.0
    %7917 = vmatpush.msra.mxu0 0.0
    %7918 = vmatpush.msra.mxu0 0.0
    %7919 = vmatpush.msra.mxu0 0.0
    %7920 = vmatpush.msra.mxu0 0.0
    %7921 = vmatpush.msra.mxu0 0.0
    %7922 = vmatpush.msra.mxu0 0.0
    %7923 = vmatpush.msra.mxu0 0.0
    %7924 = vmatpush.msra.mxu0 0.0
    %7925 = vmatpush.msra.mxu0 0.0
    %7926 = vmatpush.msra.mxu0 0.0
    %7927 = vmatpush.msra.mxu0 %v7863
    %7928 = vmatmul.f32.gmra.mxu0 %v7870
    %v7929 = vpop.f32.mrf.mxu0
    %v7930 = vadd.f32 0.0, %v7929
    %7931 = vdwg.mxu0
    %7932 = vmatpush.msra.mxu0 0.0
    %7933 = vmatpush.msra.mxu0 0.0
    %7934 = vmatpush.msra.mxu0 0.0
    %7935 = vmatpush.msra.mxu0 0.0
    %7936 = vmatpush.msra.mxu0 0.0
    %7937 = vmatpush.msra.mxu0 0.0
    %7938 = vmatpush.msra.mxu0 0.0
    %7939 = vmatpush.msra.mxu0 0.0
    %7940 = vmatpush.msra.mxu0 0.0
    %7941 = vmatpush.msra.mxu0 0.0
    %7942 = vmatpush.msra.mxu0 0.0
    %7943 = vmatpush.msra.mxu0 0.0
    %7944 = vmatpush.msra.mxu0 0.0
    %7945 = vmatpush.msra.mxu0 0.0
    %7946 = vmatpush.msra.mxu0 0.0
    %7947 = vmatpush.msra.mxu0 %v7864
    %7948 = vmatmul.f32.gmra.mxu0 %v7870
    %v7949 = vpop.f32.mrf.mxu0
    %v7950 = vadd.f32 0.0, %v7949
    %7951 = vdwg.mxu0
    %v7952 = vadd.f32 %v7845, %v7890
    %v7953 = vadd.f32 %v7846, %v7910
    %v7954 = vadd.f32 %v7847, %v7930
    %v7955 = vadd.f32 %v7848, %v7950
    %v7956 = vld [vmem:[%s8] sm:$0xff]
    %7958 = vset.pattern.permute.xlu0 0
    %7959 = vperm.xlu0 %7958, %v7956
    %v7960 = vpop.permute.xlu0 %7959
    %v7962 = vadd.f32 %v7952, %v7960
    %v7963 = vadd.f32 %v7953, %v7960
    %v7964 = vadd.f32 %v7954, %v7960
    %v7965 = vadd.f32 %v7955, %v7960
    %v7966 = vmax.f32 %v7962, 0.0
    %v7967 = vmax.f32 %v7963, 0.0
    %v7968 = vmax.f32 %v7964, 0.0
    %v7969 = vmax.f32 %v7965, 0.0
    %7974 = vrot.lane.b32.xlu0 %v7966, 32
    %v7975 = vpop.permute.xlu0 %7974
    %7976 = vrot.lane.b32.xlu0 %v7967, 32
    %v7977 = vpop.permute.xlu0 %7976
    %7978 = vrot.lane.b32.xlu0 %v7968, 32
    %v7979 = vpop.permute.xlu0 %7978
    %7980 = vrot.lane.b32.xlu0 %v7969, 32
    %v7981 = vpop.permute.xlu0 %7980
    %v7982 = vsel %vm48, %v7975, %v7977
    %v7983 = vsel %vm48, %v7977, %v7979
    %v7984 = vsel %vm48, %v7979, %v7981
    %7990 = vst.msk [vmem:[#allocation2] sm:$0xff] %vm1208, %v7975
    %7991 = vst [vmem:[#allocation2 + $0x8] sm:$0xff] %v7982
    %7992 = vst [vmem:[#allocation2 + $0x10] sm:$0xff] %v7983
    %7993 = vst [vmem:[#allocation2 + $0x18] sm:$0xff] %v7984
    %7994 = vst.msk [vmem:[#allocation2 + $0x20] sm:$0xff] %vm48, %v7981
    %v7995 = vld [vmem:[#allocation2] sm:$0xff]
    %v7996 = vld [vmem:[#allocation2 + $0x8] sm:$0xff]
    %v7997 = vld [vmem:[#allocation2 + $0x10] sm:$0xff]
    %v7998 = vld [vmem:[#allocation2 + $0x18] sm:$0xff]
    %v7999 = vld [vmem:[#allocation2 + $0x20] sm:$0xff]
    %8005 = vrot.lane.b32.xlu0 %v7995, 127
    %v8006 = vpop.permute.xlu0 %8005
    %8007 = vrot.lane.b32.xlu0 %v7996, 127
    %v8008 = vpop.permute.xlu0 %8007
    %8009 = vrot.lane.b32.xlu0 %v7997, 127
    %v8010 = vpop.permute.xlu0 %8009
    %8011 = vrot.lane.b32.xlu0 %v7998, 127
    %v8012 = vpop.permute.xlu0 %8011
    %8013 = vrot.lane.b32.xlu0 %v7999, 127
    %v8014 = vpop.permute.xlu0 %8013
    %v8015 = vsel %vm174, %v8006, %v8008
    %v8016 = vsel %vm174, %v8008, %v8010
    %v8017 = vsel %vm174, %v8010, %v8012
    %v8018 = vsel %vm174, %v8012, %v8014
    %v8024 = vmax.f32 %v7995, %v8015
    %v8025 = vmax.f32 %v7996, %v8016
    %v8026 = vmax.f32 %v7997, %v8017
    %v8027 = vmax.f32 %v7998, %v8018
    %v8028 = vmax.f32 %v7999, %v8014
    %8034 = vrot.lane.b32.xlu0 %v8024, 112
    %v8035 = vpop.permute.xlu0 %8034
    %8036 = vrot.lane.b32.xlu0 %v8025, 112
    %v8037 = vpop.permute.xlu0 %8036
    %8038 = vrot.lane.b32.xlu0 %v8026, 112
    %v8039 = vpop.permute.xlu0 %8038
    %8040 = vrot.lane.b32.xlu0 %v8027, 112
    %v8041 = vpop.permute.xlu0 %8040
    %8042 = vrot.lane.b32.xlu0 %v8028, 112
    %v8043 = vpop.permute.xlu0 %8042
    %v8044 = vsel %vm5992, %v8035, %v8037
    %v8045 = vsel %vm5992, %v8037, %v8039
    %v8046 = vsel %vm5992, %v8039, %v8041
    %v8047 = vsel %vm5992, %v8041, %v8043
    %v8053 = vmax.f32 %v8024, %v8044
    %v8054 = vmax.f32 %v8025, %v8045
    %v8055 = vmax.f32 %v8026, %v8046
    %v8056 = vmax.f32 %v8027, %v8047
    %v8057 = vmax.f32 %v8028, %v8043
    %8058 = vst.msk [vmem:[#allocation2] sm:$0xff] %vm1208, %v8053
    %8059 = vst [vmem:[#allocation2 + $0x8] sm:$0xff] %v8054
    %8060 = vst [vmem:[#allocation2 + $0x10] sm:$0xff] %v8055
    %8061 = vst [vmem:[#allocation2 + $0x18] sm:$0xff] %v8056
    %8062 = vst.msk [vmem:[#allocation2 + $0x20] sm:$0xff] %vm48, %v8057
    %v8063 = vld [vmem:[%s13] sm:$0x1]
    %v8064 = vld [vmem:[#allocation2] ss:$8 sm:$0x7]
    %v8065 = vld [vmem:[%s12] sm:$0xff]
    %v8066 = vld [vmem:[%s12 + $0x8] sm:$0xff]
    %v8067 = vld [vmem:[%s12 + $0x10] sm:$0xff]
    %v8068 = vld [vmem:[%s12 + $0x18] sm:$0xff]
    %v8069 = vld [vmem:[%s12 + $0x20] sm:$0xff]
    %v8070 = vld [vmem:[%s12 + $0x28] sm:$0xff]
    %v8071 = vld [vmem:[%s12 + $0x30] sm:$0xff]
    %v8072 = vld [vmem:[%s12 + $0x38] sm:$0xff]
    %v8073 = vld [vmem:[%s12 + $0x40] sm:$0xff]
    %v8074 = vld [vmem:[%s12 + $0x48] sm:$0xff]
    %v8075 = vld [vmem:[%s12 + $0x50] sm:$0xff]
    %v8076 = vld [vmem:[%s12 + $0x58] sm:$0xff]
    %v8077 = vld [vmem:[%s12 + $0x60] sm:$0xff]
    %v8078 = vld [vmem:[%s12 + $0x68] sm:$0xff]
    %v8079 = vld [vmem:[%s12 + $0x70] sm:$0xff]
    %v8080 = vld [vmem:[%s12 + $0x78] sm:$0xff]
    %v8081 = vld [vmem:[%s12 + $0x80] sm:$0xff]
    %v8082 = vld [vmem:[%s12 + $0x88] sm:$0xff]
    %v8083 = vld [vmem:[%s12 + $0x90] sm:$0xff]
    %v8084 = vld [vmem:[%s12 + $0x98] sm:$0xff]
    %v8085 = vld [vmem:[%s12 + $0xa0] sm:$0xff]
    %v8086 = vld [vmem:[%s12 + $0xa8] sm:$0xff]
    %v8087 = vld [vmem:[%s12 + $0xb0] sm:$0xff]
    %v8088 = vld [vmem:[%s12 + $0xb8] sm:$0xff]
    %v8089 = vld [vmem:[%s12 + $0xc0] sm:$0xff]
    %v8090 = vld [vmem:[%s12 + $0xc8] sm:$0xff]
    %v8091 = vld [vmem:[%s12 + $0xd0] sm:$0xff]
    %v8092 = vld [vmem:[%s12 + $0xd8] sm:$0xff]
    %v8093 = vld [vmem:[%s12 + $0xe0] sm:$0xff]
    %v8094 = vld [vmem:[%s12 + $0xe8] sm:$0xff]
    %v8095 = vld [vmem:[%s12 + $0xf0] sm:$0xff]
    %v8096 = vld [vmem:[%s12 + $0xf8] sm:$0xff]
    %v8098 = vperm.slane %v8064, 0
    %v8099 = vperm.slane %v8064, 1
    %v8100 = vperm.slane %v8064, 2
    %8101 = vrot.lane.b32.xlu0 %v8098, 96
    %v8102 = vpop.permute.xlu0 %8101
    %8103 = vrot.lane.b32.xlu0 %v8099, 96
    %v8104 = vpop.permute.xlu0 %8103
    %8105 = vrot.lane.b32.xlu0 %v8100, 96
    %v8106 = vpop.permute.xlu0 %8105
    %v8107 = vsel %vm622, %v8102, %v8104
    %v8108 = vsel %vm622, %v8104, %v8106
    %8111 = vmatpush.msra.mxu0 %v8080
    %8112 = vmatpush.msra.mxu0 %v8079
    %8113 = vmatpush.msra.mxu0 %v8078
    %8114 = vmatpush.msra.mxu0 %v8077
    %8115 = vmatpush.msra.mxu0 %v8076
    %8116 = vmatpush.msra.mxu0 %v8075
    %8117 = vmatpush.msra.mxu0 %v8074
    %8118 = vmatpush.msra.mxu0 %v8073
    %8119 = vmatpush.msra.mxu0 %v8072
    %8120 = vmatpush.msra.mxu0 %v8071
    %8121 = vmatpush.msra.mxu0 %v8070
    %8122 = vmatpush.msra.mxu0 %v8069
    %8123 = vmatpush.msra.mxu0 %v8068
    %8124 = vmatpush.msra.mxu0 %v8067
    %8125 = vmatpush.msra.mxu0 %v8066
    %8126 = vmatpush.msra.mxu0 %v8065
    %8127 = vmatmul.f32.gmra.mxu0 %v8107
    %v8128 = vpop.f32.mrf.mxu0
    %v8129 = vadd.f32 0.0, %v8128
    %8130 = vdwg.mxu0
    %8131 = vmatpush.msra.mxu0 %v8096
    %8132 = vmatpush.msra.mxu0 %v8095
    %8133 = vmatpush.msra.mxu0 %v8094
    %8134 = vmatpush.msra.mxu0 %v8093
    %8135 = vmatpush.msra.mxu0 %v8092
    %8136 = vmatpush.msra.mxu0 %v8091
    %8137 = vmatpush.msra.mxu0 %v8090
    %8138 = vmatpush.msra.mxu0 %v8089
    %8139 = vmatpush.msra.mxu0 %v8088
    %8140 = vmatpush.msra.mxu0 %v8087
    %8141 = vmatpush.msra.mxu0 %v8086
    %8142 = vmatpush.msra.mxu0 %v8085
    %8143 = vmatpush.msra.mxu0 %v8084
    %8144 = vmatpush.msra.mxu0 %v8083
    %8145 = vmatpush.msra.mxu0 %v8082
    %8146 = vmatpush.msra.mxu0 %v8081
    %8147 = vmatmul.f32.gmra.mxu0 %v8108
    %v8148 = vpop.f32.mrf.mxu0
    %v8149 = vadd.f32 %v8129, %v8148
    %8150 = vdwg.mxu0
    %v8151 = vadd.f32 %v8063, %v8149
    %s8152 = scalar_lea.vmem [#allocation2], 1
    %v8153 = vld [vmem:[%s8152] ss:$8 sm:$0x7]
    %s8154 = scalar_lea.vmem %s12, 256
    %v8155 = vld [vmem:[%s8154] sm:$0xff]
    %v8156 = vld [vmem:[%s8154 + $0x8] sm:$0xff]
    %v8157 = vld [vmem:[%s8154 + $0x10] sm:$0xff]
    %v8158 = vld [vmem:[%s8154 + $0x18] sm:$0xff]
    %v8159 = vld [vmem:[%s8154 + $0x20] sm:$0xff]
    %v8160 = vld [vmem:[%s8154 + $0x28] sm:$0xff]
    %v8161 = vld [vmem:[%s8154 + $0x30] sm:$0xff]
    %v8162 = vld [vmem:[%s8154 + $0x38] sm:$0xff]
    %v8163 = vld [vmem:[%s8154 + $0x40] sm:$0xff]
    %v8164 = vld [vmem:[%s8154 + $0x48] sm:$0xff]
    %v8165 = vld [vmem:[%s8154 + $0x50] sm:$0xff]
    %v8166 = vld [vmem:[%s8154 + $0x58] sm:$0xff]
    %v8167 = vld [vmem:[%s8154 + $0x60] sm:$0xff]
    %v8168 = vld [vmem:[%s8154 + $0x68] sm:$0xff]
    %v8169 = vld [vmem:[%s8154 + $0x70] sm:$0xff]
    %v8170 = vld [vmem:[%s8154 + $0x78] sm:$0xff]
    %v8171 = vld [vmem:[%s8154 + $0x80] sm:$0xff]
    %v8172 = vld [vmem:[%s8154 + $0x88] sm:$0xff]
    %v8173 = vld [vmem:[%s8154 + $0x90] sm:$0xff]
    %v8174 = vld [vmem:[%s8154 + $0x98] sm:$0xff]
    %v8175 = vld [vmem:[%s8154 + $0xa0] sm:$0xff]
    %v8176 = vld [vmem:[%s8154 + $0xa8] sm:$0xff]
    %v8177 = vld [vmem:[%s8154 + $0xb0] sm:$0xff]
    %v8178 = vld [vmem:[%s8154 + $0xb8] sm:$0xff]
    %v8179 = vld [vmem:[%s8154 + $0xc0] sm:$0xff]
    %v8180 = vld [vmem:[%s8154 + $0xc8] sm:$0xff]
    %v8181 = vld [vmem:[%s8154 + $0xd0] sm:$0xff]
    %v8182 = vld [vmem:[%s8154 + $0xd8] sm:$0xff]
    %v8183 = vld [vmem:[%s8154 + $0xe0] sm:$0xff]
    %v8184 = vld [vmem:[%s8154 + $0xe8] sm:$0xff]
    %v8185 = vld [vmem:[%s8154 + $0xf0] sm:$0xff]
    %v8186 = vld [vmem:[%s8154 + $0xf8] sm:$0xff]
    %v8188 = vperm.slane %v8153, 0
    %v8189 = vperm.slane %v8153, 1
    %v8190 = vperm.slane %v8153, 2
    %8191 = vrot.lane.b32.xlu0 %v8188, 96
    %v8192 = vpop.permute.xlu0 %8191
    %8193 = vrot.lane.b32.xlu0 %v8189, 96
    %v8194 = vpop.permute.xlu0 %8193
    %8195 = vrot.lane.b32.xlu0 %v8190, 96
    %v8196 = vpop.permute.xlu0 %8195
    %v8197 = vsel %vm622, %v8192, %v8194
    %v8198 = vsel %vm622, %v8194, %v8196
    %8201 = vmatpush.msra.mxu0 %v8170
    %8202 = vmatpush.msra.mxu0 %v8169
    %8203 = vmatpush.msra.mxu0 %v8168
    %8204 = vmatpush.msra.mxu0 %v8167
    %8205 = vmatpush.msra.mxu0 %v8166
    %8206 = vmatpush.msra.mxu0 %v8165
    %8207 = vmatpush.msra.mxu0 %v8164
    %8208 = vmatpush.msra.mxu0 %v8163
    %8209 = vmatpush.msra.mxu0 %v8162
    %8210 = vmatpush.msra.mxu0 %v8161
    %8211 = vmatpush.msra.mxu0 %v8160
    %8212 = vmatpush.msra.mxu0 %v8159
    %8213 = vmatpush.msra.mxu0 %v8158
    %8214 = vmatpush.msra.mxu0 %v8157
    %8215 = vmatpush.msra.mxu0 %v8156
    %8216 = vmatpush.msra.mxu0 %v8155
    %8217 = vmatmul.f32.gmra.mxu0 %v8197
    %v8218 = vpop.f32.mrf.mxu0
    %v8219 = vadd.f32 0.0, %v8218
    %8220 = vdwg.mxu0
    %8221 = vmatpush.msra.mxu0 %v8186
    %8222 = vmatpush.msra.mxu0 %v8185
    %8223 = vmatpush.msra.mxu0 %v8184
    %8224 = vmatpush.msra.mxu0 %v8183
    %8225 = vmatpush.msra.mxu0 %v8182
    %8226 = vmatpush.msra.mxu0 %v8181
    %8227 = vmatpush.msra.mxu0 %v8180
    %8228 = vmatpush.msra.mxu0 %v8179
    %8229 = vmatpush.msra.mxu0 %v8178
    %8230 = vmatpush.msra.mxu0 %v8177
    %8231 = vmatpush.msra.mxu0 %v8176
    %8232 = vmatpush.msra.mxu0 %v8175
    %8233 = vmatpush.msra.mxu0 %v8174
    %8234 = vmatpush.msra.mxu0 %v8173
    %8235 = vmatpush.msra.mxu0 %v8172
    %8236 = vmatpush.msra.mxu0 %v8171
    %8237 = vmatmul.f32.gmra.mxu0 %v8198
    %v8238 = vpop.f32.mrf.mxu0
    %v8239 = vadd.f32 %v8219, %v8238
    %8240 = vdwg.mxu0
    %v8241 = vadd.f32 %v8151, %v8239
    %s8242 = scalar_lea.vmem [#allocation2], 2
    %v8243 = vld [vmem:[%s8242] ss:$8 sm:$0x7]
    %s8244 = scalar_lea.vmem %s12, 512
    %v8245 = vld [vmem:[%s8244] sm:$0xff]
    %v8246 = vld [vmem:[%s8244 + $0x8] sm:$0xff]
    %v8247 = vld [vmem:[%s8244 + $0x10] sm:$0xff]
    %v8248 = vld [vmem:[%s8244 + $0x18] sm:$0xff]
    %v8249 = vld [vmem:[%s8244 + $0x20] sm:$0xff]
    %v8250 = vld [vmem:[%s8244 + $0x28] sm:$0xff]
    %v8251 = vld [vmem:[%s8244 + $0x30] sm:$0xff]
    %v8252 = vld [vmem:[%s8244 + $0x38] sm:$0xff]
    %v8253 = vld [vmem:[%s8244 + $0x40] sm:$0xff]
    %v8254 = vld [vmem:[%s8244 + $0x48] sm:$0xff]
    %v8255 = vld [vmem:[%s8244 + $0x50] sm:$0xff]
    %v8256 = vld [vmem:[%s8244 + $0x58] sm:$0xff]
    %v8257 = vld [vmem:[%s8244 + $0x60] sm:$0xff]
    %v8258 = vld [vmem:[%s8244 + $0x68] sm:$0xff]
    %v8259 = vld [vmem:[%s8244 + $0x70] sm:$0xff]
    %v8260 = vld [vmem:[%s8244 + $0x78] sm:$0xff]
    %v8261 = vld [vmem:[%s8244 + $0x80] sm:$0xff]
    %v8262 = vld [vmem:[%s8244 + $0x88] sm:$0xff]
    %v8263 = vld [vmem:[%s8244 + $0x90] sm:$0xff]
    %v8264 = vld [vmem:[%s8244 + $0x98] sm:$0xff]
    %v8265 = vld [vmem:[%s8244 + $0xa0] sm:$0xff]
    %v8266 = vld [vmem:[%s8244 + $0xa8] sm:$0xff]
    %v8267 = vld [vmem:[%s8244 + $0xb0] sm:$0xff]
    %v8268 = vld [vmem:[%s8244 + $0xb8] sm:$0xff]
    %v8269 = vld [vmem:[%s8244 + $0xc0] sm:$0xff]
    %v8270 = vld [vmem:[%s8244 + $0xc8] sm:$0xff]
    %v8271 = vld [vmem:[%s8244 + $0xd0] sm:$0xff]
    %v8272 = vld [vmem:[%s8244 + $0xd8] sm:$0xff]
    %v8273 = vld [vmem:[%s8244 + $0xe0] sm:$0xff]
    %v8274 = vld [vmem:[%s8244 + $0xe8] sm:$0xff]
    %v8275 = vld [vmem:[%s8244 + $0xf0] sm:$0xff]
    %v8276 = vld [vmem:[%s8244 + $0xf8] sm:$0xff]
    %v8278 = vperm.slane %v8243, 0
    %v8279 = vperm.slane %v8243, 1
    %v8280 = vperm.slane %v8243, 2
    %8281 = vrot.lane.b32.xlu0 %v8278, 96
    %v8282 = vpop.permute.xlu0 %8281
    %8283 = vrot.lane.b32.xlu0 %v8279, 96
    %v8284 = vpop.permute.xlu0 %8283
    %8285 = vrot.lane.b32.xlu0 %v8280, 96
    %v8286 = vpop.permute.xlu0 %8285
    %v8287 = vsel %vm622, %v8282, %v8284
    %v8288 = vsel %vm622, %v8284, %v8286
    %8291 = vmatpush.msra.mxu0 %v8260
    %8292 = vmatpush.msra.mxu0 %v8259
    %8293 = vmatpush.msra.mxu0 %v8258
    %8294 = vmatpush.msra.mxu0 %v8257
    %8295 = vmatpush.msra.mxu0 %v8256
    %8296 = vmatpush.msra.mxu0 %v8255
    %8297 = vmatpush.msra.mxu0 %v8254
    %8298 = vmatpush.msra.mxu0 %v8253
    %8299 = vmatpush.msra.mxu0 %v8252
    %8300 = vmatpush.msra.mxu0 %v8251
    %8301 = vmatpush.msra.mxu0 %v8250
    %8302 = vmatpush.msra.mxu0 %v8249
    %8303 = vmatpush.msra.mxu0 %v8248
    %8304 = vmatpush.msra.mxu0 %v8247
    %8305 = vmatpush.msra.mxu0 %v8246
    %8306 = vmatpush.msra.mxu0 %v8245
    %8307 = vmatmul.f32.gmra.mxu0 %v8287
    %v8308 = vpop.f32.mrf.mxu0
    %v8309 = vadd.f32 0.0, %v8308
    %8310 = vdwg.mxu0
    %8311 = vmatpush.msra.mxu0 %v8276
    %8312 = vmatpush.msra.mxu0 %v8275
    %8313 = vmatpush.msra.mxu0 %v8274
    %8314 = vmatpush.msra.mxu0 %v8273
    %8315 = vmatpush.msra.mxu0 %v8272
    %8316 = vmatpush.msra.mxu0 %v8271
    %8317 = vmatpush.msra.mxu0 %v8270
    %8318 = vmatpush.msra.mxu0 %v8269
    %8319 = vmatpush.msra.mxu0 %v8268
    %8320 = vmatpush.msra.mxu0 %v8267
    %8321 = vmatpush.msra.mxu0 %v8266
    %8322 = vmatpush.msra.mxu0 %v8265
    %8323 = vmatpush.msra.mxu0 %v8264
    %8324 = vmatpush.msra.mxu0 %v8263
    %8325 = vmatpush.msra.mxu0 %v8262
    %8326 = vmatpush.msra.mxu0 %v8261
    %8327 = vmatmul.f32.gmra.mxu0 %v8288
    %v8328 = vpop.f32.mrf.mxu0
    %v8329 = vadd.f32 %v8309, %v8328
    %8330 = vdwg.mxu0
    %v8331 = vadd.f32 %v8241, %v8329
    %s8332 = scalar_lea.vmem [#allocation2], 3
    %v8333 = vld [vmem:[%s8332] ss:$8 sm:$0x7]
    %s8334 = scalar_lea.vmem %s12, 768
    %v8335 = vld [vmem:[%s8334] sm:$0xff]
    %v8336 = vld [vmem:[%s8334 + $0x8] sm:$0xff]
    %v8337 = vld [vmem:[%s8334 + $0x10] sm:$0xff]
    %v8338 = vld [vmem:[%s8334 + $0x18] sm:$0xff]
    %v8339 = vld [vmem:[%s8334 + $0x20] sm:$0xff]
    %v8340 = vld [vmem:[%s8334 + $0x28] sm:$0xff]
    %v8341 = vld [vmem:[%s8334 + $0x30] sm:$0xff]
    %v8342 = vld [vmem:[%s8334 + $0x38] sm:$0xff]
    %v8343 = vld [vmem:[%s8334 + $0x40] sm:$0xff]
    %v8344 = vld [vmem:[%s8334 + $0x48] sm:$0xff]
    %v8345 = vld [vmem:[%s8334 + $0x50] sm:$0xff]
    %v8346 = vld [vmem:[%s8334 + $0x58] sm:$0xff]
    %v8347 = vld [vmem:[%s8334 + $0x60] sm:$0xff]
    %v8348 = vld [vmem:[%s8334 + $0x68] sm:$0xff]
    %v8349 = vld [vmem:[%s8334 + $0x70] sm:$0xff]
    %v8350 = vld [vmem:[%s8334 + $0x78] sm:$0xff]
    %v8351 = vld [vmem:[%s8334 + $0x80] sm:$0xff]
    %v8352 = vld [vmem:[%s8334 + $0x88] sm:$0xff]
    %v8353 = vld [vmem:[%s8334 + $0x90] sm:$0xff]
    %v8354 = vld [vmem:[%s8334 + $0x98] sm:$0xff]
    %v8355 = vld [vmem:[%s8334 + $0xa0] sm:$0xff]
    %v8356 = vld [vmem:[%s8334 + $0xa8] sm:$0xff]
    %v8357 = vld [vmem:[%s8334 + $0xb0] sm:$0xff]
    %v8358 = vld [vmem:[%s8334 + $0xb8] sm:$0xff]
    %v8359 = vld [vmem:[%s8334 + $0xc0] sm:$0xff]
    %v8360 = vld [vmem:[%s8334 + $0xc8] sm:$0xff]
    %v8361 = vld [vmem:[%s8334 + $0xd0] sm:$0xff]
    %v8362 = vld [vmem:[%s8334 + $0xd8] sm:$0xff]
    %v8363 = vld [vmem:[%s8334 + $0xe0] sm:$0xff]
    %v8364 = vld [vmem:[%s8334 + $0xe8] sm:$0xff]
    %v8365 = vld [vmem:[%s8334 + $0xf0] sm:$0xff]
    %v8366 = vld [vmem:[%s8334 + $0xf8] sm:$0xff]
    %v8368 = vperm.slane %v8333, 0
    %v8369 = vperm.slane %v8333, 1
    %v8370 = vperm.slane %v8333, 2
    %8371 = vrot.lane.b32.xlu0 %v8368, 96
    %v8372 = vpop.permute.xlu0 %8371
    %8373 = vrot.lane.b32.xlu0 %v8369, 96
    %v8374 = vpop.permute.xlu0 %8373
    %8375 = vrot.lane.b32.xlu0 %v8370, 96
    %v8376 = vpop.permute.xlu0 %8375
    %v8377 = vsel %vm622, %v8372, %v8374
    %v8378 = vsel %vm622, %v8374, %v8376
    %8381 = vmatpush.msra.mxu0 %v8350
    %8382 = vmatpush.msra.mxu0 %v8349
    %8383 = vmatpush.msra.mxu0 %v8348
    %8384 = vmatpush.msra.mxu0 %v8347
    %8385 = vmatpush.msra.mxu0 %v8346
    %8386 = vmatpush.msra.mxu0 %v8345
    %8387 = vmatpush.msra.mxu0 %v8344
    %8388 = vmatpush.msra.mxu0 %v8343
    %8389 = vmatpush.msra.mxu0 %v8342
    %8390 = vmatpush.msra.mxu0 %v8341
    %8391 = vmatpush.msra.mxu0 %v8340
    %8392 = vmatpush.msra.mxu0 %v8339
    %8393 = vmatpush.msra.mxu0 %v8338
    %8394 = vmatpush.msra.mxu0 %v8337
    %8395 = vmatpush.msra.mxu0 %v8336
    %8396 = vmatpush.msra.mxu0 %v8335
    %8397 = vmatmul.f32.gmra.mxu0 %v8377
    %v8398 = vpop.f32.mrf.mxu0
    %v8399 = vadd.f32 0.0, %v8398
    %8400 = vdwg.mxu0
    %8401 = vmatpush.msra.mxu0 %v8366
    %8402 = vmatpush.msra.mxu0 %v8365
    %8403 = vmatpush.msra.mxu0 %v8364
    %8404 = vmatpush.msra.mxu0 %v8363
    %8405 = vmatpush.msra.mxu0 %v8362
    %8406 = vmatpush.msra.mxu0 %v8361
    %8407 = vmatpush.msra.mxu0 %v8360
    %8408 = vmatpush.msra.mxu0 %v8359
    %8409 = vmatpush.msra.mxu0 %v8358
    %8410 = vmatpush.msra.mxu0 %v8357
    %8411 = vmatpush.msra.mxu0 %v8356
    %8412 = vmatpush.msra.mxu0 %v8355
    %8413 = vmatpush.msra.mxu0 %v8354
    %8414 = vmatpush.msra.mxu0 %v8353
    %8415 = vmatpush.msra.mxu0 %v8352
    %8416 = vmatpush.msra.mxu0 %v8351
    %8417 = vmatmul.f32.gmra.mxu0 %v8378
    %v8418 = vpop.f32.mrf.mxu0
    %v8419 = vadd.f32 %v8399, %v8418
    %8420 = vdwg.mxu0
    %v8421 = vadd.f32 %v8331, %v8419
    %s8422 = scalar_lea.vmem [#allocation2], 4
    %v8423 = vld [vmem:[%s8422] ss:$8 sm:$0x7]
    %s8424 = scalar_lea.vmem %s12, 1024
    %v8425 = vld [vmem:[%s8424] sm:$0xff]
    %v8426 = vld [vmem:[%s8424 + $0x8] sm:$0xff]
    %v8427 = vld [vmem:[%s8424 + $0x10] sm:$0xff]
    %v8428 = vld [vmem:[%s8424 + $0x18] sm:$0xff]
    %v8429 = vld [vmem:[%s8424 + $0x20] sm:$0xff]
    %v8430 = vld [vmem:[%s8424 + $0x28] sm:$0xff]
    %v8431 = vld [vmem:[%s8424 + $0x30] sm:$0xff]
    %v8432 = vld [vmem:[%s8424 + $0x38] sm:$0xff]
    %v8433 = vld [vmem:[%s8424 + $0x40] sm:$0xff]
    %v8434 = vld [vmem:[%s8424 + $0x48] sm:$0xff]
    %v8435 = vld [vmem:[%s8424 + $0x50] sm:$0xff]
    %v8436 = vld [vmem:[%s8424 + $0x58] sm:$0xff]
    %v8437 = vld [vmem:[%s8424 + $0x60] sm:$0xff]
    %v8438 = vld [vmem:[%s8424 + $0x68] sm:$0xff]
    %v8439 = vld [vmem:[%s8424 + $0x70] sm:$0xff]
    %v8440 = vld [vmem:[%s8424 + $0x78] sm:$0xff]
    %v8441 = vld [vmem:[%s8424 + $0x80] sm:$0xff]
    %v8442 = vld [vmem:[%s8424 + $0x88] sm:$0xff]
    %v8443 = vld [vmem:[%s8424 + $0x90] sm:$0xff]
    %v8444 = vld [vmem:[%s8424 + $0x98] sm:$0xff]
    %v8445 = vld [vmem:[%s8424 + $0xa0] sm:$0xff]
    %v8446 = vld [vmem:[%s8424 + $0xa8] sm:$0xff]
    %v8447 = vld [vmem:[%s8424 + $0xb0] sm:$0xff]
    %v8448 = vld [vmem:[%s8424 + $0xb8] sm:$0xff]
    %v8449 = vld [vmem:[%s8424 + $0xc0] sm:$0xff]
    %v8450 = vld [vmem:[%s8424 + $0xc8] sm:$0xff]
    %v8451 = vld [vmem:[%s8424 + $0xd0] sm:$0xff]
    %v8452 = vld [vmem:[%s8424 + $0xd8] sm:$0xff]
    %v8453 = vld [vmem:[%s8424 + $0xe0] sm:$0xff]
    %v8454 = vld [vmem:[%s8424 + $0xe8] sm:$0xff]
    %v8455 = vld [vmem:[%s8424 + $0xf0] sm:$0xff]
    %v8456 = vld [vmem:[%s8424 + $0xf8] sm:$0xff]
    %v8458 = vperm.slane %v8423, 0
    %v8459 = vperm.slane %v8423, 1
    %v8460 = vperm.slane %v8423, 2
    %8461 = vrot.lane.b32.xlu0 %v8458, 96
    %v8462 = vpop.permute.xlu0 %8461
    %8463 = vrot.lane.b32.xlu0 %v8459, 96
    %v8464 = vpop.permute.xlu0 %8463
    %8465 = vrot.lane.b32.xlu0 %v8460, 96
    %v8466 = vpop.permute.xlu0 %8465
    %v8467 = vsel %vm622, %v8462, %v8464
    %v8468 = vsel %vm622, %v8464, %v8466
    %8471 = vmatpush.msra.mxu0 %v8440
    %8472 = vmatpush.msra.mxu0 %v8439
    %8473 = vmatpush.msra.mxu0 %v8438
    %8474 = vmatpush.msra.mxu0 %v8437
    %8475 = vmatpush.msra.mxu0 %v8436
    %8476 = vmatpush.msra.mxu0 %v8435
    %8477 = vmatpush.msra.mxu0 %v8434
    %8478 = vmatpush.msra.mxu0 %v8433
    %8479 = vmatpush.msra.mxu0 %v8432
    %8480 = vmatpush.msra.mxu0 %v8431
    %8481 = vmatpush.msra.mxu0 %v8430
    %8482 = vmatpush.msra.mxu0 %v8429
    %8483 = vmatpush.msra.mxu0 %v8428
    %8484 = vmatpush.msra.mxu0 %v8427
    %8485 = vmatpush.msra.mxu0 %v8426
    %8486 = vmatpush.msra.mxu0 %v8425
    %8487 = vmatmul.f32.gmra.mxu0 %v8467
    %v8488 = vpop.f32.mrf.mxu0
    %v8489 = vadd.f32 0.0, %v8488
    %8490 = vdwg.mxu0
    %8491 = vmatpush.msra.mxu0 %v8456
    %8492 = vmatpush.msra.mxu0 %v8455
    %8493 = vmatpush.msra.mxu0 %v8454
    %8494 = vmatpush.msra.mxu0 %v8453
    %8495 = vmatpush.msra.mxu0 %v8452
    %8496 = vmatpush.msra.mxu0 %v8451
    %8497 = vmatpush.msra.mxu0 %v8450
    %8498 = vmatpush.msra.mxu0 %v8449
    %8499 = vmatpush.msra.mxu0 %v8448
    %8500 = vmatpush.msra.mxu0 %v8447
    %8501 = vmatpush.msra.mxu0 %v8446
    %8502 = vmatpush.msra.mxu0 %v8445
    %8503 = vmatpush.msra.mxu0 %v8444
    %8504 = vmatpush.msra.mxu0 %v8443
    %8505 = vmatpush.msra.mxu0 %v8442
    %8506 = vmatpush.msra.mxu0 %v8441
    %8507 = vmatmul.f32.gmra.mxu0 %v8468
    %v8508 = vpop.f32.mrf.mxu0
    %v8509 = vadd.f32 %v8489, %v8508
    %8510 = vdwg.mxu0
    %v8511 = vadd.f32 %v8421, %v8509
    %s8512 = scalar_lea.vmem [#allocation2], 5
    %v8513 = vld [vmem:[%s8512] ss:$8 sm:$0x7]
    %s8514 = scalar_lea.vmem %s12, 1280
    %v8515 = vld [vmem:[%s8514] sm:$0xff]
    %v8516 = vld [vmem:[%s8514 + $0x8] sm:$0xff]
    %v8517 = vld [vmem:[%s8514 + $0x10] sm:$0xff]
    %v8518 = vld [vmem:[%s8514 + $0x18] sm:$0xff]
    %v8519 = vld [vmem:[%s8514 + $0x20] sm:$0xff]
    %v8520 = vld [vmem:[%s8514 + $0x28] sm:$0xff]
    %v8521 = vld [vmem:[%s8514 + $0x30] sm:$0xff]
    %v8522 = vld [vmem:[%s8514 + $0x38] sm:$0xff]
    %v8523 = vld [vmem:[%s8514 + $0x40] sm:$0xff]
    %v8524 = vld [vmem:[%s8514 + $0x48] sm:$0xff]
    %v8525 = vld [vmem:[%s8514 + $0x50] sm:$0xff]
    %v8526 = vld [vmem:[%s8514 + $0x58] sm:$0xff]
    %v8527 = vld [vmem:[%s8514 + $0x60] sm:$0xff]
    %v8528 = vld [vmem:[%s8514 + $0x68] sm:$0xff]
    %v8529 = vld [vmem:[%s8514 + $0x70] sm:$0xff]
    %v8530 = vld [vmem:[%s8514 + $0x78] sm:$0xff]
    %v8531 = vld [vmem:[%s8514 + $0x80] sm:$0xff]
    %v8532 = vld [vmem:[%s8514 + $0x88] sm:$0xff]
    %v8533 = vld [vmem:[%s8514 + $0x90] sm:$0xff]
    %v8534 = vld [vmem:[%s8514 + $0x98] sm:$0xff]
    %v8535 = vld [vmem:[%s8514 + $0xa0] sm:$0xff]
    %v8536 = vld [vmem:[%s8514 + $0xa8] sm:$0xff]
    %v8537 = vld [vmem:[%s8514 + $0xb0] sm:$0xff]
    %v8538 = vld [vmem:[%s8514 + $0xb8] sm:$0xff]
    %v8539 = vld [vmem:[%s8514 + $0xc0] sm:$0xff]
    %v8540 = vld [vmem:[%s8514 + $0xc8] sm:$0xff]
    %v8541 = vld [vmem:[%s8514 + $0xd0] sm:$0xff]
    %v8542 = vld [vmem:[%s8514 + $0xd8] sm:$0xff]
    %v8543 = vld [vmem:[%s8514 + $0xe0] sm:$0xff]
    %v8544 = vld [vmem:[%s8514 + $0xe8] sm:$0xff]
    %v8545 = vld [vmem:[%s8514 + $0xf0] sm:$0xff]
    %v8546 = vld [vmem:[%s8514 + $0xf8] sm:$0xff]
    %v8548 = vperm.slane %v8513, 0
    %v8549 = vperm.slane %v8513, 1
    %v8550 = vperm.slane %v8513, 2
    %8551 = vrot.lane.b32.xlu0 %v8548, 96
    %v8552 = vpop.permute.xlu0 %8551
    %8553 = vrot.lane.b32.xlu0 %v8549, 96
    %v8554 = vpop.permute.xlu0 %8553
    %8555 = vrot.lane.b32.xlu0 %v8550, 96
    %v8556 = vpop.permute.xlu0 %8555
    %v8557 = vsel %vm622, %v8552, %v8554
    %v8558 = vsel %vm622, %v8554, %v8556
    %8561 = vmatpush.msra.mxu0 %v8530
    %8562 = vmatpush.msra.mxu0 %v8529
    %8563 = vmatpush.msra.mxu0 %v8528
    %8564 = vmatpush.msra.mxu0 %v8527
    %8565 = vmatpush.msra.mxu0 %v8526
    %8566 = vmatpush.msra.mxu0 %v8525
    %8567 = vmatpush.msra.mxu0 %v8524
    %8568 = vmatpush.msra.mxu0 %v8523
    %8569 = vmatpush.msra.mxu0 %v8522
    %8570 = vmatpush.msra.mxu0 %v8521
    %8571 = vmatpush.msra.mxu0 %v8520
    %8572 = vmatpush.msra.mxu0 %v8519
    %8573 = vmatpush.msra.mxu0 %v8518
    %8574 = vmatpush.msra.mxu0 %v8517
    %8575 = vmatpush.msra.mxu0 %v8516
    %8576 = vmatpush.msra.mxu0 %v8515
    %8577 = vmatmul.f32.gmra.mxu0 %v8557
    %v8578 = vpop.f32.mrf.mxu0
    %v8579 = vadd.f32 0.0, %v8578
    %8580 = vdwg.mxu0
    %8581 = vmatpush.msra.mxu0 %v8546
    %8582 = vmatpush.msra.mxu0 %v8545
    %8583 = vmatpush.msra.mxu0 %v8544
    %8584 = vmatpush.msra.mxu0 %v8543
    %8585 = vmatpush.msra.mxu0 %v8542
    %8586 = vmatpush.msra.mxu0 %v8541
    %8587 = vmatpush.msra.mxu0 %v8540
    %8588 = vmatpush.msra.mxu0 %v8539
    %8589 = vmatpush.msra.mxu0 %v8538
    %8590 = vmatpush.msra.mxu0 %v8537
    %8591 = vmatpush.msra.mxu0 %v8536
    %8592 = vmatpush.msra.mxu0 %v8535
    %8593 = vmatpush.msra.mxu0 %v8534
    %8594 = vmatpush.msra.mxu0 %v8533
    %8595 = vmatpush.msra.mxu0 %v8532
    %8596 = vmatpush.msra.mxu0 %v8531
    %8597 = vmatmul.f32.gmra.mxu0 %v8558
    %v8598 = vpop.f32.mrf.mxu0
    %v8599 = vadd.f32 %v8579, %v8598
    %8600 = vdwg.mxu0
    %v8601 = vadd.f32 %v8511, %v8599
    %s8602 = scalar_lea.vmem [#allocation2], 6
    %v8603 = vld [vmem:[%s8602] ss:$8 sm:$0x7]
    %s8604 = scalar_lea.vmem %s12, 1536
    %v8605 = vld [vmem:[%s8604] sm:$0xff]
    %v8606 = vld [vmem:[%s8604 + $0x8] sm:$0xff]
    %v8607 = vld [vmem:[%s8604 + $0x10] sm:$0xff]
    %v8608 = vld [vmem:[%s8604 + $0x18] sm:$0xff]
    %v8609 = vld [vmem:[%s8604 + $0x20] sm:$0xff]
    %v8610 = vld [vmem:[%s8604 + $0x28] sm:$0xff]
    %v8611 = vld [vmem:[%s8604 + $0x30] sm:$0xff]
    %v8612 = vld [vmem:[%s8604 + $0x38] sm:$0xff]
    %v8613 = vld [vmem:[%s8604 + $0x40] sm:$0xff]
    %v8614 = vld [vmem:[%s8604 + $0x48] sm:$0xff]
    %v8615 = vld [vmem:[%s8604 + $0x50] sm:$0xff]
    %v8616 = vld [vmem:[%s8604 + $0x58] sm:$0xff]
    %v8617 = vld [vmem:[%s8604 + $0x60] sm:$0xff]
    %v8618 = vld [vmem:[%s8604 + $0x68] sm:$0xff]
    %v8619 = vld [vmem:[%s8604 + $0x70] sm:$0xff]
    %v8620 = vld [vmem:[%s8604 + $0x78] sm:$0xff]
    %v8621 = vld [vmem:[%s8604 + $0x80] sm:$0xff]
    %v8622 = vld [vmem:[%s8604 + $0x88] sm:$0xff]
    %v8623 = vld [vmem:[%s8604 + $0x90] sm:$0xff]
    %v8624 = vld [vmem:[%s8604 + $0x98] sm:$0xff]
    %v8625 = vld [vmem:[%s8604 + $0xa0] sm:$0xff]
    %v8626 = vld [vmem:[%s8604 + $0xa8] sm:$0xff]
    %v8627 = vld [vmem:[%s8604 + $0xb0] sm:$0xff]
    %v8628 = vld [vmem:[%s8604 + $0xb8] sm:$0xff]
    %v8629 = vld [vmem:[%s8604 + $0xc0] sm:$0xff]
    %v8630 = vld [vmem:[%s8604 + $0xc8] sm:$0xff]
    %v8631 = vld [vmem:[%s8604 + $0xd0] sm:$0xff]
    %v8632 = vld [vmem:[%s8604 + $0xd8] sm:$0xff]
    %v8633 = vld [vmem:[%s8604 + $0xe0] sm:$0xff]
    %v8634 = vld [vmem:[%s8604 + $0xe8] sm:$0xff]
    %v8635 = vld [vmem:[%s8604 + $0xf0] sm:$0xff]
    %v8636 = vld [vmem:[%s8604 + $0xf8] sm:$0xff]
    %v8638 = vperm.slane %v8603, 0
    %v8639 = vperm.slane %v8603, 1
    %v8640 = vperm.slane %v8603, 2
    %8641 = vrot.lane.b32.xlu0 %v8638, 96
    %v8642 = vpop.permute.xlu0 %8641
    %8643 = vrot.lane.b32.xlu0 %v8639, 96
    %v8644 = vpop.permute.xlu0 %8643
    %8645 = vrot.lane.b32.xlu0 %v8640, 96
    %v8646 = vpop.permute.xlu0 %8645
    %v8647 = vsel %vm622, %v8642, %v8644
    %v8648 = vsel %vm622, %v8644, %v8646
    %8651 = vmatpush.msra.mxu0 %v8620
    %8652 = vmatpush.msra.mxu0 %v8619
    %8653 = vmatpush.msra.mxu0 %v8618
    %8654 = vmatpush.msra.mxu0 %v8617
    %8655 = vmatpush.msra.mxu0 %v8616
    %8656 = vmatpush.msra.mxu0 %v8615
    %8657 = vmatpush.msra.mxu0 %v8614
    %8658 = vmatpush.msra.mxu0 %v8613
    %8659 = vmatpush.msra.mxu0 %v8612
    %8660 = vmatpush.msra.mxu0 %v8611
    %8661 = vmatpush.msra.mxu0 %v8610
    %8662 = vmatpush.msra.mxu0 %v8609
    %8663 = vmatpush.msra.mxu0 %v8608
    %8664 = vmatpush.msra.mxu0 %v8607
    %8665 = vmatpush.msra.mxu0 %v8606
    %8666 = vmatpush.msra.mxu0 %v8605
    %8667 = vmatmul.f32.gmra.mxu0 %v8647
    %v8668 = vpop.f32.mrf.mxu0
    %v8669 = vadd.f32 0.0, %v8668
    %8670 = vdwg.mxu0
    %8671 = vmatpush.msra.mxu0 %v8636
    %8672 = vmatpush.msra.mxu0 %v8635
    %8673 = vmatpush.msra.mxu0 %v8634
    %8674 = vmatpush.msra.mxu0 %v8633
    %8675 = vmatpush.msra.mxu0 %v8632
    %8676 = vmatpush.msra.mxu0 %v8631
    %8677 = vmatpush.msra.mxu0 %v8630
    %8678 = vmatpush.msra.mxu0 %v8629
    %8679 = vmatpush.msra.mxu0 %v8628
    %8680 = vmatpush.msra.mxu0 %v8627
    %8681 = vmatpush.msra.mxu0 %v8626
    %8682 = vmatpush.msra.mxu0 %v8625
    %8683 = vmatpush.msra.mxu0 %v8624
    %8684 = vmatpush.msra.mxu0 %v8623
    %8685 = vmatpush.msra.mxu0 %v8622
    %8686 = vmatpush.msra.mxu0 %v8621
    %8687 = vmatmul.f32.gmra.mxu0 %v8648
    %v8688 = vpop.f32.mrf.mxu0
    %v8689 = vadd.f32 %v8669, %v8688
    %8690 = vdwg.mxu0
    %v8691 = vadd.f32 %v8601, %v8689
    %s8692 = scalar_lea.vmem [#allocation2], 7
    %v8693 = vld [vmem:[%s8692] ss:$8 sm:$0x7]
    %s8694 = scalar_lea.vmem %s12, 1792
    %v8695 = vld [vmem:[%s8694] sm:$0xff]
    %v8696 = vld [vmem:[%s8694 + $0x8] sm:$0xff]
    %v8697 = vld [vmem:[%s8694 + $0x10] sm:$0xff]
    %v8698 = vld [vmem:[%s8694 + $0x18] sm:$0xff]
    %v8699 = vld [vmem:[%s8694 + $0x20] sm:$0xff]
    %v8700 = vld [vmem:[%s8694 + $0x28] sm:$0xff]
    %v8701 = vld [vmem:[%s8694 + $0x30] sm:$0xff]
    %v8702 = vld [vmem:[%s8694 + $0x38] sm:$0xff]
    %v8703 = vld [vmem:[%s8694 + $0x40] sm:$0xff]
    %v8704 = vld [vmem:[%s8694 + $0x48] sm:$0xff]
    %v8705 = vld [vmem:[%s8694 + $0x50] sm:$0xff]
    %v8706 = vld [vmem:[%s8694 + $0x58] sm:$0xff]
    %v8707 = vld [vmem:[%s8694 + $0x60] sm:$0xff]
    %v8708 = vld [vmem:[%s8694 + $0x68] sm:$0xff]
    %v8709 = vld [vmem:[%s8694 + $0x70] sm:$0xff]
    %v8710 = vld [vmem:[%s8694 + $0x78] sm:$0xff]
    %v8711 = vld [vmem:[%s8694 + $0x80] sm:$0xff]
    %v8712 = vld [vmem:[%s8694 + $0x88] sm:$0xff]
    %v8713 = vld [vmem:[%s8694 + $0x90] sm:$0xff]
    %v8714 = vld [vmem:[%s8694 + $0x98] sm:$0xff]
    %v8715 = vld [vmem:[%s8694 + $0xa0] sm:$0xff]
    %v8716 = vld [vmem:[%s8694 + $0xa8] sm:$0xff]
    %v8717 = vld [vmem:[%s8694 + $0xb0] sm:$0xff]
    %v8718 = vld [vmem:[%s8694 + $0xb8] sm:$0xff]
    %v8719 = vld [vmem:[%s8694 + $0xc0] sm:$0xff]
    %v8720 = vld [vmem:[%s8694 + $0xc8] sm:$0xff]
    %v8721 = vld [vmem:[%s8694 + $0xd0] sm:$0xff]
    %v8722 = vld [vmem:[%s8694 + $0xd8] sm:$0xff]
    %v8723 = vld [vmem:[%s8694 + $0xe0] sm:$0xff]
    %v8724 = vld [vmem:[%s8694 + $0xe8] sm:$0xff]
    %v8725 = vld [vmem:[%s8694 + $0xf0] sm:$0xff]
    %v8726 = vld [vmem:[%s8694 + $0xf8] sm:$0xff]
    %v8728 = vperm.slane %v8693, 0
    %v8729 = vperm.slane %v8693, 1
    %v8730 = vperm.slane %v8693, 2
    %8731 = vrot.lane.b32.xlu0 %v8728, 96
    %v8732 = vpop.permute.xlu0 %8731
    %8733 = vrot.lane.b32.xlu0 %v8729, 96
    %v8734 = vpop.permute.xlu0 %8733
    %8735 = vrot.lane.b32.xlu0 %v8730, 96
    %v8736 = vpop.permute.xlu0 %8735
    %v8737 = vsel %vm622, %v8732, %v8734
    %v8738 = vsel %vm622, %v8734, %v8736
    %8741 = vmatpush.msra.mxu0 %v8710
    %8742 = vmatpush.msra.mxu0 %v8709
    %8743 = vmatpush.msra.mxu0 %v8708
    %8744 = vmatpush.msra.mxu0 %v8707
    %8745 = vmatpush.msra.mxu0 %v8706
    %8746 = vmatpush.msra.mxu0 %v8705
    %8747 = vmatpush.msra.mxu0 %v8704
    %8748 = vmatpush.msra.mxu0 %v8703
    %8749 = vmatpush.msra.mxu0 %v8702
    %8750 = vmatpush.msra.mxu0 %v8701
    %8751 = vmatpush.msra.mxu0 %v8700
    %8752 = vmatpush.msra.mxu0 %v8699
    %8753 = vmatpush.msra.mxu0 %v8698
    %8754 = vmatpush.msra.mxu0 %v8697
    %8755 = vmatpush.msra.mxu0 %v8696
    %8756 = vmatpush.msra.mxu0 %v8695
    %8757 = vmatmul.f32.gmra.mxu0 %v8737
    %v8758 = vpop.f32.mrf.mxu0
    %v8759 = vadd.f32 0.0, %v8758
    %8760 = vdwg.mxu0
    %8761 = vmatpush.msra.mxu0 %v8726
    %8762 = vmatpush.msra.mxu0 %v8725
    %8763 = vmatpush.msra.mxu0 %v8724
    %8764 = vmatpush.msra.mxu0 %v8723
    %8765 = vmatpush.msra.mxu0 %v8722
    %8766 = vmatpush.msra.mxu0 %v8721
    %8767 = vmatpush.msra.mxu0 %v8720
    %8768 = vmatpush.msra.mxu0 %v8719
    %8769 = vmatpush.msra.mxu0 %v8718
    %8770 = vmatpush.msra.mxu0 %v8717
    %8771 = vmatpush.msra.mxu0 %v8716
    %8772 = vmatpush.msra.mxu0 %v8715
    %8773 = vmatpush.msra.mxu0 %v8714
    %8774 = vmatpush.msra.mxu0 %v8713
    %8775 = vmatpush.msra.mxu0 %v8712
    %8776 = vmatpush.msra.mxu0 %v8711
    %8777 = vmatmul.f32.gmra.mxu0 %v8738
    %v8778 = vpop.f32.mrf.mxu0
    %v8779 = vadd.f32 %v8759, %v8778
    %8780 = vdwg.mxu0
    %v8781 = vadd.f32 %v8691, %v8779
    %vm8782 = vcmask 73728
    %8783 = vst.msk [vmem:[#allocation3] sm:$0x1] %vm8782, %v8781
    %v8784 = vld [vmem:[%s13] sm:$0x1]
    %s8785 = scalar_lea.vmem [#allocation2], 16
    %v8786 = vld [vmem:[%s8785] ss:$8 sm:$0x7]
    %v8787 = vld [vmem:[%s12] sm:$0xff]
    %v8788 = vld [vmem:[%s12 + $0x8] sm:$0xff]
    %v8789 = vld [vmem:[%s12 + $0x10] sm:$0xff]
    %v8790 = vld [vmem:[%s12 + $0x18] sm:$0xff]
    %v8791 = vld [vmem:[%s12 + $0x20] sm:$0xff]
    %v8792 = vld [vmem:[%s12 + $0x28] sm:$0xff]
    %v8793 = vld [vmem:[%s12 + $0x30] sm:$0xff]
    %v8794 = vld [vmem:[%s12 + $0x38] sm:$0xff]
    %v8795 = vld [vmem:[%s12 + $0x40] sm:$0xff]
    %v8796 = vld [vmem:[%s12 + $0x48] sm:$0xff]
    %v8797 = vld [vmem:[%s12 + $0x50] sm:$0xff]
    %v8798 = vld [vmem:[%s12 + $0x58] sm:$0xff]
    %v8799 = vld [vmem:[%s12 + $0x60] sm:$0xff]
    %v8800 = vld [vmem:[%s12 + $0x68] sm:$0xff]
    %v8801 = vld [vmem:[%s12 + $0x70] sm:$0xff]
    %v8802 = vld [vmem:[%s12 + $0x78] sm:$0xff]
    %v8803 = vld [vmem:[%s12 + $0x80] sm:$0xff]
    %v8804 = vld [vmem:[%s12 + $0x88] sm:$0xff]
    %v8805 = vld [vmem:[%s12 + $0x90] sm:$0xff]
    %v8806 = vld [vmem:[%s12 + $0x98] sm:$0xff]
    %v8807 = vld [vmem:[%s12 + $0xa0] sm:$0xff]
    %v8808 = vld [vmem:[%s12 + $0xa8] sm:$0xff]
    %v8809 = vld [vmem:[%s12 + $0xb0] sm:$0xff]
    %v8810 = vld [vmem:[%s12 + $0xb8] sm:$0xff]
    %v8811 = vld [vmem:[%s12 + $0xc0] sm:$0xff]
    %v8812 = vld [vmem:[%s12 + $0xc8] sm:$0xff]
    %v8813 = vld [vmem:[%s12 + $0xd0] sm:$0xff]
    %v8814 = vld [vmem:[%s12 + $0xd8] sm:$0xff]
    %v8815 = vld [vmem:[%s12 + $0xe0] sm:$0xff]
    %v8816 = vld [vmem:[%s12 + $0xe8] sm:$0xff]
    %v8817 = vld [vmem:[%s12 + $0xf0] sm:$0xff]
    %v8818 = vld [vmem:[%s12 + $0xf8] sm:$0xff]
    %v8820 = vperm.slane %v8786, 0
    %v8821 = vperm.slane %v8786, 1
    %v8822 = vperm.slane %v8786, 2
    %8823 = vrot.lane.b32.xlu0 %v8820, 96
    %v8824 = vpop.permute.xlu0 %8823
    %8825 = vrot.lane.b32.xlu0 %v8821, 96
    %v8826 = vpop.permute.xlu0 %8825
    %8827 = vrot.lane.b32.xlu0 %v8822, 96
    %v8828 = vpop.permute.xlu0 %8827
    %v8829 = vsel %vm622, %v8824, %v8826
    %v8830 = vsel %vm622, %v8826, %v8828
    %8833 = vmatpush.msra.mxu0 %v8802
    %8834 = vmatpush.msra.mxu0 %v8801
    %8835 = vmatpush.msra.mxu0 %v8800
    %8836 = vmatpush.msra.mxu0 %v8799
    %8837 = vmatpush.msra.mxu0 %v8798
    %8838 = vmatpush.msra.mxu0 %v8797
    %8839 = vmatpush.msra.mxu0 %v8796
    %8840 = vmatpush.msra.mxu0 %v8795
    %8841 = vmatpush.msra.mxu0 %v8794
    %8842 = vmatpush.msra.mxu0 %v8793
    %8843 = vmatpush.msra.mxu0 %v8792
    %8844 = vmatpush.msra.mxu0 %v8791
    %8845 = vmatpush.msra.mxu0 %v8790
    %8846 = vmatpush.msra.mxu0 %v8789
    %8847 = vmatpush.msra.mxu0 %v8788
    %8848 = vmatpush.msra.mxu0 %v8787
    %8849 = vmatmul.f32.gmra.mxu0 %v8829
    %v8850 = vpop.f32.mrf.mxu0
    %v8851 = vadd.f32 0.0, %v8850
    %8852 = vdwg.mxu0
    %8853 = vmatpush.msra.mxu0 %v8818
    %8854 = vmatpush.msra.mxu0 %v8817
    %8855 = vmatpush.msra.mxu0 %v8816
    %8856 = vmatpush.msra.mxu0 %v8815
    %8857 = vmatpush.msra.mxu0 %v8814
    %8858 = vmatpush.msra.mxu0 %v8813
    %8859 = vmatpush.msra.mxu0 %v8812
    %8860 = vmatpush.msra.mxu0 %v8811
    %8861 = vmatpush.msra.mxu0 %v8810
    %8862 = vmatpush.msra.mxu0 %v8809
    %8863 = vmatpush.msra.mxu0 %v8808
    %8864 = vmatpush.msra.mxu0 %v8807
    %8865 = vmatpush.msra.mxu0 %v8806
    %8866 = vmatpush.msra.mxu0 %v8805
    %8867 = vmatpush.msra.mxu0 %v8804
    %8868 = vmatpush.msra.mxu0 %v8803
    %8869 = vmatmul.f32.gmra.mxu0 %v8830
    %v8870 = vpop.f32.mrf.mxu0
    %v8871 = vadd.f32 %v8851, %v8870
    %8872 = vdwg.mxu0
    %v8873 = vadd.f32 %v8784, %v8871
    %s8874 = scalar_lea.vmem [#allocation2], 17
    %v8875 = vld [vmem:[%s8874] ss:$8 sm:$0x7]
    %v8876 = vld [vmem:[%s8154] sm:$0xff]
    %v8877 = vld [vmem:[%s8154 + $0x8] sm:$0xff]
    %v8878 = vld [vmem:[%s8154 + $0x10] sm:$0xff]
    %v8879 = vld [vmem:[%s8154 + $0x18] sm:$0xff]
    %v8880 = vld [vmem:[%s8154 + $0x20] sm:$0xff]
    %v8881 = vld [vmem:[%s8154 + $0x28] sm:$0xff]
    %v8882 = vld [vmem:[%s8154 + $0x30] sm:$0xff]
    %v8883 = vld [vmem:[%s8154 + $0x38] sm:$0xff]
    %v8884 = vld [vmem:[%s8154 + $0x40] sm:$0xff]
    %v8885 = vld [vmem:[%s8154 + $0x48] sm:$0xff]
    %v8886 = vld [vmem:[%s8154 + $0x50] sm:$0xff]
    %v8887 = vld [vmem:[%s8154 + $0x58] sm:$0xff]
    %v8888 = vld [vmem:[%s8154 + $0x60] sm:$0xff]
    %v8889 = vld [vmem:[%s8154 + $0x68] sm:$0xff]
    %v8890 = vld [vmem:[%s8154 + $0x70] sm:$0xff]
    %v8891 = vld [vmem:[%s8154 + $0x78] sm:$0xff]
    %v8892 = vld [vmem:[%s8154 + $0x80] sm:$0xff]
    %v8893 = vld [vmem:[%s8154 + $0x88] sm:$0xff]
    %v8894 = vld [vmem:[%s8154 + $0x90] sm:$0xff]
    %v8895 = vld [vmem:[%s8154 + $0x98] sm:$0xff]
    %v8896 = vld [vmem:[%s8154 + $0xa0] sm:$0xff]
    %v8897 = vld [vmem:[%s8154 + $0xa8] sm:$0xff]
    %v8898 = vld [vmem:[%s8154 + $0xb0] sm:$0xff]
    %v8899 = vld [vmem:[%s8154 + $0xb8] sm:$0xff]
    %v8900 = vld [vmem:[%s8154 + $0xc0] sm:$0xff]
    %v8901 = vld [vmem:[%s8154 + $0xc8] sm:$0xff]
    %v8902 = vld [vmem:[%s8154 + $0xd0] sm:$0xff]
    %v8903 = vld [vmem:[%s8154 + $0xd8] sm:$0xff]
    %v8904 = vld [vmem:[%s8154 + $0xe0] sm:$0xff]
    %v8905 = vld [vmem:[%s8154 + $0xe8] sm:$0xff]
    %v8906 = vld [vmem:[%s8154 + $0xf0] sm:$0xff]
    %v8907 = vld [vmem:[%s8154 + $0xf8] sm:$0xff]
    %v8909 = vperm.slane %v8875, 0
    %v8910 = vperm.slane %v8875, 1
    %v8911 = vperm.slane %v8875, 2
    %8912 = vrot.lane.b32.xlu0 %v8909, 96
    %v8913 = vpop.permute.xlu0 %8912
    %8914 = vrot.lane.b32.xlu0 %v8910, 96
    %v8915 = vpop.permute.xlu0 %8914
    %8916 = vrot.lane.b32.xlu0 %v8911, 96
    %v8917 = vpop.permute.xlu0 %8916
    %v8918 = vsel %vm622, %v8913, %v8915
    %v8919 = vsel %vm622, %v8915, %v8917
    %8922 = vmatpush.msra.mxu0 %v8891
    %8923 = vmatpush.msra.mxu0 %v8890
    %8924 = vmatpush.msra.mxu0 %v8889
    %8925 = vmatpush.msra.mxu0 %v8888
    %8926 = vmatpush.msra.mxu0 %v8887
    %8927 = vmatpush.msra.mxu0 %v8886
    %8928 = vmatpush.msra.mxu0 %v8885
    %8929 = vmatpush.msra.mxu0 %v8884
    %8930 = vmatpush.msra.mxu0 %v8883
    %8931 = vmatpush.msra.mxu0 %v8882
    %8932 = vmatpush.msra.mxu0 %v8881
    %8933 = vmatpush.msra.mxu0 %v8880
    %8934 = vmatpush.msra.mxu0 %v8879
    %8935 = vmatpush.msra.mxu0 %v8878
    %8936 = vmatpush.msra.mxu0 %v8877
    %8937 = vmatpush.msra.mxu0 %v8876
    %8938 = vmatmul.f32.gmra.mxu0 %v8918
    %v8939 = vpop.f32.mrf.mxu0
    %v8940 = vadd.f32 0.0, %v8939
    %8941 = vdwg.mxu0
    %8942 = vmatpush.msra.mxu0 %v8907
    %8943 = vmatpush.msra.mxu0 %v8906
    %8944 = vmatpush.msra.mxu0 %v8905
    %8945 = vmatpush.msra.mxu0 %v8904
    %8946 = vmatpush.msra.mxu0 %v8903
    %8947 = vmatpush.msra.mxu0 %v8902
    %8948 = vmatpush.msra.mxu0 %v8901
    %8949 = vmatpush.msra.mxu0 %v8900
    %8950 = vmatpush.msra.mxu0 %v8899
    %8951 = vmatpush.msra.mxu0 %v8898
    %8952 = vmatpush.msra.mxu0 %v8897
    %8953 = vmatpush.msra.mxu0 %v8896
    %8954 = vmatpush.msra.mxu0 %v8895
    %8955 = vmatpush.msra.mxu0 %v8894
    %8956 = vmatpush.msra.mxu0 %v8893
    %8957 = vmatpush.msra.mxu0 %v8892
    %8958 = vmatmul.f32.gmra.mxu0 %v8919
    %v8959 = vpop.f32.mrf.mxu0
    %v8960 = vadd.f32 %v8940, %v8959
    %8961 = vdwg.mxu0
    %v8962 = vadd.f32 %v8873, %v8960
    %s8963 = scalar_lea.vmem [#allocation2], 18
    %v8964 = vld [vmem:[%s8963] ss:$8 sm:$0x7]
    %v8965 = vld [vmem:[%s8244] sm:$0xff]
    %v8966 = vld [vmem:[%s8244 + $0x8] sm:$0xff]
    %v8967 = vld [vmem:[%s8244 + $0x10] sm:$0xff]
    %v8968 = vld [vmem:[%s8244 + $0x18] sm:$0xff]
    %v8969 = vld [vmem:[%s8244 + $0x20] sm:$0xff]
    %v8970 = vld [vmem:[%s8244 + $0x28] sm:$0xff]
    %v8971 = vld [vmem:[%s8244 + $0x30] sm:$0xff]
    %v8972 = vld [vmem:[%s8244 + $0x38] sm:$0xff]
    %v8973 = vld [vmem:[%s8244 + $0x40] sm:$0xff]
    %v8974 = vld [vmem:[%s8244 + $0x48] sm:$0xff]
    %v8975 = vld [vmem:[%s8244 + $0x50] sm:$0xff]
    %v8976 = vld [vmem:[%s8244 + $0x58] sm:$0xff]
    %v8977 = vld [vmem:[%s8244 + $0x60] sm:$0xff]
    %v8978 = vld [vmem:[%s8244 + $0x68] sm:$0xff]
    %v8979 = vld [vmem:[%s8244 + $0x70] sm:$0xff]
    %v8980 = vld [vmem:[%s8244 + $0x78] sm:$0xff]
    %v8981 = vld [vmem:[%s8244 + $0x80] sm:$0xff]
    %v8982 = vld [vmem:[%s8244 + $0x88] sm:$0xff]
    %v8983 = vld [vmem:[%s8244 + $0x90] sm:$0xff]
    %v8984 = vld [vmem:[%s8244 + $0x98] sm:$0xff]
    %v8985 = vld [vmem:[%s8244 + $0xa0] sm:$0xff]
    %v8986 = vld [vmem:[%s8244 + $0xa8] sm:$0xff]
    %v8987 = vld [vmem:[%s8244 + $0xb0] sm:$0xff]
    %v8988 = vld [vmem:[%s8244 + $0xb8] sm:$0xff]
    %v8989 = vld [vmem:[%s8244 + $0xc0] sm:$0xff]
    %v8990 = vld [vmem:[%s8244 + $0xc8] sm:$0xff]
    %v8991 = vld [vmem:[%s8244 + $0xd0] sm:$0xff]
    %v8992 = vld [vmem:[%s8244 + $0xd8] sm:$0xff]
    %v8993 = vld [vmem:[%s8244 + $0xe0] sm:$0xff]
    %v8994 = vld [vmem:[%s8244 + $0xe8] sm:$0xff]
    %v8995 = vld [vmem:[%s8244 + $0xf0] sm:$0xff]
    %v8996 = vld [vmem:[%s8244 + $0xf8] sm:$0xff]
    %v8998 = vperm.slane %v8964, 0
    %v8999 = vperm.slane %v8964, 1
    %v9000 = vperm.slane %v8964, 2
    %9001 = vrot.lane.b32.xlu0 %v8998, 96
    %v9002 = vpop.permute.xlu0 %9001
    %9003 = vrot.lane.b32.xlu0 %v8999, 96
    %v9004 = vpop.permute.xlu0 %9003
    %9005 = vrot.lane.b32.xlu0 %v9000, 96
    %v9006 = vpop.permute.xlu0 %9005
    %v9007 = vsel %vm622, %v9002, %v9004
    %v9008 = vsel %vm622, %v9004, %v9006
    %9011 = vmatpush.msra.mxu0 %v8980
    %9012 = vmatpush.msra.mxu0 %v8979
    %9013 = vmatpush.msra.mxu0 %v8978
    %9014 = vmatpush.msra.mxu0 %v8977
    %9015 = vmatpush.msra.mxu0 %v8976
    %9016 = vmatpush.msra.mxu0 %v8975
    %9017 = vmatpush.msra.mxu0 %v8974
    %9018 = vmatpush.msra.mxu0 %v8973
    %9019 = vmatpush.msra.mxu0 %v8972
    %9020 = vmatpush.msra.mxu0 %v8971
    %9021 = vmatpush.msra.mxu0 %v8970
    %9022 = vmatpush.msra.mxu0 %v8969
    %9023 = vmatpush.msra.mxu0 %v8968
    %9024 = vmatpush.msra.mxu0 %v8967
    %9025 = vmatpush.msra.mxu0 %v8966
    %9026 = vmatpush.msra.mxu0 %v8965
    %9027 = vmatmul.f32.gmra.mxu0 %v9007
    %v9028 = vpop.f32.mrf.mxu0
    %v9029 = vadd.f32 0.0, %v9028
    %9030 = vdwg.mxu0
    %9031 = vmatpush.msra.mxu0 %v8996
    %9032 = vmatpush.msra.mxu0 %v8995
    %9033 = vmatpush.msra.mxu0 %v8994
    %9034 = vmatpush.msra.mxu0 %v8993
    %9035 = vmatpush.msra.mxu0 %v8992
    %9036 = vmatpush.msra.mxu0 %v8991
    %9037 = vmatpush.msra.mxu0 %v8990
    %9038 = vmatpush.msra.mxu0 %v8989
    %9039 = vmatpush.msra.mxu0 %v8988
    %9040 = vmatpush.msra.mxu0 %v8987
    %9041 = vmatpush.msra.mxu0 %v8986
    %9042 = vmatpush.msra.mxu0 %v8985
    %9043 = vmatpush.msra.mxu0 %v8984
    %9044 = vmatpush.msra.mxu0 %v8983
    %9045 = vmatpush.msra.mxu0 %v8982
    %9046 = vmatpush.msra.mxu0 %v8981
    %9047 = vmatmul.f32.gmra.mxu0 %v9008
    %v9048 = vpop.f32.mrf.mxu0
    %v9049 = vadd.f32 %v9029, %v9048
    %9050 = vdwg.mxu0
    %v9051 = vadd.f32 %v8962, %v9049
    %s9052 = scalar_lea.vmem [#allocation2], 19
    %v9053 = vld [vmem:[%s9052] ss:$8 sm:$0x7]
    %v9054 = vld [vmem:[%s8334] sm:$0xff]
    %v9055 = vld [vmem:[%s8334 + $0x8] sm:$0xff]
    %v9056 = vld [vmem:[%s8334 + $0x10] sm:$0xff]
    %v9057 = vld [vmem:[%s8334 + $0x18] sm:$0xff]
    %v9058 = vld [vmem:[%s8334 + $0x20] sm:$0xff]
    %v9059 = vld [vmem:[%s8334 + $0x28] sm:$0xff]
    %v9060 = vld [vmem:[%s8334 + $0x30] sm:$0xff]
    %v9061 = vld [vmem:[%s8334 + $0x38] sm:$0xff]
    %v9062 = vld [vmem:[%s8334 + $0x40] sm:$0xff]
    %v9063 = vld [vmem:[%s8334 + $0x48] sm:$0xff]
    %v9064 = vld [vmem:[%s8334 + $0x50] sm:$0xff]
    %v9065 = vld [vmem:[%s8334 + $0x58] sm:$0xff]
    %v9066 = vld [vmem:[%s8334 + $0x60] sm:$0xff]
    %v9067 = vld [vmem:[%s8334 + $0x68] sm:$0xff]
    %v9068 = vld [vmem:[%s8334 + $0x70] sm:$0xff]
    %v9069 = vld [vmem:[%s8334 + $0x78] sm:$0xff]
    %v9070 = vld [vmem:[%s8334 + $0x80] sm:$0xff]
    %v9071 = vld [vmem:[%s8334 + $0x88] sm:$0xff]
    %v9072 = vld [vmem:[%s8334 + $0x90] sm:$0xff]
    %v9073 = vld [vmem:[%s8334 + $0x98] sm:$0xff]
    %v9074 = vld [vmem:[%s8334 + $0xa0] sm:$0xff]
    %v9075 = vld [vmem:[%s8334 + $0xa8] sm:$0xff]
    %v9076 = vld [vmem:[%s8334 + $0xb0] sm:$0xff]
    %v9077 = vld [vmem:[%s8334 + $0xb8] sm:$0xff]
    %v9078 = vld [vmem:[%s8334 + $0xc0] sm:$0xff]
    %v9079 = vld [vmem:[%s8334 + $0xc8] sm:$0xff]
    %v9080 = vld [vmem:[%s8334 + $0xd0] sm:$0xff]
    %v9081 = vld [vmem:[%s8334 + $0xd8] sm:$0xff]
    %v9082 = vld [vmem:[%s8334 + $0xe0] sm:$0xff]
    %v9083 = vld [vmem:[%s8334 + $0xe8] sm:$0xff]
    %v9084 = vld [vmem:[%s8334 + $0xf0] sm:$0xff]
    %v9085 = vld [vmem:[%s8334 + $0xf8] sm:$0xff]
    %v9087 = vperm.slane %v9053, 0
    %v9088 = vperm.slane %v9053, 1
    %v9089 = vperm.slane %v9053, 2
    %9090 = vrot.lane.b32.xlu0 %v9087, 96
    %v9091 = vpop.permute.xlu0 %9090
    %9092 = vrot.lane.b32.xlu0 %v9088, 96
    %v9093 = vpop.permute.xlu0 %9092
    %9094 = vrot.lane.b32.xlu0 %v9089, 96
    %v9095 = vpop.permute.xlu0 %9094
    %v9096 = vsel %vm622, %v9091, %v9093
    %v9097 = vsel %vm622, %v9093, %v9095
    %9100 = vmatpush.msra.mxu0 %v9069
    %9101 = vmatpush.msra.mxu0 %v9068
    %9102 = vmatpush.msra.mxu0 %v9067
    %9103 = vmatpush.msra.mxu0 %v9066
    %9104 = vmatpush.msra.mxu0 %v9065
    %9105 = vmatpush.msra.mxu0 %v9064
    %9106 = vmatpush.msra.mxu0 %v9063
    %9107 = vmatpush.msra.mxu0 %v9062
    %9108 = vmatpush.msra.mxu0 %v9061
    %9109 = vmatpush.msra.mxu0 %v9060
    %9110 = vmatpush.msra.mxu0 %v9059
    %9111 = vmatpush.msra.mxu0 %v9058
    %9112 = vmatpush.msra.mxu0 %v9057
    %9113 = vmatpush.msra.mxu0 %v9056
    %9114 = vmatpush.msra.mxu0 %v9055
    %9115 = vmatpush.msra.mxu0 %v9054
    %9116 = vmatmul.f32.gmra.mxu0 %v9096
    %v9117 = vpop.f32.mrf.mxu0
    %v9118 = vadd.f32 0.0, %v9117
    %9119 = vdwg.mxu0
    %9120 = vmatpush.msra.mxu0 %v9085
    %9121 = vmatpush.msra.mxu0 %v9084
    %9122 = vmatpush.msra.mxu0 %v9083
    %9123 = vmatpush.msra.mxu0 %v9082
    %9124 = vmatpush.msra.mxu0 %v9081
    %9125 = vmatpush.msra.mxu0 %v9080
    %9126 = vmatpush.msra.mxu0 %v9079
    %9127 = vmatpush.msra.mxu0 %v9078
    %9128 = vmatpush.msra.mxu0 %v9077
    %9129 = vmatpush.msra.mxu0 %v9076
    %9130 = vmatpush.msra.mxu0 %v9075
    %9131 = vmatpush.msra.mxu0 %v9074
    %9132 = vmatpush.msra.mxu0 %v9073
    %9133 = vmatpush.msra.mxu0 %v9072
    %9134 = vmatpush.msra.mxu0 %v9071
    %9135 = vmatpush.msra.mxu0 %v9070
    %9136 = vmatmul.f32.gmra.mxu0 %v9097
    %v9137 = vpop.f32.mrf.mxu0
    %v9138 = vadd.f32 %v9118, %v9137
    %9139 = vdwg.mxu0
    %v9140 = vadd.f32 %v9051, %v9138
    %s9141 = scalar_lea.vmem [#allocation2], 20
    %v9142 = vld [vmem:[%s9141] ss:$8 sm:$0x7]
    %v9143 = vld [vmem:[%s8424] sm:$0xff]
    %v9144 = vld [vmem:[%s8424 + $0x8] sm:$0xff]
    %v9145 = vld [vmem:[%s8424 + $0x10] sm:$0xff]
    %v9146 = vld [vmem:[%s8424 + $0x18] sm:$0xff]
    %v9147 = vld [vmem:[%s8424 + $0x20] sm:$0xff]
    %v9148 = vld [vmem:[%s8424 + $0x28] sm:$0xff]
    %v9149 = vld [vmem:[%s8424 + $0x30] sm:$0xff]
    %v9150 = vld [vmem:[%s8424 + $0x38] sm:$0xff]
    %v9151 = vld [vmem:[%s8424 + $0x40] sm:$0xff]
    %v9152 = vld [vmem:[%s8424 + $0x48] sm:$0xff]
    %v9153 = vld [vmem:[%s8424 + $0x50] sm:$0xff]
    %v9154 = vld [vmem:[%s8424 + $0x58] sm:$0xff]
    %v9155 = vld [vmem:[%s8424 + $0x60] sm:$0xff]
    %v9156 = vld [vmem:[%s8424 + $0x68] sm:$0xff]
    %v9157 = vld [vmem:[%s8424 + $0x70] sm:$0xff]
    %v9158 = vld [vmem:[%s8424 + $0x78] sm:$0xff]
    %v9159 = vld [vmem:[%s8424 + $0x80] sm:$0xff]
    %v9160 = vld [vmem:[%s8424 + $0x88] sm:$0xff]
    %v9161 = vld [vmem:[%s8424 + $0x90] sm:$0xff]
    %v9162 = vld [vmem:[%s8424 + $0x98] sm:$0xff]
    %v9163 = vld [vmem:[%s8424 + $0xa0] sm:$0xff]
    %v9164 = vld [vmem:[%s8424 + $0xa8] sm:$0xff]
    %v9165 = vld [vmem:[%s8424 + $0xb0] sm:$0xff]
    %v9166 = vld [vmem:[%s8424 + $0xb8] sm:$0xff]
    %v9167 = vld [vmem:[%s8424 + $0xc0] sm:$0xff]
    %v9168 = vld [vmem:[%s8424 + $0xc8] sm:$0xff]
    %v9169 = vld [vmem:[%s8424 + $0xd0] sm:$0xff]
    %v9170 = vld [vmem:[%s8424 + $0xd8] sm:$0xff]
    %v9171 = vld [vmem:[%s8424 + $0xe0] sm:$0xff]
    %v9172 = vld [vmem:[%s8424 + $0xe8] sm:$0xff]
    %v9173 = vld [vmem:[%s8424 + $0xf0] sm:$0xff]
    %v9174 = vld [vmem:[%s8424 + $0xf8] sm:$0xff]
    %v9176 = vperm.slane %v9142, 0
    %v9177 = vperm.slane %v9142, 1
    %v9178 = vperm.slane %v9142, 2
    %9179 = vrot.lane.b32.xlu0 %v9176, 96
    %v9180 = vpop.permute.xlu0 %9179
    %9181 = vrot.lane.b32.xlu0 %v9177, 96
    %v9182 = vpop.permute.xlu0 %9181
    %9183 = vrot.lane.b32.xlu0 %v9178, 96
    %v9184 = vpop.permute.xlu0 %9183
    %v9185 = vsel %vm622, %v9180, %v9182
    %v9186 = vsel %vm622, %v9182, %v9184
    %9189 = vmatpush.msra.mxu0 %v9158
    %9190 = vmatpush.msra.mxu0 %v9157
    %9191 = vmatpush.msra.mxu0 %v9156
    %9192 = vmatpush.msra.mxu0 %v9155
    %9193 = vmatpush.msra.mxu0 %v9154
    %9194 = vmatpush.msra.mxu0 %v9153
    %9195 = vmatpush.msra.mxu0 %v9152
    %9196 = vmatpush.msra.mxu0 %v9151
    %9197 = vmatpush.msra.mxu0 %v9150
    %9198 = vmatpush.msra.mxu0 %v9149
    %9199 = vmatpush.msra.mxu0 %v9148
    %9200 = vmatpush.msra.mxu0 %v9147
    %9201 = vmatpush.msra.mxu0 %v9146
    %9202 = vmatpush.msra.mxu0 %v9145
    %9203 = vmatpush.msra.mxu0 %v9144
    %9204 = vmatpush.msra.mxu0 %v9143
    %9205 = vmatmul.f32.gmra.mxu0 %v9185
    %v9206 = vpop.f32.mrf.mxu0
    %v9207 = vadd.f32 0.0, %v9206
    %9208 = vdwg.mxu0
    %9209 = vmatpush.msra.mxu0 %v9174
    %9210 = vmatpush.msra.mxu0 %v9173
    %9211 = vmatpush.msra.mxu0 %v9172
    %9212 = vmatpush.msra.mxu0 %v9171
    %9213 = vmatpush.msra.mxu0 %v9170
    %9214 = vmatpush.msra.mxu0 %v9169
    %9215 = vmatpush.msra.mxu0 %v9168
    %9216 = vmatpush.msra.mxu0 %v9167
    %9217 = vmatpush.msra.mxu0 %v9166
    %9218 = vmatpush.msra.mxu0 %v9165
    %9219 = vmatpush.msra.mxu0 %v9164
    %9220 = vmatpush.msra.mxu0 %v9163
    %9221 = vmatpush.msra.mxu0 %v9162
    %9222 = vmatpush.msra.mxu0 %v9161
    %9223 = vmatpush.msra.mxu0 %v9160
    %9224 = vmatpush.msra.mxu0 %v9159
    %9225 = vmatmul.f32.gmra.mxu0 %v9186
    %v9226 = vpop.f32.mrf.mxu0
    %v9227 = vadd.f32 %v9207, %v9226
    %9228 = vdwg.mxu0
    %v9229 = vadd.f32 %v9140, %v9227
    %s9230 = scalar_lea.vmem [#allocation2], 21
    %v9231 = vld [vmem:[%s9230] ss:$8 sm:$0x7]
    %v9232 = vld [vmem:[%s8514] sm:$0xff]
    %v9233 = vld [vmem:[%s8514 + $0x8] sm:$0xff]
    %v9234 = vld [vmem:[%s8514 + $0x10] sm:$0xff]
    %v9235 = vld [vmem:[%s8514 + $0x18] sm:$0xff]
    %v9236 = vld [vmem:[%s8514 + $0x20] sm:$0xff]
    %v9237 = vld [vmem:[%s8514 + $0x28] sm:$0xff]
    %v9238 = vld [vmem:[%s8514 + $0x30] sm:$0xff]
    %v9239 = vld [vmem:[%s8514 + $0x38] sm:$0xff]
    %v9240 = vld [vmem:[%s8514 + $0x40] sm:$0xff]
    %v9241 = vld [vmem:[%s8514 + $0x48] sm:$0xff]
    %v9242 = vld [vmem:[%s8514 + $0x50] sm:$0xff]
    %v9243 = vld [vmem:[%s8514 + $0x58] sm:$0xff]
    %v9244 = vld [vmem:[%s8514 + $0x60] sm:$0xff]
    %v9245 = vld [vmem:[%s8514 + $0x68] sm:$0xff]
    %v9246 = vld [vmem:[%s8514 + $0x70] sm:$0xff]
    %v9247 = vld [vmem:[%s8514 + $0x78] sm:$0xff]
    %v9248 = vld [vmem:[%s8514 + $0x80] sm:$0xff]
    %v9249 = vld [vmem:[%s8514 + $0x88] sm:$0xff]
    %v9250 = vld [vmem:[%s8514 + $0x90] sm:$0xff]
    %v9251 = vld [vmem:[%s8514 + $0x98] sm:$0xff]
    %v9252 = vld [vmem:[%s8514 + $0xa0] sm:$0xff]
    %v9253 = vld [vmem:[%s8514 + $0xa8] sm:$0xff]
    %v9254 = vld [vmem:[%s8514 + $0xb0] sm:$0xff]
    %v9255 = vld [vmem:[%s8514 + $0xb8] sm:$0xff]
    %v9256 = vld [vmem:[%s8514 + $0xc0] sm:$0xff]
    %v9257 = vld [vmem:[%s8514 + $0xc8] sm:$0xff]
    %v9258 = vld [vmem:[%s8514 + $0xd0] sm:$0xff]
    %v9259 = vld [vmem:[%s8514 + $0xd8] sm:$0xff]
    %v9260 = vld [vmem:[%s8514 + $0xe0] sm:$0xff]
    %v9261 = vld [vmem:[%s8514 + $0xe8] sm:$0xff]
    %v9262 = vld [vmem:[%s8514 + $0xf0] sm:$0xff]
    %v9263 = vld [vmem:[%s8514 + $0xf8] sm:$0xff]
    %v9265 = vperm.slane %v9231, 0
    %v9266 = vperm.slane %v9231, 1
    %v9267 = vperm.slane %v9231, 2
    %9268 = vrot.lane.b32.xlu0 %v9265, 96
    %v9269 = vpop.permute.xlu0 %9268
    %9270 = vrot.lane.b32.xlu0 %v9266, 96
    %v9271 = vpop.permute.xlu0 %9270
    %9272 = vrot.lane.b32.xlu0 %v9267, 96
    %v9273 = vpop.permute.xlu0 %9272
    %v9274 = vsel %vm622, %v9269, %v9271
    %v9275 = vsel %vm622, %v9271, %v9273
    %9278 = vmatpush.msra.mxu0 %v9247
    %9279 = vmatpush.msra.mxu0 %v9246
    %9280 = vmatpush.msra.mxu0 %v9245
    %9281 = vmatpush.msra.mxu0 %v9244
    %9282 = vmatpush.msra.mxu0 %v9243
    %9283 = vmatpush.msra.mxu0 %v9242
    %9284 = vmatpush.msra.mxu0 %v9241
    %9285 = vmatpush.msra.mxu0 %v9240
    %9286 = vmatpush.msra.mxu0 %v9239
    %9287 = vmatpush.msra.mxu0 %v9238
    %9288 = vmatpush.msra.mxu0 %v9237
    %9289 = vmatpush.msra.mxu0 %v9236
    %9290 = vmatpush.msra.mxu0 %v9235
    %9291 = vmatpush.msra.mxu0 %v9234
    %9292 = vmatpush.msra.mxu0 %v9233
    %9293 = vmatpush.msra.mxu0 %v9232
    %9294 = vmatmul.f32.gmra.mxu0 %v9274
    %v9295 = vpop.f32.mrf.mxu0
    %v9296 = vadd.f32 0.0, %v9295
    %9297 = vdwg.mxu0
    %9298 = vmatpush.msra.mxu0 %v9263
    %9299 = vmatpush.msra.mxu0 %v9262
    %9300 = vmatpush.msra.mxu0 %v9261
    %9301 = vmatpush.msra.mxu0 %v9260
    %9302 = vmatpush.msra.mxu0 %v9259
    %9303 = vmatpush.msra.mxu0 %v9258
    %9304 = vmatpush.msra.mxu0 %v9257
    %9305 = vmatpush.msra.mxu0 %v9256
    %9306 = vmatpush.msra.mxu0 %v9255
    %9307 = vmatpush.msra.mxu0 %v9254
    %9308 = vmatpush.msra.mxu0 %v9253
    %9309 = vmatpush.msra.mxu0 %v9252
    %9310 = vmatpush.msra.mxu0 %v9251
    %9311 = vmatpush.msra.mxu0 %v9250
    %9312 = vmatpush.msra.mxu0 %v9249
    %9313 = vmatpush.msra.mxu0 %v9248
    %9314 = vmatmul.f32.gmra.mxu0 %v9275
    %v9315 = vpop.f32.mrf.mxu0
    %v9316 = vadd.f32 %v9296, %v9315
    %9317 = vdwg.mxu0
    %v9318 = vadd.f32 %v9229, %v9316
    %s9319 = scalar_lea.vmem [#allocation2], 22
    %v9320 = vld [vmem:[%s9319] ss:$8 sm:$0x7]
    %v9321 = vld [vmem:[%s8604] sm:$0xff]
    %v9322 = vld [vmem:[%s8604 + $0x8] sm:$0xff]
    %v9323 = vld [vmem:[%s8604 + $0x10] sm:$0xff]
    %v9324 = vld [vmem:[%s8604 + $0x18] sm:$0xff]
    %v9325 = vld [vmem:[%s8604 + $0x20] sm:$0xff]
    %v9326 = vld [vmem:[%s8604 + $0x28] sm:$0xff]
    %v9327 = vld [vmem:[%s8604 + $0x30] sm:$0xff]
    %v9328 = vld [vmem:[%s8604 + $0x38] sm:$0xff]
    %v9329 = vld [vmem:[%s8604 + $0x40] sm:$0xff]
    %v9330 = vld [vmem:[%s8604 + $0x48] sm:$0xff]
    %v9331 = vld [vmem:[%s8604 + $0x50] sm:$0xff]
    %v9332 = vld [vmem:[%s8604 + $0x58] sm:$0xff]
    %v9333 = vld [vmem:[%s8604 + $0x60] sm:$0xff]
    %v9334 = vld [vmem:[%s8604 + $0x68] sm:$0xff]
    %v9335 = vld [vmem:[%s8604 + $0x70] sm:$0xff]
    %v9336 = vld [vmem:[%s8604 + $0x78] sm:$0xff]
    %v9337 = vld [vmem:[%s8604 + $0x80] sm:$0xff]
    %v9338 = vld [vmem:[%s8604 + $0x88] sm:$0xff]
    %v9339 = vld [vmem:[%s8604 + $0x90] sm:$0xff]
    %v9340 = vld [vmem:[%s8604 + $0x98] sm:$0xff]
    %v9341 = vld [vmem:[%s8604 + $0xa0] sm:$0xff]
    %v9342 = vld [vmem:[%s8604 + $0xa8] sm:$0xff]
    %v9343 = vld [vmem:[%s8604 + $0xb0] sm:$0xff]
    %v9344 = vld [vmem:[%s8604 + $0xb8] sm:$0xff]
    %v9345 = vld [vmem:[%s8604 + $0xc0] sm:$0xff]
    %v9346 = vld [vmem:[%s8604 + $0xc8] sm:$0xff]
    %v9347 = vld [vmem:[%s8604 + $0xd0] sm:$0xff]
    %v9348 = vld [vmem:[%s8604 + $0xd8] sm:$0xff]
    %v9349 = vld [vmem:[%s8604 + $0xe0] sm:$0xff]
    %v9350 = vld [vmem:[%s8604 + $0xe8] sm:$0xff]
    %v9351 = vld [vmem:[%s8604 + $0xf0] sm:$0xff]
    %v9352 = vld [vmem:[%s8604 + $0xf8] sm:$0xff]
    %v9354 = vperm.slane %v9320, 0
    %v9355 = vperm.slane %v9320, 1
    %v9356 = vperm.slane %v9320, 2
    %9357 = vrot.lane.b32.xlu0 %v9354, 96
    %v9358 = vpop.permute.xlu0 %9357
    %9359 = vrot.lane.b32.xlu0 %v9355, 96
    %v9360 = vpop.permute.xlu0 %9359
    %9361 = vrot.lane.b32.xlu0 %v9356, 96
    %v9362 = vpop.permute.xlu0 %9361
    %v9363 = vsel %vm622, %v9358, %v9360
    %v9364 = vsel %vm622, %v9360, %v9362
    %9367 = vmatpush.msra.mxu0 %v9336
    %9368 = vmatpush.msra.mxu0 %v9335
    %9369 = vmatpush.msra.mxu0 %v9334
    %9370 = vmatpush.msra.mxu0 %v9333
    %9371 = vmatpush.msra.mxu0 %v9332
    %9372 = vmatpush.msra.mxu0 %v9331
    %9373 = vmatpush.msra.mxu0 %v9330
    %9374 = vmatpush.msra.mxu0 %v9329
    %9375 = vmatpush.msra.mxu0 %v9328
    %9376 = vmatpush.msra.mxu0 %v9327
    %9377 = vmatpush.msra.mxu0 %v9326
    %9378 = vmatpush.msra.mxu0 %v9325
    %9379 = vmatpush.msra.mxu0 %v9324
    %9380 = vmatpush.msra.mxu0 %v9323
    %9381 = vmatpush.msra.mxu0 %v9322
    %9382 = vmatpush.msra.mxu0 %v9321
    %9383 = vmatmul.f32.gmra.mxu0 %v9363
    %v9384 = vpop.f32.mrf.mxu0
    %v9385 = vadd.f32 0.0, %v9384
    %9386 = vdwg.mxu0
    %9387 = vmatpush.msra.mxu0 %v9352
    %9388 = vmatpush.msra.mxu0 %v9351
    %9389 = vmatpush.msra.mxu0 %v9350
    %9390 = vmatpush.msra.mxu0 %v9349
    %9391 = vmatpush.msra.mxu0 %v9348
    %9392 = vmatpush.msra.mxu0 %v9347
    %9393 = vmatpush.msra.mxu0 %v9346
    %9394 = vmatpush.msra.mxu0 %v9345
    %9395 = vmatpush.msra.mxu0 %v9344
    %9396 = vmatpush.msra.mxu0 %v9343
    %9397 = vmatpush.msra.mxu0 %v9342
    %9398 = vmatpush.msra.mxu0 %v9341
    %9399 = vmatpush.msra.mxu0 %v9340
    %9400 = vmatpush.msra.mxu0 %v9339
    %9401 = vmatpush.msra.mxu0 %v9338
    %9402 = vmatpush.msra.mxu0 %v9337
    %9403 = vmatmul.f32.gmra.mxu0 %v9364
    %v9404 = vpop.f32.mrf.mxu0
    %v9405 = vadd.f32 %v9385, %v9404
    %9406 = vdwg.mxu0
    %v9407 = vadd.f32 %v9318, %v9405
    %s9408 = scalar_lea.vmem [#allocation2], 23
    %v9409 = vld [vmem:[%s9408] ss:$8 sm:$0x7]
    %v9410 = vld [vmem:[%s8694] sm:$0xff]
    %v9411 = vld [vmem:[%s8694 + $0x8] sm:$0xff]
    %v9412 = vld [vmem:[%s8694 + $0x10] sm:$0xff]
    %v9413 = vld [vmem:[%s8694 + $0x18] sm:$0xff]
    %v9414 = vld [vmem:[%s8694 + $0x20] sm:$0xff]
    %v9415 = vld [vmem:[%s8694 + $0x28] sm:$0xff]
    %v9416 = vld [vmem:[%s8694 + $0x30] sm:$0xff]
    %v9417 = vld [vmem:[%s8694 + $0x38] sm:$0xff]
    %v9418 = vld [vmem:[%s8694 + $0x40] sm:$0xff]
    %v9419 = vld [vmem:[%s8694 + $0x48] sm:$0xff]
    %v9420 = vld [vmem:[%s8694 + $0x50] sm:$0xff]
    %v9421 = vld [vmem:[%s8694 + $0x58] sm:$0xff]
    %v9422 = vld [vmem:[%s8694 + $0x60] sm:$0xff]
    %v9423 = vld [vmem:[%s8694 + $0x68] sm:$0xff]
    %v9424 = vld [vmem:[%s8694 + $0x70] sm:$0xff]
    %v9425 = vld [vmem:[%s8694 + $0x78] sm:$0xff]
    %v9426 = vld [vmem:[%s8694 + $0x80] sm:$0xff]
    %v9427 = vld [vmem:[%s8694 + $0x88] sm:$0xff]
    %v9428 = vld [vmem:[%s8694 + $0x90] sm:$0xff]
    %v9429 = vld [vmem:[%s8694 + $0x98] sm:$0xff]
    %v9430 = vld [vmem:[%s8694 + $0xa0] sm:$0xff]
    %v9431 = vld [vmem:[%s8694 + $0xa8] sm:$0xff]
    %v9432 = vld [vmem:[%s8694 + $0xb0] sm:$0xff]
    %v9433 = vld [vmem:[%s8694 + $0xb8] sm:$0xff]
    %v9434 = vld [vmem:[%s8694 + $0xc0] sm:$0xff]
    %v9435 = vld [vmem:[%s8694 + $0xc8] sm:$0xff]
    %v9436 = vld [vmem:[%s8694 + $0xd0] sm:$0xff]
    %v9437 = vld [vmem:[%s8694 + $0xd8] sm:$0xff]
    %v9438 = vld [vmem:[%s8694 + $0xe0] sm:$0xff]
    %v9439 = vld [vmem:[%s8694 + $0xe8] sm:$0xff]
    %v9440 = vld [vmem:[%s8694 + $0xf0] sm:$0xff]
    %v9441 = vld [vmem:[%s8694 + $0xf8] sm:$0xff]
    %v9443 = vperm.slane %v9409, 0
    %v9444 = vperm.slane %v9409, 1
    %v9445 = vperm.slane %v9409, 2
    %9446 = vrot.lane.b32.xlu0 %v9443, 96
    %v9447 = vpop.permute.xlu0 %9446
    %9448 = vrot.lane.b32.xlu0 %v9444, 96
    %v9449 = vpop.permute.xlu0 %9448
    %9450 = vrot.lane.b32.xlu0 %v9445, 96
    %v9451 = vpop.permute.xlu0 %9450
    %v9452 = vsel %vm622, %v9447, %v9449
    %v9453 = vsel %vm622, %v9449, %v9451
    %9456 = vmatpush.msra.mxu0 %v9425
    %9457 = vmatpush.msra.mxu0 %v9424
    %9458 = vmatpush.msra.mxu0 %v9423
    %9459 = vmatpush.msra.mxu0 %v9422
    %9460 = vmatpush.msra.mxu0 %v9421
    %9461 = vmatpush.msra.mxu0 %v9420
    %9462 = vmatpush.msra.mxu0 %v9419
    %9463 = vmatpush.msra.mxu0 %v9418
    %9464 = vmatpush.msra.mxu0 %v9417
    %9465 = vmatpush.msra.mxu0 %v9416
    %9466 = vmatpush.msra.mxu0 %v9415
    %9467 = vmatpush.msra.mxu0 %v9414
    %9468 = vmatpush.msra.mxu0 %v9413
    %9469 = vmatpush.msra.mxu0 %v9412
    %9470 = vmatpush.msra.mxu0 %v9411
    %9471 = vmatpush.msra.mxu0 %v9410
    %9472 = vmatmul.f32.gmra.mxu0 %v9452
    %v9473 = vpop.f32.mrf.mxu0
    %v9474 = vadd.f32 0.0, %v9473
    %9475 = vdwg.mxu0
    %9476 = vmatpush.msra.mxu0 %v9441
    %9477 = vmatpush.msra.mxu0 %v9440
    %9478 = vmatpush.msra.mxu0 %v9439
    %9479 = vmatpush.msra.mxu0 %v9438
    %9480 = vmatpush.msra.mxu0 %v9437
    %9481 = vmatpush.msra.mxu0 %v9436
    %9482 = vmatpush.msra.mxu0 %v9435
    %9483 = vmatpush.msra.mxu0 %v9434
    %9484 = vmatpush.msra.mxu0 %v9433
    %9485 = vmatpush.msra.mxu0 %v9432
    %9486 = vmatpush.msra.mxu0 %v9431
    %9487 = vmatpush.msra.mxu0 %v9430
    %9488 = vmatpush.msra.mxu0 %v9429
    %9489 = vmatpush.msra.mxu0 %v9428
    %9490 = vmatpush.msra.mxu0 %v9427
    %9491 = vmatpush.msra.mxu0 %v9426
    %9492 = vmatmul.f32.gmra.mxu0 %v9453
    %v9493 = vpop.f32.mrf.mxu0
    %v9494 = vadd.f32 %v9474, %v9493
    %9495 = vdwg.mxu0
    %v9496 = vadd.f32 %v9407, %v9494
    %9497 = vst.msk [vmem:[#allocation3 + $0x1] sm:$0x1] %vm8782, %v9496
    // Predicated region
    $region58: #{forward.1} parent=1 // pred_check
      _
    $region59: #{forward.1} parent=1 // pred_check_branch
      %9499 = sbr.rel (0) target = $region61
    $region60: #{forward.1} parent=1 // pred_region
      %9501 = vsyncadd [#allocation4], 0
      %s9503 = sshll.u32 [#allocation3], 4
      %s9504 = int_to_ptr.vmem [resolvable:$true] %s9503
      %s9505 = sshll.u32 %s14, 4
      %s9506 = int_to_ptr.hbm [resolvable:$true] %s9505
      %9508 = dma.vmem_to_hbm [thread:$0]  %s9504, 32, %s9506, [#allocation4]
    $region61: #{forward.1} parent=1 // pred_fallthru
      _
    // Predicated region
    $region62: #{forward.1} parent=1 // pred_check
      _
    $region63: #{forward.1} parent=1 // pred_check_branch
      %9510 = sbr.rel (0) target = $region65
    $region64: #{forward.1} parent=1 // pred_region
      %9512 = dma.done [#allocation4], 32
    $region65: #{forward.1} parent=1 // pred_fallthru
      _
    %9513 = vsyncpa [#allocation4], 1

</llo_original>
